<compile_context>
chip_gen: v7x
topology: tpu7x:2x2x1
jax: 0.10.0
libtpu: 0.0.40
codegen_flags: <defaults>
</compile_context>

<pallas_src>
import jax
import jax.numpy as jnp
from jax.experimental import pallas as pl
from jax.experimental.pallas import tpu as pltpu


def _leaky(z):
    # LeakyReLU(negative_slope=0.2); valid since slope < 1.
    return jnp.maximum(z, 0.2 * z)


def _disc_kernel(x_ref,
                 s1, v1, c1, s2, v2, c2, s3, v3, c3, s4, v4, c4,
                 w5, b5, w6, b6, w7, b7, w8, b8,
                 out_ref):
    """Whole Discriminator forward for one sample.

    x_ref : (1, H, W)               input image (Cin == 1)
    s*    : (kH*Ho, Hin)            0/1 row-selection (stride + H-pad folded in)
    v*    : (kH, Win*Cin, Wo*Cout)  conv weights with kx / W-pad / stride folded in
    c*    : (1, Wo*Cout)            conv bias tiled along Wo
    w*/b* : FC weights (in, out) / biases (1, out)
    out_ref: (1, 1, 11)             logits
    """

    def conv(a, s_ref, v_ref, c_ref):
        kh = v_ref.shape[0]
        ho = s_ref.shape[0] // kh
        # Gather all kH strided row-sets of `a` with one matmul:
        # (kH*Ho, Hin) @ (Hin, Win*Cin) -> (kH*Ho, Win*Cin)
        rows = jnp.dot(s_ref[...], a, preferred_element_type=jnp.float32)
        # One big-K matmul per ky tap, accumulated in f32.
        acc = jnp.dot(rows[0:ho, :], v_ref[0],
                      preferred_element_type=jnp.float32)
        for k in range(1, kh):
            acc = acc + jnp.dot(rows[k * ho:(k + 1) * ho, :], v_ref[k],
                                preferred_element_type=jnp.float32)
        return _leaky(acc + c_ref[...])           # (Ho, Wo*Cout)

    def fc(a, w_ref, b_ref, act):
        z = jnp.dot(a, w_ref[...], preferred_element_type=jnp.float32) + b_ref[...]
        return _leaky(z) if act else z

    a = x_ref[0]                  # (28, 28)  == (H, W*Cin) with Cin = 1
    a = conv(a, s1, v1, c1)       # (14, 14*32)
    # TODO(synk): dropout = identity (eval mode).
    a = conv(a, s2, v2, c2)       # (8,  8*64)
    a = conv(a, s3, v3, c3)       # (4,  4*128)
    a = conv(a, s4, v4, c4)       # (1,  256)  == flattened conv features
    a = fc(a, w5, b5, True)       # (1, 128)
    a = fc(a, w6, b6, True)       # (1, 64)
    a = fc(a, w7, b7, True)       # (1, 32)
    out_ref[0] = fc(a, w8, b8, False)   # (1, 11)


def _conv_factors(w_hwio, b, hin, win, stride, pad):
    """Fold a strided/padded conv into (S, V, bias_tiled) matmul factors.

    With activations stored unpadded as A[h, w*Cin + ci]:
        conv_out[y, x*Cout + co] = sum_ky ((S_ky @ A) @ V_ky)[y, x*Cout + co] + b[co]
    """
    kh, kw, cin, cout = w_hwio.shape
    ho = (hin + 2 * pad - kh) // stride + 1
    wo = (win + 2 * pad - kw) // stride + 1

    ky = jnp.arange(kh)[:, None, None]
    yy = jnp.arange(ho)[None, :, None]
    hh = jnp.arange(hin)[None, None, :]
    S = (stride * yy + ky - pad == hh).astype(jnp.float32)       # (kh, ho, hin)
    S = S.reshape(kh * ho, hin)

    ww = jnp.arange(win)[:, None, None]
    kx = jnp.arange(kw)[None, :, None]
    xx = jnp.arange(wo)[None, None, :]
    T = (ww + pad - stride * xx == kx).astype(jnp.float32)       # (win, kw, wo)
    V = jnp.einsum("wkx,ykio->ywixo", T, w_hwio)                 # (kh, win, cin, wo, cout)
    V = V.reshape(kh, win * cin, wo * cout)

    bt = jnp.tile(b, wo).reshape(1, wo * cout)
    return S, V, bt, ho, wo


def discriminator_forward(x_nchw, params):
    """Forward pass of the Discriminator. Accepts NCHW float32 (N, 1, 28, 28)."""
    N, C, H, W = x_nchw.shape
    assert C == 1, "first conv expects a single input channel"
    x2d = x_nchw.reshape(N, H, W).astype(jnp.float32)    # (N, H, W*Cin), Cin = 1

    conv_cfg = (("w1", "b1", 2, 1),
                ("w2", "b2", 2, 2),
                ("w3", "b3", 2, 1),
                ("w4", "b4", 1, 0))
    conv_inputs, conv_specs = [], []
    hin, win = H, W
    for wname, bname, stride, pad in conv_cfg:
        S, V, bt, hin, win = _conv_factors(params[wname], params[bname],
                                           hin, win, stride, pad)
        conv_inputs += [S, V, bt]
        conv_specs += [pl.BlockSpec(S.shape, lambda n: (0, 0)),
                       pl.BlockSpec(V.shape, lambda n: (0, 0, 0)),
                       pl.BlockSpec(bt.shape, lambda n: (0, 0))]
    assert hin == 1 and win == 1, "conv trunk must reduce spatial dims to 1x1"

    fc_inputs = []
    for wname, bname in (("w5", "b5"), ("w6", "b6"), ("w7", "b7"), ("w8", "b8")):
        fc_inputs += [params[wname], params[bname].reshape(1, -1)]
    fc_specs = [pl.BlockSpec(a.shape, lambda n: (0, 0)) for a in fc_inputs]

    # Advisory cost estimate (matmul flops + operand bytes) for the XLA scheduler.
    flops = 0
    for S, V in zip(conv_inputs[0::3], conv_inputs[1::3]):
        kh, kdim, ndim = V.shape
        ho = S.shape[0] // kh
        flops += 2 * S.shape[0] * S.shape[1] * kdim      # S @ A
        flops += 2 * kh * ho * kdim * ndim               # rows @ V_ky
    for wname in ("w5", "w6", "w7", "w8"):
        flops += 2 * params[wname].shape[0] * params[wname].shape[1]
    flops *= N
    bytes_accessed = 4 * (int(x2d.size)
                          + sum(int(a.size) for a in conv_inputs)
                          + sum(int(a.size) for a in fc_inputs)
                          + N * 11)

    out = pl.pallas_call(
        _disc_kernel,
        out_shape=jax.ShapeDtypeStruct((N, 1, 11), jnp.float32),
        grid=(N,),
        in_specs=[pl.BlockSpec((1, H, W), lambda n: (n, 0, 0))]
                 + conv_specs + fc_specs,
        out_specs=pl.BlockSpec((1, 1, 11), lambda n: (n, 0, 0)),
        compiler_params=pltpu.CompilerParams(
            dimension_semantics=("parallel",),
            vmem_limit_bytes=32 * 1024 * 1024),
        cost_estimate=pl.CostEstimate(flops=int(flops), transcendentals=0,
                                      bytes_accessed=int(bytes_accessed)),
    )(x2d, *conv_inputs, *fc_inputs)

    return out.reshape(N, 11)


def _reference(x_nchw, params):
    """Pure-JAX reference matching the PyTorch forward (dropout = identity)."""
    x = jnp.transpose(x_nchw, (0, 2, 3, 1))    # NHWC

    def conv(inp, w, b, stride, pad):
        y = jax.lax.conv_general_dilated(
            inp, w, window_strides=(stride, stride),
            padding=((pad, pad), (pad, pad)),
            dimension_numbers=("NHWC", "HWIO", "NHWC"))
        return y + b

    h = _leaky(conv(x, params["w1"], params["b1"], 2, 1))
    h = _leaky(conv(h, params["w2"], params["b2"], 2, 2))
    h = _leaky(conv(h, params["w3"], params["b3"], 2, 1))
    h = _leaky(conv(h, params["w4"], params["b4"], 1, 0))
    h = h.reshape(h.shape[0], -1)              # (N, 256); H = W = 1 so order matches torch
    h = _leaky(h @ params["w5"] + params["b5"])
    h = _leaky(h @ params["w6"] + params["b6"])
    h = _leaky(h @ params["w7"] + params["b7"])
    return h @ params["w8"] + params["b8"]


def make_params(key):
    shapes = {
        "w1": (4, 4, 1, 32),    "b1": (32,),
        "w2": (4, 4, 32, 64),   "b2": (64,),
        "w3": (4, 4, 64, 128),  "b3": (128,),
        "w4": (4, 4, 128, 256), "b4": (256,),
        "w5": (256, 128),       "b5": (128,),
        "w6": (128, 64),        "b6": (64,),
        "w7": (64, 32),         "b7": (32,),
        "w8": (32, 11),         "b8": (11,),
    }
    keys = jax.random.split(key, len(shapes))
    params = {}
    for (name, shape), k in zip(shapes.items(), keys):
        if name.startswith("w"):
            fan_in = 1
            for d in shape[:-1]:
                fan_in *= d
            params[name] = jax.random.normal(k, shape, jnp.float32) / jnp.sqrt(
                jnp.float32(fan_in))
        else:
            params[name] = 0.1 * jax.random.normal(k, shape, jnp.float32)
    return params


if __name__ == "__main__":
    key = jax.random.PRNGKey(0)
    kx, kp = jax.random.split(key)

    # Shapes implied by the module: conv4(k=4) + fc1(256) require 28x28x1 input.
    N = 2
    x = jax.random.normal(kx, (N, 1, 28, 28), jnp.float32)   # NCHW, PyTorch convention
    params = make_params(kp)

    out = jax.block_until_ready(discriminator_forward(x, params))
    ref = jax.block_until_ready(_reference(x, params))

    assert out.shape == (N, 11), out.shape
    max_err = jnp.max(jnp.abs(out - ref))
    assert jnp.allclose(out, ref, atol=1e-3, rtol=1e-3), f"max abs err = {max_err}"

    print("KERNEL_OK")
</pallas_src>

<mosaic_0001>
module attributes {stable_mosaic.version = 11 : i64} {
  func.func @_disc_kernel(%arg0: i32, %arg1: memref<1x28x28xf32, #tpu.memory_space<vmem>>, %arg2: memref<56x28xf32, #tpu.memory_space<vmem>>, %arg3: memref<4x28x448xf32, #tpu.memory_space<vmem>>, %arg4: memref<1x448xf32, #tpu.memory_space<vmem>>, %arg5: memref<32x14xf32, #tpu.memory_space<vmem>>, %arg6: memref<4x448x512xf32, #tpu.memory_space<vmem>>, %arg7: memref<1x512xf32, #tpu.memory_space<vmem>>, %arg8: memref<16x8xf32, #tpu.memory_space<vmem>>, %arg9: memref<4x512x512xf32, #tpu.memory_space<vmem>>, %arg10: memref<1x512xf32, #tpu.memory_space<vmem>>, %arg11: memref<4x4xf32, #tpu.memory_space<vmem>>, %arg12: memref<4x512x256xf32, #tpu.memory_space<vmem>>, %arg13: memref<1x256xf32, #tpu.memory_space<vmem>>, %arg14: memref<256x128xf32, #tpu.memory_space<vmem>>, %arg15: memref<1x128xf32, #tpu.memory_space<vmem>>, %arg16: memref<128x64xf32, #tpu.memory_space<vmem>>, %arg17: memref<1x64xf32, #tpu.memory_space<vmem>>, %arg18: memref<64x32xf32, #tpu.memory_space<vmem>>, %arg19: memref<1x32xf32, #tpu.memory_space<vmem>>, %arg20: memref<32x11xf32, #tpu.memory_space<vmem>>, %arg21: memref<1x11xf32, #tpu.memory_space<vmem>>, %arg22: memref<1x1x11xf32, #tpu.memory_space<vmem>>) attributes {dimension_semantics = [#tpu.dimension_semantics<parallel>], iteration_bounds = array<i64: 2>, scalar_prefetch = 0 : i64, scratch_operands = 0 : i64, tpu.core_type = #tpu.core_type<tc>, window_params = [{transform_indices = @transform_0, window_bounds = array<i64: 1, 28, 28>}, {pipeline_mode = #tpu.pipeline_mode<synchronous>, transform_indices = @transform_1, window_bounds = array<i64: 56, 28>}, {pipeline_mode = #tpu.pipeline_mode<synchronous>, transform_indices = @transform_2, window_bounds = array<i64: 4, 28, 448>}, {pipeline_mode = #tpu.pipeline_mode<synchronous>, transform_indices = @transform_3, window_bounds = array<i64: 1, 448>}, {pipeline_mode = #tpu.pipeline_mode<synchronous>, transform_indices = @transform_4, window_bounds = array<i64: 32, 14>}, {pipeline_mode = #tpu.pipeline_mode<synchronous>, transform_indices = @transform_5, window_bounds = array<i64: 4, 448, 512>}, {pipeline_mode = #tpu.pipeline_mode<synchronous>, transform_indices = @transform_6, window_bounds = array<i64: 1, 512>}, {pipeline_mode = #tpu.pipeline_mode<synchronous>, transform_indices = @transform_7, window_bounds = array<i64: 16, 8>}, {pipeline_mode = #tpu.pipeline_mode<synchronous>, transform_indices = @transform_8, window_bounds = array<i64: 4, 512, 512>}, {pipeline_mode = #tpu.pipeline_mode<synchronous>, transform_indices = @transform_9, window_bounds = array<i64: 1, 512>}, {pipeline_mode = #tpu.pipeline_mode<synchronous>, transform_indices = @transform_10, window_bounds = array<i64: 4, 4>}, {pipeline_mode = #tpu.pipeline_mode<synchronous>, transform_indices = @transform_11, window_bounds = array<i64: 4, 512, 256>}, {pipeline_mode = #tpu.pipeline_mode<synchronous>, transform_indices = @transform_12, window_bounds = array<i64: 1, 256>}, {pipeline_mode = #tpu.pipeline_mode<synchronous>, transform_indices = @transform_13, window_bounds = array<i64: 256, 128>}, {pipeline_mode = #tpu.pipeline_mode<synchronous>, transform_indices = @transform_14, window_bounds = array<i64: 1, 128>}, {pipeline_mode = #tpu.pipeline_mode<synchronous>, transform_indices = @transform_15, window_bounds = array<i64: 128, 64>}, {pipeline_mode = #tpu.pipeline_mode<synchronous>, transform_indices = @transform_16, window_bounds = array<i64: 1, 64>}, {pipeline_mode = #tpu.pipeline_mode<synchronous>, transform_indices = @transform_17, window_bounds = array<i64: 64, 32>}, {pipeline_mode = #tpu.pipeline_mode<synchronous>, transform_indices = @transform_18, window_bounds = array<i64: 1, 32>}, {pipeline_mode = #tpu.pipeline_mode<synchronous>, transform_indices = @transform_19, window_bounds = array<i64: 32, 11>}, {pipeline_mode = #tpu.pipeline_mode<synchronous>, transform_indices = @transform_20, window_bounds = array<i64: 1, 11>}, {transform_indices = @transform_21, window_bounds = array<i64: 1, 1, 11>}]} {
    %c0 = arith.constant 0 : index
    %c0_0 = arith.constant 0 : index
    %c0_1 = arith.constant 0 : index
    %0 = vector.load %arg1[%c0, %c0_0, %c0_1] : memref<1x28x28xf32, #tpu.memory_space<vmem>>, vector<1x28x28xf32>
    %1 = vector.shape_cast %0 : vector<1x28x28xf32> to vector<28x28xf32>
    %c0_2 = arith.constant 0 : index
    %c0_3 = arith.constant 0 : index
    %2 = vector.load %arg2[%c0_2, %c0_3] : memref<56x28xf32, #tpu.memory_space<vmem>>, vector<56x28xf32>
    %cst = arith.constant dense<0.000000e+00> : vector<56x28xf32>
    %3 = tpu.matmul %2, %1, %cst {dimension_numbers = #tpu.dot_dimension_numbers<[1], [0], [0], [1], [0, 0, 1, 1], [], []>} : vector<56x28xf32>, vector<28x28xf32>, vector<56x28xf32> -> vector<56x28xf32>
    %4 = vector.extract_strided_slice %3 {offsets = [0, 0], sizes = [14, 28], strides = [1, 1]} : vector<56x28xf32> to vector<14x28xf32>
    %c0_4 = arith.constant 0 : index
    %c0_5 = arith.constant 0 : index
    %c0_6 = arith.constant 0 : index
    %5 = vector.load %arg3[%c0_4, %c0_5, %c0_6] : memref<4x28x448xf32, #tpu.memory_space<vmem>>, vector<1x28x448xf32>
    %6 = vector.shape_cast %5 : vector<1x28x448xf32> to vector<28x448xf32>
    %cst_7 = arith.constant dense<0.000000e+00> : vector<14x448xf32>
    %7 = tpu.matmul %4, %6, %cst_7 {dimension_numbers = #tpu.dot_dimension_numbers<[1], [0], [0], [1], [0, 0, 1, 1], [], []>} : vector<14x28xf32>, vector<28x448xf32>, vector<14x448xf32> -> vector<14x448xf32>
    %8 = vector.extract_strided_slice %3 {offsets = [14, 0], sizes = [14, 28], strides = [1, 1]} : vector<56x28xf32> to vector<14x28xf32>
    %c1 = arith.constant 1 : index
    %c0_8 = arith.constant 0 : index
    %c0_9 = arith.constant 0 : index
    %9 = vector.load %arg3[%c1, %c0_8, %c0_9] : memref<4x28x448xf32, #tpu.memory_space<vmem>>, vector<1x28x448xf32>
    %10 = vector.shape_cast %9 : vector<1x28x448xf32> to vector<28x448xf32>
    %cst_10 = arith.constant dense<0.000000e+00> : vector<14x448xf32>
    %11 = tpu.matmul %8, %10, %cst_10 {dimension_numbers = #tpu.dot_dimension_numbers<[1], [0], [0], [1], [0, 0, 1, 1], [], []>} : vector<14x28xf32>, vector<28x448xf32>, vector<14x448xf32> -> vector<14x448xf32>
    %12 = arith.addf %7, %11 : vector<14x448xf32>
    %13 = vector.extract_strided_slice %3 {offsets = [28, 0], sizes = [14, 28], strides = [1, 1]} : vector<56x28xf32> to vector<14x28xf32>
    %c2 = arith.constant 2 : index
    %c0_11 = arith.constant 0 : index
    %c0_12 = arith.constant 0 : index
    %14 = vector.load %arg3[%c2, %c0_11, %c0_12] : memref<4x28x448xf32, #tpu.memory_space<vmem>>, vector<1x28x448xf32>
    %15 = vector.shape_cast %14 : vector<1x28x448xf32> to vector<28x448xf32>
    %cst_13 = arith.constant dense<0.000000e+00> : vector<14x448xf32>
    %16 = tpu.matmul %13, %15, %cst_13 {dimension_numbers = #tpu.dot_dimension_numbers<[1], [0], [0], [1], [0, 0, 1, 1], [], []>} : vector<14x28xf32>, vector<28x448xf32>, vector<14x448xf32> -> vector<14x448xf32>
    %17 = arith.addf %12, %16 : vector<14x448xf32>
    %18 = vector.extract_strided_slice %3 {offsets = [42, 0], sizes = [14, 28], strides = [1, 1]} : vector<56x28xf32> to vector<14x28xf32>
    %c3 = arith.constant 3 : index
    %c0_14 = arith.constant 0 : index
    %c0_15 = arith.constant 0 : index
    %19 = vector.load %arg3[%c3, %c0_14, %c0_15] : memref<4x28x448xf32, #tpu.memory_space<vmem>>, vector<1x28x448xf32>
    %20 = vector.shape_cast %19 : vector<1x28x448xf32> to vector<28x448xf32>
    %cst_16 = arith.constant dense<0.000000e+00> : vector<14x448xf32>
    %21 = tpu.matmul %18, %20, %cst_16 {dimension_numbers = #tpu.dot_dimension_numbers<[1], [0], [0], [1], [0, 0, 1, 1], [], []>} : vector<14x28xf32>, vector<28x448xf32>, vector<14x448xf32> -> vector<14x448xf32>
    %22 = arith.addf %17, %21 : vector<14x448xf32>
    %c0_17 = arith.constant 0 : index
    %c0_18 = arith.constant 0 : index
    %23 = vector.load %arg4[%c0_17, %c0_18] : memref<1x448xf32, #tpu.memory_space<vmem>>, vector<1x448xf32>
    %24 = vector.broadcast %23 : vector<1x448xf32> to vector<14x448xf32>
    %25 = arith.addf %22, %24 : vector<14x448xf32>
    %cst_19 = arith.constant 2.000000e-01 : f32
    %26 = vector.broadcast %cst_19 : f32 to vector<14x448xf32>
    %27 = arith.mulf %26, %25 : vector<14x448xf32>
    %28 = arith.maximumf %25, %27 : vector<14x448xf32>
    %c0_20 = arith.constant 0 : index
    %c0_21 = arith.constant 0 : index
    %29 = vector.load %arg5[%c0_20, %c0_21] : memref<32x14xf32, #tpu.memory_space<vmem>>, vector<32x14xf32>
    %cst_22 = arith.constant dense<0.000000e+00> : vector<32x448xf32>
    %30 = tpu.matmul %29, %28, %cst_22 {dimension_numbers = #tpu.dot_dimension_numbers<[1], [0], [0], [1], [0, 0, 1, 1], [], []>} : vector<32x14xf32>, vector<14x448xf32>, vector<32x448xf32> -> vector<32x448xf32>
    %31 = vector.extract_strided_slice %30 {offsets = [0, 0], sizes = [8, 448], strides = [1, 1]} : vector<32x448xf32> to vector<8x448xf32>
    %c0_23 = arith.constant 0 : index
    %c0_24 = arith.constant 0 : index
    %c0_25 = arith.constant 0 : index
    %32 = vector.load %arg6[%c0_23, %c0_24, %c0_25] : memref<4x448x512xf32, #tpu.memory_space<vmem>>, vector<1x448x512xf32>
    %33 = vector.shape_cast %32 : vector<1x448x512xf32> to vector<448x512xf32>
    %cst_26 = arith.constant dense<0.000000e+00> : vector<8x512xf32>
    %34 = tpu.matmul %31, %33, %cst_26 {dimension_numbers = #tpu.dot_dimension_numbers<[1], [0], [0], [1], [0, 0, 1, 1], [], []>} : vector<8x448xf32>, vector<448x512xf32>, vector<8x512xf32> -> vector<8x512xf32>
    %35 = vector.extract_strided_slice %30 {offsets = [8, 0], sizes = [8, 448], strides = [1, 1]} : vector<32x448xf32> to vector<8x448xf32>
    %c1_27 = arith.constant 1 : index
    %c0_28 = arith.constant 0 : index
    %c0_29 = arith.constant 0 : index
    %36 = vector.load %arg6[%c1_27, %c0_28, %c0_29] : memref<4x448x512xf32, #tpu.memory_space<vmem>>, vector<1x448x512xf32>
    %37 = vector.shape_cast %36 : vector<1x448x512xf32> to vector<448x512xf32>
    %cst_30 = arith.constant dense<0.000000e+00> : vector<8x512xf32>
    %38 = tpu.matmul %35, %37, %cst_30 {dimension_numbers = #tpu.dot_dimension_numbers<[1], [0], [0], [1], [0, 0, 1, 1], [], []>} : vector<8x448xf32>, vector<448x512xf32>, vector<8x512xf32> -> vector<8x512xf32>
    %39 = arith.addf %34, %38 : vector<8x512xf32>
    %40 = vector.extract_strided_slice %30 {offsets = [16, 0], sizes = [8, 448], strides = [1, 1]} : vector<32x448xf32> to vector<8x448xf32>
    %c2_31 = arith.constant 2 : index
    %c0_32 = arith.constant 0 : index
    %c0_33 = arith.constant 0 : index
    %41 = vector.load %arg6[%c2_31, %c0_32, %c0_33] : memref<4x448x512xf32, #tpu.memory_space<vmem>>, vector<1x448x512xf32>
    %42 = vector.shape_cast %41 : vector<1x448x512xf32> to vector<448x512xf32>
    %cst_34 = arith.constant dense<0.000000e+00> : vector<8x512xf32>
    %43 = tpu.matmul %40, %42, %cst_34 {dimension_numbers = #tpu.dot_dimension_numbers<[1], [0], [0], [1], [0, 0, 1, 1], [], []>} : vector<8x448xf32>, vector<448x512xf32>, vector<8x512xf32> -> vector<8x512xf32>
    %44 = arith.addf %39, %43 : vector<8x512xf32>
    %45 = vector.extract_strided_slice %30 {offsets = [24, 0], sizes = [8, 448], strides = [1, 1]} : vector<32x448xf32> to vector<8x448xf32>
    %c3_35 = arith.constant 3 : index
    %c0_36 = arith.constant 0 : index
    %c0_37 = arith.constant 0 : index
    %46 = vector.load %arg6[%c3_35, %c0_36, %c0_37] : memref<4x448x512xf32, #tpu.memory_space<vmem>>, vector<1x448x512xf32>
    %47 = vector.shape_cast %46 : vector<1x448x512xf32> to vector<448x512xf32>
    %cst_38 = arith.constant dense<0.000000e+00> : vector<8x512xf32>
    %48 = tpu.matmul %45, %47, %cst_38 {dimension_numbers = #tpu.dot_dimension_numbers<[1], [0], [0], [1], [0, 0, 1, 1], [], []>} : vector<8x448xf32>, vector<448x512xf32>, vector<8x512xf32> -> vector<8x512xf32>
    %49 = arith.addf %44, %48 : vector<8x512xf32>
    %c0_39 = arith.constant 0 : index
    %c0_40 = arith.constant 0 : index
    %50 = vector.load %arg7[%c0_39, %c0_40] : memref<1x512xf32, #tpu.memory_space<vmem>>, vector<1x512xf32>
    %51 = vector.broadcast %50 : vector<1x512xf32> to vector<8x512xf32>
    %52 = arith.addf %49, %51 : vector<8x512xf32>
    %cst_41 = arith.constant 2.000000e-01 : f32
    %53 = vector.broadcast %cst_41 : f32 to vector<8x512xf32>
    %54 = arith.mulf %53, %52 : vector<8x512xf32>
    %55 = arith.maximumf %52, %54 : vector<8x512xf32>
    %c0_42 = arith.constant 0 : index
    %c0_43 = arith.constant 0 : index
    %56 = vector.load %arg8[%c0_42, %c0_43] : memref<16x8xf32, #tpu.memory_space<vmem>>, vector<16x8xf32>
    %cst_44 = arith.constant dense<0.000000e+00> : vector<16x512xf32>
    %57 = tpu.matmul %56, %55, %cst_44 {dimension_numbers = #tpu.dot_dimension_numbers<[1], [0], [0], [1], [0, 0, 1, 1], [], []>} : vector<16x8xf32>, vector<8x512xf32>, vector<16x512xf32> -> vector<16x512xf32>
    %58 = vector.extract_strided_slice %57 {offsets = [0, 0], sizes = [4, 512], strides = [1, 1]} : vector<16x512xf32> to vector<4x512xf32>
    %c0_45 = arith.constant 0 : index
    %c0_46 = arith.constant 0 : index
    %c0_47 = arith.constant 0 : index
    %59 = vector.load %arg9[%c0_45, %c0_46, %c0_47] : memref<4x512x512xf32, #tpu.memory_space<vmem>>, vector<1x512x512xf32>
    %60 = vector.shape_cast %59 : vector<1x512x512xf32> to vector<512x512xf32>
    %cst_48 = arith.constant dense<0.000000e+00> : vector<4x512xf32>
    %61 = tpu.matmul %58, %60, %cst_48 {dimension_numbers = #tpu.dot_dimension_numbers<[1], [0], [0], [1], [0, 0, 1, 1], [], []>} : vector<4x512xf32>, vector<512x512xf32>, vector<4x512xf32> -> vector<4x512xf32>
    %62 = vector.extract_strided_slice %57 {offsets = [4, 0], sizes = [4, 512], strides = [1, 1]} : vector<16x512xf32> to vector<4x512xf32>
    %c1_49 = arith.constant 1 : index
    %c0_50 = arith.constant 0 : index
    %c0_51 = arith.constant 0 : index
    %63 = vector.load %arg9[%c1_49, %c0_50, %c0_51] : memref<4x512x512xf32, #tpu.memory_space<vmem>>, vector<1x512x512xf32>
    %64 = vector.shape_cast %63 : vector<1x512x512xf32> to vector<512x512xf32>
    %cst_52 = arith.constant dense<0.000000e+00> : vector<4x512xf32>
    %65 = tpu.matmul %62, %64, %cst_52 {dimension_numbers = #tpu.dot_dimension_numbers<[1], [0], [0], [1], [0, 0, 1, 1], [], []>} : vector<4x512xf32>, vector<512x512xf32>, vector<4x512xf32> -> vector<4x512xf32>
    %66 = arith.addf %61, %65 : vector<4x512xf32>
    %67 = vector.extract_strided_slice %57 {offsets = [8, 0], sizes = [4, 512], strides = [1, 1]} : vector<16x512xf32> to vector<4x512xf32>
    %c2_53 = arith.constant 2 : index
    %c0_54 = arith.constant 0 : index
    %c0_55 = arith.constant 0 : index
    %68 = vector.load %arg9[%c2_53, %c0_54, %c0_55] : memref<4x512x512xf32, #tpu.memory_space<vmem>>, vector<1x512x512xf32>
    %69 = vector.shape_cast %68 : vector<1x512x512xf32> to vector<512x512xf32>
    %cst_56 = arith.constant dense<0.000000e+00> : vector<4x512xf32>
    %70 = tpu.matmul %67, %69, %cst_56 {dimension_numbers = #tpu.dot_dimension_numbers<[1], [0], [0], [1], [0, 0, 1, 1], [], []>} : vector<4x512xf32>, vector<512x512xf32>, vector<4x512xf32> -> vector<4x512xf32>
    %71 = arith.addf %66, %70 : vector<4x512xf32>
    %72 = vector.extract_strided_slice %57 {offsets = [12, 0], sizes = [4, 512], strides = [1, 1]} : vector<16x512xf32> to vector<4x512xf32>
    %c3_57 = arith.constant 3 : index
    %c0_58 = arith.constant 0 : index
    %c0_59 = arith.constant 0 : index
    %73 = vector.load %arg9[%c3_57, %c0_58, %c0_59] : memref<4x512x512xf32, #tpu.memory_space<vmem>>, vector<1x512x512xf32>
    %74 = vector.shape_cast %73 : vector<1x512x512xf32> to vector<512x512xf32>
    %cst_60 = arith.constant dense<0.000000e+00> : vector<4x512xf32>
    %75 = tpu.matmul %72, %74, %cst_60 {dimension_numbers = #tpu.dot_dimension_numbers<[1], [0], [0], [1], [0, 0, 1, 1], [], []>} : vector<4x512xf32>, vector<512x512xf32>, vector<4x512xf32> -> vector<4x512xf32>
    %76 = arith.addf %71, %75 : vector<4x512xf32>
    %c0_61 = arith.constant 0 : index
    %c0_62 = arith.constant 0 : index
    %77 = vector.load %arg10[%c0_61, %c0_62] : memref<1x512xf32, #tpu.memory_space<vmem>>, vector<1x512xf32>
    %78 = vector.broadcast %77 : vector<1x512xf32> to vector<4x512xf32>
    %79 = arith.addf %76, %78 : vector<4x512xf32>
    %cst_63 = arith.constant 2.000000e-01 : f32
    %80 = vector.broadcast %cst_63 : f32 to vector<4x512xf32>
    %81 = arith.mulf %80, %79 : vector<4x512xf32>
    %82 = arith.maximumf %79, %81 : vector<4x512xf32>
    %c0_64 = arith.constant 0 : index
    %c0_65 = arith.constant 0 : index
    %83 = vector.load %arg11[%c0_64, %c0_65] : memref<4x4xf32, #tpu.memory_space<vmem>>, vector<4x4xf32>
    %cst_66 = arith.constant dense<0.000000e+00> : vector<4x512xf32>
    %84 = tpu.matmul %83, %82, %cst_66 {dimension_numbers = #tpu.dot_dimension_numbers<[1], [0], [0], [1], [0, 0, 1, 1], [], []>} : vector<4x4xf32>, vector<4x512xf32>, vector<4x512xf32> -> vector<4x512xf32>
    %85 = vector.extract_strided_slice %84 {offsets = [0, 0], sizes = [1, 512], strides = [1, 1]} : vector<4x512xf32> to vector<1x512xf32>
    %c0_67 = arith.constant 0 : index
    %c0_68 = arith.constant 0 : index
    %c0_69 = arith.constant 0 : index
    %86 = vector.load %arg12[%c0_67, %c0_68, %c0_69] : memref<4x512x256xf32, #tpu.memory_space<vmem>>, vector<1x512x256xf32>
    %87 = vector.shape_cast %86 : vector<1x512x256xf32> to vector<512x256xf32>
    %cst_70 = arith.constant dense<0.000000e+00> : vector<1x256xf32>
    %88 = tpu.matmul %85, %87, %cst_70 {dimension_numbers = #tpu.dot_dimension_numbers<[1], [0], [0], [1], [0, 0, 1, 1], [], []>} : vector<1x512xf32>, vector<512x256xf32>, vector<1x256xf32> -> vector<1x256xf32>
    %89 = vector.extract_strided_slice %84 {offsets = [1, 0], sizes = [1, 512], strides = [1, 1]} : vector<4x512xf32> to vector<1x512xf32>
    %c1_71 = arith.constant 1 : index
    %c0_72 = arith.constant 0 : index
    %c0_73 = arith.constant 0 : index
    %90 = vector.load %arg12[%c1_71, %c0_72, %c0_73] : memref<4x512x256xf32, #tpu.memory_space<vmem>>, vector<1x512x256xf32>
    %91 = vector.shape_cast %90 : vector<1x512x256xf32> to vector<512x256xf32>
    %cst_74 = arith.constant dense<0.000000e+00> : vector<1x256xf32>
    %92 = tpu.matmul %89, %91, %cst_74 {dimension_numbers = #tpu.dot_dimension_numbers<[1], [0], [0], [1], [0, 0, 1, 1], [], []>} : vector<1x512xf32>, vector<512x256xf32>, vector<1x256xf32> -> vector<1x256xf32>
    %93 = arith.addf %88, %92 : vector<1x256xf32>
    %94 = vector.extract_strided_slice %84 {offsets = [2, 0], sizes = [1, 512], strides = [1, 1]} : vector<4x512xf32> to vector<1x512xf32>
    %c2_75 = arith.constant 2 : index
    %c0_76 = arith.constant 0 : index
    %c0_77 = arith.constant 0 : index
    %95 = vector.load %arg12[%c2_75, %c0_76, %c0_77] : memref<4x512x256xf32, #tpu.memory_space<vmem>>, vector<1x512x256xf32>
    %96 = vector.shape_cast %95 : vector<1x512x256xf32> to vector<512x256xf32>
    %cst_78 = arith.constant dense<0.000000e+00> : vector<1x256xf32>
    %97 = tpu.matmul %94, %96, %cst_78 {dimension_numbers = #tpu.dot_dimension_numbers<[1], [0], [0], [1], [0, 0, 1, 1], [], []>} : vector<1x512xf32>, vector<512x256xf32>, vector<1x256xf32> -> vector<1x256xf32>
    %98 = arith.addf %93, %97 : vector<1x256xf32>
    %99 = vector.extract_strided_slice %84 {offsets = [3, 0], sizes = [1, 512], strides = [1, 1]} : vector<4x512xf32> to vector<1x512xf32>
    %c3_79 = arith.constant 3 : index
    %c0_80 = arith.constant 0 : index
    %c0_81 = arith.constant 0 : index
    %100 = vector.load %arg12[%c3_79, %c0_80, %c0_81] : memref<4x512x256xf32, #tpu.memory_space<vmem>>, vector<1x512x256xf32>
    %101 = vector.shape_cast %100 : vector<1x512x256xf32> to vector<512x256xf32>
    %cst_82 = arith.constant dense<0.000000e+00> : vector<1x256xf32>
    %102 = tpu.matmul %99, %101, %cst_82 {dimension_numbers = #tpu.dot_dimension_numbers<[1], [0], [0], [1], [0, 0, 1, 1], [], []>} : vector<1x512xf32>, vector<512x256xf32>, vector<1x256xf32> -> vector<1x256xf32>
    %103 = arith.addf %98, %102 : vector<1x256xf32>
    %c0_83 = arith.constant 0 : index
    %c0_84 = arith.constant 0 : index
    %104 = vector.load %arg13[%c0_83, %c0_84] : memref<1x256xf32, #tpu.memory_space<vmem>>, vector<1x256xf32>
    %105 = arith.addf %103, %104 : vector<1x256xf32>
    %cst_85 = arith.constant 2.000000e-01 : f32
    %106 = vector.broadcast %cst_85 : f32 to vector<1x256xf32>
    %107 = arith.mulf %106, %105 : vector<1x256xf32>
    %108 = arith.maximumf %105, %107 : vector<1x256xf32>
    %c0_86 = arith.constant 0 : index
    %c0_87 = arith.constant 0 : index
    %109 = vector.load %arg14[%c0_86, %c0_87] : memref<256x128xf32, #tpu.memory_space<vmem>>, vector<256x128xf32>
    %cst_88 = arith.constant dense<0.000000e+00> : vector<1x128xf32>
    %110 = tpu.matmul %108, %109, %cst_88 {dimension_numbers = #tpu.dot_dimension_numbers<[1], [0], [0], [1], [0, 0, 1, 1], [], []>} : vector<1x256xf32>, vector<256x128xf32>, vector<1x128xf32> -> vector<1x128xf32>
    %c0_89 = arith.constant 0 : index
    %c0_90 = arith.constant 0 : index
    %111 = vector.load %arg15[%c0_89, %c0_90] : memref<1x128xf32, #tpu.memory_space<vmem>>, vector<1x128xf32>
    %112 = arith.addf %110, %111 : vector<1x128xf32>
    %cst_91 = arith.constant 2.000000e-01 : f32
    %113 = vector.broadcast %cst_91 : f32 to vector<1x128xf32>
    %114 = arith.mulf %113, %112 : vector<1x128xf32>
    %115 = arith.maximumf %112, %114 : vector<1x128xf32>
    %c0_92 = arith.constant 0 : index
    %c0_93 = arith.constant 0 : index
    %116 = vector.load %arg16[%c0_92, %c0_93] : memref<128x64xf32, #tpu.memory_space<vmem>>, vector<128x64xf32>
    %cst_94 = arith.constant dense<0.000000e+00> : vector<1x64xf32>
    %117 = tpu.matmul %115, %116, %cst_94 {dimension_numbers = #tpu.dot_dimension_numbers<[1], [0], [0], [1], [0, 0, 1, 1], [], []>} : vector<1x128xf32>, vector<128x64xf32>, vector<1x64xf32> -> vector<1x64xf32>
    %c0_95 = arith.constant 0 : index
    %c0_96 = arith.constant 0 : index
    %118 = vector.load %arg17[%c0_95, %c0_96] : memref<1x64xf32, #tpu.memory_space<vmem>>, vector<1x64xf32>
    %119 = arith.addf %117, %118 : vector<1x64xf32>
    %cst_97 = arith.constant 2.000000e-01 : f32
    %120 = vector.broadcast %cst_97 : f32 to vector<1x64xf32>
    %121 = arith.mulf %120, %119 : vector<1x64xf32>
    %122 = arith.maximumf %119, %121 : vector<1x64xf32>
    %c0_98 = arith.constant 0 : index
    %c0_99 = arith.constant 0 : index
    %123 = vector.load %arg18[%c0_98, %c0_99] : memref<64x32xf32, #tpu.memory_space<vmem>>, vector<64x32xf32>
    %cst_100 = arith.constant dense<0.000000e+00> : vector<1x32xf32>
    %124 = tpu.matmul %122, %123, %cst_100 {dimension_numbers = #tpu.dot_dimension_numbers<[1], [0], [0], [1], [0, 0, 1, 1], [], []>} : vector<1x64xf32>, vector<64x32xf32>, vector<1x32xf32> -> vector<1x32xf32>
    %c0_101 = arith.constant 0 : index
    %c0_102 = arith.constant 0 : index
    %125 = vector.load %arg19[%c0_101, %c0_102] : memref<1x32xf32, #tpu.memory_space<vmem>>, vector<1x32xf32>
    %126 = arith.addf %124, %125 : vector<1x32xf32>
    %cst_103 = arith.constant 2.000000e-01 : f32
    %127 = vector.broadcast %cst_103 : f32 to vector<1x32xf32>
    %128 = arith.mulf %127, %126 : vector<1x32xf32>
    %129 = arith.maximumf %126, %128 : vector<1x32xf32>
    %c0_104 = arith.constant 0 : index
    %c0_105 = arith.constant 0 : index
    %130 = vector.load %arg20[%c0_104, %c0_105] : memref<32x11xf32, #tpu.memory_space<vmem>>, vector<32x11xf32>
    %cst_106 = arith.constant dense<0.000000e+00> : vector<1x11xf32>
    %131 = tpu.matmul %129, %130, %cst_106 {dimension_numbers = #tpu.dot_dimension_numbers<[1], [0], [0], [1], [0, 0, 1, 1], [], []>} : vector<1x32xf32>, vector<32x11xf32>, vector<1x11xf32> -> vector<1x11xf32>
    %c0_107 = arith.constant 0 : index
    %c0_108 = arith.constant 0 : index
    %132 = vector.load %arg21[%c0_107, %c0_108] : memref<1x11xf32, #tpu.memory_space<vmem>>, vector<1x11xf32>
    %133 = arith.addf %131, %132 : vector<1x11xf32>
    %c0_109 = arith.constant 0 : index
    %c0_110 = arith.constant 0 : index
    %c0_111 = arith.constant 0 : index
    %134 = vector.load %arg22[%c0_109, %c0_110, %c0_111] : memref<1x1x11xf32, #tpu.memory_space<vmem>>, vector<1x1x11xf32>
    %135 = vector.shape_cast %134 : vector<1x1x11xf32> to vector<1x11xf32>
    %136 = vector.shape_cast %133 : vector<1x11xf32> to vector<1x1x11xf32>
    tpu.vector_store %arg22[%c0_109, %c0_110, %c0_111], %136 {strides = array<i32>} : memref<1x1x11xf32, #tpu.memory_space<vmem>>, vector<1x1x11xf32>,
    return
  }
  func.func @transform_0(%arg0: i32) -> (i32, i32, i32) {
    %c0_i32 = arith.constant 0 : i32
    %c0_i32_0 = arith.constant 0 : i32
    %c0_i32_1 = arith.constant 0 : i32
    return %arg0, %c0_i32, %c0_i32_0 : i32, i32, i32
  }
  func.func @transform_1(%arg0: i32) -> (i32, i32) {
    %c0_i32 = arith.constant 0 : i32
    %c0_i32_0 = arith.constant 0 : i32
    %c0_i32_1 = arith.constant 0 : i32
    return %c0_i32, %c0_i32_0 : i32, i32
  }
  func.func @transform_2(%arg0: i32) -> (i32, i32, i32) {
    %c0_i32 = arith.constant 0 : i32
    %c0_i32_0 = arith.constant 0 : i32
    %c0_i32_1 = arith.constant 0 : i32
    %c0_i32_2 = arith.constant 0 : i32
    return %c0_i32, %c0_i32_0, %c0_i32_1 : i32, i32, i32
  }
  func.func @transform_3(%arg0: i32) -> (i32, i32) {
    %c0_i32 = arith.constant 0 : i32
    %c0_i32_0 = arith.constant 0 : i32
    %c0_i32_1 = arith.constant 0 : i32
    return %c0_i32, %c0_i32_0 : i32, i32
  }
  func.func @transform_4(%arg0: i32) -> (i32, i32) {
    %c0_i32 = arith.constant 0 : i32
    %c0_i32_0 = arith.constant 0 : i32
    %c0_i32_1 = arith.constant 0 : i32
    return %c0_i32, %c0_i32_0 : i32, i32
  }
  func.func @transform_5(%arg0: i32) -> (i32, i32, i32) {
    %c0_i32 = arith.constant 0 : i32
    %c0_i32_0 = arith.constant 0 : i32
    %c0_i32_1 = arith.constant 0 : i32
    %c0_i32_2 = arith.constant 0 : i32
    return %c0_i32, %c0_i32_0, %c0_i32_1 : i32, i32, i32
  }
  func.func @transform_6(%arg0: i32) -> (i32, i32) {
    %c0_i32 = arith.constant 0 : i32
    %c0_i32_0 = arith.constant 0 : i32
    %c0_i32_1 = arith.constant 0 : i32
    return %c0_i32, %c0_i32_0 : i32, i32
  }
  func.func @transform_7(%arg0: i32) -> (i32, i32) {
    %c0_i32 = arith.constant 0 : i32
    %c0_i32_0 = arith.constant 0 : i32
    %c0_i32_1 = arith.constant 0 : i32
    return %c0_i32, %c0_i32_0 : i32, i32
  }
  func.func @transform_8(%arg0: i32) -> (i32, i32, i32) {
    %c0_i32 = arith.constant 0 : i32
    %c0_i32_0 = arith.constant 0 : i32
    %c0_i32_1 = arith.constant 0 : i32
    %c0_i32_2 = arith.constant 0 : i32
    return %c0_i32, %c0_i32_0, %c0_i32_1 : i32, i32, i32
  }
  func.func @transform_9(%arg0: i32) -> (i32, i32) {
    %c0_i32 = arith.constant 0 : i32
    %c0_i32_0 = arith.constant 0 : i32
    %c0_i32_1 = arith.constant 0 : i32
    return %c0_i32, %c0_i32_0 : i32, i32
  }
  func.func @transform_10(%arg0: i32) -> (i32, i32) {
    %c0_i32 = arith.constant 0 : i32
    %c0_i32_0 = arith.constant 0 : i32
    %c0_i32_1 = arith.constant 0 : i32
    return %c0_i32, %c0_i32_0 : i32, i32
  }
  func.func @transform_11(%arg0: i32) -> (i32, i32, i32) {
    %c0_i32 = arith.constant 0 : i32
    %c0_i32_0 = arith.constant 0 : i32
    %c0_i32_1 = arith.constant 0 : i32
    %c0_i32_2 = arith.constant 0 : i32
    return %c0_i32, %c0_i32_0, %c0_i32_1 : i32, i32, i32
  }
  func.func @transform_12(%arg0: i32) -> (i32, i32) {
    %c0_i32 = arith.constant 0 : i32
    %c0_i32_0 = arith.constant 0 : i32
    %c0_i32_1 = arith.constant 0 : i32
    return %c0_i32, %c0_i32_0 : i32, i32
  }
  func.func @transform_13(%arg0: i32) -> (i32, i32) {
    %c0_i32 = arith.constant 0 : i32
    %c0_i32_0 = arith.constant 0 : i32
    %c0_i32_1 = arith.constant 0 : i32
    return %c0_i32, %c0_i32_0 : i32, i32
  }
  func.func @transform_14(%arg0: i32) -> (i32, i32) {
    %c0_i32 = arith.constant 0 : i32
    %c0_i32_0 = arith.constant 0 : i32
    %c0_i32_1 = arith.constant 0 : i32
    return %c0_i32, %c0_i32_0 : i32, i32
  }
  func.func @transform_15(%arg0: i32) -> (i32, i32) {
    %c0_i32 = arith.constant 0 : i32
    %c0_i32_0 = arith.constant 0 : i32
    %c0_i32_1 = arith.constant 0 : i32
    return %c0_i32, %c0_i32_0 : i32, i32
  }
  func.func @transform_16(%arg0: i32) -> (i32, i32) {
    %c0_i32 = arith.constant 0 : i32
    %c0_i32_0 = arith.constant 0 : i32
    %c0_i32_1 = arith.constant 0 : i32
    return %c0_i32, %c0_i32_0 : i32, i32
  }
  func.func @transform_17(%arg0: i32) -> (i32, i32) {
    %c0_i32 = arith.constant 0 : i32
    %c0_i32_0 = arith.constant 0 : i32
    %c0_i32_1 = arith.constant 0 : i32
    return %c0_i32, %c0_i32_0 : i32, i32
  }
  func.func @transform_18(%arg0: i32) -> (i32, i32) {
    %c0_i32 = arith.constant 0 : i32
    %c0_i32_0 = arith.constant 0 : i32
    %c0_i32_1 = arith.constant 0 : i32
    return %c0_i32, %c0_i32_0 : i32, i32
  }
  func.func @transform_19(%arg0: i32) -> (i32, i32) {
    %c0_i32 = arith.constant 0 : i32
    %c0_i32_0 = arith.constant 0 : i32
    %c0_i32_1 = arith.constant 0 : i32
    return %c0_i32, %c0_i32_0 : i32, i32
  }
  func.func @transform_20(%arg0: i32) -> (i32, i32) {
    %c0_i32 = arith.constant 0 : i32
    %c0_i32_0 = arith.constant 0 : i32
    %c0_i32_1 = arith.constant 0 : i32
    return %c0_i32, %c0_i32_0 : i32, i32
  }
  func.func @transform_21(%arg0: i32) -> (i32, i32, i32) {
    %c0_i32 = arith.constant 0 : i32
    %c0_i32_0 = arith.constant 0 : i32
    %c0_i32_1 = arith.constant 0 : i32
    return %arg0, %c0_i32, %c0_i32_0 : i32, i32, i32
  }
}

</mosaic_0001>

<llo_original>
// kernel: tpu_custom_call.1
$region0: #{tpu_custom_call.1}
  #allocation0 [shape = 'u32[]', space=smem, size = 0x4, offset = 0x4, fixed_abs, tag = 'smem constant byte address 0x4 - core index']
  #allocation1 [shape = 'u32[144,128]{1,0:T(1,128)}', space=vmem, size = 0x12000, scoped, tag = 'internal scratch']
  %s0 = inlined_call_operand.vmem [shape: f32[2,28,28], index: 0, kind: input, shape index: {}]
  %s1 = inlined_call_operand.vmem [shape: f32[56,28], index: 1, kind: input, shape index: {}]
  %s2 = inlined_call_operand.vmem [shape: f32[4,28,448], index: 2, kind: input, shape index: {}]
  %s3 = inlined_call_operand.hbm [shape: f32[1,448], index: 3, kind: input, shape index: {}]
  %s4 = inlined_call_operand.vmem [shape: f32[32,14], index: 4, kind: input, shape index: {}]
  %s5 = inlined_call_operand.hbm [shape: f32[4,448,512], index: 5, kind: input, shape index: {}]
  %s6 = inlined_call_operand.hbm [shape: f32[1,512], index: 6, kind: input, shape index: {}]
  %s7 = inlined_call_operand.vmem [shape: f32[16,8], index: 7, kind: input, shape index: {}]
  %s8 = inlined_call_operand.hbm [shape: f32[4,512,512], index: 8, kind: input, shape index: {}]
  %s9 = inlined_call_operand.hbm [shape: f32[1,512], index: 9, kind: input, shape index: {}]
  %s10 = inlined_call_operand.hbm [shape: f32[4,4], index: 10, kind: input, shape index: {}]
  %s11 = inlined_call_operand.hbm [shape: f32[4,512,256], index: 11, kind: input, shape index: {}]
  %s12 = inlined_call_operand.hbm [shape: f32[1,256], index: 12, kind: input, shape index: {}]
  %s13 = inlined_call_operand.hbm [shape: f32[256,128], index: 13, kind: input, shape index: {}]
  %s14 = inlined_call_operand.hbm [shape: f32[1,128], index: 14, kind: input, shape index: {}]
  %s15 = inlined_call_operand.vmem [shape: f32[128,64], index: 15, kind: input, shape index: {}]
  %s16 = inlined_call_operand.hbm [shape: f32[1,64], index: 16, kind: input, shape index: {}]
  %s17 = inlined_call_operand.vmem [shape: f32[64,32], index: 17, kind: input, shape index: {}]
  %s18 = inlined_call_operand.hbm [shape: f32[1,32], index: 18, kind: input, shape index: {}]
  %s19 = inlined_call_operand.vmem [shape: f32[32,11], index: 19, kind: input, shape index: {}]
  %s20 = inlined_call_operand.hbm [shape: f32[1,11], index: 20, kind: input, shape index: {}]
  %s21 = inlined_call_operand.hbm [shape: f32[2,1,11], index: 21, kind: output, shape index: {}]
  %s22 = sld [smem:[#allocation0]]
  $region169: #{tpu_custom_call.1} parent=0
    _
  %s24 = ssub.s32 1, %s22
  %s25 = scalar_select 0, %s24, %s22
  $region1: #{tpu_custom_call.1} parent=0
    #allocation2 [shape = 'u8[2048]{0}', space=vmem, size = 0x800, scoped, tag = 'input window, operand 3, single buffered']
    #allocation3 [shape = 's32[2]{0}', space=sflag, size = 0x8, scoped, tag = 'scoped memory for tpu_custom_call.1']
    #allocation4 [shape = 's32[2]{0}', space=sflag, size = 0x8, scoped, tag = 'scoped memory for tpu_custom_call.1']
    #allocation5 [shape = 'u8[3670016]{0}', space=vmem, size = 0x380000, scoped, tag = 'input window, operand 5, single buffered']
    #allocation6 [shape = 's32[1]{0}', space=sflag, size = 0x4, scoped, tag = 'scoped memory for tpu_custom_call.1']
    #allocation7 [shape = 'u8[2048]{0}', space=vmem, size = 0x800, scoped, tag = 'input window, operand 6, single buffered']
    #allocation8 [shape = 'u8[4194304]{0}', space=vmem, size = 0x400000, scoped, tag = 'input window, operand 8, single buffered']
    #allocation9 [shape = 's32[1]{0}', space=sflag, size = 0x4, scoped, tag = 'scoped memory for tpu_custom_call.1']
    #allocation10 [shape = 'u8[2048]{0}', space=vmem, size = 0x800, scoped, tag = 'input window, operand 9, single buffered']
    #allocation11 [shape = 'u8[2048]{0}', space=vmem, size = 0x800, scoped, tag = 'input window, operand 10, single buffered']
    #allocation12 [shape = 's32[1]{0}', space=sflag, size = 0x4, scoped, tag = 'scoped memory for tpu_custom_call.1']
    #allocation13 [shape = 'u8[2097152]{0}', space=vmem, size = 0x200000, scoped, tag = 'input window, operand 11, single buffered']
    #allocation14 [shape = 'u8[1024]{0}', space=vmem, size = 0x400, scoped, tag = 'input window, operand 12, single buffered']
    #allocation15 [shape = 's32[1]{0}', space=sflag, size = 0x4, scoped, tag = 'scoped memory for tpu_custom_call.1']
    #allocation16 [shape = 'u8[131072]{0}', space=vmem, size = 0x20000, scoped, tag = 'input window, operand 13, single buffered']
    #allocation17 [shape = 'u8[512]{0}', space=vmem, size = 0x400, scoped, tag = 'input window, operand 14, single buffered']
    #allocation18 [shape = 's32[1]{0}', space=sflag, size = 0x4, scoped, tag = 'scoped memory for tpu_custom_call.1']
    #allocation19 [shape = 'u8[512]{0}', space=vmem, size = 0x400, scoped, tag = 'input window, operand 16, single buffered']
    #allocation20 [shape = 'u8[512]{0}', space=vmem, size = 0x400, scoped, tag = 'input window, operand 18, single buffered']
    #allocation21 [shape = 's32[1]{0}', space=sflag, size = 0x4, scoped, tag = 'scoped memory for tpu_custom_call.1']
    #allocation22 [shape = 'u8[512]{0}', space=vmem, size = 0x400, scoped, tag = 'input window, operand 20, single buffered']
    #allocation23 [shape = 'u8[1024]{0}', space=vmem, size = 0x400, scoped, tag = 'output window, operand 0']
    %26 = vsyncpa [#allocation3], 0
    %27 = vsyncpa [#allocation6], 0
    %28 = vsyncpa [#allocation9], 0
    %29 = vsyncpa [#allocation12], 0
    %30 = vsyncpa [#allocation15], 0
    %31 = vsyncpa [#allocation18], 0
    %32 = vsyncpa [#allocation21], 0
    %33 = vsyncpa [#allocation4], 0
    %s34 = scalar_lea.sflag [#allocation4], 1
    %35 = vsyncpa %s34, 0
    loop: start=0, step=1, limit=4
    $region2: #{tpu_custom_call.1} parent=1 // loop_pre_header
      _
    $region3: #{tpu_custom_call.1} parent=1 // loop_header
      %s37 = sphi 0, %s41
      %p38 = scmp.ge.s32.totalorder %s37, 4
      %s47 = sphi 0, %s49
      %s50 = sphi 0, %s47
      %s51 = sphi 0, %s50
      %s67 = sphi 0, %s51
      %s71 = sphi 0, %s71
      %s73 = sphi 0, %s71
      %s74 = sphi 0, %s73
      %s88 = sphi 0, %s74
      %s92 = sphi 0, %s92
      %s94 = sphi 0, %s92
      %s95 = sphi 0, %s94
      %s109 = sphi 0, %s95
      %s113 = sphi 0, %s113
      %s115 = sphi 0, %s113
      %s116 = sphi 0, %s115
      %s130 = sphi 0, %s116
      %s134 = sphi 0, %s134
      %s136 = sphi 0, %s134
      %s137 = sphi 0, %s136
      %s151 = sphi 0, %s137
      %s155 = sphi 0, %s155
      %s157 = sphi 0, %s155
      %s158 = sphi 0, %s157
      %s172 = sphi 0, %s158
      %s176 = sphi 0, %s176
      %s178 = sphi 0, %s176
      %s179 = sphi 0, %s178
      %s193 = sphi 0, %s179
      %s197 = sphi 0, %s197
      %s199 = sphi 0, %s197
      %s200 = sphi 0, %s199
      %s214 = sphi 0, %s200
      %s218 = sphi 0, %s218
      %s220 = sphi 0, %s218
      %s221 = sphi 0, %s220
      %s235 = sphi 0, %s221
      %s239 = sphi 0, %s239
      %s241 = sphi 0, %s239
      %s242 = sphi 0, %s241
      %s256 = sphi 0, %s242
      %s260 = sphi 0, %s260
      %s262 = sphi 0, %s260
      %s263 = sphi 0, %s262
      %s277 = sphi 0, %s263
      %s281 = sphi 0, %s281
      %s283 = sphi 0, %s281
      %s284 = sphi 0, %s283
      %s298 = sphi 0, %s284
      %s302 = sphi 0, %s302
      %s304 = sphi 0, %s302
      %s305 = sphi 0, %s304
      %s319 = sphi 0, %s305
      %s323 = sphi 0, %s323
      %s325 = sphi 0, %s323
      %s326 = sphi 0, %s325
      %s340 = sphi 0, %s326
      %s344 = sphi 0, %s344
      %s346 = sphi 0, %s344
      %s347 = sphi 0, %s346
      %s361 = sphi 0, %s347
      %s365 = sphi 0, %s365
      %s367 = sphi 0, %s365
      %s368 = sphi 0, %s367
      %s382 = sphi 0, %s368
      %s386 = sphi 0, %s386
      %s388 = sphi 0, %s386
      %s389 = sphi 0, %s388
      %s403 = sphi 0, %s389
      %s407 = sphi 0, %s407
      %s409 = sphi 0, %s407
      %s410 = sphi 0, %s409
      %s424 = sphi 0, %s410
      %s428 = sphi 0, %s428
      %s430 = sphi 0, %s428
      %s431 = sphi 0, %s430
      %s445 = sphi 0, %s431
      %s449 = sphi 0, %s449
      %s451 = sphi 0, %s449
      %s452 = sphi 0, %s451
      %s466 = sphi 0, %s452
      %s470 = sphi 0, %s470
      %s472 = sphi 0, %s470
      %s473 = sphi 0, %s472
      %s487 = sphi 0, %s473
      %s493 = sphi 0, %s495
      %s496 = sphi 0, %s493
      %s497 = sphi 0, %s496
      %s513 = sphi 0, %s497
    $region4: #{tpu_custom_call.1} parent=1 // loop_header_branch
      %40 = sbr.rel (%p38) target = $region8
    $region5: #{tpu_custom_call.1} parent=1 // loop_body
      %s42 = ssub.s32 %s37, 1
      %s43 = ssub.s32 %s37, 2
      %s44 = sadd.s32 %s37, 1
      %s45 = ssub.s32 %s37, %s44
      %p46 = scmp.eq.s32.totalorder %s45, 0
      %s48 = sadd.s32 %s47, 1
      %s49 = scalar_select %p46, %s47, %s48
      %p52 = pneg %p46
      %p53 = scmp.eq.s32.totalorder %s37, 1
      %p54 = por %p52, %p53
      %p55 = scmp.ne.s32.totalorder %s47, %s50
      %p56 = scmp.eq.s32.totalorder %s37, 0
      %p57 = por %p55, %p56
      %p58 = scmp.ne.s32.totalorder %s47, %s50
      %p59 = scmp.eq.s32.totalorder %s42, 1
      %p60 = por %p58, %p59
      %p61 = scmp.ne.s32.totalorder %s50, %s51
      %p62 = scmp.eq.s32.totalorder %s42, 0
      %p63 = por %p61, %p62
      %p64 = scmp.ne.s32.totalorder %s50, %s51
      %p65 = scmp.eq.s32.totalorder %s43, 1
      %p66 = por %p64, %p65
      %p68 = scmp.ne.s32.totalorder %s51, %s67
      %p69 = scmp.eq.s32.totalorder %s43, 0
      %p70 = por %p68, %p69
      %s72 = sadd.s32 %s71, 1
      %p75 = scmp.eq.s32.totalorder %s37, 1
      %p76 = scmp.ne.s32.totalorder %s71, %s73
      %p77 = scmp.eq.s32.totalorder %s37, 0
      %p78 = por %p76, %p77
      %p79 = scmp.ne.s32.totalorder %s71, %s73
      %p80 = scmp.eq.s32.totalorder %s42, 1
      %p81 = por %p79, %p80
      %p82 = scmp.ne.s32.totalorder %s73, %s74
      %p83 = scmp.eq.s32.totalorder %s42, 0
      %p84 = por %p82, %p83
      %p85 = scmp.ne.s32.totalorder %s73, %s74
      %p86 = scmp.eq.s32.totalorder %s43, 1
      %p87 = por %p85, %p86
      %p89 = scmp.ne.s32.totalorder %s74, %s88
      %p90 = scmp.eq.s32.totalorder %s43, 0
      %p91 = por %p89, %p90
      %s93 = sadd.s32 %s92, 1
      %p96 = scmp.eq.s32.totalorder %s37, 1
      %p97 = scmp.ne.s32.totalorder %s92, %s94
      %p98 = scmp.eq.s32.totalorder %s37, 0
      %p99 = por %p97, %p98
      %p100 = scmp.ne.s32.totalorder %s92, %s94
      %p101 = scmp.eq.s32.totalorder %s42, 1
      %p102 = por %p100, %p101
      %p103 = scmp.ne.s32.totalorder %s94, %s95
      %p104 = scmp.eq.s32.totalorder %s42, 0
      %p105 = por %p103, %p104
      %p106 = scmp.ne.s32.totalorder %s94, %s95
      %p107 = scmp.eq.s32.totalorder %s43, 1
      %p108 = por %p106, %p107
      %p110 = scmp.ne.s32.totalorder %s95, %s109
      %p111 = scmp.eq.s32.totalorder %s43, 0
      %p112 = por %p110, %p111
      %s114 = sadd.s32 %s113, 1
      %p117 = scmp.eq.s32.totalorder %s37, 1
      %p118 = scmp.ne.s32.totalorder %s113, %s115
      %p119 = scmp.eq.s32.totalorder %s37, 0
      %p120 = por %p118, %p119
      %p121 = scmp.ne.s32.totalorder %s113, %s115
      %p122 = scmp.eq.s32.totalorder %s42, 1
      %p123 = por %p121, %p122
      %p124 = scmp.ne.s32.totalorder %s115, %s116
      %p125 = scmp.eq.s32.totalorder %s42, 0
      %p126 = por %p124, %p125
      %p127 = scmp.ne.s32.totalorder %s115, %s116
      %p128 = scmp.eq.s32.totalorder %s43, 1
      %p129 = por %p127, %p128
      %p131 = scmp.ne.s32.totalorder %s116, %s130
      %p132 = scmp.eq.s32.totalorder %s43, 0
      %p133 = por %p131, %p132
      %s135 = sadd.s32 %s134, 1
      %p138 = scmp.eq.s32.totalorder %s37, 1
      %p139 = scmp.ne.s32.totalorder %s134, %s136
      %p140 = scmp.eq.s32.totalorder %s37, 0
      %p141 = por %p139, %p140
      %p142 = scmp.ne.s32.totalorder %s134, %s136
      %p143 = scmp.eq.s32.totalorder %s42, 1
      %p144 = por %p142, %p143
      %p145 = scmp.ne.s32.totalorder %s136, %s137
      %p146 = scmp.eq.s32.totalorder %s42, 0
      %p147 = por %p145, %p146
      %p148 = scmp.ne.s32.totalorder %s136, %s137
      %p149 = scmp.eq.s32.totalorder %s43, 1
      %p150 = por %p148, %p149
      %p152 = scmp.ne.s32.totalorder %s137, %s151
      %p153 = scmp.eq.s32.totalorder %s43, 0
      %p154 = por %p152, %p153
      %s156 = sadd.s32 %s155, 1
      %p159 = scmp.eq.s32.totalorder %s37, 1
      %p160 = scmp.ne.s32.totalorder %s155, %s157
      %p161 = scmp.eq.s32.totalorder %s37, 0
      %p162 = por %p160, %p161
      %p163 = scmp.ne.s32.totalorder %s155, %s157
      %p164 = scmp.eq.s32.totalorder %s42, 1
      %p165 = por %p163, %p164
      %p166 = scmp.ne.s32.totalorder %s157, %s158
      %p167 = scmp.eq.s32.totalorder %s42, 0
      %p168 = por %p166, %p167
      %p169 = scmp.ne.s32.totalorder %s157, %s158
      %p170 = scmp.eq.s32.totalorder %s43, 1
      %p171 = por %p169, %p170
      %p173 = scmp.ne.s32.totalorder %s158, %s172
      %p174 = scmp.eq.s32.totalorder %s43, 0
      %p175 = por %p173, %p174
      %s177 = sadd.s32 %s176, 1
      %p180 = scmp.eq.s32.totalorder %s37, 1
      %p181 = scmp.ne.s32.totalorder %s176, %s178
      %p182 = scmp.eq.s32.totalorder %s37, 0
      %p183 = por %p181, %p182
      %p184 = scmp.ne.s32.totalorder %s176, %s178
      %p185 = scmp.eq.s32.totalorder %s42, 1
      %p186 = por %p184, %p185
      %p187 = scmp.ne.s32.totalorder %s178, %s179
      %p188 = scmp.eq.s32.totalorder %s42, 0
      %p189 = por %p187, %p188
      %p190 = scmp.ne.s32.totalorder %s178, %s179
      %p191 = scmp.eq.s32.totalorder %s43, 1
      %p192 = por %p190, %p191
      %p194 = scmp.ne.s32.totalorder %s179, %s193
      %p195 = scmp.eq.s32.totalorder %s43, 0
      %p196 = por %p194, %p195
      %s198 = sadd.s32 %s197, 1
      %p201 = scmp.eq.s32.totalorder %s37, 1
      %p202 = scmp.ne.s32.totalorder %s197, %s199
      %p203 = scmp.eq.s32.totalorder %s37, 0
      %p204 = por %p202, %p203
      %p205 = scmp.ne.s32.totalorder %s197, %s199
      %p206 = scmp.eq.s32.totalorder %s42, 1
      %p207 = por %p205, %p206
      %p208 = scmp.ne.s32.totalorder %s199, %s200
      %p209 = scmp.eq.s32.totalorder %s42, 0
      %p210 = por %p208, %p209
      %p211 = scmp.ne.s32.totalorder %s199, %s200
      %p212 = scmp.eq.s32.totalorder %s43, 1
      %p213 = por %p211, %p212
      %p215 = scmp.ne.s32.totalorder %s200, %s214
      %p216 = scmp.eq.s32.totalorder %s43, 0
      %p217 = por %p215, %p216
      %s219 = sadd.s32 %s218, 1
      %p222 = scmp.eq.s32.totalorder %s37, 1
      %p223 = scmp.ne.s32.totalorder %s218, %s220
      %p224 = scmp.eq.s32.totalorder %s37, 0
      %p225 = por %p223, %p224
      %p226 = scmp.ne.s32.totalorder %s218, %s220
      %p227 = scmp.eq.s32.totalorder %s42, 1
      %p228 = por %p226, %p227
      %p229 = scmp.ne.s32.totalorder %s220, %s221
      %p230 = scmp.eq.s32.totalorder %s42, 0
      %p231 = por %p229, %p230
      %p232 = scmp.ne.s32.totalorder %s220, %s221
      %p233 = scmp.eq.s32.totalorder %s43, 1
      %p234 = por %p232, %p233
      %p236 = scmp.ne.s32.totalorder %s221, %s235
      %p237 = scmp.eq.s32.totalorder %s43, 0
      %p238 = por %p236, %p237
      %s240 = sadd.s32 %s239, 1
      %p243 = scmp.eq.s32.totalorder %s37, 1
      %p244 = scmp.ne.s32.totalorder %s239, %s241
      %p245 = scmp.eq.s32.totalorder %s37, 0
      %p246 = por %p244, %p245
      %p247 = scmp.ne.s32.totalorder %s239, %s241
      %p248 = scmp.eq.s32.totalorder %s42, 1
      %p249 = por %p247, %p248
      %p250 = scmp.ne.s32.totalorder %s241, %s242
      %p251 = scmp.eq.s32.totalorder %s42, 0
      %p252 = por %p250, %p251
      %p253 = scmp.ne.s32.totalorder %s241, %s242
      %p254 = scmp.eq.s32.totalorder %s43, 1
      %p255 = por %p253, %p254
      %p257 = scmp.ne.s32.totalorder %s242, %s256
      %p258 = scmp.eq.s32.totalorder %s43, 0
      %p259 = por %p257, %p258
      %s261 = sadd.s32 %s260, 1
      %p264 = scmp.eq.s32.totalorder %s37, 1
      %p265 = scmp.ne.s32.totalorder %s260, %s262
      %p266 = scmp.eq.s32.totalorder %s37, 0
      %p267 = por %p265, %p266
      %p268 = scmp.ne.s32.totalorder %s260, %s262
      %p269 = scmp.eq.s32.totalorder %s42, 1
      %p270 = por %p268, %p269
      %p271 = scmp.ne.s32.totalorder %s262, %s263
      %p272 = scmp.eq.s32.totalorder %s42, 0
      %p273 = por %p271, %p272
      %p274 = scmp.ne.s32.totalorder %s262, %s263
      %p275 = scmp.eq.s32.totalorder %s43, 1
      %p276 = por %p274, %p275
      %p278 = scmp.ne.s32.totalorder %s263, %s277
      %p279 = scmp.eq.s32.totalorder %s43, 0
      %p280 = por %p278, %p279
      %s282 = sadd.s32 %s281, 1
      %p285 = scmp.eq.s32.totalorder %s37, 1
      %p286 = scmp.ne.s32.totalorder %s281, %s283
      %p287 = scmp.eq.s32.totalorder %s37, 0
      %p288 = por %p286, %p287
      %p289 = scmp.ne.s32.totalorder %s281, %s283
      %p290 = scmp.eq.s32.totalorder %s42, 1
      %p291 = por %p289, %p290
      %p292 = scmp.ne.s32.totalorder %s283, %s284
      %p293 = scmp.eq.s32.totalorder %s42, 0
      %p294 = por %p292, %p293
      %p295 = scmp.ne.s32.totalorder %s283, %s284
      %p296 = scmp.eq.s32.totalorder %s43, 1
      %p297 = por %p295, %p296
      %p299 = scmp.ne.s32.totalorder %s284, %s298
      %p300 = scmp.eq.s32.totalorder %s43, 0
      %p301 = por %p299, %p300
      %s303 = sadd.s32 %s302, 1
      %p306 = scmp.eq.s32.totalorder %s37, 1
      %p307 = scmp.ne.s32.totalorder %s302, %s304
      %p308 = scmp.eq.s32.totalorder %s37, 0
      %p309 = por %p307, %p308
      %p310 = scmp.ne.s32.totalorder %s302, %s304
      %p311 = scmp.eq.s32.totalorder %s42, 1
      %p312 = por %p310, %p311
      %p313 = scmp.ne.s32.totalorder %s304, %s305
      %p314 = scmp.eq.s32.totalorder %s42, 0
      %p315 = por %p313, %p314
      %p316 = scmp.ne.s32.totalorder %s304, %s305
      %p317 = scmp.eq.s32.totalorder %s43, 1
      %p318 = por %p316, %p317
      %p320 = scmp.ne.s32.totalorder %s305, %s319
      %p321 = scmp.eq.s32.totalorder %s43, 0
      %p322 = por %p320, %p321
      %s324 = sadd.s32 %s323, 1
      %p327 = scmp.eq.s32.totalorder %s37, 1
      %p328 = scmp.ne.s32.totalorder %s323, %s325
      %p329 = scmp.eq.s32.totalorder %s37, 0
      %p330 = por %p328, %p329
      %p331 = scmp.ne.s32.totalorder %s323, %s325
      %p332 = scmp.eq.s32.totalorder %s42, 1
      %p333 = por %p331, %p332
      %p334 = scmp.ne.s32.totalorder %s325, %s326
      %p335 = scmp.eq.s32.totalorder %s42, 0
      %p336 = por %p334, %p335
      %p337 = scmp.ne.s32.totalorder %s325, %s326
      %p338 = scmp.eq.s32.totalorder %s43, 1
      %p339 = por %p337, %p338
      %p341 = scmp.ne.s32.totalorder %s326, %s340
      %p342 = scmp.eq.s32.totalorder %s43, 0
      %p343 = por %p341, %p342
      %s345 = sadd.s32 %s344, 1
      %p348 = scmp.eq.s32.totalorder %s37, 1
      %p349 = scmp.ne.s32.totalorder %s344, %s346
      %p350 = scmp.eq.s32.totalorder %s37, 0
      %p351 = por %p349, %p350
      %p352 = scmp.ne.s32.totalorder %s344, %s346
      %p353 = scmp.eq.s32.totalorder %s42, 1
      %p354 = por %p352, %p353
      %p355 = scmp.ne.s32.totalorder %s346, %s347
      %p356 = scmp.eq.s32.totalorder %s42, 0
      %p357 = por %p355, %p356
      %p358 = scmp.ne.s32.totalorder %s346, %s347
      %p359 = scmp.eq.s32.totalorder %s43, 1
      %p360 = por %p358, %p359
      %p362 = scmp.ne.s32.totalorder %s347, %s361
      %p363 = scmp.eq.s32.totalorder %s43, 0
      %p364 = por %p362, %p363
      %s366 = sadd.s32 %s365, 1
      %p369 = scmp.eq.s32.totalorder %s37, 1
      %p370 = scmp.ne.s32.totalorder %s365, %s367
      %p371 = scmp.eq.s32.totalorder %s37, 0
      %p372 = por %p370, %p371
      %p373 = scmp.ne.s32.totalorder %s365, %s367
      %p374 = scmp.eq.s32.totalorder %s42, 1
      %p375 = por %p373, %p374
      %p376 = scmp.ne.s32.totalorder %s367, %s368
      %p377 = scmp.eq.s32.totalorder %s42, 0
      %p378 = por %p376, %p377
      %p379 = scmp.ne.s32.totalorder %s367, %s368
      %p380 = scmp.eq.s32.totalorder %s43, 1
      %p381 = por %p379, %p380
      %p383 = scmp.ne.s32.totalorder %s368, %s382
      %p384 = scmp.eq.s32.totalorder %s43, 0
      %p385 = por %p383, %p384
      %s387 = sadd.s32 %s386, 1
      %p390 = scmp.eq.s32.totalorder %s37, 1
      %p391 = scmp.ne.s32.totalorder %s386, %s388
      %p392 = scmp.eq.s32.totalorder %s37, 0
      %p393 = por %p391, %p392
      %p394 = scmp.ne.s32.totalorder %s386, %s388
      %p395 = scmp.eq.s32.totalorder %s42, 1
      %p396 = por %p394, %p395
      %p397 = scmp.ne.s32.totalorder %s388, %s389
      %p398 = scmp.eq.s32.totalorder %s42, 0
      %p399 = por %p397, %p398
      %p400 = scmp.ne.s32.totalorder %s388, %s389
      %p401 = scmp.eq.s32.totalorder %s43, 1
      %p402 = por %p400, %p401
      %p404 = scmp.ne.s32.totalorder %s389, %s403
      %p405 = scmp.eq.s32.totalorder %s43, 0
      %p406 = por %p404, %p405
      %s408 = sadd.s32 %s407, 1
      %p411 = scmp.eq.s32.totalorder %s37, 1
      %p412 = scmp.ne.s32.totalorder %s407, %s409
      %p413 = scmp.eq.s32.totalorder %s37, 0
      %p414 = por %p412, %p413
      %p415 = scmp.ne.s32.totalorder %s407, %s409
      %p416 = scmp.eq.s32.totalorder %s42, 1
      %p417 = por %p415, %p416
      %p418 = scmp.ne.s32.totalorder %s409, %s410
      %p419 = scmp.eq.s32.totalorder %s42, 0
      %p420 = por %p418, %p419
      %p421 = scmp.ne.s32.totalorder %s409, %s410
      %p422 = scmp.eq.s32.totalorder %s43, 1
      %p423 = por %p421, %p422
      %p425 = scmp.ne.s32.totalorder %s410, %s424
      %p426 = scmp.eq.s32.totalorder %s43, 0
      %p427 = por %p425, %p426
      %s429 = sadd.s32 %s428, 1
      %p432 = scmp.eq.s32.totalorder %s37, 1
      %p433 = scmp.ne.s32.totalorder %s428, %s430
      %p434 = scmp.eq.s32.totalorder %s37, 0
      %p435 = por %p433, %p434
      %p436 = scmp.ne.s32.totalorder %s428, %s430
      %p437 = scmp.eq.s32.totalorder %s42, 1
      %p438 = por %p436, %p437
      %p439 = scmp.ne.s32.totalorder %s430, %s431
      %p440 = scmp.eq.s32.totalorder %s42, 0
      %p441 = por %p439, %p440
      %p442 = scmp.ne.s32.totalorder %s430, %s431
      %p443 = scmp.eq.s32.totalorder %s43, 1
      %p444 = por %p442, %p443
      %p446 = scmp.ne.s32.totalorder %s431, %s445
      %p447 = scmp.eq.s32.totalorder %s43, 0
      %p448 = por %p446, %p447
      %s450 = sadd.s32 %s449, 1
      %p453 = scmp.eq.s32.totalorder %s37, 1
      %p454 = scmp.ne.s32.totalorder %s449, %s451
      %p455 = scmp.eq.s32.totalorder %s37, 0
      %p456 = por %p454, %p455
      %p457 = scmp.ne.s32.totalorder %s449, %s451
      %p458 = scmp.eq.s32.totalorder %s42, 1
      %p459 = por %p457, %p458
      %p460 = scmp.ne.s32.totalorder %s451, %s452
      %p461 = scmp.eq.s32.totalorder %s42, 0
      %p462 = por %p460, %p461
      %p463 = scmp.ne.s32.totalorder %s451, %s452
      %p464 = scmp.eq.s32.totalorder %s43, 1
      %p465 = por %p463, %p464
      %p467 = scmp.ne.s32.totalorder %s452, %s466
      %p468 = scmp.eq.s32.totalorder %s43, 0
      %p469 = por %p467, %p468
      %s471 = sadd.s32 %s470, 1
      %p474 = scmp.eq.s32.totalorder %s37, 1
      %p475 = scmp.ne.s32.totalorder %s470, %s472
      %p476 = scmp.eq.s32.totalorder %s37, 0
      %p477 = por %p475, %p476
      %p478 = scmp.ne.s32.totalorder %s470, %s472
      %p479 = scmp.eq.s32.totalorder %s42, 1
      %p480 = por %p478, %p479
      %p481 = scmp.ne.s32.totalorder %s472, %s473
      %p482 = scmp.eq.s32.totalorder %s42, 0
      %p483 = por %p481, %p482
      %p484 = scmp.ne.s32.totalorder %s472, %s473
      %p485 = scmp.eq.s32.totalorder %s43, 1
      %p486 = por %p484, %p485
      %p488 = scmp.ne.s32.totalorder %s473, %s487
      %p489 = scmp.eq.s32.totalorder %s43, 0
      %p490 = por %p488, %p489
      %s491 = ssub.s32 %s37, %s44
      %p492 = scmp.eq.s32.totalorder %s491, 0
      %s494 = sadd.s32 %s493, 1
      %s495 = scalar_select %p492, %s493, %s494
      %p498 = pneg %p492
      %p499 = scmp.eq.s32.totalorder %s37, 1
      %p500 = por %p498, %p499
      %p501 = scmp.ne.s32.totalorder %s493, %s496
      %p502 = scmp.eq.s32.totalorder %s37, 0
      %p503 = por %p501, %p502
      %p504 = scmp.ne.s32.totalorder %s493, %s496
      %p505 = scmp.eq.s32.totalorder %s42, 1
      %p506 = por %p504, %p505
      %p507 = scmp.ne.s32.totalorder %s496, %s497
      %p508 = scmp.eq.s32.totalorder %s42, 0
      %p509 = por %p507, %p508
      %p510 = scmp.ne.s32.totalorder %s496, %s497
      %p511 = scmp.eq.s32.totalorder %s43, 1
      %p512 = por %p510, %p511
      %p514 = scmp.ne.s32.totalorder %s497, %s513
      %p515 = scmp.eq.s32.totalorder %s43, 0
      %p516 = por %p514, %p515
      %p517 = scmp.le.s32.totalorder 1, %s37
      %p518 = scmp.lt.s32.totalorder %s37, 3
      %p519 = pnand %p517, %p518
      %p520 = pneg %p519
      // Predicated region
      $region9: #{tpu_custom_call.1} parent=5 // pred_check
        _
      $region10: #{tpu_custom_call.1} parent=5 // pred_check_branch
        %522 = sbr.rel (%p519) target = $region12
      $region11: #{tpu_custom_call.1} parent=5 // pred_region
        %s523 = ssub.s32 %s37, 1
        // Predicated region
        $region13: #{tpu_custom_call.1} parent=11 // pred_check
          %p524 = pneg %p84
        $region14: #{tpu_custom_call.1} parent=11 // pred_check_branch
          %526 = sbr.rel (%p524) target = $region16
        $region15: #{tpu_custom_call.1} parent=11 // pred_region
          _
        $region16: #{tpu_custom_call.1} parent=11 // pred_fallthru
          _
        // Predicated region
        $region17: #{tpu_custom_call.1} parent=11 // pred_check
          %p527 = pneg %p105
        $region18: #{tpu_custom_call.1} parent=11 // pred_check_branch
          %529 = sbr.rel (%p527) target = $region20
        $region19: #{tpu_custom_call.1} parent=11 // pred_region
          _
        $region20: #{tpu_custom_call.1} parent=11 // pred_fallthru
          _
        // Predicated region
        $region21: #{tpu_custom_call.1} parent=11 // pred_check
          %p530 = pneg %p126
        $region22: #{tpu_custom_call.1} parent=11 // pred_check_branch
          %532 = sbr.rel (%p530) target = $region24
        $region23: #{tpu_custom_call.1} parent=11 // pred_region
          %s534 = ssub.s32 64, 64
          %535 = vsyncadd [#allocation3], %s534
          %s537 = sshll.u32 [#allocation2], 4
          %s538 = int_to_ptr.vmem [resolvable:$true] %s537
          %540 = dma.hbm_to_vmem [thread:$0]  %s3, 64, %s538, [#allocation3]
        $region24: #{tpu_custom_call.1} parent=11 // pred_fallthru
          _
        // Predicated region
        $region25: #{tpu_custom_call.1} parent=11 // pred_check
          %p541 = pneg %p147
        $region26: #{tpu_custom_call.1} parent=11 // pred_check_branch
          %543 = sbr.rel (%p541) target = $region28
        $region27: #{tpu_custom_call.1} parent=11 // pred_region
          _
        $region28: #{tpu_custom_call.1} parent=11 // pred_fallthru
          _
        // Predicated region
        $region29: #{tpu_custom_call.1} parent=11 // pred_check
          %p544 = pneg %p168
        $region30: #{tpu_custom_call.1} parent=11 // pred_check_branch
          %546 = sbr.rel (%p544) target = $region32
        $region31: #{tpu_custom_call.1} parent=11 // pred_region
          %s548 = ssub.s32 114688, 114688
          %549 = vsyncadd [#allocation6], %s548
          %s550 = sshll.u32 [#allocation5], 4
          %s551 = int_to_ptr.vmem [resolvable:$true] %s550
          %556 = dma.hbm_to_vmem [thread:$0]  %s5, 114688, %s551, [#allocation6], 512, 512, 32
        $region32: #{tpu_custom_call.1} parent=11 // pred_fallthru
          _
        // Predicated region
        $region33: #{tpu_custom_call.1} parent=11 // pred_check
          %p557 = pneg %p189
        $region34: #{tpu_custom_call.1} parent=11 // pred_check_branch
          %559 = sbr.rel (%p557) target = $region36
        $region35: #{tpu_custom_call.1} parent=11 // pred_region
          %s561 = ssub.s32 64, 64
          %562 = vsyncadd [#allocation6], %s561
          %s564 = sshll.u32 [#allocation7], 4
          %s565 = int_to_ptr.vmem [resolvable:$true] %s564
          %567 = dma.hbm_to_vmem [thread:$0]  %s6, 64, %s565, [#allocation6]
        $region36: #{tpu_custom_call.1} parent=11 // pred_fallthru
          _
        // Predicated region
        $region37: #{tpu_custom_call.1} parent=11 // pred_check
          %p568 = pneg %p210
        $region38: #{tpu_custom_call.1} parent=11 // pred_check_branch
          %570 = sbr.rel (%p568) target = $region40
        $region39: #{tpu_custom_call.1} parent=11 // pred_region
          _
        $region40: #{tpu_custom_call.1} parent=11 // pred_fallthru
          _
        // Predicated region
        $region41: #{tpu_custom_call.1} parent=11 // pred_check
          %p571 = pneg %p231
        $region42: #{tpu_custom_call.1} parent=11 // pred_check_branch
          %573 = sbr.rel (%p571) target = $region44
        $region43: #{tpu_custom_call.1} parent=11 // pred_region
          %s575 = ssub.s32 131072, 131072
          %576 = vsyncadd [#allocation9], %s575
          %s577 = sshll.u32 [#allocation8], 4
          %s578 = int_to_ptr.vmem [resolvable:$true] %s577
          %583 = dma.hbm_to_vmem [thread:$0]  %s8, 131072, %s578, [#allocation9], 512, 512, 32
        $region44: #{tpu_custom_call.1} parent=11 // pred_fallthru
          _
        // Predicated region
        $region45: #{tpu_custom_call.1} parent=11 // pred_check
          %p584 = pneg %p252
        $region46: #{tpu_custom_call.1} parent=11 // pred_check_branch
          %586 = sbr.rel (%p584) target = $region48
        $region47: #{tpu_custom_call.1} parent=11 // pred_region
          %s588 = ssub.s32 64, 64
          %589 = vsyncadd [#allocation9], %s588
          %s591 = sshll.u32 [#allocation10], 4
          %s592 = int_to_ptr.vmem [resolvable:$true] %s591
          %594 = dma.hbm_to_vmem [thread:$0]  %s9, 64, %s592, [#allocation9]
        $region48: #{tpu_custom_call.1} parent=11 // pred_fallthru
          _
        // Predicated region
        $region49: #{tpu_custom_call.1} parent=11 // pred_check
          %p595 = pneg %p273
        $region50: #{tpu_custom_call.1} parent=11 // pred_check_branch
          %597 = sbr.rel (%p595) target = $region52
        $region51: #{tpu_custom_call.1} parent=11 // pred_region
          %s599 = ssub.s32 64, 64
          %600 = vsyncadd [#allocation12], %s599
          %s602 = sshll.u32 [#allocation11], 4
          %s603 = int_to_ptr.vmem [resolvable:$true] %s602
          %605 = dma.hbm_to_vmem [thread:$0]  %s10, 64, %s603, [#allocation12]
        $region52: #{tpu_custom_call.1} parent=11 // pred_fallthru
          _
        // Predicated region
        $region53: #{tpu_custom_call.1} parent=11 // pred_check
          %p606 = pneg %p294
        $region54: #{tpu_custom_call.1} parent=11 // pred_check_branch
          %608 = sbr.rel (%p606) target = $region56
        $region55: #{tpu_custom_call.1} parent=11 // pred_region
          %s610 = ssub.s32 65536, 65536
          %611 = vsyncadd [#allocation12], %s610
          %s612 = sshll.u32 [#allocation13], 4
          %s613 = int_to_ptr.vmem [resolvable:$true] %s612
          %618 = dma.hbm_to_vmem [thread:$0]  %s11, 65536, %s613, [#allocation12], 256, 256, 16
        $region56: #{tpu_custom_call.1} parent=11 // pred_fallthru
          _
        // Predicated region
        $region57: #{tpu_custom_call.1} parent=11 // pred_check
          %p619 = pneg %p315
        $region58: #{tpu_custom_call.1} parent=11 // pred_check_branch
          %621 = sbr.rel (%p619) target = $region60
        $region59: #{tpu_custom_call.1} parent=11 // pred_region
          %s623 = ssub.s32 32, 32
          %624 = vsyncadd [#allocation15], %s623
          %s626 = sshll.u32 [#allocation14], 4
          %s627 = int_to_ptr.vmem [resolvable:$true] %s626
          %629 = dma.hbm_to_vmem [thread:$0]  %s12, 32, %s627, [#allocation15]
        $region60: #{tpu_custom_call.1} parent=11 // pred_fallthru
          _
        // Predicated region
        $region61: #{tpu_custom_call.1} parent=11 // pred_check
          %p630 = pneg %p336
        $region62: #{tpu_custom_call.1} parent=11 // pred_check_branch
          %632 = sbr.rel (%p630) target = $region64
        $region63: #{tpu_custom_call.1} parent=11 // pred_region
          %s634 = ssub.s32 4096, 4096
          %635 = vsyncadd [#allocation15], %s634
          %s636 = sshll.u32 [#allocation16], 4
          %s637 = int_to_ptr.vmem [resolvable:$true] %s636
          %642 = dma.hbm_to_vmem [thread:$0]  %s13, 4096, %s637, [#allocation15], 128, 128, 8
        $region64: #{tpu_custom_call.1} parent=11 // pred_fallthru
          _
        // Predicated region
        $region65: #{tpu_custom_call.1} parent=11 // pred_check
          %p643 = pneg %p357
        $region66: #{tpu_custom_call.1} parent=11 // pred_check_branch
          %645 = sbr.rel (%p643) target = $region68
        $region67: #{tpu_custom_call.1} parent=11 // pred_region
          %s647 = ssub.s32 16, 16
          %648 = vsyncadd [#allocation18], %s647
          %s650 = sshll.u32 [#allocation17], 4
          %s651 = int_to_ptr.vmem [resolvable:$true] %s650
          %653 = dma.hbm_to_vmem [thread:$0]  %s14, 16, %s651, [#allocation18]
        $region68: #{tpu_custom_call.1} parent=11 // pred_fallthru
          _
        // Predicated region
        $region69: #{tpu_custom_call.1} parent=11 // pred_check
          %p654 = pneg %p378
        $region70: #{tpu_custom_call.1} parent=11 // pred_check_branch
          %656 = sbr.rel (%p654) target = $region72
        $region71: #{tpu_custom_call.1} parent=11 // pred_region
          _
        $region72: #{tpu_custom_call.1} parent=11 // pred_fallthru
          _
        // Predicated region
        $region73: #{tpu_custom_call.1} parent=11 // pred_check
          %p657 = pneg %p399
        $region74: #{tpu_custom_call.1} parent=11 // pred_check_branch
          %659 = sbr.rel (%p657) target = $region76
        $region75: #{tpu_custom_call.1} parent=11 // pred_region
          %s661 = ssub.s32 16, 16
          %662 = vsyncadd [#allocation18], %s661
          %s664 = sshll.u32 [#allocation19], 4
          %s665 = int_to_ptr.vmem [resolvable:$true] %s664
          %667 = dma.hbm_to_vmem [thread:$0]  %s16, 16, %s665, [#allocation18]
        $region76: #{tpu_custom_call.1} parent=11 // pred_fallthru
          _
        // Predicated region
        $region77: #{tpu_custom_call.1} parent=11 // pred_check
          %p668 = pneg %p420
        $region78: #{tpu_custom_call.1} parent=11 // pred_check_branch
          %670 = sbr.rel (%p668) target = $region80
        $region79: #{tpu_custom_call.1} parent=11 // pred_region
          _
        $region80: #{tpu_custom_call.1} parent=11 // pred_fallthru
          _
        // Predicated region
        $region81: #{tpu_custom_call.1} parent=11 // pred_check
          %p671 = pneg %p441
        $region82: #{tpu_custom_call.1} parent=11 // pred_check_branch
          %673 = sbr.rel (%p671) target = $region84
        $region83: #{tpu_custom_call.1} parent=11 // pred_region
          %s675 = ssub.s32 16, 16
          %676 = vsyncadd [#allocation21], %s675
          %s678 = sshll.u32 [#allocation20], 4
          %s679 = int_to_ptr.vmem [resolvable:$true] %s678
          %681 = dma.hbm_to_vmem [thread:$0]  %s18, 16, %s679, [#allocation21]
        $region84: #{tpu_custom_call.1} parent=11 // pred_fallthru
          _
        // Predicated region
        $region85: #{tpu_custom_call.1} parent=11 // pred_check
          %p682 = pneg %p462
        $region86: #{tpu_custom_call.1} parent=11 // pred_check_branch
          %684 = sbr.rel (%p682) target = $region88
        $region87: #{tpu_custom_call.1} parent=11 // pred_region
          _
        $region88: #{tpu_custom_call.1} parent=11 // pred_fallthru
          _
        // Predicated region
        $region89: #{tpu_custom_call.1} parent=11 // pred_check
          %p685 = pneg %p483
        $region90: #{tpu_custom_call.1} parent=11 // pred_check_branch
          %687 = sbr.rel (%p685) target = $region92
        $region91: #{tpu_custom_call.1} parent=11 // pred_region
          %s689 = ssub.s32 16, 16
          %690 = vsyncadd [#allocation21], %s689
          %s692 = sshll.u32 [#allocation22], 4
          %s693 = int_to_ptr.vmem [resolvable:$true] %s692
          %695 = dma.hbm_to_vmem [thread:$0]  %s20, 16, %s693, [#allocation21]
        $region92: #{tpu_custom_call.1} parent=11 // pred_fallthru
          _
      $region12: #{tpu_custom_call.1} parent=5 // pred_fallthru
        _
      %p696 = scmp.lt.s32.totalorder %s37, 2
      // Predicated region
      $region93: #{tpu_custom_call.1} parent=5 // pred_check
        %p697 = pneg %p696
      $region94: #{tpu_custom_call.1} parent=5 // pred_check_branch
        %699 = sbr.rel (%p697) target = $region96
      $region95: #{tpu_custom_call.1} parent=5 // pred_region
        // Predicated region
        $region97: #{tpu_custom_call.1} parent=95 // pred_check
          %p700 = pneg %p57
        $region98: #{tpu_custom_call.1} parent=95 // pred_check_branch
          %702 = sbr.rel (%p700) target = $region100
        $region99: #{tpu_custom_call.1} parent=95 // pred_region
          %p703 = scmp.lt.s32.totalorder %s37, 1
          %s704 = scalar_select %p703, %s37, 1
          %s705 = smul.addr %s704, 4
          %s706 = smul.addr %s705, 8
          %s707 = scalar_lea.vmem %s0, %s706
        $region100: #{tpu_custom_call.1} parent=95 // pred_fallthru
          _
      $region96: #{tpu_custom_call.1} parent=5 // pred_fallthru
        _
      %p708 = scmp.le.s32.totalorder 1, %s37
      %p709 = scmp.lt.s32.totalorder %s37, 3
      %p710 = pnand %p708, %p709
      %p711 = pneg %p710
      // Predicated region
      $region101: #{tpu_custom_call.1} parent=5 // pred_check
        _
      $region102: #{tpu_custom_call.1} parent=5 // pred_check_branch
        %713 = sbr.rel (%p710) target = $region104
      $region103: #{tpu_custom_call.1} parent=5 // pred_region
        %s714 = ssub.s32 %s37, 1
        // Predicated region
        $region105: #{tpu_custom_call.1} parent=103 // pred_check
          %p715 = pneg %p126
        $region106: #{tpu_custom_call.1} parent=103 // pred_check_branch
          %717 = sbr.rel (%p715) target = $region108
        $region107: #{tpu_custom_call.1} parent=103 // pred_region
          %718 = dma.done [#allocation3], 64
        $region108: #{tpu_custom_call.1} parent=103 // pred_fallthru
          _
        // Predicated region
        $region109: #{tpu_custom_call.1} parent=103 // pred_check
          %p719 = pneg %p168
        $region110: #{tpu_custom_call.1} parent=103 // pred_check_branch
          %721 = sbr.rel (%p719) target = $region112
        $region111: #{tpu_custom_call.1} parent=103 // pred_region
          %722 = dma.done [#allocation6], 114688
        $region112: #{tpu_custom_call.1} parent=103 // pred_fallthru
          _
        // Predicated region
        $region113: #{tpu_custom_call.1} parent=103 // pred_check
          %p723 = pneg %p189
        $region114: #{tpu_custom_call.1} parent=103 // pred_check_branch
          %725 = sbr.rel (%p723) target = $region116
        $region115: #{tpu_custom_call.1} parent=103 // pred_region
          %726 = dma.done [#allocation6], 64
        $region116: #{tpu_custom_call.1} parent=103 // pred_fallthru
          _
        // Predicated region
        $region117: #{tpu_custom_call.1} parent=103 // pred_check
          %p727 = pneg %p231
        $region118: #{tpu_custom_call.1} parent=103 // pred_check_branch
          %729 = sbr.rel (%p727) target = $region120
        $region119: #{tpu_custom_call.1} parent=103 // pred_region
          %730 = dma.done [#allocation9], 131072
        $region120: #{tpu_custom_call.1} parent=103 // pred_fallthru
          _
        // Predicated region
        $region121: #{tpu_custom_call.1} parent=103 // pred_check
          %p731 = pneg %p252
        $region122: #{tpu_custom_call.1} parent=103 // pred_check_branch
          %733 = sbr.rel (%p731) target = $region124
        $region123: #{tpu_custom_call.1} parent=103 // pred_region
          %734 = dma.done [#allocation9], 64
        $region124: #{tpu_custom_call.1} parent=103 // pred_fallthru
          _
        // Predicated region
        $region125: #{tpu_custom_call.1} parent=103 // pred_check
          %p735 = pneg %p273
        $region126: #{tpu_custom_call.1} parent=103 // pred_check_branch
          %737 = sbr.rel (%p735) target = $region128
        $region127: #{tpu_custom_call.1} parent=103 // pred_region
          %738 = dma.done [#allocation12], 64
        $region128: #{tpu_custom_call.1} parent=103 // pred_fallthru
          _
        // Predicated region
        $region129: #{tpu_custom_call.1} parent=103 // pred_check
          %p739 = pneg %p294
        $region130: #{tpu_custom_call.1} parent=103 // pred_check_branch
          %741 = sbr.rel (%p739) target = $region132
        $region131: #{tpu_custom_call.1} parent=103 // pred_region
          %742 = dma.done [#allocation12], 65536
        $region132: #{tpu_custom_call.1} parent=103 // pred_fallthru
          _
        // Predicated region
        $region133: #{tpu_custom_call.1} parent=103 // pred_check
          %p743 = pneg %p315
        $region134: #{tpu_custom_call.1} parent=103 // pred_check_branch
          %745 = sbr.rel (%p743) target = $region136
        $region135: #{tpu_custom_call.1} parent=103 // pred_region
          %746 = dma.done [#allocation15], 32
        $region136: #{tpu_custom_call.1} parent=103 // pred_fallthru
          _
        // Predicated region
        $region137: #{tpu_custom_call.1} parent=103 // pred_check
          %p747 = pneg %p336
        $region138: #{tpu_custom_call.1} parent=103 // pred_check_branch
          %749 = sbr.rel (%p747) target = $region140
        $region139: #{tpu_custom_call.1} parent=103 // pred_region
          %750 = dma.done [#allocation15], 4096
        $region140: #{tpu_custom_call.1} parent=103 // pred_fallthru
          _
        // Predicated region
        $region141: #{tpu_custom_call.1} parent=103 // pred_check
          %p751 = pneg %p357
        $region142: #{tpu_custom_call.1} parent=103 // pred_check_branch
          %753 = sbr.rel (%p751) target = $region144
        $region143: #{tpu_custom_call.1} parent=103 // pred_region
          %754 = dma.done [#allocation18], 16
        $region144: #{tpu_custom_call.1} parent=103 // pred_fallthru
          _
        // Predicated region
        $region145: #{tpu_custom_call.1} parent=103 // pred_check
          %p755 = pneg %p399
        $region146: #{tpu_custom_call.1} parent=103 // pred_check_branch
          %757 = sbr.rel (%p755) target = $region148
        $region147: #{tpu_custom_call.1} parent=103 // pred_region
          %758 = dma.done [#allocation18], 16
        $region148: #{tpu_custom_call.1} parent=103 // pred_fallthru
          _
        // Predicated region
        $region149: #{tpu_custom_call.1} parent=103 // pred_check
          %p759 = pneg %p441
        $region150: #{tpu_custom_call.1} parent=103 // pred_check_branch
          %761 = sbr.rel (%p759) target = $region152
        $region151: #{tpu_custom_call.1} parent=103 // pred_region
          %762 = dma.done [#allocation21], 16
        $region152: #{tpu_custom_call.1} parent=103 // pred_fallthru
          _
        // Predicated region
        $region153: #{tpu_custom_call.1} parent=103 // pred_check
          %p763 = pneg %p483
        $region154: #{tpu_custom_call.1} parent=103 // pred_check_branch
          %765 = sbr.rel (%p763) target = $region156
        $region155: #{tpu_custom_call.1} parent=103 // pred_region
          %766 = dma.done [#allocation21], 16
        $region156: #{tpu_custom_call.1} parent=103 // pred_fallthru
          _
        %p767 = scmp.lt.s32.totalorder %s42, 1
        %s768 = scalar_select %p767, %s42, 1
        %s769 = smul.addr %s768, 4
        %s770 = smul.addr %s769, 8
        %s771 = scalar_lea.vmem %s0, %s770
        %p772 = pneg %p63
        %p773 = pneg %p60
        %p774 = pneg %p84
        %p775 = pneg %p81
        %p776 = pneg %p105
        %p777 = pneg %p102
        %p778 = pneg %p126
        %p779 = pneg %p123
        %p780 = pneg %p147
        %p781 = pneg %p144
        %p782 = pneg %p168
        %p783 = pneg %p165
        %p784 = pneg %p189
        %p785 = pneg %p186
        %p786 = pneg %p210
        %p787 = pneg %p207
        %p788 = pneg %p231
        %p789 = pneg %p228
        %p790 = pneg %p252
        %p791 = pneg %p249
        %p792 = pneg %p273
        %p793 = pneg %p270
        %p794 = pneg %p294
        %p795 = pneg %p291
        %p796 = pneg %p315
        %p797 = pneg %p312
        %p798 = pneg %p336
        %p799 = pneg %p333
        %p800 = pneg %p357
        %p801 = pneg %p354
        %p802 = pneg %p378
        %p803 = pneg %p375
        %p804 = pneg %p399
        %p805 = pneg %p396
        %p806 = pneg %p420
        %p807 = pneg %p417
        %p808 = pneg %p441
        %p809 = pneg %p438
        %p810 = pneg %p462
        %p811 = pneg %p459
        %p812 = pneg %p483
        %p813 = pneg %p480
        %p814 = pneg %p509
        %p815 = pneg %p506
        %s816 = sand.u32 %s496, 1
        %s817 = scalar_lea.sflag [#allocation4], %s816
        %s818 = sand.u32 %s496, 1
        %s819 = scalar_lea.vmem [#allocation23], %s818
        %p820 = scmp.lt.s32.totalorder %s42, 1
        %s821 = scalar_select %p820, %s42, 1
        %s822 = smul.addr %s821, 4
        %s823 = smul.addr %s822, 8
        %s824 = scalar_lea.vmem %s0, %s823
        %v825 = vld [vmem:[%s824] sm:$0xff]
        %v826 = vld [vmem:[%s824 + $0x8] sm:$0xff]
        %v827 = vld [vmem:[%s824 + $0x10] sm:$0xff]
        %v828 = vld [vmem:[%s824 + $0x18] sm:$0xf]
        %v829 = vld [vmem:[%s1] sm:$0xff]
        %v830 = vld [vmem:[%s1 + $0x8] sm:$0xff]
        %v831 = vld [vmem:[%s1 + $0x10] sm:$0xff]
        %v832 = vld [vmem:[%s1 + $0x18] sm:$0xff]
        %v833 = vld [vmem:[%s1 + $0x20] sm:$0xff]
        %v834 = vld [vmem:[%s1 + $0x28] sm:$0xff]
        %v835 = vld [vmem:[%s1 + $0x30] sm:$0xff]
        %vm836 = vcmask 228352
        %v838 = vsel %vm836, %v829, 0
        %v841 = vsel %vm836, %v830, 0
        %v844 = vsel %vm836, %v831, 0
        %v847 = vsel %vm836, %v832, 0
        %v850 = vsel %vm836, %v833, 0
        %v853 = vsel %vm836, %v834, 0
        %v856 = vsel %vm836, %v835, 0
        %vm858 = vcmask 1043456
        %v860 = vsel %vm858, %v828, 0
        %862 = vmatprep.subr.mxu0 0.0
        %863 = vmatpush1.msra.mxu0 %v825
        %864 = vmatprep.subr.mxu0 0.0
        %865 = vmatpush1.msra.mxu0 %v826
        %866 = vmatprep.subr.mxu0 0.0
        %867 = vmatpush1.msra.mxu0 %v827
        %868 = vmatprep.subr.mxu0 0.0
        %869 = vmatpush1.msra.mxu0 %v860
        %870 = vmatprep.subr.mxu0 0.0
        %871 = vmatpush1.msra.mxu0 0.0
        %872 = vmatprep.subr.mxu0 0.0
        %873 = vmatpush1.msra.mxu0 0.0
        %874 = vmatprep.subr.mxu0 0.0
        %875 = vmatpush1.msra.mxu0 0.0
        %876 = vmatprep.subr.mxu0 0.0
        %877 = vmatpush1.msra.mxu0 0.0
        %878 = vmatprep.subr.mxu0 0.0
        %879 = vmatpush1.msra.mxu0 0.0
        %880 = vmatprep.subr.mxu0 0.0
        %881 = vmatpush1.msra.mxu0 0.0
        %882 = vmatprep.subr.mxu0 0.0
        %883 = vmatpush1.msra.mxu0 0.0
        %884 = vmatprep.subr.mxu0 0.0
        %885 = vmatpush1.msra.mxu0 0.0
        %886 = vmatprep.subr.mxu0 0.0
        %887 = vmatpush1.msra.mxu0 0.0
        %888 = vmatprep.subr.mxu0 0.0
        %889 = vmatpush1.msra.mxu0 0.0
        %890 = vmatprep.subr.mxu0 0.0
        %891 = vmatpush1.msra.mxu0 0.0
        %892 = vmatprep.subr.mxu0 0.0
        %893 = vmatpush1.msra.mxu0 0.0
        %894 = vmatprep.subr.mxu0 0.0
        %895 = vmatpush1.msra.mxu0 0.0
        %896 = vmatprep.subr.mxu0 0.0
        %897 = vmatpush1.msra.mxu0 0.0
        %898 = vmatprep.subr.mxu0 0.0
        %899 = vmatpush1.msra.mxu0 0.0
        %900 = vmatprep.subr.mxu0 0.0
        %901 = vmatpush1.msra.mxu0 0.0
        %902 = vmatprep.subr.mxu0 0.0
        %903 = vmatpush1.msra.mxu0 0.0
        %904 = vmatprep.subr.mxu0 0.0
        %905 = vmatpush1.msra.mxu0 0.0
        %906 = vmatprep.subr.mxu0 0.0
        %907 = vmatpush1.msra.mxu0 0.0
        %908 = vmatprep.subr.mxu0 0.0
        %909 = vmatpush1.msra.mxu0 0.0
        %910 = vmatprep.subr.mxu0 0.0
        %911 = vmatpush1.msra.mxu0 0.0
        %912 = vmatprep.subr.mxu0 0.0
        %913 = vmatpush1.msra.mxu0 0.0
        %914 = vmatprep.subr.mxu0 0.0
        %915 = vmatpush1.msra.mxu0 0.0
        %916 = vmatprep.subr.mxu0 0.0
        %917 = vmatpush1.msra.mxu0 0.0
        %918 = vmatprep.subr.mxu0 0.0
        %919 = vmatpush1.msra.mxu0 0.0
        %920 = vmatprep.subr.mxu0 0.0
        %921 = vmatpush1.msra.mxu0 0.0
        %922 = vmatprep.subr.mxu0 0.0
        %923 = vmatpush1.msra.mxu0 0.0
        %924 = vmatprep.subr.mxu0 0.0
        %925 = vmatpush1.msra.mxu0 0.0
        %926 = vmatprep.mubr.f32.mxu0 0.0
        %927 = vmatmul.mubr.f32.gmra.mrb[0].mxu0 %v838
        %v928 = vpop.f32.mrb[0].mxu0
        %v929 = vadd.f32 0.0, %v928
        %v930 = vpop.f32.mrb[0].mxu0
        %931 = vmatprep.mubr.f32.mxu0 0.0
        %932 = vmatmul.mubr.f32.gmra.mrb[0].mxu0 %v841
        %v933 = vpop.f32.mrb[0].mxu0
        %v934 = vadd.f32 0.0, %v933
        %v935 = vpop.f32.mrb[0].mxu0
        %936 = vmatprep.mubr.f32.mxu0 0.0
        %937 = vmatmul.mubr.f32.gmra.mrb[0].mxu0 %v844
        %v938 = vpop.f32.mrb[0].mxu0
        %v939 = vadd.f32 0.0, %v938
        %v940 = vpop.f32.mrb[0].mxu0
        %941 = vmatprep.mubr.f32.mxu0 0.0
        %942 = vmatmul.mubr.f32.gmra.mrb[0].mxu0 %v847
        %v943 = vpop.f32.mrb[0].mxu0
        %v944 = vadd.f32 0.0, %v943
        %v945 = vpop.f32.mrb[0].mxu0
        %946 = vmatprep.mubr.f32.mxu0 0.0
        %947 = vmatmul.mubr.f32.gmra.mrb[0].mxu0 %v850
        %v948 = vpop.f32.mrb[0].mxu0
        %v949 = vadd.f32 0.0, %v948
        %v950 = vpop.f32.mrb[0].mxu0
        %951 = vmatprep.mubr.f32.mxu0 0.0
        %952 = vmatmul.mubr.f32.gmra.mrb[0].mxu0 %v853
        %v953 = vpop.f32.mrb[0].mxu0
        %v954 = vadd.f32 0.0, %v953
        %v955 = vpop.f32.mrb[0].mxu0
        %956 = vmatprep.mubr.f32.mxu0 0.0
        %957 = vmatmul.mubr.f32.gmra.mrb[0].mxu0 %v856
        %v958 = vpop.f32.mrb[0].mxu0
        %v959 = vadd.f32 0.0, %v958
        %v960 = vpop.f32.mrb[0].mxu0
        %961 = vdwg.mxu0
        %v962 = vld [vmem:[%s2] sm:$0xff]
        %v963 = vld [vmem:[%s2 + $0x8] sm:$0xff]
        %v964 = vld [vmem:[%s2 + $0x10] sm:$0xff]
        %v965 = vld [vmem:[%s2 + $0x18] sm:$0xff]
        %v966 = vld [vmem:[%s2 + $0x20] sm:$0xff]
        %v967 = vld [vmem:[%s2 + $0x28] sm:$0xff]
        %v968 = vld [vmem:[%s2 + $0x30] sm:$0xff]
        %v969 = vld [vmem:[%s2 + $0x38] sm:$0xff]
        %v970 = vld [vmem:[%s2 + $0x40] sm:$0xff]
        %v971 = vld [vmem:[%s2 + $0x48] sm:$0xff]
        %v972 = vld [vmem:[%s2 + $0x50] sm:$0xff]
        %v973 = vld [vmem:[%s2 + $0x58] sm:$0xff]
        %v974 = vld [vmem:[%s2 + $0x60] sm:$0xf]
        %v975 = vld [vmem:[%s2 + $0x68] sm:$0xf]
        %v976 = vld [vmem:[%s2 + $0x70] sm:$0xf]
        %v977 = vld [vmem:[%s2 + $0x78] sm:$0xf]
        %s978 = scalar_lea.vmem %s2, 128
        %v979 = vld [vmem:[%s978] sm:$0xff]
        %v980 = vld [vmem:[%s978 + $0x8] sm:$0xff]
        %v981 = vld [vmem:[%s978 + $0x10] sm:$0xff]
        %v982 = vld [vmem:[%s978 + $0x18] sm:$0xff]
        %v983 = vld [vmem:[%s978 + $0x20] sm:$0xff]
        %v984 = vld [vmem:[%s978 + $0x28] sm:$0xff]
        %v985 = vld [vmem:[%s978 + $0x30] sm:$0xff]
        %v986 = vld [vmem:[%s978 + $0x38] sm:$0xff]
        %v987 = vld [vmem:[%s978 + $0x40] sm:$0xff]
        %v988 = vld [vmem:[%s978 + $0x48] sm:$0xff]
        %v989 = vld [vmem:[%s978 + $0x50] sm:$0xff]
        %v990 = vld [vmem:[%s978 + $0x58] sm:$0xff]
        %v991 = vld [vmem:[%s978 + $0x60] sm:$0xf]
        %v992 = vld [vmem:[%s978 + $0x68] sm:$0xf]
        %v993 = vld [vmem:[%s978 + $0x70] sm:$0xf]
        %v994 = vld [vmem:[%s978 + $0x78] sm:$0xf]
        %vm998 = vcmask 1041408
        %v999 = vrot.slane %v934, 6
        %v1000 = vrot.slane %v939, 6
        %v1001 = vsel %vm998, %v999, %v1000
        %v1002 = vrot.slane %v944, 6
        %v1003 = vsel %vm998, %v1000, %v1002
        %v1004 = vsel %vm836, %v1001, 0
        %v1006 = vsel %vm836, %v1003, 0
        %v1009 = vsel %vm858, %v991, 0
        %v1012 = vsel %vm858, %v992, 0
        %v1015 = vsel %vm858, %v993, 0
        %v1018 = vsel %vm858, %v994, 0
        %1020 = vmatprep.subr.mxu0 %v980
        %1021 = vmatpush1.msra.mxu0 %v979
        %1022 = vmatprep.subr.mxu0 %v984
        %1023 = vmatpush1.msra.mxu0 %v983
        %1024 = vmatprep.subr.mxu0 %v988
        %1025 = vmatpush1.msra.mxu0 %v987
        %1026 = vmatprep.subr.mxu0 %v1012
        %1027 = vmatpush1.msra.mxu0 %v1009
        %1028 = vmatprep.subr.mxu0 0.0
        %1029 = vmatpush1.msra.mxu0 0.0
        %1030 = vmatprep.subr.mxu0 0.0
        %1031 = vmatpush1.msra.mxu0 0.0
        %1032 = vmatprep.subr.mxu0 0.0
        %1033 = vmatpush1.msra.mxu0 0.0
        %1034 = vmatprep.subr.mxu0 0.0
        %1035 = vmatpush1.msra.mxu0 0.0
        %1036 = vmatprep.subr.mxu0 0.0
        %1037 = vmatpush1.msra.mxu0 0.0
        %1038 = vmatprep.subr.mxu0 0.0
        %1039 = vmatpush1.msra.mxu0 0.0
        %1040 = vmatprep.subr.mxu0 0.0
        %1041 = vmatpush1.msra.mxu0 0.0
        %1042 = vmatprep.subr.mxu0 0.0
        %1043 = vmatpush1.msra.mxu0 0.0
        %1044 = vmatprep.subr.mxu0 0.0
        %1045 = vmatpush1.msra.mxu0 0.0
        %1046 = vmatprep.subr.mxu0 0.0
        %1047 = vmatpush1.msra.mxu0 0.0
        %1048 = vmatprep.subr.mxu0 0.0
        %1049 = vmatpush1.msra.mxu0 0.0
        %1050 = vmatprep.subr.mxu0 0.0
        %1051 = vmatpush1.msra.mxu0 0.0
        %1052 = vmatprep.subr.mxu0 0.0
        %1053 = vmatpush1.msra.mxu0 0.0
        %1054 = vmatprep.subr.mxu0 0.0
        %1055 = vmatpush1.msra.mxu0 0.0
        %1056 = vmatprep.subr.mxu0 0.0
        %1057 = vmatpush1.msra.mxu0 0.0
        %1058 = vmatprep.subr.mxu0 0.0
        %1059 = vmatpush1.msra.mxu0 0.0
        %1060 = vmatprep.subr.mxu0 0.0
        %1061 = vmatpush1.msra.mxu0 0.0
        %1062 = vmatprep.subr.mxu0 0.0
        %1063 = vmatpush1.msra.mxu0 0.0
        %1064 = vmatprep.subr.mxu0 0.0
        %1065 = vmatpush1.msra.mxu0 0.0
        %1066 = vmatprep.subr.mxu0 0.0
        %1067 = vmatpush1.msra.mxu0 0.0
        %1068 = vmatprep.subr.mxu0 0.0
        %1069 = vmatpush1.msra.mxu0 0.0
        %1070 = vmatprep.subr.mxu0 0.0
        %1071 = vmatpush1.msra.mxu0 0.0
        %1072 = vmatprep.subr.mxu0 0.0
        %1073 = vmatpush1.msra.mxu0 0.0
        %1074 = vmatprep.subr.mxu0 0.0
        %1075 = vmatpush1.msra.mxu0 0.0
        %1076 = vmatprep.subr.mxu0 0.0
        %1077 = vmatpush1.msra.mxu0 0.0
        %1078 = vmatprep.subr.mxu0 0.0
        %1079 = vmatpush1.msra.mxu0 0.0
        %1080 = vmatprep.subr.mxu0 0.0
        %1081 = vmatpush1.msra.mxu0 0.0
        %1082 = vmatprep.subr.mxu0 0.0
        %1083 = vmatpush1.msra.mxu0 0.0
        %1084 = vmatprep.mubr.f32.mxu0 0.0
        %1085 = vmatmul.mubr.f32.gmra.mrb[0].mxu0 %v1004
        %v1086 = vpop.f32.mrb[0].mxu0
        %v1087 = vadd.f32 0.0, %v1086
        %v1088 = vpop.f32.mrb[0].mxu0
        %v1089 = vadd.f32 0.0, %v1088
        %1090 = vmatprep.mubr.f32.mxu0 0.0
        %1091 = vmatmul.mubr.f32.gmra.mrb[0].mxu0 %v1006
        %v1092 = vpop.f32.mrb[0].mxu0
        %v1093 = vadd.f32 0.0, %v1092
        %v1094 = vpop.f32.mrb[0].mxu0
        %v1095 = vadd.f32 0.0, %v1094
        %1096 = vdwg.mxu0
        %1097 = vmatprep.subr.mxu0 %v982
        %1098 = vmatpush1.msra.mxu0 %v981
        %1099 = vmatprep.subr.mxu0 %v986
        %1100 = vmatpush1.msra.mxu0 %v985
        %1101 = vmatprep.subr.mxu0 %v990
        %1102 = vmatpush1.msra.mxu0 %v989
        %1103 = vmatprep.subr.mxu0 %v1018
        %1104 = vmatpush1.msra.mxu0 %v1015
        %1105 = vmatprep.subr.mxu0 0.0
        %1106 = vmatpush1.msra.mxu0 0.0
        %1107 = vmatprep.subr.mxu0 0.0
        %1108 = vmatpush1.msra.mxu0 0.0
        %1109 = vmatprep.subr.mxu0 0.0
        %1110 = vmatpush1.msra.mxu0 0.0
        %1111 = vmatprep.subr.mxu0 0.0
        %1112 = vmatpush1.msra.mxu0 0.0
        %1113 = vmatprep.subr.mxu0 0.0
        %1114 = vmatpush1.msra.mxu0 0.0
        %1115 = vmatprep.subr.mxu0 0.0
        %1116 = vmatpush1.msra.mxu0 0.0
        %1117 = vmatprep.subr.mxu0 0.0
        %1118 = vmatpush1.msra.mxu0 0.0
        %1119 = vmatprep.subr.mxu0 0.0
        %1120 = vmatpush1.msra.mxu0 0.0
        %1121 = vmatprep.subr.mxu0 0.0
        %1122 = vmatpush1.msra.mxu0 0.0
        %1123 = vmatprep.subr.mxu0 0.0
        %1124 = vmatpush1.msra.mxu0 0.0
        %1125 = vmatprep.subr.mxu0 0.0
        %1126 = vmatpush1.msra.mxu0 0.0
        %1127 = vmatprep.subr.mxu0 0.0
        %1128 = vmatpush1.msra.mxu0 0.0
        %1129 = vmatprep.subr.mxu0 0.0
        %1130 = vmatpush1.msra.mxu0 0.0
        %1131 = vmatprep.subr.mxu0 0.0
        %1132 = vmatpush1.msra.mxu0 0.0
        %1133 = vmatprep.subr.mxu0 0.0
        %1134 = vmatpush1.msra.mxu0 0.0
        %1135 = vmatprep.subr.mxu0 0.0
        %1136 = vmatpush1.msra.mxu0 0.0
        %1137 = vmatprep.subr.mxu0 0.0
        %1138 = vmatpush1.msra.mxu0 0.0
        %1139 = vmatprep.subr.mxu0 0.0
        %1140 = vmatpush1.msra.mxu0 0.0
        %1141 = vmatprep.subr.mxu0 0.0
        %1142 = vmatpush1.msra.mxu0 0.0
        %1143 = vmatprep.subr.mxu0 0.0
        %1144 = vmatpush1.msra.mxu0 0.0
        %1145 = vmatprep.subr.mxu0 0.0
        %1146 = vmatpush1.msra.mxu0 0.0
        %1147 = vmatprep.subr.mxu0 0.0
        %1148 = vmatpush1.msra.mxu0 0.0
        %1149 = vmatprep.subr.mxu0 0.0
        %1150 = vmatpush1.msra.mxu0 0.0
        %1151 = vmatprep.subr.mxu0 0.0
        %1152 = vmatpush1.msra.mxu0 0.0
        %1153 = vmatprep.subr.mxu0 0.0
        %1154 = vmatpush1.msra.mxu0 0.0
        %1155 = vmatprep.subr.mxu0 0.0
        %1156 = vmatpush1.msra.mxu0 0.0
        %1157 = vmatprep.subr.mxu0 0.0
        %1158 = vmatpush1.msra.mxu0 0.0
        %1159 = vmatprep.subr.mxu0 0.0
        %1160 = vmatpush1.msra.mxu0 0.0
        %1161 = vmatprep.mubr.f32.mxu0 0.0
        %1162 = vmatmul.mubr.f32.gmra.mrb[0].mxu0 %v1004
        %v1163 = vpop.f32.mrb[0].mxu0
        %v1164 = vadd.f32 0.0, %v1163
        %v1165 = vpop.f32.mrb[0].mxu0
        %v1166 = vadd.f32 0.0, %v1165
        %1167 = vmatprep.mubr.f32.mxu0 0.0
        %1168 = vmatmul.mubr.f32.gmra.mrb[0].mxu0 %v1006
        %v1169 = vpop.f32.mrb[0].mxu0
        %v1170 = vadd.f32 0.0, %v1169
        %v1171 = vpop.f32.mrb[0].mxu0
        %v1172 = vadd.f32 0.0, %v1171
        %1173 = vdwg.mxu0
        %v1175 = vsel %vm836, %v929, 0
        %v1177 = vsel %vm836, %v934, 0
        %v1180 = vsel %vm858, %v974, 0
        %v1183 = vsel %vm858, %v975, 0
        %v1186 = vsel %vm858, %v976, 0
        %v1189 = vsel %vm858, %v977, 0
        %1191 = vmatprep.subr.mxu0 %v963
        %1192 = vmatpush1.msra.mxu0 %v962
        %1193 = vmatprep.subr.mxu0 %v967
        %1194 = vmatpush1.msra.mxu0 %v966
        %1195 = vmatprep.subr.mxu0 %v971
        %1196 = vmatpush1.msra.mxu0 %v970
        %1197 = vmatprep.subr.mxu0 %v1183
        %1198 = vmatpush1.msra.mxu0 %v1180
        %1199 = vmatprep.subr.mxu0 0.0
        %1200 = vmatpush1.msra.mxu0 0.0
        %1201 = vmatprep.subr.mxu0 0.0
        %1202 = vmatpush1.msra.mxu0 0.0
        %1203 = vmatprep.subr.mxu0 0.0
        %1204 = vmatpush1.msra.mxu0 0.0
        %1205 = vmatprep.subr.mxu0 0.0
        %1206 = vmatpush1.msra.mxu0 0.0
        %1207 = vmatprep.subr.mxu0 0.0
        %1208 = vmatpush1.msra.mxu0 0.0
        %1209 = vmatprep.subr.mxu0 0.0
        %1210 = vmatpush1.msra.mxu0 0.0
        %1211 = vmatprep.subr.mxu0 0.0
        %1212 = vmatpush1.msra.mxu0 0.0
        %1213 = vmatprep.subr.mxu0 0.0
        %1214 = vmatpush1.msra.mxu0 0.0
        %1215 = vmatprep.subr.mxu0 0.0
        %1216 = vmatpush1.msra.mxu0 0.0
        %1217 = vmatprep.subr.mxu0 0.0
        %1218 = vmatpush1.msra.mxu0 0.0
        %1219 = vmatprep.subr.mxu0 0.0
        %1220 = vmatpush1.msra.mxu0 0.0
        %1221 = vmatprep.subr.mxu0 0.0
        %1222 = vmatpush1.msra.mxu0 0.0
        %1223 = vmatprep.subr.mxu0 0.0
        %1224 = vmatpush1.msra.mxu0 0.0
        %1225 = vmatprep.subr.mxu0 0.0
        %1226 = vmatpush1.msra.mxu0 0.0
        %1227 = vmatprep.subr.mxu0 0.0
        %1228 = vmatpush1.msra.mxu0 0.0
        %1229 = vmatprep.subr.mxu0 0.0
        %1230 = vmatpush1.msra.mxu0 0.0
        %1231 = vmatprep.subr.mxu0 0.0
        %1232 = vmatpush1.msra.mxu0 0.0
        %1233 = vmatprep.subr.mxu0 0.0
        %1234 = vmatpush1.msra.mxu0 0.0
        %1235 = vmatprep.subr.mxu0 0.0
        %1236 = vmatpush1.msra.mxu0 0.0
        %1237 = vmatprep.subr.mxu0 0.0
        %1238 = vmatpush1.msra.mxu0 0.0
        %1239 = vmatprep.subr.mxu0 0.0
        %1240 = vmatpush1.msra.mxu0 0.0
        %1241 = vmatprep.subr.mxu0 0.0
        %1242 = vmatpush1.msra.mxu0 0.0
        %1243 = vmatprep.subr.mxu0 0.0
        %1244 = vmatpush1.msra.mxu0 0.0
        %1245 = vmatprep.subr.mxu0 0.0
        %1246 = vmatpush1.msra.mxu0 0.0
        %1247 = vmatprep.subr.mxu0 0.0
        %1248 = vmatpush1.msra.mxu0 0.0
        %1249 = vmatprep.subr.mxu0 0.0
        %1250 = vmatpush1.msra.mxu0 0.0
        %1251 = vmatprep.subr.mxu0 0.0
        %1252 = vmatpush1.msra.mxu0 0.0
        %1253 = vmatprep.subr.mxu0 0.0
        %1254 = vmatpush1.msra.mxu0 0.0
        %1255 = vmatprep.mubr.f32.mxu0 0.0
        %1256 = vmatmul.mubr.f32.gmra.mrb[0].mxu0 %v1175
        %v1257 = vpop.f32.mrb[0].mxu0
        %v1258 = vadd.f32 %v1087, %v1257
        %v1259 = vpop.f32.mrb[0].mxu0
        %v1260 = vadd.f32 %v1089, %v1259
        %1261 = vmatprep.mubr.f32.mxu0 0.0
        %1262 = vmatmul.mubr.f32.gmra.mrb[0].mxu0 %v1177
        %v1263 = vpop.f32.mrb[0].mxu0
        %v1264 = vadd.f32 %v1093, %v1263
        %v1265 = vpop.f32.mrb[0].mxu0
        %v1266 = vadd.f32 %v1095, %v1265
        %1267 = vdwg.mxu0
        %1268 = vmatprep.subr.mxu0 %v965
        %1269 = vmatpush1.msra.mxu0 %v964
        %1270 = vmatprep.subr.mxu0 %v969
        %1271 = vmatpush1.msra.mxu0 %v968
        %1272 = vmatprep.subr.mxu0 %v973
        %1273 = vmatpush1.msra.mxu0 %v972
        %1274 = vmatprep.subr.mxu0 %v1189
        %1275 = vmatpush1.msra.mxu0 %v1186
        %1276 = vmatprep.subr.mxu0 0.0
        %1277 = vmatpush1.msra.mxu0 0.0
        %1278 = vmatprep.subr.mxu0 0.0
        %1279 = vmatpush1.msra.mxu0 0.0
        %1280 = vmatprep.subr.mxu0 0.0
        %1281 = vmatpush1.msra.mxu0 0.0
        %1282 = vmatprep.subr.mxu0 0.0
        %1283 = vmatpush1.msra.mxu0 0.0
        %1284 = vmatprep.subr.mxu0 0.0
        %1285 = vmatpush1.msra.mxu0 0.0
        %1286 = vmatprep.subr.mxu0 0.0
        %1287 = vmatpush1.msra.mxu0 0.0
        %1288 = vmatprep.subr.mxu0 0.0
        %1289 = vmatpush1.msra.mxu0 0.0
        %1290 = vmatprep.subr.mxu0 0.0
        %1291 = vmatpush1.msra.mxu0 0.0
        %1292 = vmatprep.subr.mxu0 0.0
        %1293 = vmatpush1.msra.mxu0 0.0
        %1294 = vmatprep.subr.mxu0 0.0
        %1295 = vmatpush1.msra.mxu0 0.0
        %1296 = vmatprep.subr.mxu0 0.0
        %1297 = vmatpush1.msra.mxu0 0.0
        %1298 = vmatprep.subr.mxu0 0.0
        %1299 = vmatpush1.msra.mxu0 0.0
        %1300 = vmatprep.subr.mxu0 0.0
        %1301 = vmatpush1.msra.mxu0 0.0
        %1302 = vmatprep.subr.mxu0 0.0
        %1303 = vmatpush1.msra.mxu0 0.0
        %1304 = vmatprep.subr.mxu0 0.0
        %1305 = vmatpush1.msra.mxu0 0.0
        %1306 = vmatprep.subr.mxu0 0.0
        %1307 = vmatpush1.msra.mxu0 0.0
        %1308 = vmatprep.subr.mxu0 0.0
        %1309 = vmatpush1.msra.mxu0 0.0
        %1310 = vmatprep.subr.mxu0 0.0
        %1311 = vmatpush1.msra.mxu0 0.0
        %1312 = vmatprep.subr.mxu0 0.0
        %1313 = vmatpush1.msra.mxu0 0.0
        %1314 = vmatprep.subr.mxu0 0.0
        %1315 = vmatpush1.msra.mxu0 0.0
        %1316 = vmatprep.subr.mxu0 0.0
        %1317 = vmatpush1.msra.mxu0 0.0
        %1318 = vmatprep.subr.mxu0 0.0
        %1319 = vmatpush1.msra.mxu0 0.0
        %1320 = vmatprep.subr.mxu0 0.0
        %1321 = vmatpush1.msra.mxu0 0.0
        %1322 = vmatprep.subr.mxu0 0.0
        %1323 = vmatpush1.msra.mxu0 0.0
        %1324 = vmatprep.subr.mxu0 0.0
        %1325 = vmatpush1.msra.mxu0 0.0
        %1326 = vmatprep.subr.mxu0 0.0
        %1327 = vmatpush1.msra.mxu0 0.0
        %1328 = vmatprep.subr.mxu0 0.0
        %1329 = vmatpush1.msra.mxu0 0.0
        %1330 = vmatprep.subr.mxu0 0.0
        %1331 = vmatpush1.msra.mxu0 0.0
        %1332 = vmatprep.mubr.f32.mxu0 0.0
        %1333 = vmatmul.mubr.f32.gmra.mrb[0].mxu0 %v1175
        %v1334 = vpop.f32.mrb[0].mxu0
        %v1335 = vadd.f32 %v1164, %v1334
        %v1336 = vpop.f32.mrb[0].mxu0
        %v1337 = vadd.f32 %v1166, %v1336
        %1338 = vmatprep.mubr.f32.mxu0 0.0
        %1339 = vmatmul.mubr.f32.gmra.mrb[0].mxu0 %v1177
        %v1340 = vpop.f32.mrb[0].mxu0
        %v1341 = vadd.f32 %v1170, %v1340
        %v1342 = vpop.f32.mrb[0].mxu0
        %v1343 = vadd.f32 %v1172, %v1342
        %1344 = vdwg.mxu0
        %s1345 = scalar_lea.vmem %s2, 256
        %v1346 = vld [vmem:[%s1345] sm:$0xff]
        %v1347 = vld [vmem:[%s1345 + $0x8] sm:$0xff]
        %v1348 = vld [vmem:[%s1345 + $0x10] sm:$0xff]
        %v1349 = vld [vmem:[%s1345 + $0x18] sm:$0xff]
        %v1350 = vld [vmem:[%s1345 + $0x20] sm:$0xff]
        %v1351 = vld [vmem:[%s1345 + $0x28] sm:$0xff]
        %v1352 = vld [vmem:[%s1345 + $0x30] sm:$0xff]
        %v1353 = vld [vmem:[%s1345 + $0x38] sm:$0xff]
        %v1354 = vld [vmem:[%s1345 + $0x40] sm:$0xff]
        %v1355 = vld [vmem:[%s1345 + $0x48] sm:$0xff]
        %v1356 = vld [vmem:[%s1345 + $0x50] sm:$0xff]
        %v1357 = vld [vmem:[%s1345 + $0x58] sm:$0xff]
        %v1358 = vld [vmem:[%s1345 + $0x60] sm:$0xf]
        %v1359 = vld [vmem:[%s1345 + $0x68] sm:$0xf]
        %v1360 = vld [vmem:[%s1345 + $0x70] sm:$0xf]
        %v1361 = vld [vmem:[%s1345 + $0x78] sm:$0xf]
        %v1364 = vrot.slane %v944, 4
        %v1365 = vrot.slane %v949, 4
        %v1366 = vsel %vm858, %v1364, %v1365
        %v1367 = vrot.slane %v954, 4
        %v1368 = vsel %vm858, %v1365, %v1367
        %v1369 = vsel %vm836, %v1366, 0
        %v1371 = vsel %vm836, %v1368, 0
        %v1374 = vsel %vm858, %v1358, 0
        %v1377 = vsel %vm858, %v1359, 0
        %v1380 = vsel %vm858, %v1360, 0
        %v1383 = vsel %vm858, %v1361, 0
        %1385 = vmatprep.subr.mxu0 %v1347
        %1386 = vmatpush1.msra.mxu0 %v1346
        %1387 = vmatprep.subr.mxu0 %v1351
        %1388 = vmatpush1.msra.mxu0 %v1350
        %1389 = vmatprep.subr.mxu0 %v1355
        %1390 = vmatpush1.msra.mxu0 %v1354
        %1391 = vmatprep.subr.mxu0 %v1377
        %1392 = vmatpush1.msra.mxu0 %v1374
        %1393 = vmatprep.subr.mxu0 0.0
        %1394 = vmatpush1.msra.mxu0 0.0
        %1395 = vmatprep.subr.mxu0 0.0
        %1396 = vmatpush1.msra.mxu0 0.0
        %1397 = vmatprep.subr.mxu0 0.0
        %1398 = vmatpush1.msra.mxu0 0.0
        %1399 = vmatprep.subr.mxu0 0.0
        %1400 = vmatpush1.msra.mxu0 0.0
        %1401 = vmatprep.subr.mxu0 0.0
        %1402 = vmatpush1.msra.mxu0 0.0
        %1403 = vmatprep.subr.mxu0 0.0
        %1404 = vmatpush1.msra.mxu0 0.0
        %1405 = vmatprep.subr.mxu0 0.0
        %1406 = vmatpush1.msra.mxu0 0.0
        %1407 = vmatprep.subr.mxu0 0.0
        %1408 = vmatpush1.msra.mxu0 0.0
        %1409 = vmatprep.subr.mxu0 0.0
        %1410 = vmatpush1.msra.mxu0 0.0
        %1411 = vmatprep.subr.mxu0 0.0
        %1412 = vmatpush1.msra.mxu0 0.0
        %1413 = vmatprep.subr.mxu0 0.0
        %1414 = vmatpush1.msra.mxu0 0.0
        %1415 = vmatprep.subr.mxu0 0.0
        %1416 = vmatpush1.msra.mxu0 0.0
        %1417 = vmatprep.subr.mxu0 0.0
        %1418 = vmatpush1.msra.mxu0 0.0
        %1419 = vmatprep.subr.mxu0 0.0
        %1420 = vmatpush1.msra.mxu0 0.0
        %1421 = vmatprep.subr.mxu0 0.0
        %1422 = vmatpush1.msra.mxu0 0.0
        %1423 = vmatprep.subr.mxu0 0.0
        %1424 = vmatpush1.msra.mxu0 0.0
        %1425 = vmatprep.subr.mxu0 0.0
        %1426 = vmatpush1.msra.mxu0 0.0
        %1427 = vmatprep.subr.mxu0 0.0
        %1428 = vmatpush1.msra.mxu0 0.0
        %1429 = vmatprep.subr.mxu0 0.0
        %1430 = vmatpush1.msra.mxu0 0.0
        %1431 = vmatprep.subr.mxu0 0.0
        %1432 = vmatpush1.msra.mxu0 0.0
        %1433 = vmatprep.subr.mxu0 0.0
        %1434 = vmatpush1.msra.mxu0 0.0
        %1435 = vmatprep.subr.mxu0 0.0
        %1436 = vmatpush1.msra.mxu0 0.0
        %1437 = vmatprep.subr.mxu0 0.0
        %1438 = vmatpush1.msra.mxu0 0.0
        %1439 = vmatprep.subr.mxu0 0.0
        %1440 = vmatpush1.msra.mxu0 0.0
        %1441 = vmatprep.subr.mxu0 0.0
        %1442 = vmatpush1.msra.mxu0 0.0
        %1443 = vmatprep.subr.mxu0 0.0
        %1444 = vmatpush1.msra.mxu0 0.0
        %1445 = vmatprep.subr.mxu0 0.0
        %1446 = vmatpush1.msra.mxu0 0.0
        %1447 = vmatprep.subr.mxu0 0.0
        %1448 = vmatpush1.msra.mxu0 0.0
        %1449 = vmatprep.mubr.f32.mxu0 0.0
        %1450 = vmatmul.mubr.f32.gmra.mrb[0].mxu0 %v1369
        %v1451 = vpop.f32.mrb[0].mxu0
        %v1452 = vadd.f32 0.0, %v1451
        %v1453 = vpop.f32.mrb[0].mxu0
        %v1454 = vadd.f32 0.0, %v1453
        %1455 = vmatprep.mubr.f32.mxu0 0.0
        %1456 = vmatmul.mubr.f32.gmra.mrb[0].mxu0 %v1371
        %v1457 = vpop.f32.mrb[0].mxu0
        %v1458 = vadd.f32 0.0, %v1457
        %v1459 = vpop.f32.mrb[0].mxu0
        %v1460 = vadd.f32 0.0, %v1459
        %1461 = vdwg.mxu0
        %1462 = vmatprep.subr.mxu0 %v1349
        %1463 = vmatpush1.msra.mxu0 %v1348
        %1464 = vmatprep.subr.mxu0 %v1353
        %1465 = vmatpush1.msra.mxu0 %v1352
        %1466 = vmatprep.subr.mxu0 %v1357
        %1467 = vmatpush1.msra.mxu0 %v1356
        %1468 = vmatprep.subr.mxu0 %v1383
        %1469 = vmatpush1.msra.mxu0 %v1380
        %1470 = vmatprep.subr.mxu0 0.0
        %1471 = vmatpush1.msra.mxu0 0.0
        %1472 = vmatprep.subr.mxu0 0.0
        %1473 = vmatpush1.msra.mxu0 0.0
        %1474 = vmatprep.subr.mxu0 0.0
        %1475 = vmatpush1.msra.mxu0 0.0
        %1476 = vmatprep.subr.mxu0 0.0
        %1477 = vmatpush1.msra.mxu0 0.0
        %1478 = vmatprep.subr.mxu0 0.0
        %1479 = vmatpush1.msra.mxu0 0.0
        %1480 = vmatprep.subr.mxu0 0.0
        %1481 = vmatpush1.msra.mxu0 0.0
        %1482 = vmatprep.subr.mxu0 0.0
        %1483 = vmatpush1.msra.mxu0 0.0
        %1484 = vmatprep.subr.mxu0 0.0
        %1485 = vmatpush1.msra.mxu0 0.0
        %1486 = vmatprep.subr.mxu0 0.0
        %1487 = vmatpush1.msra.mxu0 0.0
        %1488 = vmatprep.subr.mxu0 0.0
        %1489 = vmatpush1.msra.mxu0 0.0
        %1490 = vmatprep.subr.mxu0 0.0
        %1491 = vmatpush1.msra.mxu0 0.0
        %1492 = vmatprep.subr.mxu0 0.0
        %1493 = vmatpush1.msra.mxu0 0.0
        %1494 = vmatprep.subr.mxu0 0.0
        %1495 = vmatpush1.msra.mxu0 0.0
        %1496 = vmatprep.subr.mxu0 0.0
        %1497 = vmatpush1.msra.mxu0 0.0
        %1498 = vmatprep.subr.mxu0 0.0
        %1499 = vmatpush1.msra.mxu0 0.0
        %1500 = vmatprep.subr.mxu0 0.0
        %1501 = vmatpush1.msra.mxu0 0.0
        %1502 = vmatprep.subr.mxu0 0.0
        %1503 = vmatpush1.msra.mxu0 0.0
        %1504 = vmatprep.subr.mxu0 0.0
        %1505 = vmatpush1.msra.mxu0 0.0
        %1506 = vmatprep.subr.mxu0 0.0
        %1507 = vmatpush1.msra.mxu0 0.0
        %1508 = vmatprep.subr.mxu0 0.0
        %1509 = vmatpush1.msra.mxu0 0.0
        %1510 = vmatprep.subr.mxu0 0.0
        %1511 = vmatpush1.msra.mxu0 0.0
        %1512 = vmatprep.subr.mxu0 0.0
        %1513 = vmatpush1.msra.mxu0 0.0
        %1514 = vmatprep.subr.mxu0 0.0
        %1515 = vmatpush1.msra.mxu0 0.0
        %1516 = vmatprep.subr.mxu0 0.0
        %1517 = vmatpush1.msra.mxu0 0.0
        %1518 = vmatprep.subr.mxu0 0.0
        %1519 = vmatpush1.msra.mxu0 0.0
        %1520 = vmatprep.subr.mxu0 0.0
        %1521 = vmatpush1.msra.mxu0 0.0
        %1522 = vmatprep.subr.mxu0 0.0
        %1523 = vmatpush1.msra.mxu0 0.0
        %1524 = vmatprep.subr.mxu0 0.0
        %1525 = vmatpush1.msra.mxu0 0.0
        %1526 = vmatprep.mubr.f32.mxu0 0.0
        %1527 = vmatmul.mubr.f32.gmra.mrb[0].mxu0 %v1369
        %v1528 = vpop.f32.mrb[0].mxu0
        %v1529 = vadd.f32 0.0, %v1528
        %v1530 = vpop.f32.mrb[0].mxu0
        %v1531 = vadd.f32 0.0, %v1530
        %1532 = vmatprep.mubr.f32.mxu0 0.0
        %1533 = vmatmul.mubr.f32.gmra.mrb[0].mxu0 %v1371
        %v1534 = vpop.f32.mrb[0].mxu0
        %v1535 = vadd.f32 0.0, %v1534
        %v1536 = vpop.f32.mrb[0].mxu0
        %v1537 = vadd.f32 0.0, %v1536
        %1538 = vdwg.mxu0
        %v1539 = vadd.f32 %v1258, %v1452
        %v1540 = vadd.f32 %v1260, %v1454
        %v1541 = vadd.f32 %v1335, %v1529
        %v1542 = vadd.f32 %v1337, %v1531
        %v1543 = vadd.f32 %v1264, %v1458
        %v1544 = vadd.f32 %v1266, %v1460
        %v1545 = vadd.f32 %v1341, %v1535
        %v1546 = vadd.f32 %v1343, %v1537
        %s1547 = scalar_lea.vmem %s2, 384
        %v1548 = vld [vmem:[%s1547] sm:$0xff]
        %v1549 = vld [vmem:[%s1547 + $0x8] sm:$0xff]
        %v1550 = vld [vmem:[%s1547 + $0x10] sm:$0xff]
        %v1551 = vld [vmem:[%s1547 + $0x18] sm:$0xff]
        %v1552 = vld [vmem:[%s1547 + $0x20] sm:$0xff]
        %v1553 = vld [vmem:[%s1547 + $0x28] sm:$0xff]
        %v1554 = vld [vmem:[%s1547 + $0x30] sm:$0xff]
        %v1555 = vld [vmem:[%s1547 + $0x38] sm:$0xff]
        %v1556 = vld [vmem:[%s1547 + $0x40] sm:$0xff]
        %v1557 = vld [vmem:[%s1547 + $0x48] sm:$0xff]
        %v1558 = vld [vmem:[%s1547 + $0x50] sm:$0xff]
        %v1559 = vld [vmem:[%s1547 + $0x58] sm:$0xff]
        %v1560 = vld [vmem:[%s1547 + $0x60] sm:$0xf]
        %v1561 = vld [vmem:[%s1547 + $0x68] sm:$0xf]
        %v1562 = vld [vmem:[%s1547 + $0x70] sm:$0xf]
        %v1563 = vld [vmem:[%s1547 + $0x78] sm:$0xf]
        %vm1565 = vcmask 1045504
        %v1566 = vrot.slane %v954, 2
        %v1567 = vrot.slane %v959, 2
        %v1568 = vsel %vm1565, %v1566, %v1567
        %v1569 = vsel %vm836, %v1568, 0
        %v1571 = vsel %vm836, %v1567, 0
        %v1574 = vsel %vm858, %v1560, 0
        %v1577 = vsel %vm858, %v1561, 0
        %v1580 = vsel %vm858, %v1562, 0
        %v1583 = vsel %vm858, %v1563, 0
        %1585 = vmatprep.subr.mxu0 %v1549
        %1586 = vmatpush1.msra.mxu0 %v1548
        %1587 = vmatprep.subr.mxu0 %v1553
        %1588 = vmatpush1.msra.mxu0 %v1552
        %1589 = vmatprep.subr.mxu0 %v1557
        %1590 = vmatpush1.msra.mxu0 %v1556
        %1591 = vmatprep.subr.mxu0 %v1577
        %1592 = vmatpush1.msra.mxu0 %v1574
        %1593 = vmatprep.subr.mxu0 0.0
        %1594 = vmatpush1.msra.mxu0 0.0
        %1595 = vmatprep.subr.mxu0 0.0
        %1596 = vmatpush1.msra.mxu0 0.0
        %1597 = vmatprep.subr.mxu0 0.0
        %1598 = vmatpush1.msra.mxu0 0.0
        %1599 = vmatprep.subr.mxu0 0.0
        %1600 = vmatpush1.msra.mxu0 0.0
        %1601 = vmatprep.subr.mxu0 0.0
        %1602 = vmatpush1.msra.mxu0 0.0
        %1603 = vmatprep.subr.mxu0 0.0
        %1604 = vmatpush1.msra.mxu0 0.0
        %1605 = vmatprep.subr.mxu0 0.0
        %1606 = vmatpush1.msra.mxu0 0.0
        %1607 = vmatprep.subr.mxu0 0.0
        %1608 = vmatpush1.msra.mxu0 0.0
        %1609 = vmatprep.subr.mxu0 0.0
        %1610 = vmatpush1.msra.mxu0 0.0
        %1611 = vmatprep.subr.mxu0 0.0
        %1612 = vmatpush1.msra.mxu0 0.0
        %1613 = vmatprep.subr.mxu0 0.0
        %1614 = vmatpush1.msra.mxu0 0.0
        %1615 = vmatprep.subr.mxu0 0.0
        %1616 = vmatpush1.msra.mxu0 0.0
        %1617 = vmatprep.subr.mxu0 0.0
        %1618 = vmatpush1.msra.mxu0 0.0
        %1619 = vmatprep.subr.mxu0 0.0
        %1620 = vmatpush1.msra.mxu0 0.0
        %1621 = vmatprep.subr.mxu0 0.0
        %1622 = vmatpush1.msra.mxu0 0.0
        %1623 = vmatprep.subr.mxu0 0.0
        %1624 = vmatpush1.msra.mxu0 0.0
        %1625 = vmatprep.subr.mxu0 0.0
        %1626 = vmatpush1.msra.mxu0 0.0
        %1627 = vmatprep.subr.mxu0 0.0
        %1628 = vmatpush1.msra.mxu0 0.0
        %1629 = vmatprep.subr.mxu0 0.0
        %1630 = vmatpush1.msra.mxu0 0.0
        %1631 = vmatprep.subr.mxu0 0.0
        %1632 = vmatpush1.msra.mxu0 0.0
        %1633 = vmatprep.subr.mxu0 0.0
        %1634 = vmatpush1.msra.mxu0 0.0
        %1635 = vmatprep.subr.mxu0 0.0
        %1636 = vmatpush1.msra.mxu0 0.0
        %1637 = vmatprep.subr.mxu0 0.0
        %1638 = vmatpush1.msra.mxu0 0.0
        %1639 = vmatprep.subr.mxu0 0.0
        %1640 = vmatpush1.msra.mxu0 0.0
        %1641 = vmatprep.subr.mxu0 0.0
        %1642 = vmatpush1.msra.mxu0 0.0
        %1643 = vmatprep.subr.mxu0 0.0
        %1644 = vmatpush1.msra.mxu0 0.0
        %1645 = vmatprep.subr.mxu0 0.0
        %1646 = vmatpush1.msra.mxu0 0.0
        %1647 = vmatprep.subr.mxu0 0.0
        %1648 = vmatpush1.msra.mxu0 0.0
        %1649 = vmatprep.mubr.f32.mxu0 0.0
        %1650 = vmatmul.mubr.f32.gmra.mrb[0].mxu0 %v1569
        %v1651 = vpop.f32.mrb[0].mxu0
        %v1652 = vadd.f32 0.0, %v1651
        %v1653 = vpop.f32.mrb[0].mxu0
        %v1654 = vadd.f32 0.0, %v1653
        %1655 = vmatprep.mubr.f32.mxu0 0.0
        %1656 = vmatmul.mubr.f32.gmra.mrb[0].mxu0 %v1571
        %v1657 = vpop.f32.mrb[0].mxu0
        %v1658 = vadd.f32 0.0, %v1657
        %v1659 = vpop.f32.mrb[0].mxu0
        %v1660 = vadd.f32 0.0, %v1659
        %1661 = vdwg.mxu0
        %1662 = vmatprep.subr.mxu0 %v1551
        %1663 = vmatpush1.msra.mxu0 %v1550
        %1664 = vmatprep.subr.mxu0 %v1555
        %1665 = vmatpush1.msra.mxu0 %v1554
        %1666 = vmatprep.subr.mxu0 %v1559
        %1667 = vmatpush1.msra.mxu0 %v1558
        %1668 = vmatprep.subr.mxu0 %v1583
        %1669 = vmatpush1.msra.mxu0 %v1580
        %1670 = vmatprep.subr.mxu0 0.0
        %1671 = vmatpush1.msra.mxu0 0.0
        %1672 = vmatprep.subr.mxu0 0.0
        %1673 = vmatpush1.msra.mxu0 0.0
        %1674 = vmatprep.subr.mxu0 0.0
        %1675 = vmatpush1.msra.mxu0 0.0
        %1676 = vmatprep.subr.mxu0 0.0
        %1677 = vmatpush1.msra.mxu0 0.0
        %1678 = vmatprep.subr.mxu0 0.0
        %1679 = vmatpush1.msra.mxu0 0.0
        %1680 = vmatprep.subr.mxu0 0.0
        %1681 = vmatpush1.msra.mxu0 0.0
        %1682 = vmatprep.subr.mxu0 0.0
        %1683 = vmatpush1.msra.mxu0 0.0
        %1684 = vmatprep.subr.mxu0 0.0
        %1685 = vmatpush1.msra.mxu0 0.0
        %1686 = vmatprep.subr.mxu0 0.0
        %1687 = vmatpush1.msra.mxu0 0.0
        %1688 = vmatprep.subr.mxu0 0.0
        %1689 = vmatpush1.msra.mxu0 0.0
        %1690 = vmatprep.subr.mxu0 0.0
        %1691 = vmatpush1.msra.mxu0 0.0
        %1692 = vmatprep.subr.mxu0 0.0
        %1693 = vmatpush1.msra.mxu0 0.0
        %1694 = vmatprep.subr.mxu0 0.0
        %1695 = vmatpush1.msra.mxu0 0.0
        %1696 = vmatprep.subr.mxu0 0.0
        %1697 = vmatpush1.msra.mxu0 0.0
        %1698 = vmatprep.subr.mxu0 0.0
        %1699 = vmatpush1.msra.mxu0 0.0
        %1700 = vmatprep.subr.mxu0 0.0
        %1701 = vmatpush1.msra.mxu0 0.0
        %1702 = vmatprep.subr.mxu0 0.0
        %1703 = vmatpush1.msra.mxu0 0.0
        %1704 = vmatprep.subr.mxu0 0.0
        %1705 = vmatpush1.msra.mxu0 0.0
        %1706 = vmatprep.subr.mxu0 0.0
        %1707 = vmatpush1.msra.mxu0 0.0
        %1708 = vmatprep.subr.mxu0 0.0
        %1709 = vmatpush1.msra.mxu0 0.0
        %1710 = vmatprep.subr.mxu0 0.0
        %1711 = vmatpush1.msra.mxu0 0.0
        %1712 = vmatprep.subr.mxu0 0.0
        %1713 = vmatpush1.msra.mxu0 0.0
        %1714 = vmatprep.subr.mxu0 0.0
        %1715 = vmatpush1.msra.mxu0 0.0
        %1716 = vmatprep.subr.mxu0 0.0
        %1717 = vmatpush1.msra.mxu0 0.0
        %1718 = vmatprep.subr.mxu0 0.0
        %1719 = vmatpush1.msra.mxu0 0.0
        %1720 = vmatprep.subr.mxu0 0.0
        %1721 = vmatpush1.msra.mxu0 0.0
        %1722 = vmatprep.subr.mxu0 0.0
        %1723 = vmatpush1.msra.mxu0 0.0
        %1724 = vmatprep.subr.mxu0 0.0
        %1725 = vmatpush1.msra.mxu0 0.0
        %1726 = vmatprep.mubr.f32.mxu0 0.0
        %1727 = vmatmul.mubr.f32.gmra.mrb[0].mxu0 %v1569
        %v1728 = vpop.f32.mrb[0].mxu0
        %v1729 = vadd.f32 0.0, %v1728
        %v1730 = vpop.f32.mrb[0].mxu0
        %v1731 = vadd.f32 0.0, %v1730
        %1732 = vmatprep.mubr.f32.mxu0 0.0
        %1733 = vmatmul.mubr.f32.gmra.mrb[0].mxu0 %v1571
        %v1734 = vpop.f32.mrb[0].mxu0
        %v1735 = vadd.f32 0.0, %v1734
        %v1736 = vpop.f32.mrb[0].mxu0
        %v1737 = vadd.f32 0.0, %v1736
        %1738 = vdwg.mxu0
        %v1739 = vadd.f32 %v1539, %v1652
        %v1740 = vadd.f32 %v1540, %v1654
        %v1741 = vadd.f32 %v1541, %v1729
        %v1742 = vadd.f32 %v1542, %v1731
        %v1743 = vadd.f32 %v1543, %v1658
        %v1744 = vadd.f32 %v1544, %v1660
        %v1745 = vadd.f32 %v1545, %v1735
        %v1746 = vadd.f32 %v1546, %v1737
        %v1747 = vld [vmem:[#allocation2] sm:$0xf]
        %v1749 = vlaneseq
        %v1750 = vshrl.u32 %v1749, 7
        %v1751 = vsub.s32 0, %v1750
        %v1752 = vrot.slane %v1747, %v1751
        %v1753 = vlaneseq
        %v1754 = vshrl.u32 %v1753, 7
        %v1755 = vsub.s32 1, %v1754
        %v1756 = vrot.slane %v1747, %v1755
        %v1757 = vlaneseq
        %v1758 = vshrl.u32 %v1757, 7
        %v1759 = vsub.s32 2, %v1758
        %v1760 = vrot.slane %v1747, %v1759
        %v1761 = vlaneseq
        %v1762 = vshrl.u32 %v1761, 7
        %v1763 = vsub.s32 3, %v1762
        %v1764 = vrot.slane %v1747, %v1763
        %v1769 = vadd.f32 %v1739, %v1752
        %v1770 = vadd.f32 %v1740, %v1756
        %v1771 = vadd.f32 %v1741, %v1760
        %v1772 = vadd.f32 %v1742, %v1764
        %v1773 = vadd.f32 %v1743, %v1752
        %v1774 = vadd.f32 %v1744, %v1756
        %v1775 = vadd.f32 %v1745, %v1760
        %v1776 = vadd.f32 %v1746, %v1764
        %v1777 = vmul.f32 %v1769, 0.2
        %v1778 = vmul.f32 %v1770, 0.2
        %v1779 = vmul.f32 %v1771, 0.2
        %v1780 = vmul.f32 %v1772, 0.2
        %v1781 = vmul.f32 %v1773, 0.2
        %v1782 = vmul.f32 %v1774, 0.2
        %v1783 = vmul.f32 %v1775, 0.2
        %v1784 = vmul.f32 %v1776, 0.2
        %v1785 = vmax.f32 %v1769, %v1777
        %v1786 = vmax.f32 %v1770, %v1778
        %v1787 = vmax.f32 %v1771, %v1779
        %v1788 = vmax.f32 %v1772, %v1780
        %v1789 = vmax.f32 %v1773, %v1781
        %v1790 = vmax.f32 %v1774, %v1782
        %v1791 = vmax.f32 %v1775, %v1783
        %v1792 = vmax.f32 %v1776, %v1784
        %v1793 = vld [vmem:[%s4] sm:$0xff]
        %v1794 = vld [vmem:[%s4 + $0x8] sm:$0xff]
        %v1795 = vld [vmem:[%s4 + $0x10] sm:$0xff]
        %v1796 = vld [vmem:[%s4 + $0x18] sm:$0xff]
        %vm1797 = vcmask 113664
        %v1799 = vsel %vm1797, %v1793, 0
        %v1802 = vsel %vm1797, %v1794, 0
        %v1805 = vsel %vm1797, %v1795, 0
        %v1808 = vsel %vm1797, %v1796, 0
        %v1811 = vsel %vm1565, %v1789, 0
        %v1814 = vsel %vm1565, %v1790, 0
        %v1817 = vsel %vm1565, %v1791, 0
        %v1820 = vsel %vm1565, %v1792, 0
        %1822 = vmatprep.subr.mxu0 %v1786
        %1823 = vmatpush1.msra.mxu0 %v1785
        %1824 = vmatprep.subr.mxu0 %v1814
        %1825 = vmatpush1.msra.mxu0 %v1811
        %1826 = vmatprep.subr.mxu0 0.0
        %1827 = vmatpush1.msra.mxu0 0.0
        %1828 = vmatprep.subr.mxu0 0.0
        %1829 = vmatpush1.msra.mxu0 0.0
        %1830 = vmatprep.subr.mxu0 0.0
        %1831 = vmatpush1.msra.mxu0 0.0
        %1832 = vmatprep.subr.mxu0 0.0
        %1833 = vmatpush1.msra.mxu0 0.0
        %1834 = vmatprep.subr.mxu0 0.0
        %1835 = vmatpush1.msra.mxu0 0.0
        %1836 = vmatprep.subr.mxu0 0.0
        %1837 = vmatpush1.msra.mxu0 0.0
        %1838 = vmatprep.subr.mxu0 0.0
        %1839 = vmatpush1.msra.mxu0 0.0
        %1840 = vmatprep.subr.mxu0 0.0
        %1841 = vmatpush1.msra.mxu0 0.0
        %1842 = vmatprep.subr.mxu0 0.0
        %1843 = vmatpush1.msra.mxu0 0.0
        %1844 = vmatprep.subr.mxu0 0.0
        %1845 = vmatpush1.msra.mxu0 0.0
        %1846 = vmatprep.subr.mxu0 0.0
        %1847 = vmatpush1.msra.mxu0 0.0
        %1848 = vmatprep.subr.mxu0 0.0
        %1849 = vmatpush1.msra.mxu0 0.0
        %1850 = vmatprep.subr.mxu0 0.0
        %1851 = vmatpush1.msra.mxu0 0.0
        %1852 = vmatprep.subr.mxu0 0.0
        %1853 = vmatpush1.msra.mxu0 0.0
        %1854 = vmatprep.subr.mxu0 0.0
        %1855 = vmatpush1.msra.mxu0 0.0
        %1856 = vmatprep.subr.mxu0 0.0
        %1857 = vmatpush1.msra.mxu0 0.0
        %1858 = vmatprep.subr.mxu0 0.0
        %1859 = vmatpush1.msra.mxu0 0.0
        %1860 = vmatprep.subr.mxu0 0.0
        %1861 = vmatpush1.msra.mxu0 0.0
        %1862 = vmatprep.subr.mxu0 0.0
        %1863 = vmatpush1.msra.mxu0 0.0
        %1864 = vmatprep.subr.mxu0 0.0
        %1865 = vmatpush1.msra.mxu0 0.0
        %1866 = vmatprep.subr.mxu0 0.0
        %1867 = vmatpush1.msra.mxu0 0.0
        %1868 = vmatprep.subr.mxu0 0.0
        %1869 = vmatpush1.msra.mxu0 0.0
        %1870 = vmatprep.subr.mxu0 0.0
        %1871 = vmatpush1.msra.mxu0 0.0
        %1872 = vmatprep.subr.mxu0 0.0
        %1873 = vmatpush1.msra.mxu0 0.0
        %1874 = vmatprep.subr.mxu0 0.0
        %1875 = vmatpush1.msra.mxu0 0.0
        %1876 = vmatprep.subr.mxu0 0.0
        %1877 = vmatpush1.msra.mxu0 0.0
        %1878 = vmatprep.subr.mxu0 0.0
        %1879 = vmatpush1.msra.mxu0 0.0
        %1880 = vmatprep.subr.mxu0 0.0
        %1881 = vmatpush1.msra.mxu0 0.0
        %1882 = vmatprep.subr.mxu0 0.0
        %1883 = vmatpush1.msra.mxu0 0.0
        %1884 = vmatprep.subr.mxu0 0.0
        %1885 = vmatpush1.msra.mxu0 0.0
        %1886 = vmatprep.mubr.f32.mxu0 0.0
        %1887 = vmatmul.mubr.f32.gmra.mrb[0].mxu0 %v1799
        %v1888 = vpop.f32.mrb[0].mxu0
        %v1889 = vadd.f32 0.0, %v1888
        %v1890 = vpop.f32.mrb[0].mxu0
        %v1891 = vadd.f32 0.0, %v1890
        %1892 = vmatprep.mubr.f32.mxu0 0.0
        %1893 = vmatmul.mubr.f32.gmra.mrb[0].mxu0 %v1802
        %v1894 = vpop.f32.mrb[0].mxu0
        %v1895 = vadd.f32 0.0, %v1894
        %v1896 = vpop.f32.mrb[0].mxu0
        %v1897 = vadd.f32 0.0, %v1896
        %1898 = vmatprep.mubr.f32.mxu0 0.0
        %1899 = vmatmul.mubr.f32.gmra.mrb[0].mxu0 %v1805
        %v1900 = vpop.f32.mrb[0].mxu0
        %v1901 = vadd.f32 0.0, %v1900
        %v1902 = vpop.f32.mrb[0].mxu0
        %v1903 = vadd.f32 0.0, %v1902
        %1904 = vmatprep.mubr.f32.mxu0 0.0
        %1905 = vmatmul.mubr.f32.gmra.mrb[0].mxu0 %v1808
        %v1906 = vpop.f32.mrb[0].mxu0
        %v1907 = vadd.f32 0.0, %v1906
        %v1908 = vpop.f32.mrb[0].mxu0
        %v1909 = vadd.f32 0.0, %v1908
        %1910 = vdwg.mxu0
        %1911 = vmatprep.subr.mxu0 %v1788
        %1912 = vmatpush1.msra.mxu0 %v1787
        %1913 = vmatprep.subr.mxu0 %v1820
        %1914 = vmatpush1.msra.mxu0 %v1817
        %1915 = vmatprep.subr.mxu0 0.0
        %1916 = vmatpush1.msra.mxu0 0.0
        %1917 = vmatprep.subr.mxu0 0.0
        %1918 = vmatpush1.msra.mxu0 0.0
        %1919 = vmatprep.subr.mxu0 0.0
        %1920 = vmatpush1.msra.mxu0 0.0
        %1921 = vmatprep.subr.mxu0 0.0
        %1922 = vmatpush1.msra.mxu0 0.0
        %1923 = vmatprep.subr.mxu0 0.0
        %1924 = vmatpush1.msra.mxu0 0.0
        %1925 = vmatprep.subr.mxu0 0.0
        %1926 = vmatpush1.msra.mxu0 0.0
        %1927 = vmatprep.subr.mxu0 0.0
        %1928 = vmatpush1.msra.mxu0 0.0
        %1929 = vmatprep.subr.mxu0 0.0
        %1930 = vmatpush1.msra.mxu0 0.0
        %1931 = vmatprep.subr.mxu0 0.0
        %1932 = vmatpush1.msra.mxu0 0.0
        %1933 = vmatprep.subr.mxu0 0.0
        %1934 = vmatpush1.msra.mxu0 0.0
        %1935 = vmatprep.subr.mxu0 0.0
        %1936 = vmatpush1.msra.mxu0 0.0
        %1937 = vmatprep.subr.mxu0 0.0
        %1938 = vmatpush1.msra.mxu0 0.0
        %1939 = vmatprep.subr.mxu0 0.0
        %1940 = vmatpush1.msra.mxu0 0.0
        %1941 = vmatprep.subr.mxu0 0.0
        %1942 = vmatpush1.msra.mxu0 0.0
        %1943 = vmatprep.subr.mxu0 0.0
        %1944 = vmatpush1.msra.mxu0 0.0
        %1945 = vmatprep.subr.mxu0 0.0
        %1946 = vmatpush1.msra.mxu0 0.0
        %1947 = vmatprep.subr.mxu0 0.0
        %1948 = vmatpush1.msra.mxu0 0.0
        %1949 = vmatprep.subr.mxu0 0.0
        %1950 = vmatpush1.msra.mxu0 0.0
        %1951 = vmatprep.subr.mxu0 0.0
        %1952 = vmatpush1.msra.mxu0 0.0
        %1953 = vmatprep.subr.mxu0 0.0
        %1954 = vmatpush1.msra.mxu0 0.0
        %1955 = vmatprep.subr.mxu0 0.0
        %1956 = vmatpush1.msra.mxu0 0.0
        %1957 = vmatprep.subr.mxu0 0.0
        %1958 = vmatpush1.msra.mxu0 0.0
        %1959 = vmatprep.subr.mxu0 0.0
        %1960 = vmatpush1.msra.mxu0 0.0
        %1961 = vmatprep.subr.mxu0 0.0
        %1962 = vmatpush1.msra.mxu0 0.0
        %1963 = vmatprep.subr.mxu0 0.0
        %1964 = vmatpush1.msra.mxu0 0.0
        %1965 = vmatprep.subr.mxu0 0.0
        %1966 = vmatpush1.msra.mxu0 0.0
        %1967 = vmatprep.subr.mxu0 0.0
        %1968 = vmatpush1.msra.mxu0 0.0
        %1969 = vmatprep.subr.mxu0 0.0
        %1970 = vmatpush1.msra.mxu0 0.0
        %1971 = vmatprep.subr.mxu0 0.0
        %1972 = vmatpush1.msra.mxu0 0.0
        %1973 = vmatprep.subr.mxu0 0.0
        %1974 = vmatpush1.msra.mxu0 0.0
        %1975 = vmatprep.mubr.f32.mxu0 0.0
        %1976 = vmatmul.mubr.f32.gmra.mrb[0].mxu0 %v1799
        %v1977 = vpop.f32.mrb[0].mxu0
        %v1978 = vadd.f32 0.0, %v1977
        %v1979 = vpop.f32.mrb[0].mxu0
        %v1980 = vadd.f32 0.0, %v1979
        %1981 = vmatprep.mubr.f32.mxu0 0.0
        %1982 = vmatmul.mubr.f32.gmra.mrb[0].mxu0 %v1802
        %v1983 = vpop.f32.mrb[0].mxu0
        %v1984 = vadd.f32 0.0, %v1983
        %v1985 = vpop.f32.mrb[0].mxu0
        %v1986 = vadd.f32 0.0, %v1985
        %1987 = vmatprep.mubr.f32.mxu0 0.0
        %1988 = vmatmul.mubr.f32.gmra.mrb[0].mxu0 %v1805
        %v1989 = vpop.f32.mrb[0].mxu0
        %v1990 = vadd.f32 0.0, %v1989
        %v1991 = vpop.f32.mrb[0].mxu0
        %v1992 = vadd.f32 0.0, %v1991
        %1993 = vmatprep.mubr.f32.mxu0 0.0
        %1994 = vmatmul.mubr.f32.gmra.mrb[0].mxu0 %v1808
        %v1995 = vpop.f32.mrb[0].mxu0
        %v1996 = vadd.f32 0.0, %v1995
        %v1997 = vpop.f32.mrb[0].mxu0
        %v1998 = vadd.f32 0.0, %v1997
        %1999 = vdwg.mxu0
        %v2000 = vld [vmem:[#allocation5] sm:$0xff]
        %v2001 = vld [vmem:[#allocation5 + $0x8] sm:$0xff]
        %v2002 = vld [vmem:[#allocation5 + $0x10] sm:$0xff]
        %v2003 = vld [vmem:[#allocation5 + $0x18] sm:$0xff]
        %v2004 = vld [vmem:[#allocation5 + $0x20] sm:$0xff]
        %v2005 = vld [vmem:[#allocation5 + $0x28] sm:$0xff]
        %v2006 = vld [vmem:[#allocation5 + $0x30] sm:$0xff]
        %v2007 = vld [vmem:[#allocation5 + $0x38] sm:$0xff]
        %v2008 = vld [vmem:[#allocation5 + $0x40] sm:$0xff]
        %v2009 = vld [vmem:[#allocation5 + $0x48] sm:$0xff]
        %v2010 = vld [vmem:[#allocation5 + $0x50] sm:$0xff]
        %v2011 = vld [vmem:[#allocation5 + $0x58] sm:$0xff]
        %v2012 = vld [vmem:[#allocation5 + $0x60] sm:$0xff]
        %v2013 = vld [vmem:[#allocation5 + $0x68] sm:$0xff]
        %v2014 = vld [vmem:[#allocation5 + $0x70] sm:$0xff]
        %v2015 = vld [vmem:[#allocation5 + $0x78] sm:$0xff]
        %v2016 = vld [vmem:[#allocation5 + $0x80] sm:$0xff]
        %v2017 = vld [vmem:[#allocation5 + $0x88] sm:$0xff]
        %v2018 = vld [vmem:[#allocation5 + $0x90] sm:$0xff]
        %v2019 = vld [vmem:[#allocation5 + $0x98] sm:$0xff]
        %v2020 = vld [vmem:[#allocation5 + $0xa0] sm:$0xff]
        %v2021 = vld [vmem:[#allocation5 + $0xa8] sm:$0xff]
        %v2022 = vld [vmem:[#allocation5 + $0xb0] sm:$0xff]
        %v2023 = vld [vmem:[#allocation5 + $0xb8] sm:$0xff]
        %v2024 = vld [vmem:[#allocation5 + $0xc0] sm:$0xff]
        %v2025 = vld [vmem:[#allocation5 + $0xc8] sm:$0xff]
        %v2026 = vld [vmem:[#allocation5 + $0xd0] sm:$0xff]
        %v2027 = vld [vmem:[#allocation5 + $0xd8] sm:$0xff]
        %v2028 = vld [vmem:[#allocation5 + $0xe0] sm:$0xff]
        %v2029 = vld [vmem:[#allocation5 + $0xe8] sm:$0xff]
        %v2030 = vld [vmem:[#allocation5 + $0xf0] sm:$0xff]
        %v2031 = vld [vmem:[#allocation5 + $0xf8] sm:$0xff]
        %v2032 = vld [vmem:[#allocation5 + $0x100] sm:$0xff]
        %v2033 = vld [vmem:[#allocation5 + $0x108] sm:$0xff]
        %v2034 = vld [vmem:[#allocation5 + $0x110] sm:$0xff]
        %v2035 = vld [vmem:[#allocation5 + $0x118] sm:$0xff]
        %v2036 = vld [vmem:[#allocation5 + $0x120] sm:$0xff]
        %v2037 = vld [vmem:[#allocation5 + $0x128] sm:$0xff]
        %v2038 = vld [vmem:[#allocation5 + $0x130] sm:$0xff]
        %v2039 = vld [vmem:[#allocation5 + $0x138] sm:$0xff]
        %v2040 = vld [vmem:[#allocation5 + $0x140] sm:$0xff]
        %v2041 = vld [vmem:[#allocation5 + $0x148] sm:$0xff]
        %v2042 = vld [vmem:[#allocation5 + $0x150] sm:$0xff]
        %v2043 = vld [vmem:[#allocation5 + $0x158] sm:$0xff]
        %v2044 = vld [vmem:[#allocation5 + $0x160] sm:$0xff]
        %v2045 = vld [vmem:[#allocation5 + $0x168] sm:$0xff]
        %v2046 = vld [vmem:[#allocation5 + $0x170] sm:$0xff]
        %v2047 = vld [vmem:[#allocation5 + $0x178] sm:$0xff]
        %v2048 = vld [vmem:[#allocation5 + $0x180] sm:$0xff]
        %v2049 = vld [vmem:[#allocation5 + $0x188] sm:$0xff]
        %v2050 = vld [vmem:[#allocation5 + $0x190] sm:$0xff]
        %v2051 = vld [vmem:[#allocation5 + $0x198] sm:$0xff]
        %v2052 = vld [vmem:[#allocation5 + $0x1a0] sm:$0xff]
        %v2053 = vld [vmem:[#allocation5 + $0x1a8] sm:$0xff]
        %v2054 = vld [vmem:[#allocation5 + $0x1b0] sm:$0xff]
        %v2055 = vld [vmem:[#allocation5 + $0x1b8] sm:$0xff]
        %v2056 = vld [vmem:[#allocation5 + $0x1c0] sm:$0xff]
        %v2057 = vld [vmem:[#allocation5 + $0x1c8] sm:$0xff]
        %v2058 = vld [vmem:[#allocation5 + $0x1d0] sm:$0xff]
        %v2059 = vld [vmem:[#allocation5 + $0x1d8] sm:$0xff]
        %v2060 = vld [vmem:[#allocation5 + $0x1e0] sm:$0xff]
        %v2061 = vld [vmem:[#allocation5 + $0x1e8] sm:$0xff]
        %v2062 = vld [vmem:[#allocation5 + $0x1f0] sm:$0xff]
        %v2063 = vld [vmem:[#allocation5 + $0x1f8] sm:$0xff]
        %v2064 = vld [vmem:[#allocation5 + $0x200] sm:$0xff]
        %v2065 = vld [vmem:[#allocation5 + $0x208] sm:$0xff]
        %v2066 = vld [vmem:[#allocation5 + $0x210] sm:$0xff]
        %v2067 = vld [vmem:[#allocation5 + $0x218] sm:$0xff]
        %v2068 = vld [vmem:[#allocation5 + $0x220] sm:$0xff]
        %v2069 = vld [vmem:[#allocation5 + $0x228] sm:$0xff]
        %v2070 = vld [vmem:[#allocation5 + $0x230] sm:$0xff]
        %v2071 = vld [vmem:[#allocation5 + $0x238] sm:$0xff]
        %v2072 = vld [vmem:[#allocation5 + $0x240] sm:$0xff]
        %v2073 = vld [vmem:[#allocation5 + $0x248] sm:$0xff]
        %v2074 = vld [vmem:[#allocation5 + $0x250] sm:$0xff]
        %v2075 = vld [vmem:[#allocation5 + $0x258] sm:$0xff]
        %v2076 = vld [vmem:[#allocation5 + $0x260] sm:$0xff]
        %v2077 = vld [vmem:[#allocation5 + $0x268] sm:$0xff]
        %v2078 = vld [vmem:[#allocation5 + $0x270] sm:$0xff]
        %v2079 = vld [vmem:[#allocation5 + $0x278] sm:$0xff]
        %v2080 = vld [vmem:[#allocation5 + $0x280] sm:$0xff]
        %v2081 = vld [vmem:[#allocation5 + $0x288] sm:$0xff]
        %v2082 = vld [vmem:[#allocation5 + $0x290] sm:$0xff]
        %v2083 = vld [vmem:[#allocation5 + $0x298] sm:$0xff]
        %v2084 = vld [vmem:[#allocation5 + $0x2a0] sm:$0xff]
        %v2085 = vld [vmem:[#allocation5 + $0x2a8] sm:$0xff]
        %v2086 = vld [vmem:[#allocation5 + $0x2b0] sm:$0xff]
        %v2087 = vld [vmem:[#allocation5 + $0x2b8] sm:$0xff]
        %v2088 = vld [vmem:[#allocation5 + $0x2c0] sm:$0xff]
        %v2089 = vld [vmem:[#allocation5 + $0x2c8] sm:$0xff]
        %v2090 = vld [vmem:[#allocation5 + $0x2d0] sm:$0xff]
        %v2091 = vld [vmem:[#allocation5 + $0x2d8] sm:$0xff]
        %v2092 = vld [vmem:[#allocation5 + $0x2e0] sm:$0xff]
        %v2093 = vld [vmem:[#allocation5 + $0x2e8] sm:$0xff]
        %v2094 = vld [vmem:[#allocation5 + $0x2f0] sm:$0xff]
        %v2095 = vld [vmem:[#allocation5 + $0x2f8] sm:$0xff]
        %v2096 = vld [vmem:[#allocation5 + $0x300] sm:$0xff]
        %v2097 = vld [vmem:[#allocation5 + $0x308] sm:$0xff]
        %v2098 = vld [vmem:[#allocation5 + $0x310] sm:$0xff]
        %v2099 = vld [vmem:[#allocation5 + $0x318] sm:$0xff]
        %v2100 = vld [vmem:[#allocation5 + $0x320] sm:$0xff]
        %v2101 = vld [vmem:[#allocation5 + $0x328] sm:$0xff]
        %v2102 = vld [vmem:[#allocation5 + $0x330] sm:$0xff]
        %v2103 = vld [vmem:[#allocation5 + $0x338] sm:$0xff]
        %v2104 = vld [vmem:[#allocation5 + $0x340] sm:$0xff]
        %v2105 = vld [vmem:[#allocation5 + $0x348] sm:$0xff]
        %v2106 = vld [vmem:[#allocation5 + $0x350] sm:$0xff]
        %v2107 = vld [vmem:[#allocation5 + $0x358] sm:$0xff]
        %v2108 = vld [vmem:[#allocation5 + $0x360] sm:$0xff]
        %v2109 = vld [vmem:[#allocation5 + $0x368] sm:$0xff]
        %v2110 = vld [vmem:[#allocation5 + $0x370] sm:$0xff]
        %v2111 = vld [vmem:[#allocation5 + $0x378] sm:$0xff]
        %v2112 = vld [vmem:[#allocation5 + $0x380] sm:$0xff]
        %v2113 = vld [vmem:[#allocation5 + $0x388] sm:$0xff]
        %v2114 = vld [vmem:[#allocation5 + $0x390] sm:$0xff]
        %v2115 = vld [vmem:[#allocation5 + $0x398] sm:$0xff]
        %v2116 = vld [vmem:[#allocation5 + $0x3a0] sm:$0xff]
        %v2117 = vld [vmem:[#allocation5 + $0x3a8] sm:$0xff]
        %v2118 = vld [vmem:[#allocation5 + $0x3b0] sm:$0xff]
        %v2119 = vld [vmem:[#allocation5 + $0x3b8] sm:$0xff]
        %v2120 = vld [vmem:[#allocation5 + $0x3c0] sm:$0xff]
        %v2121 = vld [vmem:[#allocation5 + $0x3c8] sm:$0xff]
        %v2122 = vld [vmem:[#allocation5 + $0x3d0] sm:$0xff]
        %v2123 = vld [vmem:[#allocation5 + $0x3d8] sm:$0xff]
        %v2124 = vld [vmem:[#allocation5 + $0x3e0] sm:$0xff]
        %v2125 = vld [vmem:[#allocation5 + $0x3e8] sm:$0xff]
        %v2126 = vld [vmem:[#allocation5 + $0x3f0] sm:$0xff]
        %v2127 = vld [vmem:[#allocation5 + $0x3f8] sm:$0xff]
        %v2128 = vld [vmem:[#allocation5 + $0x400] sm:$0xff]
        %v2129 = vld [vmem:[#allocation5 + $0x408] sm:$0xff]
        %v2130 = vld [vmem:[#allocation5 + $0x410] sm:$0xff]
        %v2131 = vld [vmem:[#allocation5 + $0x418] sm:$0xff]
        %v2132 = vld [vmem:[#allocation5 + $0x420] sm:$0xff]
        %v2133 = vld [vmem:[#allocation5 + $0x428] sm:$0xff]
        %v2134 = vld [vmem:[#allocation5 + $0x430] sm:$0xff]
        %v2135 = vld [vmem:[#allocation5 + $0x438] sm:$0xff]
        %v2136 = vld [vmem:[#allocation5 + $0x440] sm:$0xff]
        %v2137 = vld [vmem:[#allocation5 + $0x448] sm:$0xff]
        %v2138 = vld [vmem:[#allocation5 + $0x450] sm:$0xff]
        %v2139 = vld [vmem:[#allocation5 + $0x458] sm:$0xff]
        %v2140 = vld [vmem:[#allocation5 + $0x460] sm:$0xff]
        %v2141 = vld [vmem:[#allocation5 + $0x468] sm:$0xff]
        %v2142 = vld [vmem:[#allocation5 + $0x470] sm:$0xff]
        %v2143 = vld [vmem:[#allocation5 + $0x478] sm:$0xff]
        %v2144 = vld [vmem:[#allocation5 + $0x480] sm:$0xff]
        %v2145 = vld [vmem:[#allocation5 + $0x488] sm:$0xff]
        %v2146 = vld [vmem:[#allocation5 + $0x490] sm:$0xff]
        %v2147 = vld [vmem:[#allocation5 + $0x498] sm:$0xff]
        %v2148 = vld [vmem:[#allocation5 + $0x4a0] sm:$0xff]
        %v2149 = vld [vmem:[#allocation5 + $0x4a8] sm:$0xff]
        %v2150 = vld [vmem:[#allocation5 + $0x4b0] sm:$0xff]
        %v2151 = vld [vmem:[#allocation5 + $0x4b8] sm:$0xff]
        %v2152 = vld [vmem:[#allocation5 + $0x4c0] sm:$0xff]
        %v2153 = vld [vmem:[#allocation5 + $0x4c8] sm:$0xff]
        %v2154 = vld [vmem:[#allocation5 + $0x4d0] sm:$0xff]
        %v2155 = vld [vmem:[#allocation5 + $0x4d8] sm:$0xff]
        %v2156 = vld [vmem:[#allocation5 + $0x4e0] sm:$0xff]
        %v2157 = vld [vmem:[#allocation5 + $0x4e8] sm:$0xff]
        %v2158 = vld [vmem:[#allocation5 + $0x4f0] sm:$0xff]
        %v2159 = vld [vmem:[#allocation5 + $0x4f8] sm:$0xff]
        %v2160 = vld [vmem:[#allocation5 + $0x500] sm:$0xff]
        %v2161 = vld [vmem:[#allocation5 + $0x508] sm:$0xff]
        %v2162 = vld [vmem:[#allocation5 + $0x510] sm:$0xff]
        %v2163 = vld [vmem:[#allocation5 + $0x518] sm:$0xff]
        %v2164 = vld [vmem:[#allocation5 + $0x520] sm:$0xff]
        %v2165 = vld [vmem:[#allocation5 + $0x528] sm:$0xff]
        %v2166 = vld [vmem:[#allocation5 + $0x530] sm:$0xff]
        %v2167 = vld [vmem:[#allocation5 + $0x538] sm:$0xff]
        %v2168 = vld [vmem:[#allocation5 + $0x540] sm:$0xff]
        %v2169 = vld [vmem:[#allocation5 + $0x548] sm:$0xff]
        %v2170 = vld [vmem:[#allocation5 + $0x550] sm:$0xff]
        %v2171 = vld [vmem:[#allocation5 + $0x558] sm:$0xff]
        %v2172 = vld [vmem:[#allocation5 + $0x560] sm:$0xff]
        %v2173 = vld [vmem:[#allocation5 + $0x568] sm:$0xff]
        %v2174 = vld [vmem:[#allocation5 + $0x570] sm:$0xff]
        %v2175 = vld [vmem:[#allocation5 + $0x578] sm:$0xff]
        %v2176 = vld [vmem:[#allocation5 + $0x580] sm:$0xff]
        %v2177 = vld [vmem:[#allocation5 + $0x588] sm:$0xff]
        %v2178 = vld [vmem:[#allocation5 + $0x590] sm:$0xff]
        %v2179 = vld [vmem:[#allocation5 + $0x598] sm:$0xff]
        %v2180 = vld [vmem:[#allocation5 + $0x5a0] sm:$0xff]
        %v2181 = vld [vmem:[#allocation5 + $0x5a8] sm:$0xff]
        %v2182 = vld [vmem:[#allocation5 + $0x5b0] sm:$0xff]
        %v2183 = vld [vmem:[#allocation5 + $0x5b8] sm:$0xff]
        %v2184 = vld [vmem:[#allocation5 + $0x5c0] sm:$0xff]
        %v2185 = vld [vmem:[#allocation5 + $0x5c8] sm:$0xff]
        %v2186 = vld [vmem:[#allocation5 + $0x5d0] sm:$0xff]
        %v2187 = vld [vmem:[#allocation5 + $0x5d8] sm:$0xff]
        %v2188 = vld [vmem:[#allocation5 + $0x5e0] sm:$0xff]
        %v2189 = vld [vmem:[#allocation5 + $0x5e8] sm:$0xff]
        %v2190 = vld [vmem:[#allocation5 + $0x5f0] sm:$0xff]
        %v2191 = vld [vmem:[#allocation5 + $0x5f8] sm:$0xff]
        %v2192 = vld [vmem:[#allocation5 + $0x600] sm:$0xff]
        %v2193 = vld [vmem:[#allocation5 + $0x608] sm:$0xff]
        %v2194 = vld [vmem:[#allocation5 + $0x610] sm:$0xff]
        %v2195 = vld [vmem:[#allocation5 + $0x618] sm:$0xff]
        %v2196 = vld [vmem:[#allocation5 + $0x620] sm:$0xff]
        %v2197 = vld [vmem:[#allocation5 + $0x628] sm:$0xff]
        %v2198 = vld [vmem:[#allocation5 + $0x630] sm:$0xff]
        %v2199 = vld [vmem:[#allocation5 + $0x638] sm:$0xff]
        %v2200 = vld [vmem:[#allocation5 + $0x640] sm:$0xff]
        %v2201 = vld [vmem:[#allocation5 + $0x648] sm:$0xff]
        %v2202 = vld [vmem:[#allocation5 + $0x650] sm:$0xff]
        %v2203 = vld [vmem:[#allocation5 + $0x658] sm:$0xff]
        %v2204 = vld [vmem:[#allocation5 + $0x660] sm:$0xff]
        %v2205 = vld [vmem:[#allocation5 + $0x668] sm:$0xff]
        %v2206 = vld [vmem:[#allocation5 + $0x670] sm:$0xff]
        %v2207 = vld [vmem:[#allocation5 + $0x678] sm:$0xff]
        %v2208 = vld [vmem:[#allocation5 + $0x680] sm:$0xff]
        %v2209 = vld [vmem:[#allocation5 + $0x688] sm:$0xff]
        %v2210 = vld [vmem:[#allocation5 + $0x690] sm:$0xff]
        %v2211 = vld [vmem:[#allocation5 + $0x698] sm:$0xff]
        %v2212 = vld [vmem:[#allocation5 + $0x6a0] sm:$0xff]
        %v2213 = vld [vmem:[#allocation5 + $0x6a8] sm:$0xff]
        %v2214 = vld [vmem:[#allocation5 + $0x6b0] sm:$0xff]
        %v2215 = vld [vmem:[#allocation5 + $0x6b8] sm:$0xff]
        %v2216 = vld [vmem:[#allocation5 + $0x6c0] sm:$0xff]
        %v2217 = vld [vmem:[#allocation5 + $0x6c8] sm:$0xff]
        %v2218 = vld [vmem:[#allocation5 + $0x6d0] sm:$0xff]
        %v2219 = vld [vmem:[#allocation5 + $0x6d8] sm:$0xff]
        %v2220 = vld [vmem:[#allocation5 + $0x6e0] sm:$0xff]
        %v2221 = vld [vmem:[#allocation5 + $0x6e8] sm:$0xff]
        %v2222 = vld [vmem:[#allocation5 + $0x6f0] sm:$0xff]
        %v2223 = vld [vmem:[#allocation5 + $0x6f8] sm:$0xff]
        %s2224 = scalar_lea.vmem [#allocation5], 1792
        %v2225 = vld [vmem:[%s2224] sm:$0xff]
        %v2226 = vld [vmem:[%s2224 + $0x8] sm:$0xff]
        %v2227 = vld [vmem:[%s2224 + $0x10] sm:$0xff]
        %v2228 = vld [vmem:[%s2224 + $0x18] sm:$0xff]
        %v2229 = vld [vmem:[%s2224 + $0x20] sm:$0xff]
        %v2230 = vld [vmem:[%s2224 + $0x28] sm:$0xff]
        %v2231 = vld [vmem:[%s2224 + $0x30] sm:$0xff]
        %v2232 = vld [vmem:[%s2224 + $0x38] sm:$0xff]
        %v2233 = vld [vmem:[%s2224 + $0x40] sm:$0xff]
        %v2234 = vld [vmem:[%s2224 + $0x48] sm:$0xff]
        %v2235 = vld [vmem:[%s2224 + $0x50] sm:$0xff]
        %v2236 = vld [vmem:[%s2224 + $0x58] sm:$0xff]
        %v2237 = vld [vmem:[%s2224 + $0x60] sm:$0xff]
        %v2238 = vld [vmem:[%s2224 + $0x68] sm:$0xff]
        %v2239 = vld [vmem:[%s2224 + $0x70] sm:$0xff]
        %v2240 = vld [vmem:[%s2224 + $0x78] sm:$0xff]
        %v2241 = vld [vmem:[%s2224 + $0x80] sm:$0xff]
        %v2242 = vld [vmem:[%s2224 + $0x88] sm:$0xff]
        %v2243 = vld [vmem:[%s2224 + $0x90] sm:$0xff]
        %v2244 = vld [vmem:[%s2224 + $0x98] sm:$0xff]
        %v2245 = vld [vmem:[%s2224 + $0xa0] sm:$0xff]
        %v2246 = vld [vmem:[%s2224 + $0xa8] sm:$0xff]
        %v2247 = vld [vmem:[%s2224 + $0xb0] sm:$0xff]
        %v2248 = vld [vmem:[%s2224 + $0xb8] sm:$0xff]
        %v2249 = vld [vmem:[%s2224 + $0xc0] sm:$0xff]
        %v2250 = vld [vmem:[%s2224 + $0xc8] sm:$0xff]
        %v2251 = vld [vmem:[%s2224 + $0xd0] sm:$0xff]
        %v2252 = vld [vmem:[%s2224 + $0xd8] sm:$0xff]
        %v2253 = vld [vmem:[%s2224 + $0xe0] sm:$0xff]
        %v2254 = vld [vmem:[%s2224 + $0xe8] sm:$0xff]
        %v2255 = vld [vmem:[%s2224 + $0xf0] sm:$0xff]
        %v2256 = vld [vmem:[%s2224 + $0xf8] sm:$0xff]
        %v2257 = vld [vmem:[%s2224 + $0x100] sm:$0xff]
        %v2258 = vld [vmem:[%s2224 + $0x108] sm:$0xff]
        %v2259 = vld [vmem:[%s2224 + $0x110] sm:$0xff]
        %v2260 = vld [vmem:[%s2224 + $0x118] sm:$0xff]
        %v2261 = vld [vmem:[%s2224 + $0x120] sm:$0xff]
        %v2262 = vld [vmem:[%s2224 + $0x128] sm:$0xff]
        %v2263 = vld [vmem:[%s2224 + $0x130] sm:$0xff]
        %v2264 = vld [vmem:[%s2224 + $0x138] sm:$0xff]
        %v2265 = vld [vmem:[%s2224 + $0x140] sm:$0xff]
        %v2266 = vld [vmem:[%s2224 + $0x148] sm:$0xff]
        %v2267 = vld [vmem:[%s2224 + $0x150] sm:$0xff]
        %v2268 = vld [vmem:[%s2224 + $0x158] sm:$0xff]
        %v2269 = vld [vmem:[%s2224 + $0x160] sm:$0xff]
        %v2270 = vld [vmem:[%s2224 + $0x168] sm:$0xff]
        %v2271 = vld [vmem:[%s2224 + $0x170] sm:$0xff]
        %v2272 = vld [vmem:[%s2224 + $0x178] sm:$0xff]
        %v2273 = vld [vmem:[%s2224 + $0x180] sm:$0xff]
        %v2274 = vld [vmem:[%s2224 + $0x188] sm:$0xff]
        %v2275 = vld [vmem:[%s2224 + $0x190] sm:$0xff]
        %v2276 = vld [vmem:[%s2224 + $0x198] sm:$0xff]
        %v2277 = vld [vmem:[%s2224 + $0x1a0] sm:$0xff]
        %v2278 = vld [vmem:[%s2224 + $0x1a8] sm:$0xff]
        %v2279 = vld [vmem:[%s2224 + $0x1b0] sm:$0xff]
        %v2280 = vld [vmem:[%s2224 + $0x1b8] sm:$0xff]
        %v2281 = vld [vmem:[%s2224 + $0x1c0] sm:$0xff]
        %v2282 = vld [vmem:[%s2224 + $0x1c8] sm:$0xff]
        %v2283 = vld [vmem:[%s2224 + $0x1d0] sm:$0xff]
        %v2284 = vld [vmem:[%s2224 + $0x1d8] sm:$0xff]
        %v2285 = vld [vmem:[%s2224 + $0x1e0] sm:$0xff]
        %v2286 = vld [vmem:[%s2224 + $0x1e8] sm:$0xff]
        %v2287 = vld [vmem:[%s2224 + $0x1f0] sm:$0xff]
        %v2288 = vld [vmem:[%s2224 + $0x1f8] sm:$0xff]
        %v2289 = vld [vmem:[%s2224 + $0x200] sm:$0xff]
        %v2290 = vld [vmem:[%s2224 + $0x208] sm:$0xff]
        %v2291 = vld [vmem:[%s2224 + $0x210] sm:$0xff]
        %v2292 = vld [vmem:[%s2224 + $0x218] sm:$0xff]
        %v2293 = vld [vmem:[%s2224 + $0x220] sm:$0xff]
        %v2294 = vld [vmem:[%s2224 + $0x228] sm:$0xff]
        %v2295 = vld [vmem:[%s2224 + $0x230] sm:$0xff]
        %v2296 = vld [vmem:[%s2224 + $0x238] sm:$0xff]
        %v2297 = vld [vmem:[%s2224 + $0x240] sm:$0xff]
        %v2298 = vld [vmem:[%s2224 + $0x248] sm:$0xff]
        %v2299 = vld [vmem:[%s2224 + $0x250] sm:$0xff]
        %v2300 = vld [vmem:[%s2224 + $0x258] sm:$0xff]
        %v2301 = vld [vmem:[%s2224 + $0x260] sm:$0xff]
        %v2302 = vld [vmem:[%s2224 + $0x268] sm:$0xff]
        %v2303 = vld [vmem:[%s2224 + $0x270] sm:$0xff]
        %v2304 = vld [vmem:[%s2224 + $0x278] sm:$0xff]
        %v2305 = vld [vmem:[%s2224 + $0x280] sm:$0xff]
        %v2306 = vld [vmem:[%s2224 + $0x288] sm:$0xff]
        %v2307 = vld [vmem:[%s2224 + $0x290] sm:$0xff]
        %v2308 = vld [vmem:[%s2224 + $0x298] sm:$0xff]
        %v2309 = vld [vmem:[%s2224 + $0x2a0] sm:$0xff]
        %v2310 = vld [vmem:[%s2224 + $0x2a8] sm:$0xff]
        %v2311 = vld [vmem:[%s2224 + $0x2b0] sm:$0xff]
        %v2312 = vld [vmem:[%s2224 + $0x2b8] sm:$0xff]
        %v2313 = vld [vmem:[%s2224 + $0x2c0] sm:$0xff]
        %v2314 = vld [vmem:[%s2224 + $0x2c8] sm:$0xff]
        %v2315 = vld [vmem:[%s2224 + $0x2d0] sm:$0xff]
        %v2316 = vld [vmem:[%s2224 + $0x2d8] sm:$0xff]
        %v2317 = vld [vmem:[%s2224 + $0x2e0] sm:$0xff]
        %v2318 = vld [vmem:[%s2224 + $0x2e8] sm:$0xff]
        %v2319 = vld [vmem:[%s2224 + $0x2f0] sm:$0xff]
        %v2320 = vld [vmem:[%s2224 + $0x2f8] sm:$0xff]
        %v2321 = vld [vmem:[%s2224 + $0x300] sm:$0xff]
        %v2322 = vld [vmem:[%s2224 + $0x308] sm:$0xff]
        %v2323 = vld [vmem:[%s2224 + $0x310] sm:$0xff]
        %v2324 = vld [vmem:[%s2224 + $0x318] sm:$0xff]
        %v2325 = vld [vmem:[%s2224 + $0x320] sm:$0xff]
        %v2326 = vld [vmem:[%s2224 + $0x328] sm:$0xff]
        %v2327 = vld [vmem:[%s2224 + $0x330] sm:$0xff]
        %v2328 = vld [vmem:[%s2224 + $0x338] sm:$0xff]
        %v2329 = vld [vmem:[%s2224 + $0x340] sm:$0xff]
        %v2330 = vld [vmem:[%s2224 + $0x348] sm:$0xff]
        %v2331 = vld [vmem:[%s2224 + $0x350] sm:$0xff]
        %v2332 = vld [vmem:[%s2224 + $0x358] sm:$0xff]
        %v2333 = vld [vmem:[%s2224 + $0x360] sm:$0xff]
        %v2334 = vld [vmem:[%s2224 + $0x368] sm:$0xff]
        %v2335 = vld [vmem:[%s2224 + $0x370] sm:$0xff]
        %v2336 = vld [vmem:[%s2224 + $0x378] sm:$0xff]
        %v2337 = vld [vmem:[%s2224 + $0x380] sm:$0xff]
        %v2338 = vld [vmem:[%s2224 + $0x388] sm:$0xff]
        %v2339 = vld [vmem:[%s2224 + $0x390] sm:$0xff]
        %v2340 = vld [vmem:[%s2224 + $0x398] sm:$0xff]
        %v2341 = vld [vmem:[%s2224 + $0x3a0] sm:$0xff]
        %v2342 = vld [vmem:[%s2224 + $0x3a8] sm:$0xff]
        %v2343 = vld [vmem:[%s2224 + $0x3b0] sm:$0xff]
        %v2344 = vld [vmem:[%s2224 + $0x3b8] sm:$0xff]
        %v2345 = vld [vmem:[%s2224 + $0x3c0] sm:$0xff]
        %v2346 = vld [vmem:[%s2224 + $0x3c8] sm:$0xff]
        %v2347 = vld [vmem:[%s2224 + $0x3d0] sm:$0xff]
        %v2348 = vld [vmem:[%s2224 + $0x3d8] sm:$0xff]
        %v2349 = vld [vmem:[%s2224 + $0x3e0] sm:$0xff]
        %v2350 = vld [vmem:[%s2224 + $0x3e8] sm:$0xff]
        %v2351 = vld [vmem:[%s2224 + $0x3f0] sm:$0xff]
        %v2352 = vld [vmem:[%s2224 + $0x3f8] sm:$0xff]
        %v2353 = vld [vmem:[%s2224 + $0x400] sm:$0xff]
        %v2354 = vld [vmem:[%s2224 + $0x408] sm:$0xff]
        %v2355 = vld [vmem:[%s2224 + $0x410] sm:$0xff]
        %v2356 = vld [vmem:[%s2224 + $0x418] sm:$0xff]
        %v2357 = vld [vmem:[%s2224 + $0x420] sm:$0xff]
        %v2358 = vld [vmem:[%s2224 + $0x428] sm:$0xff]
        %v2359 = vld [vmem:[%s2224 + $0x430] sm:$0xff]
        %v2360 = vld [vmem:[%s2224 + $0x438] sm:$0xff]
        %v2361 = vld [vmem:[%s2224 + $0x440] sm:$0xff]
        %v2362 = vld [vmem:[%s2224 + $0x448] sm:$0xff]
        %v2363 = vld [vmem:[%s2224 + $0x450] sm:$0xff]
        %v2364 = vld [vmem:[%s2224 + $0x458] sm:$0xff]
        %v2365 = vld [vmem:[%s2224 + $0x460] sm:$0xff]
        %v2366 = vld [vmem:[%s2224 + $0x468] sm:$0xff]
        %v2367 = vld [vmem:[%s2224 + $0x470] sm:$0xff]
        %v2368 = vld [vmem:[%s2224 + $0x478] sm:$0xff]
        %v2369 = vld [vmem:[%s2224 + $0x480] sm:$0xff]
        %v2370 = vld [vmem:[%s2224 + $0x488] sm:$0xff]
        %v2371 = vld [vmem:[%s2224 + $0x490] sm:$0xff]
        %v2372 = vld [vmem:[%s2224 + $0x498] sm:$0xff]
        %v2373 = vld [vmem:[%s2224 + $0x4a0] sm:$0xff]
        %v2374 = vld [vmem:[%s2224 + $0x4a8] sm:$0xff]
        %v2375 = vld [vmem:[%s2224 + $0x4b0] sm:$0xff]
        %v2376 = vld [vmem:[%s2224 + $0x4b8] sm:$0xff]
        %v2377 = vld [vmem:[%s2224 + $0x4c0] sm:$0xff]
        %v2378 = vld [vmem:[%s2224 + $0x4c8] sm:$0xff]
        %v2379 = vld [vmem:[%s2224 + $0x4d0] sm:$0xff]
        %v2380 = vld [vmem:[%s2224 + $0x4d8] sm:$0xff]
        %v2381 = vld [vmem:[%s2224 + $0x4e0] sm:$0xff]
        %v2382 = vld [vmem:[%s2224 + $0x4e8] sm:$0xff]
        %v2383 = vld [vmem:[%s2224 + $0x4f0] sm:$0xff]
        %v2384 = vld [vmem:[%s2224 + $0x4f8] sm:$0xff]
        %v2385 = vld [vmem:[%s2224 + $0x500] sm:$0xff]
        %v2386 = vld [vmem:[%s2224 + $0x508] sm:$0xff]
        %v2387 = vld [vmem:[%s2224 + $0x510] sm:$0xff]
        %v2388 = vld [vmem:[%s2224 + $0x518] sm:$0xff]
        %v2389 = vld [vmem:[%s2224 + $0x520] sm:$0xff]
        %v2390 = vld [vmem:[%s2224 + $0x528] sm:$0xff]
        %v2391 = vld [vmem:[%s2224 + $0x530] sm:$0xff]
        %v2392 = vld [vmem:[%s2224 + $0x538] sm:$0xff]
        %v2393 = vld [vmem:[%s2224 + $0x540] sm:$0xff]
        %v2394 = vld [vmem:[%s2224 + $0x548] sm:$0xff]
        %v2395 = vld [vmem:[%s2224 + $0x550] sm:$0xff]
        %v2396 = vld [vmem:[%s2224 + $0x558] sm:$0xff]
        %v2397 = vld [vmem:[%s2224 + $0x560] sm:$0xff]
        %v2398 = vld [vmem:[%s2224 + $0x568] sm:$0xff]
        %v2399 = vld [vmem:[%s2224 + $0x570] sm:$0xff]
        %v2400 = vld [vmem:[%s2224 + $0x578] sm:$0xff]
        %v2401 = vld [vmem:[%s2224 + $0x580] sm:$0xff]
        %v2402 = vld [vmem:[%s2224 + $0x588] sm:$0xff]
        %v2403 = vld [vmem:[%s2224 + $0x590] sm:$0xff]
        %v2404 = vld [vmem:[%s2224 + $0x598] sm:$0xff]
        %v2405 = vld [vmem:[%s2224 + $0x5a0] sm:$0xff]
        %v2406 = vld [vmem:[%s2224 + $0x5a8] sm:$0xff]
        %v2407 = vld [vmem:[%s2224 + $0x5b0] sm:$0xff]
        %v2408 = vld [vmem:[%s2224 + $0x5b8] sm:$0xff]
        %v2409 = vld [vmem:[%s2224 + $0x5c0] sm:$0xff]
        %v2410 = vld [vmem:[%s2224 + $0x5c8] sm:$0xff]
        %v2411 = vld [vmem:[%s2224 + $0x5d0] sm:$0xff]
        %v2412 = vld [vmem:[%s2224 + $0x5d8] sm:$0xff]
        %v2413 = vld [vmem:[%s2224 + $0x5e0] sm:$0xff]
        %v2414 = vld [vmem:[%s2224 + $0x5e8] sm:$0xff]
        %v2415 = vld [vmem:[%s2224 + $0x5f0] sm:$0xff]
        %v2416 = vld [vmem:[%s2224 + $0x5f8] sm:$0xff]
        %v2417 = vld [vmem:[%s2224 + $0x600] sm:$0xff]
        %v2418 = vld [vmem:[%s2224 + $0x608] sm:$0xff]
        %v2419 = vld [vmem:[%s2224 + $0x610] sm:$0xff]
        %v2420 = vld [vmem:[%s2224 + $0x618] sm:$0xff]
        %v2421 = vld [vmem:[%s2224 + $0x620] sm:$0xff]
        %v2422 = vld [vmem:[%s2224 + $0x628] sm:$0xff]
        %v2423 = vld [vmem:[%s2224 + $0x630] sm:$0xff]
        %v2424 = vld [vmem:[%s2224 + $0x638] sm:$0xff]
        %v2425 = vld [vmem:[%s2224 + $0x640] sm:$0xff]
        %v2426 = vld [vmem:[%s2224 + $0x648] sm:$0xff]
        %v2427 = vld [vmem:[%s2224 + $0x650] sm:$0xff]
        %v2428 = vld [vmem:[%s2224 + $0x658] sm:$0xff]
        %v2429 = vld [vmem:[%s2224 + $0x660] sm:$0xff]
        %v2430 = vld [vmem:[%s2224 + $0x668] sm:$0xff]
        %v2431 = vld [vmem:[%s2224 + $0x670] sm:$0xff]
        %v2432 = vld [vmem:[%s2224 + $0x678] sm:$0xff]
        %v2433 = vld [vmem:[%s2224 + $0x680] sm:$0xff]
        %v2434 = vld [vmem:[%s2224 + $0x688] sm:$0xff]
        %v2435 = vld [vmem:[%s2224 + $0x690] sm:$0xff]
        %v2436 = vld [vmem:[%s2224 + $0x698] sm:$0xff]
        %v2437 = vld [vmem:[%s2224 + $0x6a0] sm:$0xff]
        %v2438 = vld [vmem:[%s2224 + $0x6a8] sm:$0xff]
        %v2439 = vld [vmem:[%s2224 + $0x6b0] sm:$0xff]
        %v2440 = vld [vmem:[%s2224 + $0x6b8] sm:$0xff]
        %v2441 = vld [vmem:[%s2224 + $0x6c0] sm:$0xff]
        %v2442 = vld [vmem:[%s2224 + $0x6c8] sm:$0xff]
        %v2443 = vld [vmem:[%s2224 + $0x6d0] sm:$0xff]
        %v2444 = vld [vmem:[%s2224 + $0x6d8] sm:$0xff]
        %v2445 = vld [vmem:[%s2224 + $0x6e0] sm:$0xff]
        %v2446 = vld [vmem:[%s2224 + $0x6e8] sm:$0xff]
        %v2447 = vld [vmem:[%s2224 + $0x6f0] sm:$0xff]
        %v2448 = vld [vmem:[%s2224 + $0x6f8] sm:$0xff]
        %vm2449 = vcmask 523264
        %v2451 = vsel %vm2449, %v1986, 0
        %2453 = vmatprep.subr.mxu0 %v2226
        %2454 = vmatpush1.msra.mxu0 %v2225
        %2455 = vmatprep.subr.mxu0 %v2230
        %2456 = vmatpush1.msra.mxu0 %v2229
        %2457 = vmatprep.subr.mxu0 %v2234
        %2458 = vmatpush1.msra.mxu0 %v2233
        %2459 = vmatprep.subr.mxu0 %v2238
        %2460 = vmatpush1.msra.mxu0 %v2237
        %2461 = vmatprep.subr.mxu0 %v2242
        %2462 = vmatpush1.msra.mxu0 %v2241
        %2463 = vmatprep.subr.mxu0 %v2246
        %2464 = vmatpush1.msra.mxu0 %v2245
        %2465 = vmatprep.subr.mxu0 %v2250
        %2466 = vmatpush1.msra.mxu0 %v2249
        %2467 = vmatprep.subr.mxu0 %v2254
        %2468 = vmatpush1.msra.mxu0 %v2253
        %2469 = vmatprep.subr.mxu0 %v2258
        %2470 = vmatpush1.msra.mxu0 %v2257
        %2471 = vmatprep.subr.mxu0 %v2262
        %2472 = vmatpush1.msra.mxu0 %v2261
        %2473 = vmatprep.subr.mxu0 %v2266
        %2474 = vmatpush1.msra.mxu0 %v2265
        %2475 = vmatprep.subr.mxu0 %v2270
        %2476 = vmatpush1.msra.mxu0 %v2269
        %2477 = vmatprep.subr.mxu0 %v2274
        %2478 = vmatpush1.msra.mxu0 %v2273
        %2479 = vmatprep.subr.mxu0 %v2278
        %2480 = vmatpush1.msra.mxu0 %v2277
        %2481 = vmatprep.subr.mxu0 %v2282
        %2482 = vmatpush1.msra.mxu0 %v2281
        %2483 = vmatprep.subr.mxu0 %v2286
        %2484 = vmatpush1.msra.mxu0 %v2285
        %2485 = vmatprep.subr.mxu0 %v2290
        %2486 = vmatpush1.msra.mxu0 %v2289
        %2487 = vmatprep.subr.mxu0 %v2294
        %2488 = vmatpush1.msra.mxu0 %v2293
        %2489 = vmatprep.subr.mxu0 %v2298
        %2490 = vmatpush1.msra.mxu0 %v2297
        %2491 = vmatprep.subr.mxu0 %v2302
        %2492 = vmatpush1.msra.mxu0 %v2301
        %2493 = vmatprep.subr.mxu0 %v2306
        %2494 = vmatpush1.msra.mxu0 %v2305
        %2495 = vmatprep.subr.mxu0 %v2310
        %2496 = vmatpush1.msra.mxu0 %v2309
        %2497 = vmatprep.subr.mxu0 %v2314
        %2498 = vmatpush1.msra.mxu0 %v2313
        %2499 = vmatprep.subr.mxu0 %v2318
        %2500 = vmatpush1.msra.mxu0 %v2317
        %2501 = vmatprep.subr.mxu0 %v2322
        %2502 = vmatpush1.msra.mxu0 %v2321
        %2503 = vmatprep.subr.mxu0 %v2326
        %2504 = vmatpush1.msra.mxu0 %v2325
        %2505 = vmatprep.subr.mxu0 %v2330
        %2506 = vmatpush1.msra.mxu0 %v2329
        %2507 = vmatprep.subr.mxu0 %v2334
        %2508 = vmatpush1.msra.mxu0 %v2333
        %2509 = vmatprep.subr.mxu0 %v2338
        %2510 = vmatpush1.msra.mxu0 %v2337
        %2511 = vmatprep.subr.mxu0 %v2342
        %2512 = vmatpush1.msra.mxu0 %v2341
        %2513 = vmatprep.subr.mxu0 %v2346
        %2514 = vmatpush1.msra.mxu0 %v2345
        %2515 = vmatprep.subr.mxu0 %v2350
        %2516 = vmatpush1.msra.mxu0 %v2349
        %2517 = vmatprep.mubr.f32.mxu0 %v1897
        %2518 = vmatmul.mubr.f32.gmra.mrb[0].mxu0 %v1895
        %v2519 = vpop.f32.mrb[0].mxu0
        %v2520 = vadd.f32 0.0, %v2519
        %v2521 = vpop.f32.mrb[0].mxu0
        %v2522 = vadd.f32 0.0, %v2521
        %2523 = vdwg.mxu0
        %2524 = vmatprep.subr.mxu0 %v2354
        %2525 = vmatpush1.msra.mxu0 %v2353
        %2526 = vmatprep.subr.mxu0 %v2358
        %2527 = vmatpush1.msra.mxu0 %v2357
        %2528 = vmatprep.subr.mxu0 %v2362
        %2529 = vmatpush1.msra.mxu0 %v2361
        %2530 = vmatprep.subr.mxu0 %v2366
        %2531 = vmatpush1.msra.mxu0 %v2365
        %2532 = vmatprep.subr.mxu0 %v2370
        %2533 = vmatpush1.msra.mxu0 %v2369
        %2534 = vmatprep.subr.mxu0 %v2374
        %2535 = vmatpush1.msra.mxu0 %v2373
        %2536 = vmatprep.subr.mxu0 %v2378
        %2537 = vmatpush1.msra.mxu0 %v2377
        %2538 = vmatprep.subr.mxu0 %v2382
        %2539 = vmatpush1.msra.mxu0 %v2381
        %2540 = vmatprep.subr.mxu0 %v2386
        %2541 = vmatpush1.msra.mxu0 %v2385
        %2542 = vmatprep.subr.mxu0 %v2390
        %2543 = vmatpush1.msra.mxu0 %v2389
        %2544 = vmatprep.subr.mxu0 %v2394
        %2545 = vmatpush1.msra.mxu0 %v2393
        %2546 = vmatprep.subr.mxu0 %v2398
        %2547 = vmatpush1.msra.mxu0 %v2397
        %2548 = vmatprep.subr.mxu0 %v2402
        %2549 = vmatpush1.msra.mxu0 %v2401
        %2550 = vmatprep.subr.mxu0 %v2406
        %2551 = vmatpush1.msra.mxu0 %v2405
        %2552 = vmatprep.subr.mxu0 %v2410
        %2553 = vmatpush1.msra.mxu0 %v2409
        %2554 = vmatprep.subr.mxu0 %v2414
        %2555 = vmatpush1.msra.mxu0 %v2413
        %2556 = vmatprep.subr.mxu0 %v2418
        %2557 = vmatpush1.msra.mxu0 %v2417
        %2558 = vmatprep.subr.mxu0 %v2422
        %2559 = vmatpush1.msra.mxu0 %v2421
        %2560 = vmatprep.subr.mxu0 %v2426
        %2561 = vmatpush1.msra.mxu0 %v2425
        %2562 = vmatprep.subr.mxu0 %v2430
        %2563 = vmatpush1.msra.mxu0 %v2429
        %2564 = vmatprep.subr.mxu0 %v2434
        %2565 = vmatpush1.msra.mxu0 %v2433
        %2566 = vmatprep.subr.mxu0 %v2438
        %2567 = vmatpush1.msra.mxu0 %v2437
        %2568 = vmatprep.subr.mxu0 %v2442
        %2569 = vmatpush1.msra.mxu0 %v2441
        %2570 = vmatprep.subr.mxu0 %v2446
        %2571 = vmatpush1.msra.mxu0 %v2445
        %2572 = vmatprep.subr.mxu0 0.0
        %2573 = vmatpush1.msra.mxu0 0.0
        %2574 = vmatprep.subr.mxu0 0.0
        %2575 = vmatpush1.msra.mxu0 0.0
        %2576 = vmatprep.subr.mxu0 0.0
        %2577 = vmatpush1.msra.mxu0 0.0
        %2578 = vmatprep.subr.mxu0 0.0
        %2579 = vmatpush1.msra.mxu0 0.0
        %2580 = vmatprep.subr.mxu0 0.0
        %2581 = vmatpush1.msra.mxu0 0.0
        %2582 = vmatprep.subr.mxu0 0.0
        %2583 = vmatpush1.msra.mxu0 0.0
        %2584 = vmatprep.subr.mxu0 0.0
        %2585 = vmatpush1.msra.mxu0 0.0
        %2586 = vmatprep.subr.mxu0 0.0
        %2587 = vmatpush1.msra.mxu0 0.0
        %2588 = vmatprep.mubr.f32.mxu0 %v2451
        %2589 = vmatmul.mubr.f32.gmra.mrb[0].mxu0 %v1984
        %v2590 = vpop.f32.mrb[0].mxu0
        %v2591 = vadd.f32 %v2520, %v2590
        %v2592 = vpop.f32.mrb[0].mxu0
        %v2593 = vadd.f32 %v2522, %v2592
        %2594 = vdwg.mxu0
        %2595 = vmatprep.subr.mxu0 %v2228
        %2596 = vmatpush1.msra.mxu0 %v2227
        %2597 = vmatprep.subr.mxu0 %v2232
        %2598 = vmatpush1.msra.mxu0 %v2231
        %2599 = vmatprep.subr.mxu0 %v2236
        %2600 = vmatpush1.msra.mxu0 %v2235
        %2601 = vmatprep.subr.mxu0 %v2240
        %2602 = vmatpush1.msra.mxu0 %v2239
        %2603 = vmatprep.subr.mxu0 %v2244
        %2604 = vmatpush1.msra.mxu0 %v2243
        %2605 = vmatprep.subr.mxu0 %v2248
        %2606 = vmatpush1.msra.mxu0 %v2247
        %2607 = vmatprep.subr.mxu0 %v2252
        %2608 = vmatpush1.msra.mxu0 %v2251
        %2609 = vmatprep.subr.mxu0 %v2256
        %2610 = vmatpush1.msra.mxu0 %v2255
        %2611 = vmatprep.subr.mxu0 %v2260
        %2612 = vmatpush1.msra.mxu0 %v2259
        %2613 = vmatprep.subr.mxu0 %v2264
        %2614 = vmatpush1.msra.mxu0 %v2263
        %2615 = vmatprep.subr.mxu0 %v2268
        %2616 = vmatpush1.msra.mxu0 %v2267
        %2617 = vmatprep.subr.mxu0 %v2272
        %2618 = vmatpush1.msra.mxu0 %v2271
        %2619 = vmatprep.subr.mxu0 %v2276
        %2620 = vmatpush1.msra.mxu0 %v2275
        %2621 = vmatprep.subr.mxu0 %v2280
        %2622 = vmatpush1.msra.mxu0 %v2279
        %2623 = vmatprep.subr.mxu0 %v2284
        %2624 = vmatpush1.msra.mxu0 %v2283
        %2625 = vmatprep.subr.mxu0 %v2288
        %2626 = vmatpush1.msra.mxu0 %v2287
        %2627 = vmatprep.subr.mxu0 %v2292
        %2628 = vmatpush1.msra.mxu0 %v2291
        %2629 = vmatprep.subr.mxu0 %v2296
        %2630 = vmatpush1.msra.mxu0 %v2295
        %2631 = vmatprep.subr.mxu0 %v2300
        %2632 = vmatpush1.msra.mxu0 %v2299
        %2633 = vmatprep.subr.mxu0 %v2304
        %2634 = vmatpush1.msra.mxu0 %v2303
        %2635 = vmatprep.subr.mxu0 %v2308
        %2636 = vmatpush1.msra.mxu0 %v2307
        %2637 = vmatprep.subr.mxu0 %v2312
        %2638 = vmatpush1.msra.mxu0 %v2311
        %2639 = vmatprep.subr.mxu0 %v2316
        %2640 = vmatpush1.msra.mxu0 %v2315
        %2641 = vmatprep.subr.mxu0 %v2320
        %2642 = vmatpush1.msra.mxu0 %v2319
        %2643 = vmatprep.subr.mxu0 %v2324
        %2644 = vmatpush1.msra.mxu0 %v2323
        %2645 = vmatprep.subr.mxu0 %v2328
        %2646 = vmatpush1.msra.mxu0 %v2327
        %2647 = vmatprep.subr.mxu0 %v2332
        %2648 = vmatpush1.msra.mxu0 %v2331
        %2649 = vmatprep.subr.mxu0 %v2336
        %2650 = vmatpush1.msra.mxu0 %v2335
        %2651 = vmatprep.subr.mxu0 %v2340
        %2652 = vmatpush1.msra.mxu0 %v2339
        %2653 = vmatprep.subr.mxu0 %v2344
        %2654 = vmatpush1.msra.mxu0 %v2343
        %2655 = vmatprep.subr.mxu0 %v2348
        %2656 = vmatpush1.msra.mxu0 %v2347
        %2657 = vmatprep.subr.mxu0 %v2352
        %2658 = vmatpush1.msra.mxu0 %v2351
        %2659 = vmatprep.mubr.f32.mxu0 %v1897
        %2660 = vmatmul.mubr.f32.gmra.mrb[0].mxu0 %v1895
        %v2661 = vpop.f32.mrb[0].mxu0
        %v2662 = vadd.f32 0.0, %v2661
        %v2663 = vpop.f32.mrb[0].mxu0
        %v2664 = vadd.f32 0.0, %v2663
        %2665 = vdwg.mxu0
        %2666 = vmatprep.subr.mxu0 %v2356
        %2667 = vmatpush1.msra.mxu0 %v2355
        %2668 = vmatprep.subr.mxu0 %v2360
        %2669 = vmatpush1.msra.mxu0 %v2359
        %2670 = vmatprep.subr.mxu0 %v2364
        %2671 = vmatpush1.msra.mxu0 %v2363
        %2672 = vmatprep.subr.mxu0 %v2368
        %2673 = vmatpush1.msra.mxu0 %v2367
        %2674 = vmatprep.subr.mxu0 %v2372
        %2675 = vmatpush1.msra.mxu0 %v2371
        %2676 = vmatprep.subr.mxu0 %v2376
        %2677 = vmatpush1.msra.mxu0 %v2375
        %2678 = vmatprep.subr.mxu0 %v2380
        %2679 = vmatpush1.msra.mxu0 %v2379
        %2680 = vmatprep.subr.mxu0 %v2384
        %2681 = vmatpush1.msra.mxu0 %v2383
        %2682 = vmatprep.subr.mxu0 %v2388
        %2683 = vmatpush1.msra.mxu0 %v2387
        %2684 = vmatprep.subr.mxu0 %v2392
        %2685 = vmatpush1.msra.mxu0 %v2391
        %2686 = vmatprep.subr.mxu0 %v2396
        %2687 = vmatpush1.msra.mxu0 %v2395
        %2688 = vmatprep.subr.mxu0 %v2400
        %2689 = vmatpush1.msra.mxu0 %v2399
        %2690 = vmatprep.subr.mxu0 %v2404
        %2691 = vmatpush1.msra.mxu0 %v2403
        %2692 = vmatprep.subr.mxu0 %v2408
        %2693 = vmatpush1.msra.mxu0 %v2407
        %2694 = vmatprep.subr.mxu0 %v2412
        %2695 = vmatpush1.msra.mxu0 %v2411
        %2696 = vmatprep.subr.mxu0 %v2416
        %2697 = vmatpush1.msra.mxu0 %v2415
        %2698 = vmatprep.subr.mxu0 %v2420
        %2699 = vmatpush1.msra.mxu0 %v2419
        %2700 = vmatprep.subr.mxu0 %v2424
        %2701 = vmatpush1.msra.mxu0 %v2423
        %2702 = vmatprep.subr.mxu0 %v2428
        %2703 = vmatpush1.msra.mxu0 %v2427
        %2704 = vmatprep.subr.mxu0 %v2432
        %2705 = vmatpush1.msra.mxu0 %v2431
        %2706 = vmatprep.subr.mxu0 %v2436
        %2707 = vmatpush1.msra.mxu0 %v2435
        %2708 = vmatprep.subr.mxu0 %v2440
        %2709 = vmatpush1.msra.mxu0 %v2439
        %2710 = vmatprep.subr.mxu0 %v2444
        %2711 = vmatpush1.msra.mxu0 %v2443
        %2712 = vmatprep.subr.mxu0 %v2448
        %2713 = vmatpush1.msra.mxu0 %v2447
        %2714 = vmatprep.subr.mxu0 0.0
        %2715 = vmatpush1.msra.mxu0 0.0
        %2716 = vmatprep.subr.mxu0 0.0
        %2717 = vmatpush1.msra.mxu0 0.0
        %2718 = vmatprep.subr.mxu0 0.0
        %2719 = vmatpush1.msra.mxu0 0.0
        %2720 = vmatprep.subr.mxu0 0.0
        %2721 = vmatpush1.msra.mxu0 0.0
        %2722 = vmatprep.subr.mxu0 0.0
        %2723 = vmatpush1.msra.mxu0 0.0
        %2724 = vmatprep.subr.mxu0 0.0
        %2725 = vmatpush1.msra.mxu0 0.0
        %2726 = vmatprep.subr.mxu0 0.0
        %2727 = vmatpush1.msra.mxu0 0.0
        %2728 = vmatprep.subr.mxu0 0.0
        %2729 = vmatpush1.msra.mxu0 0.0
        %2730 = vmatprep.mubr.f32.mxu0 %v2451
        %2731 = vmatmul.mubr.f32.gmra.mrb[0].mxu0 %v1984
        %v2732 = vpop.f32.mrb[0].mxu0
        %v2733 = vadd.f32 %v2662, %v2732
        %v2734 = vpop.f32.mrb[0].mxu0
        %v2735 = vadd.f32 %v2664, %v2734
        %2736 = vdwg.mxu0
        %v2738 = vsel %vm2449, %v1980, 0
        %2740 = vmatprep.subr.mxu0 %v2001
        %2741 = vmatpush1.msra.mxu0 %v2000
        %2742 = vmatprep.subr.mxu0 %v2005
        %2743 = vmatpush1.msra.mxu0 %v2004
        %2744 = vmatprep.subr.mxu0 %v2009
        %2745 = vmatpush1.msra.mxu0 %v2008
        %2746 = vmatprep.subr.mxu0 %v2013
        %2747 = vmatpush1.msra.mxu0 %v2012
        %2748 = vmatprep.subr.mxu0 %v2017
        %2749 = vmatpush1.msra.mxu0 %v2016
        %2750 = vmatprep.subr.mxu0 %v2021
        %2751 = vmatpush1.msra.mxu0 %v2020
        %2752 = vmatprep.subr.mxu0 %v2025
        %2753 = vmatpush1.msra.mxu0 %v2024
        %2754 = vmatprep.subr.mxu0 %v2029
        %2755 = vmatpush1.msra.mxu0 %v2028
        %2756 = vmatprep.subr.mxu0 %v2033
        %2757 = vmatpush1.msra.mxu0 %v2032
        %2758 = vmatprep.subr.mxu0 %v2037
        %2759 = vmatpush1.msra.mxu0 %v2036
        %2760 = vmatprep.subr.mxu0 %v2041
        %2761 = vmatpush1.msra.mxu0 %v2040
        %2762 = vmatprep.subr.mxu0 %v2045
        %2763 = vmatpush1.msra.mxu0 %v2044
        %2764 = vmatprep.subr.mxu0 %v2049
        %2765 = vmatpush1.msra.mxu0 %v2048
        %2766 = vmatprep.subr.mxu0 %v2053
        %2767 = vmatpush1.msra.mxu0 %v2052
        %2768 = vmatprep.subr.mxu0 %v2057
        %2769 = vmatpush1.msra.mxu0 %v2056
        %2770 = vmatprep.subr.mxu0 %v2061
        %2771 = vmatpush1.msra.mxu0 %v2060
        %2772 = vmatprep.subr.mxu0 %v2065
        %2773 = vmatpush1.msra.mxu0 %v2064
        %2774 = vmatprep.subr.mxu0 %v2069
        %2775 = vmatpush1.msra.mxu0 %v2068
        %2776 = vmatprep.subr.mxu0 %v2073
        %2777 = vmatpush1.msra.mxu0 %v2072
        %2778 = vmatprep.subr.mxu0 %v2077
        %2779 = vmatpush1.msra.mxu0 %v2076
        %2780 = vmatprep.subr.mxu0 %v2081
        %2781 = vmatpush1.msra.mxu0 %v2080
        %2782 = vmatprep.subr.mxu0 %v2085
        %2783 = vmatpush1.msra.mxu0 %v2084
        %2784 = vmatprep.subr.mxu0 %v2089
        %2785 = vmatpush1.msra.mxu0 %v2088
        %2786 = vmatprep.subr.mxu0 %v2093
        %2787 = vmatpush1.msra.mxu0 %v2092
        %2788 = vmatprep.subr.mxu0 %v2097
        %2789 = vmatpush1.msra.mxu0 %v2096
        %2790 = vmatprep.subr.mxu0 %v2101
        %2791 = vmatpush1.msra.mxu0 %v2100
        %2792 = vmatprep.subr.mxu0 %v2105
        %2793 = vmatpush1.msra.mxu0 %v2104
        %2794 = vmatprep.subr.mxu0 %v2109
        %2795 = vmatpush1.msra.mxu0 %v2108
        %2796 = vmatprep.subr.mxu0 %v2113
        %2797 = vmatpush1.msra.mxu0 %v2112
        %2798 = vmatprep.subr.mxu0 %v2117
        %2799 = vmatpush1.msra.mxu0 %v2116
        %2800 = vmatprep.subr.mxu0 %v2121
        %2801 = vmatpush1.msra.mxu0 %v2120
        %2802 = vmatprep.subr.mxu0 %v2125
        %2803 = vmatpush1.msra.mxu0 %v2124
        %2804 = vmatprep.mubr.f32.mxu0 %v1891
        %2805 = vmatmul.mubr.f32.gmra.mrb[0].mxu0 %v1889
        %v2806 = vpop.f32.mrb[0].mxu0
        %v2807 = vadd.f32 %v2591, %v2806
        %v2808 = vpop.f32.mrb[0].mxu0
        %v2809 = vadd.f32 %v2593, %v2808
        %2810 = vdwg.mxu0
        %2811 = vmatprep.subr.mxu0 %v2129
        %2812 = vmatpush1.msra.mxu0 %v2128
        %2813 = vmatprep.subr.mxu0 %v2133
        %2814 = vmatpush1.msra.mxu0 %v2132
        %2815 = vmatprep.subr.mxu0 %v2137
        %2816 = vmatpush1.msra.mxu0 %v2136
        %2817 = vmatprep.subr.mxu0 %v2141
        %2818 = vmatpush1.msra.mxu0 %v2140
        %2819 = vmatprep.subr.mxu0 %v2145
        %2820 = vmatpush1.msra.mxu0 %v2144
        %2821 = vmatprep.subr.mxu0 %v2149
        %2822 = vmatpush1.msra.mxu0 %v2148
        %2823 = vmatprep.subr.mxu0 %v2153
        %2824 = vmatpush1.msra.mxu0 %v2152
        %2825 = vmatprep.subr.mxu0 %v2157
        %2826 = vmatpush1.msra.mxu0 %v2156
        %2827 = vmatprep.subr.mxu0 %v2161
        %2828 = vmatpush1.msra.mxu0 %v2160
        %2829 = vmatprep.subr.mxu0 %v2165
        %2830 = vmatpush1.msra.mxu0 %v2164
        %2831 = vmatprep.subr.mxu0 %v2169
        %2832 = vmatpush1.msra.mxu0 %v2168
        %2833 = vmatprep.subr.mxu0 %v2173
        %2834 = vmatpush1.msra.mxu0 %v2172
        %2835 = vmatprep.subr.mxu0 %v2177
        %2836 = vmatpush1.msra.mxu0 %v2176
        %2837 = vmatprep.subr.mxu0 %v2181
        %2838 = vmatpush1.msra.mxu0 %v2180
        %2839 = vmatprep.subr.mxu0 %v2185
        %2840 = vmatpush1.msra.mxu0 %v2184
        %2841 = vmatprep.subr.mxu0 %v2189
        %2842 = vmatpush1.msra.mxu0 %v2188
        %2843 = vmatprep.subr.mxu0 %v2193
        %2844 = vmatpush1.msra.mxu0 %v2192
        %2845 = vmatprep.subr.mxu0 %v2197
        %2846 = vmatpush1.msra.mxu0 %v2196
        %2847 = vmatprep.subr.mxu0 %v2201
        %2848 = vmatpush1.msra.mxu0 %v2200
        %2849 = vmatprep.subr.mxu0 %v2205
        %2850 = vmatpush1.msra.mxu0 %v2204
        %2851 = vmatprep.subr.mxu0 %v2209
        %2852 = vmatpush1.msra.mxu0 %v2208
        %2853 = vmatprep.subr.mxu0 %v2213
        %2854 = vmatpush1.msra.mxu0 %v2212
        %2855 = vmatprep.subr.mxu0 %v2217
        %2856 = vmatpush1.msra.mxu0 %v2216
        %2857 = vmatprep.subr.mxu0 %v2221
        %2858 = vmatpush1.msra.mxu0 %v2220
        %2859 = vmatprep.subr.mxu0 0.0
        %2860 = vmatpush1.msra.mxu0 0.0
        %2861 = vmatprep.subr.mxu0 0.0
        %2862 = vmatpush1.msra.mxu0 0.0
        %2863 = vmatprep.subr.mxu0 0.0
        %2864 = vmatpush1.msra.mxu0 0.0
        %2865 = vmatprep.subr.mxu0 0.0
        %2866 = vmatpush1.msra.mxu0 0.0
        %2867 = vmatprep.subr.mxu0 0.0
        %2868 = vmatpush1.msra.mxu0 0.0
        %2869 = vmatprep.subr.mxu0 0.0
        %2870 = vmatpush1.msra.mxu0 0.0
        %2871 = vmatprep.subr.mxu0 0.0
        %2872 = vmatpush1.msra.mxu0 0.0
        %2873 = vmatprep.subr.mxu0 0.0
        %2874 = vmatpush1.msra.mxu0 0.0
        %2875 = vmatprep.mubr.f32.mxu0 %v2738
        %2876 = vmatmul.mubr.f32.gmra.mrb[0].mxu0 %v1978
        %v2877 = vpop.f32.mrb[0].mxu0
        %v2878 = vadd.f32 %v2807, %v2877
        %v2879 = vpop.f32.mrb[0].mxu0
        %v2880 = vadd.f32 %v2809, %v2879
        %2881 = vdwg.mxu0
        %2882 = vmatprep.subr.mxu0 %v2003
        %2883 = vmatpush1.msra.mxu0 %v2002
        %2884 = vmatprep.subr.mxu0 %v2007
        %2885 = vmatpush1.msra.mxu0 %v2006
        %2886 = vmatprep.subr.mxu0 %v2011
        %2887 = vmatpush1.msra.mxu0 %v2010
        %2888 = vmatprep.subr.mxu0 %v2015
        %2889 = vmatpush1.msra.mxu0 %v2014
        %2890 = vmatprep.subr.mxu0 %v2019
        %2891 = vmatpush1.msra.mxu0 %v2018
        %2892 = vmatprep.subr.mxu0 %v2023
        %2893 = vmatpush1.msra.mxu0 %v2022
        %2894 = vmatprep.subr.mxu0 %v2027
        %2895 = vmatpush1.msra.mxu0 %v2026
        %2896 = vmatprep.subr.mxu0 %v2031
        %2897 = vmatpush1.msra.mxu0 %v2030
        %2898 = vmatprep.subr.mxu0 %v2035
        %2899 = vmatpush1.msra.mxu0 %v2034
        %2900 = vmatprep.subr.mxu0 %v2039
        %2901 = vmatpush1.msra.mxu0 %v2038
        %2902 = vmatprep.subr.mxu0 %v2043
        %2903 = vmatpush1.msra.mxu0 %v2042
        %2904 = vmatprep.subr.mxu0 %v2047
        %2905 = vmatpush1.msra.mxu0 %v2046
        %2906 = vmatprep.subr.mxu0 %v2051
        %2907 = vmatpush1.msra.mxu0 %v2050
        %2908 = vmatprep.subr.mxu0 %v2055
        %2909 = vmatpush1.msra.mxu0 %v2054
        %2910 = vmatprep.subr.mxu0 %v2059
        %2911 = vmatpush1.msra.mxu0 %v2058
        %2912 = vmatprep.subr.mxu0 %v2063
        %2913 = vmatpush1.msra.mxu0 %v2062
        %2914 = vmatprep.subr.mxu0 %v2067
        %2915 = vmatpush1.msra.mxu0 %v2066
        %2916 = vmatprep.subr.mxu0 %v2071
        %2917 = vmatpush1.msra.mxu0 %v2070
        %2918 = vmatprep.subr.mxu0 %v2075
        %2919 = vmatpush1.msra.mxu0 %v2074
        %2920 = vmatprep.subr.mxu0 %v2079
        %2921 = vmatpush1.msra.mxu0 %v2078
        %2922 = vmatprep.subr.mxu0 %v2083
        %2923 = vmatpush1.msra.mxu0 %v2082
        %2924 = vmatprep.subr.mxu0 %v2087
        %2925 = vmatpush1.msra.mxu0 %v2086
        %2926 = vmatprep.subr.mxu0 %v2091
        %2927 = vmatpush1.msra.mxu0 %v2090
        %2928 = vmatprep.subr.mxu0 %v2095
        %2929 = vmatpush1.msra.mxu0 %v2094
        %2930 = vmatprep.subr.mxu0 %v2099
        %2931 = vmatpush1.msra.mxu0 %v2098
        %2932 = vmatprep.subr.mxu0 %v2103
        %2933 = vmatpush1.msra.mxu0 %v2102
        %2934 = vmatprep.subr.mxu0 %v2107
        %2935 = vmatpush1.msra.mxu0 %v2106
        %2936 = vmatprep.subr.mxu0 %v2111
        %2937 = vmatpush1.msra.mxu0 %v2110
        %2938 = vmatprep.subr.mxu0 %v2115
        %2939 = vmatpush1.msra.mxu0 %v2114
        %2940 = vmatprep.subr.mxu0 %v2119
        %2941 = vmatpush1.msra.mxu0 %v2118
        %2942 = vmatprep.subr.mxu0 %v2123
        %2943 = vmatpush1.msra.mxu0 %v2122
        %2944 = vmatprep.subr.mxu0 %v2127
        %2945 = vmatpush1.msra.mxu0 %v2126
        %2946 = vmatprep.mubr.f32.mxu0 %v1891
        %2947 = vmatmul.mubr.f32.gmra.mrb[0].mxu0 %v1889
        %v2948 = vpop.f32.mrb[0].mxu0
        %v2949 = vadd.f32 %v2733, %v2948
        %v2950 = vpop.f32.mrb[0].mxu0
        %v2951 = vadd.f32 %v2735, %v2950
        %2952 = vdwg.mxu0
        %2953 = vmatprep.subr.mxu0 %v2131
        %2954 = vmatpush1.msra.mxu0 %v2130
        %2955 = vmatprep.subr.mxu0 %v2135
        %2956 = vmatpush1.msra.mxu0 %v2134
        %2957 = vmatprep.subr.mxu0 %v2139
        %2958 = vmatpush1.msra.mxu0 %v2138
        %2959 = vmatprep.subr.mxu0 %v2143
        %2960 = vmatpush1.msra.mxu0 %v2142
        %2961 = vmatprep.subr.mxu0 %v2147
        %2962 = vmatpush1.msra.mxu0 %v2146
        %2963 = vmatprep.subr.mxu0 %v2151
        %2964 = vmatpush1.msra.mxu0 %v2150
        %2965 = vmatprep.subr.mxu0 %v2155
        %2966 = vmatpush1.msra.mxu0 %v2154
        %2967 = vmatprep.subr.mxu0 %v2159
        %2968 = vmatpush1.msra.mxu0 %v2158
        %2969 = vmatprep.subr.mxu0 %v2163
        %2970 = vmatpush1.msra.mxu0 %v2162
        %2971 = vmatprep.subr.mxu0 %v2167
        %2972 = vmatpush1.msra.mxu0 %v2166
        %2973 = vmatprep.subr.mxu0 %v2171
        %2974 = vmatpush1.msra.mxu0 %v2170
        %2975 = vmatprep.subr.mxu0 %v2175
        %2976 = vmatpush1.msra.mxu0 %v2174
        %2977 = vmatprep.subr.mxu0 %v2179
        %2978 = vmatpush1.msra.mxu0 %v2178
        %2979 = vmatprep.subr.mxu0 %v2183
        %2980 = vmatpush1.msra.mxu0 %v2182
        %2981 = vmatprep.subr.mxu0 %v2187
        %2982 = vmatpush1.msra.mxu0 %v2186
        %2983 = vmatprep.subr.mxu0 %v2191
        %2984 = vmatpush1.msra.mxu0 %v2190
        %2985 = vmatprep.subr.mxu0 %v2195
        %2986 = vmatpush1.msra.mxu0 %v2194
        %2987 = vmatprep.subr.mxu0 %v2199
        %2988 = vmatpush1.msra.mxu0 %v2198
        %2989 = vmatprep.subr.mxu0 %v2203
        %2990 = vmatpush1.msra.mxu0 %v2202
        %2991 = vmatprep.subr.mxu0 %v2207
        %2992 = vmatpush1.msra.mxu0 %v2206
        %2993 = vmatprep.subr.mxu0 %v2211
        %2994 = vmatpush1.msra.mxu0 %v2210
        %2995 = vmatprep.subr.mxu0 %v2215
        %2996 = vmatpush1.msra.mxu0 %v2214
        %2997 = vmatprep.subr.mxu0 %v2219
        %2998 = vmatpush1.msra.mxu0 %v2218
        %2999 = vmatprep.subr.mxu0 %v2223
        %3000 = vmatpush1.msra.mxu0 %v2222
        %3001 = vmatprep.subr.mxu0 0.0
        %3002 = vmatpush1.msra.mxu0 0.0
        %3003 = vmatprep.subr.mxu0 0.0
        %3004 = vmatpush1.msra.mxu0 0.0
        %3005 = vmatprep.subr.mxu0 0.0
        %3006 = vmatpush1.msra.mxu0 0.0
        %3007 = vmatprep.subr.mxu0 0.0
        %3008 = vmatpush1.msra.mxu0 0.0
        %3009 = vmatprep.subr.mxu0 0.0
        %3010 = vmatpush1.msra.mxu0 0.0
        %3011 = vmatprep.subr.mxu0 0.0
        %3012 = vmatpush1.msra.mxu0 0.0
        %3013 = vmatprep.subr.mxu0 0.0
        %3014 = vmatpush1.msra.mxu0 0.0
        %3015 = vmatprep.subr.mxu0 0.0
        %3016 = vmatpush1.msra.mxu0 0.0
        %3017 = vmatprep.mubr.f32.mxu0 %v2738
        %3018 = vmatmul.mubr.f32.gmra.mrb[0].mxu0 %v1978
        %v3019 = vpop.f32.mrb[0].mxu0
        %v3020 = vadd.f32 %v2949, %v3019
        %v3021 = vpop.f32.mrb[0].mxu0
        %v3022 = vadd.f32 %v2951, %v3021
        %3023 = vdwg.mxu0
        %s3024 = scalar_lea.vmem [#allocation5], 3584
        %v3025 = vld [vmem:[%s3024] sm:$0xff]
        %v3026 = vld [vmem:[%s3024 + $0x8] sm:$0xff]
        %v3027 = vld [vmem:[%s3024 + $0x10] sm:$0xff]
        %v3028 = vld [vmem:[%s3024 + $0x18] sm:$0xff]
        %v3029 = vld [vmem:[%s3024 + $0x20] sm:$0xff]
        %v3030 = vld [vmem:[%s3024 + $0x28] sm:$0xff]
        %v3031 = vld [vmem:[%s3024 + $0x30] sm:$0xff]
        %v3032 = vld [vmem:[%s3024 + $0x38] sm:$0xff]
        %v3033 = vld [vmem:[%s3024 + $0x40] sm:$0xff]
        %v3034 = vld [vmem:[%s3024 + $0x48] sm:$0xff]
        %v3035 = vld [vmem:[%s3024 + $0x50] sm:$0xff]
        %v3036 = vld [vmem:[%s3024 + $0x58] sm:$0xff]
        %v3037 = vld [vmem:[%s3024 + $0x60] sm:$0xff]
        %v3038 = vld [vmem:[%s3024 + $0x68] sm:$0xff]
        %v3039 = vld [vmem:[%s3024 + $0x70] sm:$0xff]
        %v3040 = vld [vmem:[%s3024 + $0x78] sm:$0xff]
        %v3041 = vld [vmem:[%s3024 + $0x80] sm:$0xff]
        %v3042 = vld [vmem:[%s3024 + $0x88] sm:$0xff]
        %v3043 = vld [vmem:[%s3024 + $0x90] sm:$0xff]
        %v3044 = vld [vmem:[%s3024 + $0x98] sm:$0xff]
        %v3045 = vld [vmem:[%s3024 + $0xa0] sm:$0xff]
        %v3046 = vld [vmem:[%s3024 + $0xa8] sm:$0xff]
        %v3047 = vld [vmem:[%s3024 + $0xb0] sm:$0xff]
        %v3048 = vld [vmem:[%s3024 + $0xb8] sm:$0xff]
        %v3049 = vld [vmem:[%s3024 + $0xc0] sm:$0xff]
        %v3050 = vld [vmem:[%s3024 + $0xc8] sm:$0xff]
        %v3051 = vld [vmem:[%s3024 + $0xd0] sm:$0xff]
        %v3052 = vld [vmem:[%s3024 + $0xd8] sm:$0xff]
        %v3053 = vld [vmem:[%s3024 + $0xe0] sm:$0xff]
        %v3054 = vld [vmem:[%s3024 + $0xe8] sm:$0xff]
        %v3055 = vld [vmem:[%s3024 + $0xf0] sm:$0xff]
        %v3056 = vld [vmem:[%s3024 + $0xf8] sm:$0xff]
        %v3057 = vld [vmem:[%s3024 + $0x100] sm:$0xff]
        %v3058 = vld [vmem:[%s3024 + $0x108] sm:$0xff]
        %v3059 = vld [vmem:[%s3024 + $0x110] sm:$0xff]
        %v3060 = vld [vmem:[%s3024 + $0x118] sm:$0xff]
        %v3061 = vld [vmem:[%s3024 + $0x120] sm:$0xff]
        %v3062 = vld [vmem:[%s3024 + $0x128] sm:$0xff]
        %v3063 = vld [vmem:[%s3024 + $0x130] sm:$0xff]
        %v3064 = vld [vmem:[%s3024 + $0x138] sm:$0xff]
        %v3065 = vld [vmem:[%s3024 + $0x140] sm:$0xff]
        %v3066 = vld [vmem:[%s3024 + $0x148] sm:$0xff]
        %v3067 = vld [vmem:[%s3024 + $0x150] sm:$0xff]
        %v3068 = vld [vmem:[%s3024 + $0x158] sm:$0xff]
        %v3069 = vld [vmem:[%s3024 + $0x160] sm:$0xff]
        %v3070 = vld [vmem:[%s3024 + $0x168] sm:$0xff]
        %v3071 = vld [vmem:[%s3024 + $0x170] sm:$0xff]
        %v3072 = vld [vmem:[%s3024 + $0x178] sm:$0xff]
        %v3073 = vld [vmem:[%s3024 + $0x180] sm:$0xff]
        %v3074 = vld [vmem:[%s3024 + $0x188] sm:$0xff]
        %v3075 = vld [vmem:[%s3024 + $0x190] sm:$0xff]
        %v3076 = vld [vmem:[%s3024 + $0x198] sm:$0xff]
        %v3077 = vld [vmem:[%s3024 + $0x1a0] sm:$0xff]
        %v3078 = vld [vmem:[%s3024 + $0x1a8] sm:$0xff]
        %v3079 = vld [vmem:[%s3024 + $0x1b0] sm:$0xff]
        %v3080 = vld [vmem:[%s3024 + $0x1b8] sm:$0xff]
        %v3081 = vld [vmem:[%s3024 + $0x1c0] sm:$0xff]
        %v3082 = vld [vmem:[%s3024 + $0x1c8] sm:$0xff]
        %v3083 = vld [vmem:[%s3024 + $0x1d0] sm:$0xff]
        %v3084 = vld [vmem:[%s3024 + $0x1d8] sm:$0xff]
        %v3085 = vld [vmem:[%s3024 + $0x1e0] sm:$0xff]
        %v3086 = vld [vmem:[%s3024 + $0x1e8] sm:$0xff]
        %v3087 = vld [vmem:[%s3024 + $0x1f0] sm:$0xff]
        %v3088 = vld [vmem:[%s3024 + $0x1f8] sm:$0xff]
        %v3089 = vld [vmem:[%s3024 + $0x200] sm:$0xff]
        %v3090 = vld [vmem:[%s3024 + $0x208] sm:$0xff]
        %v3091 = vld [vmem:[%s3024 + $0x210] sm:$0xff]
        %v3092 = vld [vmem:[%s3024 + $0x218] sm:$0xff]
        %v3093 = vld [vmem:[%s3024 + $0x220] sm:$0xff]
        %v3094 = vld [vmem:[%s3024 + $0x228] sm:$0xff]
        %v3095 = vld [vmem:[%s3024 + $0x230] sm:$0xff]
        %v3096 = vld [vmem:[%s3024 + $0x238] sm:$0xff]
        %v3097 = vld [vmem:[%s3024 + $0x240] sm:$0xff]
        %v3098 = vld [vmem:[%s3024 + $0x248] sm:$0xff]
        %v3099 = vld [vmem:[%s3024 + $0x250] sm:$0xff]
        %v3100 = vld [vmem:[%s3024 + $0x258] sm:$0xff]
        %v3101 = vld [vmem:[%s3024 + $0x260] sm:$0xff]
        %v3102 = vld [vmem:[%s3024 + $0x268] sm:$0xff]
        %v3103 = vld [vmem:[%s3024 + $0x270] sm:$0xff]
        %v3104 = vld [vmem:[%s3024 + $0x278] sm:$0xff]
        %v3105 = vld [vmem:[%s3024 + $0x280] sm:$0xff]
        %v3106 = vld [vmem:[%s3024 + $0x288] sm:$0xff]
        %v3107 = vld [vmem:[%s3024 + $0x290] sm:$0xff]
        %v3108 = vld [vmem:[%s3024 + $0x298] sm:$0xff]
        %v3109 = vld [vmem:[%s3024 + $0x2a0] sm:$0xff]
        %v3110 = vld [vmem:[%s3024 + $0x2a8] sm:$0xff]
        %v3111 = vld [vmem:[%s3024 + $0x2b0] sm:$0xff]
        %v3112 = vld [vmem:[%s3024 + $0x2b8] sm:$0xff]
        %v3113 = vld [vmem:[%s3024 + $0x2c0] sm:$0xff]
        %v3114 = vld [vmem:[%s3024 + $0x2c8] sm:$0xff]
        %v3115 = vld [vmem:[%s3024 + $0x2d0] sm:$0xff]
        %v3116 = vld [vmem:[%s3024 + $0x2d8] sm:$0xff]
        %v3117 = vld [vmem:[%s3024 + $0x2e0] sm:$0xff]
        %v3118 = vld [vmem:[%s3024 + $0x2e8] sm:$0xff]
        %v3119 = vld [vmem:[%s3024 + $0x2f0] sm:$0xff]
        %v3120 = vld [vmem:[%s3024 + $0x2f8] sm:$0xff]
        %v3121 = vld [vmem:[%s3024 + $0x300] sm:$0xff]
        %v3122 = vld [vmem:[%s3024 + $0x308] sm:$0xff]
        %v3123 = vld [vmem:[%s3024 + $0x310] sm:$0xff]
        %v3124 = vld [vmem:[%s3024 + $0x318] sm:$0xff]
        %v3125 = vld [vmem:[%s3024 + $0x320] sm:$0xff]
        %v3126 = vld [vmem:[%s3024 + $0x328] sm:$0xff]
        %v3127 = vld [vmem:[%s3024 + $0x330] sm:$0xff]
        %v3128 = vld [vmem:[%s3024 + $0x338] sm:$0xff]
        %v3129 = vld [vmem:[%s3024 + $0x340] sm:$0xff]
        %v3130 = vld [vmem:[%s3024 + $0x348] sm:$0xff]
        %v3131 = vld [vmem:[%s3024 + $0x350] sm:$0xff]
        %v3132 = vld [vmem:[%s3024 + $0x358] sm:$0xff]
        %v3133 = vld [vmem:[%s3024 + $0x360] sm:$0xff]
        %v3134 = vld [vmem:[%s3024 + $0x368] sm:$0xff]
        %v3135 = vld [vmem:[%s3024 + $0x370] sm:$0xff]
        %v3136 = vld [vmem:[%s3024 + $0x378] sm:$0xff]
        %v3137 = vld [vmem:[%s3024 + $0x380] sm:$0xff]
        %v3138 = vld [vmem:[%s3024 + $0x388] sm:$0xff]
        %v3139 = vld [vmem:[%s3024 + $0x390] sm:$0xff]
        %v3140 = vld [vmem:[%s3024 + $0x398] sm:$0xff]
        %v3141 = vld [vmem:[%s3024 + $0x3a0] sm:$0xff]
        %v3142 = vld [vmem:[%s3024 + $0x3a8] sm:$0xff]
        %v3143 = vld [vmem:[%s3024 + $0x3b0] sm:$0xff]
        %v3144 = vld [vmem:[%s3024 + $0x3b8] sm:$0xff]
        %v3145 = vld [vmem:[%s3024 + $0x3c0] sm:$0xff]
        %v3146 = vld [vmem:[%s3024 + $0x3c8] sm:$0xff]
        %v3147 = vld [vmem:[%s3024 + $0x3d0] sm:$0xff]
        %v3148 = vld [vmem:[%s3024 + $0x3d8] sm:$0xff]
        %v3149 = vld [vmem:[%s3024 + $0x3e0] sm:$0xff]
        %v3150 = vld [vmem:[%s3024 + $0x3e8] sm:$0xff]
        %v3151 = vld [vmem:[%s3024 + $0x3f0] sm:$0xff]
        %v3152 = vld [vmem:[%s3024 + $0x3f8] sm:$0xff]
        %v3153 = vld [vmem:[%s3024 + $0x400] sm:$0xff]
        %v3154 = vld [vmem:[%s3024 + $0x408] sm:$0xff]
        %v3155 = vld [vmem:[%s3024 + $0x410] sm:$0xff]
        %v3156 = vld [vmem:[%s3024 + $0x418] sm:$0xff]
        %v3157 = vld [vmem:[%s3024 + $0x420] sm:$0xff]
        %v3158 = vld [vmem:[%s3024 + $0x428] sm:$0xff]
        %v3159 = vld [vmem:[%s3024 + $0x430] sm:$0xff]
        %v3160 = vld [vmem:[%s3024 + $0x438] sm:$0xff]
        %v3161 = vld [vmem:[%s3024 + $0x440] sm:$0xff]
        %v3162 = vld [vmem:[%s3024 + $0x448] sm:$0xff]
        %v3163 = vld [vmem:[%s3024 + $0x450] sm:$0xff]
        %v3164 = vld [vmem:[%s3024 + $0x458] sm:$0xff]
        %v3165 = vld [vmem:[%s3024 + $0x460] sm:$0xff]
        %v3166 = vld [vmem:[%s3024 + $0x468] sm:$0xff]
        %v3167 = vld [vmem:[%s3024 + $0x470] sm:$0xff]
        %v3168 = vld [vmem:[%s3024 + $0x478] sm:$0xff]
        %v3169 = vld [vmem:[%s3024 + $0x480] sm:$0xff]
        %v3170 = vld [vmem:[%s3024 + $0x488] sm:$0xff]
        %v3171 = vld [vmem:[%s3024 + $0x490] sm:$0xff]
        %v3172 = vld [vmem:[%s3024 + $0x498] sm:$0xff]
        %v3173 = vld [vmem:[%s3024 + $0x4a0] sm:$0xff]
        %v3174 = vld [vmem:[%s3024 + $0x4a8] sm:$0xff]
        %v3175 = vld [vmem:[%s3024 + $0x4b0] sm:$0xff]
        %v3176 = vld [vmem:[%s3024 + $0x4b8] sm:$0xff]
        %v3177 = vld [vmem:[%s3024 + $0x4c0] sm:$0xff]
        %v3178 = vld [vmem:[%s3024 + $0x4c8] sm:$0xff]
        %v3179 = vld [vmem:[%s3024 + $0x4d0] sm:$0xff]
        %v3180 = vld [vmem:[%s3024 + $0x4d8] sm:$0xff]
        %v3181 = vld [vmem:[%s3024 + $0x4e0] sm:$0xff]
        %v3182 = vld [vmem:[%s3024 + $0x4e8] sm:$0xff]
        %v3183 = vld [vmem:[%s3024 + $0x4f0] sm:$0xff]
        %v3184 = vld [vmem:[%s3024 + $0x4f8] sm:$0xff]
        %v3185 = vld [vmem:[%s3024 + $0x500] sm:$0xff]
        %v3186 = vld [vmem:[%s3024 + $0x508] sm:$0xff]
        %v3187 = vld [vmem:[%s3024 + $0x510] sm:$0xff]
        %v3188 = vld [vmem:[%s3024 + $0x518] sm:$0xff]
        %v3189 = vld [vmem:[%s3024 + $0x520] sm:$0xff]
        %v3190 = vld [vmem:[%s3024 + $0x528] sm:$0xff]
        %v3191 = vld [vmem:[%s3024 + $0x530] sm:$0xff]
        %v3192 = vld [vmem:[%s3024 + $0x538] sm:$0xff]
        %v3193 = vld [vmem:[%s3024 + $0x540] sm:$0xff]
        %v3194 = vld [vmem:[%s3024 + $0x548] sm:$0xff]
        %v3195 = vld [vmem:[%s3024 + $0x550] sm:$0xff]
        %v3196 = vld [vmem:[%s3024 + $0x558] sm:$0xff]
        %v3197 = vld [vmem:[%s3024 + $0x560] sm:$0xff]
        %v3198 = vld [vmem:[%s3024 + $0x568] sm:$0xff]
        %v3199 = vld [vmem:[%s3024 + $0x570] sm:$0xff]
        %v3200 = vld [vmem:[%s3024 + $0x578] sm:$0xff]
        %v3201 = vld [vmem:[%s3024 + $0x580] sm:$0xff]
        %v3202 = vld [vmem:[%s3024 + $0x588] sm:$0xff]
        %v3203 = vld [vmem:[%s3024 + $0x590] sm:$0xff]
        %v3204 = vld [vmem:[%s3024 + $0x598] sm:$0xff]
        %v3205 = vld [vmem:[%s3024 + $0x5a0] sm:$0xff]
        %v3206 = vld [vmem:[%s3024 + $0x5a8] sm:$0xff]
        %v3207 = vld [vmem:[%s3024 + $0x5b0] sm:$0xff]
        %v3208 = vld [vmem:[%s3024 + $0x5b8] sm:$0xff]
        %v3209 = vld [vmem:[%s3024 + $0x5c0] sm:$0xff]
        %v3210 = vld [vmem:[%s3024 + $0x5c8] sm:$0xff]
        %v3211 = vld [vmem:[%s3024 + $0x5d0] sm:$0xff]
        %v3212 = vld [vmem:[%s3024 + $0x5d8] sm:$0xff]
        %v3213 = vld [vmem:[%s3024 + $0x5e0] sm:$0xff]
        %v3214 = vld [vmem:[%s3024 + $0x5e8] sm:$0xff]
        %v3215 = vld [vmem:[%s3024 + $0x5f0] sm:$0xff]
        %v3216 = vld [vmem:[%s3024 + $0x5f8] sm:$0xff]
        %v3217 = vld [vmem:[%s3024 + $0x600] sm:$0xff]
        %v3218 = vld [vmem:[%s3024 + $0x608] sm:$0xff]
        %v3219 = vld [vmem:[%s3024 + $0x610] sm:$0xff]
        %v3220 = vld [vmem:[%s3024 + $0x618] sm:$0xff]
        %v3221 = vld [vmem:[%s3024 + $0x620] sm:$0xff]
        %v3222 = vld [vmem:[%s3024 + $0x628] sm:$0xff]
        %v3223 = vld [vmem:[%s3024 + $0x630] sm:$0xff]
        %v3224 = vld [vmem:[%s3024 + $0x638] sm:$0xff]
        %v3225 = vld [vmem:[%s3024 + $0x640] sm:$0xff]
        %v3226 = vld [vmem:[%s3024 + $0x648] sm:$0xff]
        %v3227 = vld [vmem:[%s3024 + $0x650] sm:$0xff]
        %v3228 = vld [vmem:[%s3024 + $0x658] sm:$0xff]
        %v3229 = vld [vmem:[%s3024 + $0x660] sm:$0xff]
        %v3230 = vld [vmem:[%s3024 + $0x668] sm:$0xff]
        %v3231 = vld [vmem:[%s3024 + $0x670] sm:$0xff]
        %v3232 = vld [vmem:[%s3024 + $0x678] sm:$0xff]
        %v3233 = vld [vmem:[%s3024 + $0x680] sm:$0xff]
        %v3234 = vld [vmem:[%s3024 + $0x688] sm:$0xff]
        %v3235 = vld [vmem:[%s3024 + $0x690] sm:$0xff]
        %v3236 = vld [vmem:[%s3024 + $0x698] sm:$0xff]
        %v3237 = vld [vmem:[%s3024 + $0x6a0] sm:$0xff]
        %v3238 = vld [vmem:[%s3024 + $0x6a8] sm:$0xff]
        %v3239 = vld [vmem:[%s3024 + $0x6b0] sm:$0xff]
        %v3240 = vld [vmem:[%s3024 + $0x6b8] sm:$0xff]
        %v3241 = vld [vmem:[%s3024 + $0x6c0] sm:$0xff]
        %v3242 = vld [vmem:[%s3024 + $0x6c8] sm:$0xff]
        %v3243 = vld [vmem:[%s3024 + $0x6d0] sm:$0xff]
        %v3244 = vld [vmem:[%s3024 + $0x6d8] sm:$0xff]
        %v3245 = vld [vmem:[%s3024 + $0x6e0] sm:$0xff]
        %v3246 = vld [vmem:[%s3024 + $0x6e8] sm:$0xff]
        %v3247 = vld [vmem:[%s3024 + $0x6f0] sm:$0xff]
        %v3248 = vld [vmem:[%s3024 + $0x6f8] sm:$0xff]
        %v3250 = vsel %vm2449, %v1992, 0
        %3252 = vmatprep.subr.mxu0 %v3026
        %3253 = vmatpush1.msra.mxu0 %v3025
        %3254 = vmatprep.subr.mxu0 %v3030
        %3255 = vmatpush1.msra.mxu0 %v3029
        %3256 = vmatprep.subr.mxu0 %v3034
        %3257 = vmatpush1.msra.mxu0 %v3033
        %3258 = vmatprep.subr.mxu0 %v3038
        %3259 = vmatpush1.msra.mxu0 %v3037
        %3260 = vmatprep.subr.mxu0 %v3042
        %3261 = vmatpush1.msra.mxu0 %v3041
        %3262 = vmatprep.subr.mxu0 %v3046
        %3263 = vmatpush1.msra.mxu0 %v3045
        %3264 = vmatprep.subr.mxu0 %v3050
        %3265 = vmatpush1.msra.mxu0 %v3049
        %3266 = vmatprep.subr.mxu0 %v3054
        %3267 = vmatpush1.msra.mxu0 %v3053
        %3268 = vmatprep.subr.mxu0 %v3058
        %3269 = vmatpush1.msra.mxu0 %v3057
        %3270 = vmatprep.subr.mxu0 %v3062
        %3271 = vmatpush1.msra.mxu0 %v3061
        %3272 = vmatprep.subr.mxu0 %v3066
        %3273 = vmatpush1.msra.mxu0 %v3065
        %3274 = vmatprep.subr.mxu0 %v3070
        %3275 = vmatpush1.msra.mxu0 %v3069
        %3276 = vmatprep.subr.mxu0 %v3074
        %3277 = vmatpush1.msra.mxu0 %v3073
        %3278 = vmatprep.subr.mxu0 %v3078
        %3279 = vmatpush1.msra.mxu0 %v3077
        %3280 = vmatprep.subr.mxu0 %v3082
        %3281 = vmatpush1.msra.mxu0 %v3081
        %3282 = vmatprep.subr.mxu0 %v3086
        %3283 = vmatpush1.msra.mxu0 %v3085
        %3284 = vmatprep.subr.mxu0 %v3090
        %3285 = vmatpush1.msra.mxu0 %v3089
        %3286 = vmatprep.subr.mxu0 %v3094
        %3287 = vmatpush1.msra.mxu0 %v3093
        %3288 = vmatprep.subr.mxu0 %v3098
        %3289 = vmatpush1.msra.mxu0 %v3097
        %3290 = vmatprep.subr.mxu0 %v3102
        %3291 = vmatpush1.msra.mxu0 %v3101
        %3292 = vmatprep.subr.mxu0 %v3106
        %3293 = vmatpush1.msra.mxu0 %v3105
        %3294 = vmatprep.subr.mxu0 %v3110
        %3295 = vmatpush1.msra.mxu0 %v3109
        %3296 = vmatprep.subr.mxu0 %v3114
        %3297 = vmatpush1.msra.mxu0 %v3113
        %3298 = vmatprep.subr.mxu0 %v3118
        %3299 = vmatpush1.msra.mxu0 %v3117
        %3300 = vmatprep.subr.mxu0 %v3122
        %3301 = vmatpush1.msra.mxu0 %v3121
        %3302 = vmatprep.subr.mxu0 %v3126
        %3303 = vmatpush1.msra.mxu0 %v3125
        %3304 = vmatprep.subr.mxu0 %v3130
        %3305 = vmatpush1.msra.mxu0 %v3129
        %3306 = vmatprep.subr.mxu0 %v3134
        %3307 = vmatpush1.msra.mxu0 %v3133
        %3308 = vmatprep.subr.mxu0 %v3138
        %3309 = vmatpush1.msra.mxu0 %v3137
        %3310 = vmatprep.subr.mxu0 %v3142
        %3311 = vmatpush1.msra.mxu0 %v3141
        %3312 = vmatprep.subr.mxu0 %v3146
        %3313 = vmatpush1.msra.mxu0 %v3145
        %3314 = vmatprep.subr.mxu0 %v3150
        %3315 = vmatpush1.msra.mxu0 %v3149
        %3316 = vmatprep.mubr.f32.mxu0 %v1903
        %3317 = vmatmul.mubr.f32.gmra.mrb[0].mxu0 %v1901
        %v3318 = vpop.f32.mrb[0].mxu0
        %v3319 = vadd.f32 0.0, %v3318
        %v3320 = vpop.f32.mrb[0].mxu0
        %v3321 = vadd.f32 0.0, %v3320
        %3322 = vdwg.mxu0
        %3323 = vmatprep.subr.mxu0 %v3154
        %3324 = vmatpush1.msra.mxu0 %v3153
        %3325 = vmatprep.subr.mxu0 %v3158
        %3326 = vmatpush1.msra.mxu0 %v3157
        %3327 = vmatprep.subr.mxu0 %v3162
        %3328 = vmatpush1.msra.mxu0 %v3161
        %3329 = vmatprep.subr.mxu0 %v3166
        %3330 = vmatpush1.msra.mxu0 %v3165
        %3331 = vmatprep.subr.mxu0 %v3170
        %3332 = vmatpush1.msra.mxu0 %v3169
        %3333 = vmatprep.subr.mxu0 %v3174
        %3334 = vmatpush1.msra.mxu0 %v3173
        %3335 = vmatprep.subr.mxu0 %v3178
        %3336 = vmatpush1.msra.mxu0 %v3177
        %3337 = vmatprep.subr.mxu0 %v3182
        %3338 = vmatpush1.msra.mxu0 %v3181
        %3339 = vmatprep.subr.mxu0 %v3186
        %3340 = vmatpush1.msra.mxu0 %v3185
        %3341 = vmatprep.subr.mxu0 %v3190
        %3342 = vmatpush1.msra.mxu0 %v3189
        %3343 = vmatprep.subr.mxu0 %v3194
        %3344 = vmatpush1.msra.mxu0 %v3193
        %3345 = vmatprep.subr.mxu0 %v3198
        %3346 = vmatpush1.msra.mxu0 %v3197
        %3347 = vmatprep.subr.mxu0 %v3202
        %3348 = vmatpush1.msra.mxu0 %v3201
        %3349 = vmatprep.subr.mxu0 %v3206
        %3350 = vmatpush1.msra.mxu0 %v3205
        %3351 = vmatprep.subr.mxu0 %v3210
        %3352 = vmatpush1.msra.mxu0 %v3209
        %3353 = vmatprep.subr.mxu0 %v3214
        %3354 = vmatpush1.msra.mxu0 %v3213
        %3355 = vmatprep.subr.mxu0 %v3218
        %3356 = vmatpush1.msra.mxu0 %v3217
        %3357 = vmatprep.subr.mxu0 %v3222
        %3358 = vmatpush1.msra.mxu0 %v3221
        %3359 = vmatprep.subr.mxu0 %v3226
        %3360 = vmatpush1.msra.mxu0 %v3225
        %3361 = vmatprep.subr.mxu0 %v3230
        %3362 = vmatpush1.msra.mxu0 %v3229
        %3363 = vmatprep.subr.mxu0 %v3234
        %3364 = vmatpush1.msra.mxu0 %v3233
        %3365 = vmatprep.subr.mxu0 %v3238
        %3366 = vmatpush1.msra.mxu0 %v3237
        %3367 = vmatprep.subr.mxu0 %v3242
        %3368 = vmatpush1.msra.mxu0 %v3241
        %3369 = vmatprep.subr.mxu0 %v3246
        %3370 = vmatpush1.msra.mxu0 %v3245
        %3371 = vmatprep.subr.mxu0 0.0
        %3372 = vmatpush1.msra.mxu0 0.0
        %3373 = vmatprep.subr.mxu0 0.0
        %3374 = vmatpush1.msra.mxu0 0.0
        %3375 = vmatprep.subr.mxu0 0.0
        %3376 = vmatpush1.msra.mxu0 0.0
        %3377 = vmatprep.subr.mxu0 0.0
        %3378 = vmatpush1.msra.mxu0 0.0
        %3379 = vmatprep.subr.mxu0 0.0
        %3380 = vmatpush1.msra.mxu0 0.0
        %3381 = vmatprep.subr.mxu0 0.0
        %3382 = vmatpush1.msra.mxu0 0.0
        %3383 = vmatprep.subr.mxu0 0.0
        %3384 = vmatpush1.msra.mxu0 0.0
        %3385 = vmatprep.subr.mxu0 0.0
        %3386 = vmatpush1.msra.mxu0 0.0
        %3387 = vmatprep.mubr.f32.mxu0 %v3250
        %3388 = vmatmul.mubr.f32.gmra.mrb[0].mxu0 %v1990
        %v3389 = vpop.f32.mrb[0].mxu0
        %v3390 = vadd.f32 %v3319, %v3389
        %v3391 = vpop.f32.mrb[0].mxu0
        %v3392 = vadd.f32 %v3321, %v3391
        %3393 = vdwg.mxu0
        %3394 = vmatprep.subr.mxu0 %v3028
        %3395 = vmatpush1.msra.mxu0 %v3027
        %3396 = vmatprep.subr.mxu0 %v3032
        %3397 = vmatpush1.msra.mxu0 %v3031
        %3398 = vmatprep.subr.mxu0 %v3036
        %3399 = vmatpush1.msra.mxu0 %v3035
        %3400 = vmatprep.subr.mxu0 %v3040
        %3401 = vmatpush1.msra.mxu0 %v3039
        %3402 = vmatprep.subr.mxu0 %v3044
        %3403 = vmatpush1.msra.mxu0 %v3043
        %3404 = vmatprep.subr.mxu0 %v3048
        %3405 = vmatpush1.msra.mxu0 %v3047
        %3406 = vmatprep.subr.mxu0 %v3052
        %3407 = vmatpush1.msra.mxu0 %v3051
        %3408 = vmatprep.subr.mxu0 %v3056
        %3409 = vmatpush1.msra.mxu0 %v3055
        %3410 = vmatprep.subr.mxu0 %v3060
        %3411 = vmatpush1.msra.mxu0 %v3059
        %3412 = vmatprep.subr.mxu0 %v3064
        %3413 = vmatpush1.msra.mxu0 %v3063
        %3414 = vmatprep.subr.mxu0 %v3068
        %3415 = vmatpush1.msra.mxu0 %v3067
        %3416 = vmatprep.subr.mxu0 %v3072
        %3417 = vmatpush1.msra.mxu0 %v3071
        %3418 = vmatprep.subr.mxu0 %v3076
        %3419 = vmatpush1.msra.mxu0 %v3075
        %3420 = vmatprep.subr.mxu0 %v3080
        %3421 = vmatpush1.msra.mxu0 %v3079
        %3422 = vmatprep.subr.mxu0 %v3084
        %3423 = vmatpush1.msra.mxu0 %v3083
        %3424 = vmatprep.subr.mxu0 %v3088
        %3425 = vmatpush1.msra.mxu0 %v3087
        %3426 = vmatprep.subr.mxu0 %v3092
        %3427 = vmatpush1.msra.mxu0 %v3091
        %3428 = vmatprep.subr.mxu0 %v3096
        %3429 = vmatpush1.msra.mxu0 %v3095
        %3430 = vmatprep.subr.mxu0 %v3100
        %3431 = vmatpush1.msra.mxu0 %v3099
        %3432 = vmatprep.subr.mxu0 %v3104
        %3433 = vmatpush1.msra.mxu0 %v3103
        %3434 = vmatprep.subr.mxu0 %v3108
        %3435 = vmatpush1.msra.mxu0 %v3107
        %3436 = vmatprep.subr.mxu0 %v3112
        %3437 = vmatpush1.msra.mxu0 %v3111
        %3438 = vmatprep.subr.mxu0 %v3116
        %3439 = vmatpush1.msra.mxu0 %v3115
        %3440 = vmatprep.subr.mxu0 %v3120
        %3441 = vmatpush1.msra.mxu0 %v3119
        %3442 = vmatprep.subr.mxu0 %v3124
        %3443 = vmatpush1.msra.mxu0 %v3123
        %3444 = vmatprep.subr.mxu0 %v3128
        %3445 = vmatpush1.msra.mxu0 %v3127
        %3446 = vmatprep.subr.mxu0 %v3132
        %3447 = vmatpush1.msra.mxu0 %v3131
        %3448 = vmatprep.subr.mxu0 %v3136
        %3449 = vmatpush1.msra.mxu0 %v3135
        %3450 = vmatprep.subr.mxu0 %v3140
        %3451 = vmatpush1.msra.mxu0 %v3139
        %3452 = vmatprep.subr.mxu0 %v3144
        %3453 = vmatpush1.msra.mxu0 %v3143
        %3454 = vmatprep.subr.mxu0 %v3148
        %3455 = vmatpush1.msra.mxu0 %v3147
        %3456 = vmatprep.subr.mxu0 %v3152
        %3457 = vmatpush1.msra.mxu0 %v3151
        %3458 = vmatprep.mubr.f32.mxu0 %v1903
        %3459 = vmatmul.mubr.f32.gmra.mrb[0].mxu0 %v1901
        %v3460 = vpop.f32.mrb[0].mxu0
        %v3461 = vadd.f32 0.0, %v3460
        %v3462 = vpop.f32.mrb[0].mxu0
        %v3463 = vadd.f32 0.0, %v3462
        %3464 = vdwg.mxu0
        %3465 = vmatprep.subr.mxu0 %v3156
        %3466 = vmatpush1.msra.mxu0 %v3155
        %3467 = vmatprep.subr.mxu0 %v3160
        %3468 = vmatpush1.msra.mxu0 %v3159
        %3469 = vmatprep.subr.mxu0 %v3164
        %3470 = vmatpush1.msra.mxu0 %v3163
        %3471 = vmatprep.subr.mxu0 %v3168
        %3472 = vmatpush1.msra.mxu0 %v3167
        %3473 = vmatprep.subr.mxu0 %v3172
        %3474 = vmatpush1.msra.mxu0 %v3171
        %3475 = vmatprep.subr.mxu0 %v3176
        %3476 = vmatpush1.msra.mxu0 %v3175
        %3477 = vmatprep.subr.mxu0 %v3180
        %3478 = vmatpush1.msra.mxu0 %v3179
        %3479 = vmatprep.subr.mxu0 %v3184
        %3480 = vmatpush1.msra.mxu0 %v3183
        %3481 = vmatprep.subr.mxu0 %v3188
        %3482 = vmatpush1.msra.mxu0 %v3187
        %3483 = vmatprep.subr.mxu0 %v3192
        %3484 = vmatpush1.msra.mxu0 %v3191
        %3485 = vmatprep.subr.mxu0 %v3196
        %3486 = vmatpush1.msra.mxu0 %v3195
        %3487 = vmatprep.subr.mxu0 %v3200
        %3488 = vmatpush1.msra.mxu0 %v3199
        %3489 = vmatprep.subr.mxu0 %v3204
        %3490 = vmatpush1.msra.mxu0 %v3203
        %3491 = vmatprep.subr.mxu0 %v3208
        %3492 = vmatpush1.msra.mxu0 %v3207
        %3493 = vmatprep.subr.mxu0 %v3212
        %3494 = vmatpush1.msra.mxu0 %v3211
        %3495 = vmatprep.subr.mxu0 %v3216
        %3496 = vmatpush1.msra.mxu0 %v3215
        %3497 = vmatprep.subr.mxu0 %v3220
        %3498 = vmatpush1.msra.mxu0 %v3219
        %3499 = vmatprep.subr.mxu0 %v3224
        %3500 = vmatpush1.msra.mxu0 %v3223
        %3501 = vmatprep.subr.mxu0 %v3228
        %3502 = vmatpush1.msra.mxu0 %v3227
        %3503 = vmatprep.subr.mxu0 %v3232
        %3504 = vmatpush1.msra.mxu0 %v3231
        %3505 = vmatprep.subr.mxu0 %v3236
        %3506 = vmatpush1.msra.mxu0 %v3235
        %3507 = vmatprep.subr.mxu0 %v3240
        %3508 = vmatpush1.msra.mxu0 %v3239
        %3509 = vmatprep.subr.mxu0 %v3244
        %3510 = vmatpush1.msra.mxu0 %v3243
        %3511 = vmatprep.subr.mxu0 %v3248
        %3512 = vmatpush1.msra.mxu0 %v3247
        %3513 = vmatprep.subr.mxu0 0.0
        %3514 = vmatpush1.msra.mxu0 0.0
        %3515 = vmatprep.subr.mxu0 0.0
        %3516 = vmatpush1.msra.mxu0 0.0
        %3517 = vmatprep.subr.mxu0 0.0
        %3518 = vmatpush1.msra.mxu0 0.0
        %3519 = vmatprep.subr.mxu0 0.0
        %3520 = vmatpush1.msra.mxu0 0.0
        %3521 = vmatprep.subr.mxu0 0.0
        %3522 = vmatpush1.msra.mxu0 0.0
        %3523 = vmatprep.subr.mxu0 0.0
        %3524 = vmatpush1.msra.mxu0 0.0
        %3525 = vmatprep.subr.mxu0 0.0
        %3526 = vmatpush1.msra.mxu0 0.0
        %3527 = vmatprep.subr.mxu0 0.0
        %3528 = vmatpush1.msra.mxu0 0.0
        %3529 = vmatprep.mubr.f32.mxu0 %v3250
        %3530 = vmatmul.mubr.f32.gmra.mrb[0].mxu0 %v1990
        %v3531 = vpop.f32.mrb[0].mxu0
        %v3532 = vadd.f32 %v3461, %v3531
        %v3533 = vpop.f32.mrb[0].mxu0
        %v3534 = vadd.f32 %v3463, %v3533
        %3535 = vdwg.mxu0
        %v3536 = vadd.f32 %v2878, %v3390
        %v3537 = vadd.f32 %v2880, %v3392
        %v3538 = vadd.f32 %v3020, %v3532
        %v3539 = vadd.f32 %v3022, %v3534
        %s3540 = scalar_lea.vmem [#allocation5], 5376
        %v3541 = vld [vmem:[%s3540] sm:$0xff]
        %v3542 = vld [vmem:[%s3540 + $0x8] sm:$0xff]
        %v3543 = vld [vmem:[%s3540 + $0x10] sm:$0xff]
        %v3544 = vld [vmem:[%s3540 + $0x18] sm:$0xff]
        %v3545 = vld [vmem:[%s3540 + $0x20] sm:$0xff]
        %v3546 = vld [vmem:[%s3540 + $0x28] sm:$0xff]
        %v3547 = vld [vmem:[%s3540 + $0x30] sm:$0xff]
        %v3548 = vld [vmem:[%s3540 + $0x38] sm:$0xff]
        %v3549 = vld [vmem:[%s3540 + $0x40] sm:$0xff]
        %v3550 = vld [vmem:[%s3540 + $0x48] sm:$0xff]
        %v3551 = vld [vmem:[%s3540 + $0x50] sm:$0xff]
        %v3552 = vld [vmem:[%s3540 + $0x58] sm:$0xff]
        %v3553 = vld [vmem:[%s3540 + $0x60] sm:$0xff]
        %v3554 = vld [vmem:[%s3540 + $0x68] sm:$0xff]
        %v3555 = vld [vmem:[%s3540 + $0x70] sm:$0xff]
        %v3556 = vld [vmem:[%s3540 + $0x78] sm:$0xff]
        %v3557 = vld [vmem:[%s3540 + $0x80] sm:$0xff]
        %v3558 = vld [vmem:[%s3540 + $0x88] sm:$0xff]
        %v3559 = vld [vmem:[%s3540 + $0x90] sm:$0xff]
        %v3560 = vld [vmem:[%s3540 + $0x98] sm:$0xff]
        %v3561 = vld [vmem:[%s3540 + $0xa0] sm:$0xff]
        %v3562 = vld [vmem:[%s3540 + $0xa8] sm:$0xff]
        %v3563 = vld [vmem:[%s3540 + $0xb0] sm:$0xff]
        %v3564 = vld [vmem:[%s3540 + $0xb8] sm:$0xff]
        %v3565 = vld [vmem:[%s3540 + $0xc0] sm:$0xff]
        %v3566 = vld [vmem:[%s3540 + $0xc8] sm:$0xff]
        %v3567 = vld [vmem:[%s3540 + $0xd0] sm:$0xff]
        %v3568 = vld [vmem:[%s3540 + $0xd8] sm:$0xff]
        %v3569 = vld [vmem:[%s3540 + $0xe0] sm:$0xff]
        %v3570 = vld [vmem:[%s3540 + $0xe8] sm:$0xff]
        %v3571 = vld [vmem:[%s3540 + $0xf0] sm:$0xff]
        %v3572 = vld [vmem:[%s3540 + $0xf8] sm:$0xff]
        %v3573 = vld [vmem:[%s3540 + $0x100] sm:$0xff]
        %v3574 = vld [vmem:[%s3540 + $0x108] sm:$0xff]
        %v3575 = vld [vmem:[%s3540 + $0x110] sm:$0xff]
        %v3576 = vld [vmem:[%s3540 + $0x118] sm:$0xff]
        %v3577 = vld [vmem:[%s3540 + $0x120] sm:$0xff]
        %v3578 = vld [vmem:[%s3540 + $0x128] sm:$0xff]
        %v3579 = vld [vmem:[%s3540 + $0x130] sm:$0xff]
        %v3580 = vld [vmem:[%s3540 + $0x138] sm:$0xff]
        %v3581 = vld [vmem:[%s3540 + $0x140] sm:$0xff]
        %v3582 = vld [vmem:[%s3540 + $0x148] sm:$0xff]
        %v3583 = vld [vmem:[%s3540 + $0x150] sm:$0xff]
        %v3584 = vld [vmem:[%s3540 + $0x158] sm:$0xff]
        %v3585 = vld [vmem:[%s3540 + $0x160] sm:$0xff]
        %v3586 = vld [vmem:[%s3540 + $0x168] sm:$0xff]
        %v3587 = vld [vmem:[%s3540 + $0x170] sm:$0xff]
        %v3588 = vld [vmem:[%s3540 + $0x178] sm:$0xff]
        %v3589 = vld [vmem:[%s3540 + $0x180] sm:$0xff]
        %v3590 = vld [vmem:[%s3540 + $0x188] sm:$0xff]
        %v3591 = vld [vmem:[%s3540 + $0x190] sm:$0xff]
        %v3592 = vld [vmem:[%s3540 + $0x198] sm:$0xff]
        %v3593 = vld [vmem:[%s3540 + $0x1a0] sm:$0xff]
        %v3594 = vld [vmem:[%s3540 + $0x1a8] sm:$0xff]
        %v3595 = vld [vmem:[%s3540 + $0x1b0] sm:$0xff]
        %v3596 = vld [vmem:[%s3540 + $0x1b8] sm:$0xff]
        %v3597 = vld [vmem:[%s3540 + $0x1c0] sm:$0xff]
        %v3598 = vld [vmem:[%s3540 + $0x1c8] sm:$0xff]
        %v3599 = vld [vmem:[%s3540 + $0x1d0] sm:$0xff]
        %v3600 = vld [vmem:[%s3540 + $0x1d8] sm:$0xff]
        %v3601 = vld [vmem:[%s3540 + $0x1e0] sm:$0xff]
        %v3602 = vld [vmem:[%s3540 + $0x1e8] sm:$0xff]
        %v3603 = vld [vmem:[%s3540 + $0x1f0] sm:$0xff]
        %v3604 = vld [vmem:[%s3540 + $0x1f8] sm:$0xff]
        %v3605 = vld [vmem:[%s3540 + $0x200] sm:$0xff]
        %v3606 = vld [vmem:[%s3540 + $0x208] sm:$0xff]
        %v3607 = vld [vmem:[%s3540 + $0x210] sm:$0xff]
        %v3608 = vld [vmem:[%s3540 + $0x218] sm:$0xff]
        %v3609 = vld [vmem:[%s3540 + $0x220] sm:$0xff]
        %v3610 = vld [vmem:[%s3540 + $0x228] sm:$0xff]
        %v3611 = vld [vmem:[%s3540 + $0x230] sm:$0xff]
        %v3612 = vld [vmem:[%s3540 + $0x238] sm:$0xff]
        %v3613 = vld [vmem:[%s3540 + $0x240] sm:$0xff]
        %v3614 = vld [vmem:[%s3540 + $0x248] sm:$0xff]
        %v3615 = vld [vmem:[%s3540 + $0x250] sm:$0xff]
        %v3616 = vld [vmem:[%s3540 + $0x258] sm:$0xff]
        %v3617 = vld [vmem:[%s3540 + $0x260] sm:$0xff]
        %v3618 = vld [vmem:[%s3540 + $0x268] sm:$0xff]
        %v3619 = vld [vmem:[%s3540 + $0x270] sm:$0xff]
        %v3620 = vld [vmem:[%s3540 + $0x278] sm:$0xff]
        %v3621 = vld [vmem:[%s3540 + $0x280] sm:$0xff]
        %v3622 = vld [vmem:[%s3540 + $0x288] sm:$0xff]
        %v3623 = vld [vmem:[%s3540 + $0x290] sm:$0xff]
        %v3624 = vld [vmem:[%s3540 + $0x298] sm:$0xff]
        %v3625 = vld [vmem:[%s3540 + $0x2a0] sm:$0xff]
        %v3626 = vld [vmem:[%s3540 + $0x2a8] sm:$0xff]
        %v3627 = vld [vmem:[%s3540 + $0x2b0] sm:$0xff]
        %v3628 = vld [vmem:[%s3540 + $0x2b8] sm:$0xff]
        %v3629 = vld [vmem:[%s3540 + $0x2c0] sm:$0xff]
        %v3630 = vld [vmem:[%s3540 + $0x2c8] sm:$0xff]
        %v3631 = vld [vmem:[%s3540 + $0x2d0] sm:$0xff]
        %v3632 = vld [vmem:[%s3540 + $0x2d8] sm:$0xff]
        %v3633 = vld [vmem:[%s3540 + $0x2e0] sm:$0xff]
        %v3634 = vld [vmem:[%s3540 + $0x2e8] sm:$0xff]
        %v3635 = vld [vmem:[%s3540 + $0x2f0] sm:$0xff]
        %v3636 = vld [vmem:[%s3540 + $0x2f8] sm:$0xff]
        %v3637 = vld [vmem:[%s3540 + $0x300] sm:$0xff]
        %v3638 = vld [vmem:[%s3540 + $0x308] sm:$0xff]
        %v3639 = vld [vmem:[%s3540 + $0x310] sm:$0xff]
        %v3640 = vld [vmem:[%s3540 + $0x318] sm:$0xff]
        %v3641 = vld [vmem:[%s3540 + $0x320] sm:$0xff]
        %v3642 = vld [vmem:[%s3540 + $0x328] sm:$0xff]
        %v3643 = vld [vmem:[%s3540 + $0x330] sm:$0xff]
        %v3644 = vld [vmem:[%s3540 + $0x338] sm:$0xff]
        %v3645 = vld [vmem:[%s3540 + $0x340] sm:$0xff]
        %v3646 = vld [vmem:[%s3540 + $0x348] sm:$0xff]
        %v3647 = vld [vmem:[%s3540 + $0x350] sm:$0xff]
        %v3648 = vld [vmem:[%s3540 + $0x358] sm:$0xff]
        %v3649 = vld [vmem:[%s3540 + $0x360] sm:$0xff]
        %v3650 = vld [vmem:[%s3540 + $0x368] sm:$0xff]
        %v3651 = vld [vmem:[%s3540 + $0x370] sm:$0xff]
        %v3652 = vld [vmem:[%s3540 + $0x378] sm:$0xff]
        %v3653 = vld [vmem:[%s3540 + $0x380] sm:$0xff]
        %v3654 = vld [vmem:[%s3540 + $0x388] sm:$0xff]
        %v3655 = vld [vmem:[%s3540 + $0x390] sm:$0xff]
        %v3656 = vld [vmem:[%s3540 + $0x398] sm:$0xff]
        %v3657 = vld [vmem:[%s3540 + $0x3a0] sm:$0xff]
        %v3658 = vld [vmem:[%s3540 + $0x3a8] sm:$0xff]
        %v3659 = vld [vmem:[%s3540 + $0x3b0] sm:$0xff]
        %v3660 = vld [vmem:[%s3540 + $0x3b8] sm:$0xff]
        %v3661 = vld [vmem:[%s3540 + $0x3c0] sm:$0xff]
        %v3662 = vld [vmem:[%s3540 + $0x3c8] sm:$0xff]
        %v3663 = vld [vmem:[%s3540 + $0x3d0] sm:$0xff]
        %v3664 = vld [vmem:[%s3540 + $0x3d8] sm:$0xff]
        %v3665 = vld [vmem:[%s3540 + $0x3e0] sm:$0xff]
        %v3666 = vld [vmem:[%s3540 + $0x3e8] sm:$0xff]
        %v3667 = vld [vmem:[%s3540 + $0x3f0] sm:$0xff]
        %v3668 = vld [vmem:[%s3540 + $0x3f8] sm:$0xff]
        %v3669 = vld [vmem:[%s3540 + $0x400] sm:$0xff]
        %v3670 = vld [vmem:[%s3540 + $0x408] sm:$0xff]
        %v3671 = vld [vmem:[%s3540 + $0x410] sm:$0xff]
        %v3672 = vld [vmem:[%s3540 + $0x418] sm:$0xff]
        %v3673 = vld [vmem:[%s3540 + $0x420] sm:$0xff]
        %v3674 = vld [vmem:[%s3540 + $0x428] sm:$0xff]
        %v3675 = vld [vmem:[%s3540 + $0x430] sm:$0xff]
        %v3676 = vld [vmem:[%s3540 + $0x438] sm:$0xff]
        %v3677 = vld [vmem:[%s3540 + $0x440] sm:$0xff]
        %v3678 = vld [vmem:[%s3540 + $0x448] sm:$0xff]
        %v3679 = vld [vmem:[%s3540 + $0x450] sm:$0xff]
        %v3680 = vld [vmem:[%s3540 + $0x458] sm:$0xff]
        %v3681 = vld [vmem:[%s3540 + $0x460] sm:$0xff]
        %v3682 = vld [vmem:[%s3540 + $0x468] sm:$0xff]
        %v3683 = vld [vmem:[%s3540 + $0x470] sm:$0xff]
        %v3684 = vld [vmem:[%s3540 + $0x478] sm:$0xff]
        %v3685 = vld [vmem:[%s3540 + $0x480] sm:$0xff]
        %v3686 = vld [vmem:[%s3540 + $0x488] sm:$0xff]
        %v3687 = vld [vmem:[%s3540 + $0x490] sm:$0xff]
        %v3688 = vld [vmem:[%s3540 + $0x498] sm:$0xff]
        %v3689 = vld [vmem:[%s3540 + $0x4a0] sm:$0xff]
        %v3690 = vld [vmem:[%s3540 + $0x4a8] sm:$0xff]
        %v3691 = vld [vmem:[%s3540 + $0x4b0] sm:$0xff]
        %v3692 = vld [vmem:[%s3540 + $0x4b8] sm:$0xff]
        %v3693 = vld [vmem:[%s3540 + $0x4c0] sm:$0xff]
        %v3694 = vld [vmem:[%s3540 + $0x4c8] sm:$0xff]
        %v3695 = vld [vmem:[%s3540 + $0x4d0] sm:$0xff]
        %v3696 = vld [vmem:[%s3540 + $0x4d8] sm:$0xff]
        %v3697 = vld [vmem:[%s3540 + $0x4e0] sm:$0xff]
        %v3698 = vld [vmem:[%s3540 + $0x4e8] sm:$0xff]
        %v3699 = vld [vmem:[%s3540 + $0x4f0] sm:$0xff]
        %v3700 = vld [vmem:[%s3540 + $0x4f8] sm:$0xff]
        %v3701 = vld [vmem:[%s3540 + $0x500] sm:$0xff]
        %v3702 = vld [vmem:[%s3540 + $0x508] sm:$0xff]
        %v3703 = vld [vmem:[%s3540 + $0x510] sm:$0xff]
        %v3704 = vld [vmem:[%s3540 + $0x518] sm:$0xff]
        %v3705 = vld [vmem:[%s3540 + $0x520] sm:$0xff]
        %v3706 = vld [vmem:[%s3540 + $0x528] sm:$0xff]
        %v3707 = vld [vmem:[%s3540 + $0x530] sm:$0xff]
        %v3708 = vld [vmem:[%s3540 + $0x538] sm:$0xff]
        %v3709 = vld [vmem:[%s3540 + $0x540] sm:$0xff]
        %v3710 = vld [vmem:[%s3540 + $0x548] sm:$0xff]
        %v3711 = vld [vmem:[%s3540 + $0x550] sm:$0xff]
        %v3712 = vld [vmem:[%s3540 + $0x558] sm:$0xff]
        %v3713 = vld [vmem:[%s3540 + $0x560] sm:$0xff]
        %v3714 = vld [vmem:[%s3540 + $0x568] sm:$0xff]
        %v3715 = vld [vmem:[%s3540 + $0x570] sm:$0xff]
        %v3716 = vld [vmem:[%s3540 + $0x578] sm:$0xff]
        %v3717 = vld [vmem:[%s3540 + $0x580] sm:$0xff]
        %v3718 = vld [vmem:[%s3540 + $0x588] sm:$0xff]
        %v3719 = vld [vmem:[%s3540 + $0x590] sm:$0xff]
        %v3720 = vld [vmem:[%s3540 + $0x598] sm:$0xff]
        %v3721 = vld [vmem:[%s3540 + $0x5a0] sm:$0xff]
        %v3722 = vld [vmem:[%s3540 + $0x5a8] sm:$0xff]
        %v3723 = vld [vmem:[%s3540 + $0x5b0] sm:$0xff]
        %v3724 = vld [vmem:[%s3540 + $0x5b8] sm:$0xff]
        %v3725 = vld [vmem:[%s3540 + $0x5c0] sm:$0xff]
        %v3726 = vld [vmem:[%s3540 + $0x5c8] sm:$0xff]
        %v3727 = vld [vmem:[%s3540 + $0x5d0] sm:$0xff]
        %v3728 = vld [vmem:[%s3540 + $0x5d8] sm:$0xff]
        %v3729 = vld [vmem:[%s3540 + $0x5e0] sm:$0xff]
        %v3730 = vld [vmem:[%s3540 + $0x5e8] sm:$0xff]
        %v3731 = vld [vmem:[%s3540 + $0x5f0] sm:$0xff]
        %v3732 = vld [vmem:[%s3540 + $0x5f8] sm:$0xff]
        %v3733 = vld [vmem:[%s3540 + $0x600] sm:$0xff]
        %v3734 = vld [vmem:[%s3540 + $0x608] sm:$0xff]
        %v3735 = vld [vmem:[%s3540 + $0x610] sm:$0xff]
        %v3736 = vld [vmem:[%s3540 + $0x618] sm:$0xff]
        %v3737 = vld [vmem:[%s3540 + $0x620] sm:$0xff]
        %v3738 = vld [vmem:[%s3540 + $0x628] sm:$0xff]
        %v3739 = vld [vmem:[%s3540 + $0x630] sm:$0xff]
        %v3740 = vld [vmem:[%s3540 + $0x638] sm:$0xff]
        %v3741 = vld [vmem:[%s3540 + $0x640] sm:$0xff]
        %v3742 = vld [vmem:[%s3540 + $0x648] sm:$0xff]
        %v3743 = vld [vmem:[%s3540 + $0x650] sm:$0xff]
        %v3744 = vld [vmem:[%s3540 + $0x658] sm:$0xff]
        %v3745 = vld [vmem:[%s3540 + $0x660] sm:$0xff]
        %v3746 = vld [vmem:[%s3540 + $0x668] sm:$0xff]
        %v3747 = vld [vmem:[%s3540 + $0x670] sm:$0xff]
        %v3748 = vld [vmem:[%s3540 + $0x678] sm:$0xff]
        %v3749 = vld [vmem:[%s3540 + $0x680] sm:$0xff]
        %v3750 = vld [vmem:[%s3540 + $0x688] sm:$0xff]
        %v3751 = vld [vmem:[%s3540 + $0x690] sm:$0xff]
        %v3752 = vld [vmem:[%s3540 + $0x698] sm:$0xff]
        %v3753 = vld [vmem:[%s3540 + $0x6a0] sm:$0xff]
        %v3754 = vld [vmem:[%s3540 + $0x6a8] sm:$0xff]
        %v3755 = vld [vmem:[%s3540 + $0x6b0] sm:$0xff]
        %v3756 = vld [vmem:[%s3540 + $0x6b8] sm:$0xff]
        %v3757 = vld [vmem:[%s3540 + $0x6c0] sm:$0xff]
        %v3758 = vld [vmem:[%s3540 + $0x6c8] sm:$0xff]
        %v3759 = vld [vmem:[%s3540 + $0x6d0] sm:$0xff]
        %v3760 = vld [vmem:[%s3540 + $0x6d8] sm:$0xff]
        %v3761 = vld [vmem:[%s3540 + $0x6e0] sm:$0xff]
        %v3762 = vld [vmem:[%s3540 + $0x6e8] sm:$0xff]
        %v3763 = vld [vmem:[%s3540 + $0x6f0] sm:$0xff]
        %v3764 = vld [vmem:[%s3540 + $0x6f8] sm:$0xff]
        %v3766 = vsel %vm2449, %v1998, 0
        %3768 = vmatprep.subr.mxu0 %v3542
        %3769 = vmatpush1.msra.mxu0 %v3541
        %3770 = vmatprep.subr.mxu0 %v3546
        %3771 = vmatpush1.msra.mxu0 %v3545
        %3772 = vmatprep.subr.mxu0 %v3550
        %3773 = vmatpush1.msra.mxu0 %v3549
        %3774 = vmatprep.subr.mxu0 %v3554
        %3775 = vmatpush1.msra.mxu0 %v3553
        %3776 = vmatprep.subr.mxu0 %v3558
        %3777 = vmatpush1.msra.mxu0 %v3557
        %3778 = vmatprep.subr.mxu0 %v3562
        %3779 = vmatpush1.msra.mxu0 %v3561
        %3780 = vmatprep.subr.mxu0 %v3566
        %3781 = vmatpush1.msra.mxu0 %v3565
        %3782 = vmatprep.subr.mxu0 %v3570
        %3783 = vmatpush1.msra.mxu0 %v3569
        %3784 = vmatprep.subr.mxu0 %v3574
        %3785 = vmatpush1.msra.mxu0 %v3573
        %3786 = vmatprep.subr.mxu0 %v3578
        %3787 = vmatpush1.msra.mxu0 %v3577
        %3788 = vmatprep.subr.mxu0 %v3582
        %3789 = vmatpush1.msra.mxu0 %v3581
        %3790 = vmatprep.subr.mxu0 %v3586
        %3791 = vmatpush1.msra.mxu0 %v3585
        %3792 = vmatprep.subr.mxu0 %v3590
        %3793 = vmatpush1.msra.mxu0 %v3589
        %3794 = vmatprep.subr.mxu0 %v3594
        %3795 = vmatpush1.msra.mxu0 %v3593
        %3796 = vmatprep.subr.mxu0 %v3598
        %3797 = vmatpush1.msra.mxu0 %v3597
        %3798 = vmatprep.subr.mxu0 %v3602
        %3799 = vmatpush1.msra.mxu0 %v3601
        %3800 = vmatprep.subr.mxu0 %v3606
        %3801 = vmatpush1.msra.mxu0 %v3605
        %3802 = vmatprep.subr.mxu0 %v3610
        %3803 = vmatpush1.msra.mxu0 %v3609
        %3804 = vmatprep.subr.mxu0 %v3614
        %3805 = vmatpush1.msra.mxu0 %v3613
        %3806 = vmatprep.subr.mxu0 %v3618
        %3807 = vmatpush1.msra.mxu0 %v3617
        %3808 = vmatprep.subr.mxu0 %v3622
        %3809 = vmatpush1.msra.mxu0 %v3621
        %3810 = vmatprep.subr.mxu0 %v3626
        %3811 = vmatpush1.msra.mxu0 %v3625
        %3812 = vmatprep.subr.mxu0 %v3630
        %3813 = vmatpush1.msra.mxu0 %v3629
        %3814 = vmatprep.subr.mxu0 %v3634
        %3815 = vmatpush1.msra.mxu0 %v3633
        %3816 = vmatprep.subr.mxu0 %v3638
        %3817 = vmatpush1.msra.mxu0 %v3637
        %3818 = vmatprep.subr.mxu0 %v3642
        %3819 = vmatpush1.msra.mxu0 %v3641
        %3820 = vmatprep.subr.mxu0 %v3646
        %3821 = vmatpush1.msra.mxu0 %v3645
        %3822 = vmatprep.subr.mxu0 %v3650
        %3823 = vmatpush1.msra.mxu0 %v3649
        %3824 = vmatprep.subr.mxu0 %v3654
        %3825 = vmatpush1.msra.mxu0 %v3653
        %3826 = vmatprep.subr.mxu0 %v3658
        %3827 = vmatpush1.msra.mxu0 %v3657
        %3828 = vmatprep.subr.mxu0 %v3662
        %3829 = vmatpush1.msra.mxu0 %v3661
        %3830 = vmatprep.subr.mxu0 %v3666
        %3831 = vmatpush1.msra.mxu0 %v3665
        %3832 = vmatprep.mubr.f32.mxu0 %v1909
        %3833 = vmatmul.mubr.f32.gmra.mrb[0].mxu0 %v1907
        %v3834 = vpop.f32.mrb[0].mxu0
        %v3835 = vadd.f32 0.0, %v3834
        %v3836 = vpop.f32.mrb[0].mxu0
        %v3837 = vadd.f32 0.0, %v3836
        %3838 = vdwg.mxu0
        %3839 = vmatprep.subr.mxu0 %v3670
        %3840 = vmatpush1.msra.mxu0 %v3669
        %3841 = vmatprep.subr.mxu0 %v3674
        %3842 = vmatpush1.msra.mxu0 %v3673
        %3843 = vmatprep.subr.mxu0 %v3678
        %3844 = vmatpush1.msra.mxu0 %v3677
        %3845 = vmatprep.subr.mxu0 %v3682
        %3846 = vmatpush1.msra.mxu0 %v3681
        %3847 = vmatprep.subr.mxu0 %v3686
        %3848 = vmatpush1.msra.mxu0 %v3685
        %3849 = vmatprep.subr.mxu0 %v3690
        %3850 = vmatpush1.msra.mxu0 %v3689
        %3851 = vmatprep.subr.mxu0 %v3694
        %3852 = vmatpush1.msra.mxu0 %v3693
        %3853 = vmatprep.subr.mxu0 %v3698
        %3854 = vmatpush1.msra.mxu0 %v3697
        %3855 = vmatprep.subr.mxu0 %v3702
        %3856 = vmatpush1.msra.mxu0 %v3701
        %3857 = vmatprep.subr.mxu0 %v3706
        %3858 = vmatpush1.msra.mxu0 %v3705
        %3859 = vmatprep.subr.mxu0 %v3710
        %3860 = vmatpush1.msra.mxu0 %v3709
        %3861 = vmatprep.subr.mxu0 %v3714
        %3862 = vmatpush1.msra.mxu0 %v3713
        %3863 = vmatprep.subr.mxu0 %v3718
        %3864 = vmatpush1.msra.mxu0 %v3717
        %3865 = vmatprep.subr.mxu0 %v3722
        %3866 = vmatpush1.msra.mxu0 %v3721
        %3867 = vmatprep.subr.mxu0 %v3726
        %3868 = vmatpush1.msra.mxu0 %v3725
        %3869 = vmatprep.subr.mxu0 %v3730
        %3870 = vmatpush1.msra.mxu0 %v3729
        %3871 = vmatprep.subr.mxu0 %v3734
        %3872 = vmatpush1.msra.mxu0 %v3733
        %3873 = vmatprep.subr.mxu0 %v3738
        %3874 = vmatpush1.msra.mxu0 %v3737
        %3875 = vmatprep.subr.mxu0 %v3742
        %3876 = vmatpush1.msra.mxu0 %v3741
        %3877 = vmatprep.subr.mxu0 %v3746
        %3878 = vmatpush1.msra.mxu0 %v3745
        %3879 = vmatprep.subr.mxu0 %v3750
        %3880 = vmatpush1.msra.mxu0 %v3749
        %3881 = vmatprep.subr.mxu0 %v3754
        %3882 = vmatpush1.msra.mxu0 %v3753
        %3883 = vmatprep.subr.mxu0 %v3758
        %3884 = vmatpush1.msra.mxu0 %v3757
        %3885 = vmatprep.subr.mxu0 %v3762
        %3886 = vmatpush1.msra.mxu0 %v3761
        %3887 = vmatprep.subr.mxu0 0.0
        %3888 = vmatpush1.msra.mxu0 0.0
        %3889 = vmatprep.subr.mxu0 0.0
        %3890 = vmatpush1.msra.mxu0 0.0
        %3891 = vmatprep.subr.mxu0 0.0
        %3892 = vmatpush1.msra.mxu0 0.0
        %3893 = vmatprep.subr.mxu0 0.0
        %3894 = vmatpush1.msra.mxu0 0.0
        %3895 = vmatprep.subr.mxu0 0.0
        %3896 = vmatpush1.msra.mxu0 0.0
        %3897 = vmatprep.subr.mxu0 0.0
        %3898 = vmatpush1.msra.mxu0 0.0
        %3899 = vmatprep.subr.mxu0 0.0
        %3900 = vmatpush1.msra.mxu0 0.0
        %3901 = vmatprep.subr.mxu0 0.0
        %3902 = vmatpush1.msra.mxu0 0.0
        %3903 = vmatprep.mubr.f32.mxu0 %v3766
        %3904 = vmatmul.mubr.f32.gmra.mrb[0].mxu0 %v1996
        %v3905 = vpop.f32.mrb[0].mxu0
        %v3906 = vadd.f32 %v3835, %v3905
        %v3907 = vpop.f32.mrb[0].mxu0
        %v3908 = vadd.f32 %v3837, %v3907
        %3909 = vdwg.mxu0
        %3910 = vmatprep.subr.mxu0 %v3544
        %3911 = vmatpush1.msra.mxu0 %v3543
        %3912 = vmatprep.subr.mxu0 %v3548
        %3913 = vmatpush1.msra.mxu0 %v3547
        %3914 = vmatprep.subr.mxu0 %v3552
        %3915 = vmatpush1.msra.mxu0 %v3551
        %3916 = vmatprep.subr.mxu0 %v3556
        %3917 = vmatpush1.msra.mxu0 %v3555
        %3918 = vmatprep.subr.mxu0 %v3560
        %3919 = vmatpush1.msra.mxu0 %v3559
        %3920 = vmatprep.subr.mxu0 %v3564
        %3921 = vmatpush1.msra.mxu0 %v3563
        %3922 = vmatprep.subr.mxu0 %v3568
        %3923 = vmatpush1.msra.mxu0 %v3567
        %3924 = vmatprep.subr.mxu0 %v3572
        %3925 = vmatpush1.msra.mxu0 %v3571
        %3926 = vmatprep.subr.mxu0 %v3576
        %3927 = vmatpush1.msra.mxu0 %v3575
        %3928 = vmatprep.subr.mxu0 %v3580
        %3929 = vmatpush1.msra.mxu0 %v3579
        %3930 = vmatprep.subr.mxu0 %v3584
        %3931 = vmatpush1.msra.mxu0 %v3583
        %3932 = vmatprep.subr.mxu0 %v3588
        %3933 = vmatpush1.msra.mxu0 %v3587
        %3934 = vmatprep.subr.mxu0 %v3592
        %3935 = vmatpush1.msra.mxu0 %v3591
        %3936 = vmatprep.subr.mxu0 %v3596
        %3937 = vmatpush1.msra.mxu0 %v3595
        %3938 = vmatprep.subr.mxu0 %v3600
        %3939 = vmatpush1.msra.mxu0 %v3599
        %3940 = vmatprep.subr.mxu0 %v3604
        %3941 = vmatpush1.msra.mxu0 %v3603
        %3942 = vmatprep.subr.mxu0 %v3608
        %3943 = vmatpush1.msra.mxu0 %v3607
        %3944 = vmatprep.subr.mxu0 %v3612
        %3945 = vmatpush1.msra.mxu0 %v3611
        %3946 = vmatprep.subr.mxu0 %v3616
        %3947 = vmatpush1.msra.mxu0 %v3615
        %3948 = vmatprep.subr.mxu0 %v3620
        %3949 = vmatpush1.msra.mxu0 %v3619
        %3950 = vmatprep.subr.mxu0 %v3624
        %3951 = vmatpush1.msra.mxu0 %v3623
        %3952 = vmatprep.subr.mxu0 %v3628
        %3953 = vmatpush1.msra.mxu0 %v3627
        %3954 = vmatprep.subr.mxu0 %v3632
        %3955 = vmatpush1.msra.mxu0 %v3631
        %3956 = vmatprep.subr.mxu0 %v3636
        %3957 = vmatpush1.msra.mxu0 %v3635
        %3958 = vmatprep.subr.mxu0 %v3640
        %3959 = vmatpush1.msra.mxu0 %v3639
        %3960 = vmatprep.subr.mxu0 %v3644
        %3961 = vmatpush1.msra.mxu0 %v3643
        %3962 = vmatprep.subr.mxu0 %v3648
        %3963 = vmatpush1.msra.mxu0 %v3647
        %3964 = vmatprep.subr.mxu0 %v3652
        %3965 = vmatpush1.msra.mxu0 %v3651
        %3966 = vmatprep.subr.mxu0 %v3656
        %3967 = vmatpush1.msra.mxu0 %v3655
        %3968 = vmatprep.subr.mxu0 %v3660
        %3969 = vmatpush1.msra.mxu0 %v3659
        %3970 = vmatprep.subr.mxu0 %v3664
        %3971 = vmatpush1.msra.mxu0 %v3663
        %3972 = vmatprep.subr.mxu0 %v3668
        %3973 = vmatpush1.msra.mxu0 %v3667
        %3974 = vmatprep.mubr.f32.mxu0 %v1909
        %3975 = vmatmul.mubr.f32.gmra.mrb[0].mxu0 %v1907
        %v3976 = vpop.f32.mrb[0].mxu0
        %v3977 = vadd.f32 0.0, %v3976
        %v3978 = vpop.f32.mrb[0].mxu0
        %v3979 = vadd.f32 0.0, %v3978
        %3980 = vdwg.mxu0
        %3981 = vmatprep.subr.mxu0 %v3672
        %3982 = vmatpush1.msra.mxu0 %v3671
        %3983 = vmatprep.subr.mxu0 %v3676
        %3984 = vmatpush1.msra.mxu0 %v3675
        %3985 = vmatprep.subr.mxu0 %v3680
        %3986 = vmatpush1.msra.mxu0 %v3679
        %3987 = vmatprep.subr.mxu0 %v3684
        %3988 = vmatpush1.msra.mxu0 %v3683
        %3989 = vmatprep.subr.mxu0 %v3688
        %3990 = vmatpush1.msra.mxu0 %v3687
        %3991 = vmatprep.subr.mxu0 %v3692
        %3992 = vmatpush1.msra.mxu0 %v3691
        %3993 = vmatprep.subr.mxu0 %v3696
        %3994 = vmatpush1.msra.mxu0 %v3695
        %3995 = vmatprep.subr.mxu0 %v3700
        %3996 = vmatpush1.msra.mxu0 %v3699
        %3997 = vmatprep.subr.mxu0 %v3704
        %3998 = vmatpush1.msra.mxu0 %v3703
        %3999 = vmatprep.subr.mxu0 %v3708
        %4000 = vmatpush1.msra.mxu0 %v3707
        %4001 = vmatprep.subr.mxu0 %v3712
        %4002 = vmatpush1.msra.mxu0 %v3711
        %4003 = vmatprep.subr.mxu0 %v3716
        %4004 = vmatpush1.msra.mxu0 %v3715
        %4005 = vmatprep.subr.mxu0 %v3720
        %4006 = vmatpush1.msra.mxu0 %v3719
        %4007 = vmatprep.subr.mxu0 %v3724
        %4008 = vmatpush1.msra.mxu0 %v3723
        %4009 = vmatprep.subr.mxu0 %v3728
        %4010 = vmatpush1.msra.mxu0 %v3727
        %4011 = vmatprep.subr.mxu0 %v3732
        %4012 = vmatpush1.msra.mxu0 %v3731
        %4013 = vmatprep.subr.mxu0 %v3736
        %4014 = vmatpush1.msra.mxu0 %v3735
        %4015 = vmatprep.subr.mxu0 %v3740
        %4016 = vmatpush1.msra.mxu0 %v3739
        %4017 = vmatprep.subr.mxu0 %v3744
        %4018 = vmatpush1.msra.mxu0 %v3743
        %4019 = vmatprep.subr.mxu0 %v3748
        %4020 = vmatpush1.msra.mxu0 %v3747
        %4021 = vmatprep.subr.mxu0 %v3752
        %4022 = vmatpush1.msra.mxu0 %v3751
        %4023 = vmatprep.subr.mxu0 %v3756
        %4024 = vmatpush1.msra.mxu0 %v3755
        %4025 = vmatprep.subr.mxu0 %v3760
        %4026 = vmatpush1.msra.mxu0 %v3759
        %4027 = vmatprep.subr.mxu0 %v3764
        %4028 = vmatpush1.msra.mxu0 %v3763
        %4029 = vmatprep.subr.mxu0 0.0
        %4030 = vmatpush1.msra.mxu0 0.0
        %4031 = vmatprep.subr.mxu0 0.0
        %4032 = vmatpush1.msra.mxu0 0.0
        %4033 = vmatprep.subr.mxu0 0.0
        %4034 = vmatpush1.msra.mxu0 0.0
        %4035 = vmatprep.subr.mxu0 0.0
        %4036 = vmatpush1.msra.mxu0 0.0
        %4037 = vmatprep.subr.mxu0 0.0
        %4038 = vmatpush1.msra.mxu0 0.0
        %4039 = vmatprep.subr.mxu0 0.0
        %4040 = vmatpush1.msra.mxu0 0.0
        %4041 = vmatprep.subr.mxu0 0.0
        %4042 = vmatpush1.msra.mxu0 0.0
        %4043 = vmatprep.subr.mxu0 0.0
        %4044 = vmatpush1.msra.mxu0 0.0
        %4045 = vmatprep.mubr.f32.mxu0 %v3766
        %4046 = vmatmul.mubr.f32.gmra.mrb[0].mxu0 %v1996
        %v4047 = vpop.f32.mrb[0].mxu0
        %v4048 = vadd.f32 %v3977, %v4047
        %v4049 = vpop.f32.mrb[0].mxu0
        %v4050 = vadd.f32 %v3979, %v4049
        %4051 = vdwg.mxu0
        %v4052 = vadd.f32 %v3536, %v3906
        %v4053 = vadd.f32 %v3537, %v3908
        %v4054 = vadd.f32 %v3538, %v4048
        %v4055 = vadd.f32 %v3539, %v4050
        %v4056 = vld [vmem:[#allocation7] sm:$0xf]
        %v4058 = vlaneseq
        %v4059 = vshrl.u32 %v4058, 7
        %v4060 = vsub.s32 0, %v4059
        %v4061 = vrot.slane %v4056, %v4060
        %v4062 = vlaneseq
        %v4063 = vshrl.u32 %v4062, 7
        %v4064 = vsub.s32 1, %v4063
        %v4065 = vrot.slane %v4056, %v4064
        %v4066 = vlaneseq
        %v4067 = vshrl.u32 %v4066, 7
        %v4068 = vsub.s32 2, %v4067
        %v4069 = vrot.slane %v4056, %v4068
        %v4070 = vlaneseq
        %v4071 = vshrl.u32 %v4070, 7
        %v4072 = vsub.s32 3, %v4071
        %v4073 = vrot.slane %v4056, %v4072
        %v4078 = vadd.f32 %v4052, %v4061
        %v4079 = vadd.f32 %v4053, %v4065
        %v4080 = vadd.f32 %v4054, %v4069
        %v4081 = vadd.f32 %v4055, %v4073
        %v4082 = vmul.f32 %v4078, 0.2
        %v4083 = vmul.f32 %v4079, 0.2
        %v4084 = vmul.f32 %v4080, 0.2
        %v4085 = vmul.f32 %v4081, 0.2
        %v4086 = vmax.f32 %v4078, %v4082
        %v4087 = vmax.f32 %v4079, %v4083
        %v4088 = vmax.f32 %v4080, %v4084
        %v4089 = vmax.f32 %v4081, %v4085
        %v4090 = vld [vmem:[%s7] sm:$0xff]
        %v4091 = vld [vmem:[%s7 + $0x8] sm:$0xff]
        %vm4092 = vcmask 64512
        %v4094 = vsel %vm4092, %v4090, 0
        %v4097 = vsel %vm4092, %v4091, 0
        %4099 = vmatprep.subr.mxu0 %v4087
        %4100 = vmatpush1.msra.mxu0 %v4086
        %4101 = vmatprep.subr.mxu0 0.0
        %4102 = vmatpush1.msra.mxu0 0.0
        %4103 = vmatprep.subr.mxu0 0.0
        %4104 = vmatpush1.msra.mxu0 0.0
        %4105 = vmatprep.subr.mxu0 0.0
        %4106 = vmatpush1.msra.mxu0 0.0
        %4107 = vmatprep.subr.mxu0 0.0
        %4108 = vmatpush1.msra.mxu0 0.0
        %4109 = vmatprep.subr.mxu0 0.0
        %4110 = vmatpush1.msra.mxu0 0.0
        %4111 = vmatprep.subr.mxu0 0.0
        %4112 = vmatpush1.msra.mxu0 0.0
        %4113 = vmatprep.subr.mxu0 0.0
        %4114 = vmatpush1.msra.mxu0 0.0
        %4115 = vmatprep.subr.mxu0 0.0
        %4116 = vmatpush1.msra.mxu0 0.0
        %4117 = vmatprep.subr.mxu0 0.0
        %4118 = vmatpush1.msra.mxu0 0.0
        %4119 = vmatprep.subr.mxu0 0.0
        %4120 = vmatpush1.msra.mxu0 0.0
        %4121 = vmatprep.subr.mxu0 0.0
        %4122 = vmatpush1.msra.mxu0 0.0
        %4123 = vmatprep.subr.mxu0 0.0
        %4124 = vmatpush1.msra.mxu0 0.0
        %4125 = vmatprep.subr.mxu0 0.0
        %4126 = vmatpush1.msra.mxu0 0.0
        %4127 = vmatprep.subr.mxu0 0.0
        %4128 = vmatpush1.msra.mxu0 0.0
        %4129 = vmatprep.subr.mxu0 0.0
        %4130 = vmatpush1.msra.mxu0 0.0
        %4131 = vmatprep.subr.mxu0 0.0
        %4132 = vmatpush1.msra.mxu0 0.0
        %4133 = vmatprep.subr.mxu0 0.0
        %4134 = vmatpush1.msra.mxu0 0.0
        %4135 = vmatprep.subr.mxu0 0.0
        %4136 = vmatpush1.msra.mxu0 0.0
        %4137 = vmatprep.subr.mxu0 0.0
        %4138 = vmatpush1.msra.mxu0 0.0
        %4139 = vmatprep.subr.mxu0 0.0
        %4140 = vmatpush1.msra.mxu0 0.0
        %4141 = vmatprep.subr.mxu0 0.0
        %4142 = vmatpush1.msra.mxu0 0.0
        %4143 = vmatprep.subr.mxu0 0.0
        %4144 = vmatpush1.msra.mxu0 0.0
        %4145 = vmatprep.subr.mxu0 0.0
        %4146 = vmatpush1.msra.mxu0 0.0
        %4147 = vmatprep.subr.mxu0 0.0
        %4148 = vmatpush1.msra.mxu0 0.0
        %4149 = vmatprep.subr.mxu0 0.0
        %4150 = vmatpush1.msra.mxu0 0.0
        %4151 = vmatprep.subr.mxu0 0.0
        %4152 = vmatpush1.msra.mxu0 0.0
        %4153 = vmatprep.subr.mxu0 0.0
        %4154 = vmatpush1.msra.mxu0 0.0
        %4155 = vmatprep.subr.mxu0 0.0
        %4156 = vmatpush1.msra.mxu0 0.0
        %4157 = vmatprep.subr.mxu0 0.0
        %4158 = vmatpush1.msra.mxu0 0.0
        %4159 = vmatprep.subr.mxu0 0.0
        %4160 = vmatpush1.msra.mxu0 0.0
        %4161 = vmatprep.subr.mxu0 0.0
        %4162 = vmatpush1.msra.mxu0 0.0
        %4163 = vmatprep.mubr.f32.mxu0 0.0
        %4164 = vmatmul.mubr.f32.gmra.mrb[0].mxu0 %v4094
        %v4165 = vpop.f32.mrb[0].mxu0
        %v4166 = vadd.f32 0.0, %v4165
        %v4167 = vpop.f32.mrb[0].mxu0
        %v4168 = vadd.f32 0.0, %v4167
        %4169 = vmatprep.mubr.f32.mxu0 0.0
        %4170 = vmatmul.mubr.f32.gmra.mrb[0].mxu0 %v4097
        %v4171 = vpop.f32.mrb[0].mxu0
        %v4172 = vadd.f32 0.0, %v4171
        %v4173 = vpop.f32.mrb[0].mxu0
        %v4174 = vadd.f32 0.0, %v4173
        %4175 = vdwg.mxu0
        %4176 = vmatprep.subr.mxu0 %v4089
        %4177 = vmatpush1.msra.mxu0 %v4088
        %4178 = vmatprep.subr.mxu0 0.0
        %4179 = vmatpush1.msra.mxu0 0.0
        %4180 = vmatprep.subr.mxu0 0.0
        %4181 = vmatpush1.msra.mxu0 0.0
        %4182 = vmatprep.subr.mxu0 0.0
        %4183 = vmatpush1.msra.mxu0 0.0
        %4184 = vmatprep.subr.mxu0 0.0
        %4185 = vmatpush1.msra.mxu0 0.0
        %4186 = vmatprep.subr.mxu0 0.0
        %4187 = vmatpush1.msra.mxu0 0.0
        %4188 = vmatprep.subr.mxu0 0.0
        %4189 = vmatpush1.msra.mxu0 0.0
        %4190 = vmatprep.subr.mxu0 0.0
        %4191 = vmatpush1.msra.mxu0 0.0
        %4192 = vmatprep.subr.mxu0 0.0
        %4193 = vmatpush1.msra.mxu0 0.0
        %4194 = vmatprep.subr.mxu0 0.0
        %4195 = vmatpush1.msra.mxu0 0.0
        %4196 = vmatprep.subr.mxu0 0.0
        %4197 = vmatpush1.msra.mxu0 0.0
        %4198 = vmatprep.subr.mxu0 0.0
        %4199 = vmatpush1.msra.mxu0 0.0
        %4200 = vmatprep.subr.mxu0 0.0
        %4201 = vmatpush1.msra.mxu0 0.0
        %4202 = vmatprep.subr.mxu0 0.0
        %4203 = vmatpush1.msra.mxu0 0.0
        %4204 = vmatprep.subr.mxu0 0.0
        %4205 = vmatpush1.msra.mxu0 0.0
        %4206 = vmatprep.subr.mxu0 0.0
        %4207 = vmatpush1.msra.mxu0 0.0
        %4208 = vmatprep.subr.mxu0 0.0
        %4209 = vmatpush1.msra.mxu0 0.0
        %4210 = vmatprep.subr.mxu0 0.0
        %4211 = vmatpush1.msra.mxu0 0.0
        %4212 = vmatprep.subr.mxu0 0.0
        %4213 = vmatpush1.msra.mxu0 0.0
        %4214 = vmatprep.subr.mxu0 0.0
        %4215 = vmatpush1.msra.mxu0 0.0
        %4216 = vmatprep.subr.mxu0 0.0
        %4217 = vmatpush1.msra.mxu0 0.0
        %4218 = vmatprep.subr.mxu0 0.0
        %4219 = vmatpush1.msra.mxu0 0.0
        %4220 = vmatprep.subr.mxu0 0.0
        %4221 = vmatpush1.msra.mxu0 0.0
        %4222 = vmatprep.subr.mxu0 0.0
        %4223 = vmatpush1.msra.mxu0 0.0
        %4224 = vmatprep.subr.mxu0 0.0
        %4225 = vmatpush1.msra.mxu0 0.0
        %4226 = vmatprep.subr.mxu0 0.0
        %4227 = vmatpush1.msra.mxu0 0.0
        %4228 = vmatprep.subr.mxu0 0.0
        %4229 = vmatpush1.msra.mxu0 0.0
        %4230 = vmatprep.subr.mxu0 0.0
        %4231 = vmatpush1.msra.mxu0 0.0
        %4232 = vmatprep.subr.mxu0 0.0
        %4233 = vmatpush1.msra.mxu0 0.0
        %4234 = vmatprep.subr.mxu0 0.0
        %4235 = vmatpush1.msra.mxu0 0.0
        %4236 = vmatprep.subr.mxu0 0.0
        %4237 = vmatpush1.msra.mxu0 0.0
        %4238 = vmatprep.subr.mxu0 0.0
        %4239 = vmatpush1.msra.mxu0 0.0
        %4240 = vmatprep.mubr.f32.mxu0 0.0
        %4241 = vmatmul.mubr.f32.gmra.mrb[0].mxu0 %v4094
        %v4242 = vpop.f32.mrb[0].mxu0
        %v4243 = vadd.f32 0.0, %v4242
        %v4244 = vpop.f32.mrb[0].mxu0
        %v4245 = vadd.f32 0.0, %v4244
        %4246 = vmatprep.mubr.f32.mxu0 0.0
        %4247 = vmatmul.mubr.f32.gmra.mrb[0].mxu0 %v4097
        %v4248 = vpop.f32.mrb[0].mxu0
        %v4249 = vadd.f32 0.0, %v4248
        %v4250 = vpop.f32.mrb[0].mxu0
        %v4251 = vadd.f32 0.0, %v4250
        %4252 = vdwg.mxu0
        %v4253 = vld [vmem:[#allocation8] sm:$0xff]
        %v4254 = vld [vmem:[#allocation8 + $0x8] sm:$0xff]
        %v4255 = vld [vmem:[#allocation8 + $0x10] sm:$0xff]
        %v4256 = vld [vmem:[#allocation8 + $0x18] sm:$0xff]
        %v4257 = vld [vmem:[#allocation8 + $0x20] sm:$0xff]
        %v4258 = vld [vmem:[#allocation8 + $0x28] sm:$0xff]
        %v4259 = vld [vmem:[#allocation8 + $0x30] sm:$0xff]
        %v4260 = vld [vmem:[#allocation8 + $0x38] sm:$0xff]
        %v4261 = vld [vmem:[#allocation8 + $0x40] sm:$0xff]
        %v4262 = vld [vmem:[#allocation8 + $0x48] sm:$0xff]
        %v4263 = vld [vmem:[#allocation8 + $0x50] sm:$0xff]
        %v4264 = vld [vmem:[#allocation8 + $0x58] sm:$0xff]
        %v4265 = vld [vmem:[#allocation8 + $0x60] sm:$0xff]
        %v4266 = vld [vmem:[#allocation8 + $0x68] sm:$0xff]
        %v4267 = vld [vmem:[#allocation8 + $0x70] sm:$0xff]
        %v4268 = vld [vmem:[#allocation8 + $0x78] sm:$0xff]
        %v4269 = vld [vmem:[#allocation8 + $0x80] sm:$0xff]
        %v4270 = vld [vmem:[#allocation8 + $0x88] sm:$0xff]
        %v4271 = vld [vmem:[#allocation8 + $0x90] sm:$0xff]
        %v4272 = vld [vmem:[#allocation8 + $0x98] sm:$0xff]
        %v4273 = vld [vmem:[#allocation8 + $0xa0] sm:$0xff]
        %v4274 = vld [vmem:[#allocation8 + $0xa8] sm:$0xff]
        %v4275 = vld [vmem:[#allocation8 + $0xb0] sm:$0xff]
        %v4276 = vld [vmem:[#allocation8 + $0xb8] sm:$0xff]
        %v4277 = vld [vmem:[#allocation8 + $0xc0] sm:$0xff]
        %v4278 = vld [vmem:[#allocation8 + $0xc8] sm:$0xff]
        %v4279 = vld [vmem:[#allocation8 + $0xd0] sm:$0xff]
        %v4280 = vld [vmem:[#allocation8 + $0xd8] sm:$0xff]
        %v4281 = vld [vmem:[#allocation8 + $0xe0] sm:$0xff]
        %v4282 = vld [vmem:[#allocation8 + $0xe8] sm:$0xff]
        %v4283 = vld [vmem:[#allocation8 + $0xf0] sm:$0xff]
        %v4284 = vld [vmem:[#allocation8 + $0xf8] sm:$0xff]
        %v4285 = vld [vmem:[#allocation8 + $0x100] sm:$0xff]
        %v4286 = vld [vmem:[#allocation8 + $0x108] sm:$0xff]
        %v4287 = vld [vmem:[#allocation8 + $0x110] sm:$0xff]
        %v4288 = vld [vmem:[#allocation8 + $0x118] sm:$0xff]
        %v4289 = vld [vmem:[#allocation8 + $0x120] sm:$0xff]
        %v4290 = vld [vmem:[#allocation8 + $0x128] sm:$0xff]
        %v4291 = vld [vmem:[#allocation8 + $0x130] sm:$0xff]
        %v4292 = vld [vmem:[#allocation8 + $0x138] sm:$0xff]
        %v4293 = vld [vmem:[#allocation8 + $0x140] sm:$0xff]
        %v4294 = vld [vmem:[#allocation8 + $0x148] sm:$0xff]
        %v4295 = vld [vmem:[#allocation8 + $0x150] sm:$0xff]
        %v4296 = vld [vmem:[#allocation8 + $0x158] sm:$0xff]
        %v4297 = vld [vmem:[#allocation8 + $0x160] sm:$0xff]
        %v4298 = vld [vmem:[#allocation8 + $0x168] sm:$0xff]
        %v4299 = vld [vmem:[#allocation8 + $0x170] sm:$0xff]
        %v4300 = vld [vmem:[#allocation8 + $0x178] sm:$0xff]
        %v4301 = vld [vmem:[#allocation8 + $0x180] sm:$0xff]
        %v4302 = vld [vmem:[#allocation8 + $0x188] sm:$0xff]
        %v4303 = vld [vmem:[#allocation8 + $0x190] sm:$0xff]
        %v4304 = vld [vmem:[#allocation8 + $0x198] sm:$0xff]
        %v4305 = vld [vmem:[#allocation8 + $0x1a0] sm:$0xff]
        %v4306 = vld [vmem:[#allocation8 + $0x1a8] sm:$0xff]
        %v4307 = vld [vmem:[#allocation8 + $0x1b0] sm:$0xff]
        %v4308 = vld [vmem:[#allocation8 + $0x1b8] sm:$0xff]
        %v4309 = vld [vmem:[#allocation8 + $0x1c0] sm:$0xff]
        %v4310 = vld [vmem:[#allocation8 + $0x1c8] sm:$0xff]
        %v4311 = vld [vmem:[#allocation8 + $0x1d0] sm:$0xff]
        %v4312 = vld [vmem:[#allocation8 + $0x1d8] sm:$0xff]
        %v4313 = vld [vmem:[#allocation8 + $0x1e0] sm:$0xff]
        %v4314 = vld [vmem:[#allocation8 + $0x1e8] sm:$0xff]
        %v4315 = vld [vmem:[#allocation8 + $0x1f0] sm:$0xff]
        %v4316 = vld [vmem:[#allocation8 + $0x1f8] sm:$0xff]
        %v4317 = vld [vmem:[#allocation8 + $0x200] sm:$0xff]
        %v4318 = vld [vmem:[#allocation8 + $0x208] sm:$0xff]
        %v4319 = vld [vmem:[#allocation8 + $0x210] sm:$0xff]
        %v4320 = vld [vmem:[#allocation8 + $0x218] sm:$0xff]
        %v4321 = vld [vmem:[#allocation8 + $0x220] sm:$0xff]
        %v4322 = vld [vmem:[#allocation8 + $0x228] sm:$0xff]
        %v4323 = vld [vmem:[#allocation8 + $0x230] sm:$0xff]
        %v4324 = vld [vmem:[#allocation8 + $0x238] sm:$0xff]
        %v4325 = vld [vmem:[#allocation8 + $0x240] sm:$0xff]
        %v4326 = vld [vmem:[#allocation8 + $0x248] sm:$0xff]
        %v4327 = vld [vmem:[#allocation8 + $0x250] sm:$0xff]
        %v4328 = vld [vmem:[#allocation8 + $0x258] sm:$0xff]
        %v4329 = vld [vmem:[#allocation8 + $0x260] sm:$0xff]
        %v4330 = vld [vmem:[#allocation8 + $0x268] sm:$0xff]
        %v4331 = vld [vmem:[#allocation8 + $0x270] sm:$0xff]
        %v4332 = vld [vmem:[#allocation8 + $0x278] sm:$0xff]
        %v4333 = vld [vmem:[#allocation8 + $0x280] sm:$0xff]
        %v4334 = vld [vmem:[#allocation8 + $0x288] sm:$0xff]
        %v4335 = vld [vmem:[#allocation8 + $0x290] sm:$0xff]
        %v4336 = vld [vmem:[#allocation8 + $0x298] sm:$0xff]
        %v4337 = vld [vmem:[#allocation8 + $0x2a0] sm:$0xff]
        %v4338 = vld [vmem:[#allocation8 + $0x2a8] sm:$0xff]
        %v4339 = vld [vmem:[#allocation8 + $0x2b0] sm:$0xff]
        %v4340 = vld [vmem:[#allocation8 + $0x2b8] sm:$0xff]
        %v4341 = vld [vmem:[#allocation8 + $0x2c0] sm:$0xff]
        %v4342 = vld [vmem:[#allocation8 + $0x2c8] sm:$0xff]
        %v4343 = vld [vmem:[#allocation8 + $0x2d0] sm:$0xff]
        %v4344 = vld [vmem:[#allocation8 + $0x2d8] sm:$0xff]
        %v4345 = vld [vmem:[#allocation8 + $0x2e0] sm:$0xff]
        %v4346 = vld [vmem:[#allocation8 + $0x2e8] sm:$0xff]
        %v4347 = vld [vmem:[#allocation8 + $0x2f0] sm:$0xff]
        %v4348 = vld [vmem:[#allocation8 + $0x2f8] sm:$0xff]
        %v4349 = vld [vmem:[#allocation8 + $0x300] sm:$0xff]
        %v4350 = vld [vmem:[#allocation8 + $0x308] sm:$0xff]
        %v4351 = vld [vmem:[#allocation8 + $0x310] sm:$0xff]
        %v4352 = vld [vmem:[#allocation8 + $0x318] sm:$0xff]
        %v4353 = vld [vmem:[#allocation8 + $0x320] sm:$0xff]
        %v4354 = vld [vmem:[#allocation8 + $0x328] sm:$0xff]
        %v4355 = vld [vmem:[#allocation8 + $0x330] sm:$0xff]
        %v4356 = vld [vmem:[#allocation8 + $0x338] sm:$0xff]
        %v4357 = vld [vmem:[#allocation8 + $0x340] sm:$0xff]
        %v4358 = vld [vmem:[#allocation8 + $0x348] sm:$0xff]
        %v4359 = vld [vmem:[#allocation8 + $0x350] sm:$0xff]
        %v4360 = vld [vmem:[#allocation8 + $0x358] sm:$0xff]
        %v4361 = vld [vmem:[#allocation8 + $0x360] sm:$0xff]
        %v4362 = vld [vmem:[#allocation8 + $0x368] sm:$0xff]
        %v4363 = vld [vmem:[#allocation8 + $0x370] sm:$0xff]
        %v4364 = vld [vmem:[#allocation8 + $0x378] sm:$0xff]
        %v4365 = vld [vmem:[#allocation8 + $0x380] sm:$0xff]
        %v4366 = vld [vmem:[#allocation8 + $0x388] sm:$0xff]
        %v4367 = vld [vmem:[#allocation8 + $0x390] sm:$0xff]
        %v4368 = vld [vmem:[#allocation8 + $0x398] sm:$0xff]
        %v4369 = vld [vmem:[#allocation8 + $0x3a0] sm:$0xff]
        %v4370 = vld [vmem:[#allocation8 + $0x3a8] sm:$0xff]
        %v4371 = vld [vmem:[#allocation8 + $0x3b0] sm:$0xff]
        %v4372 = vld [vmem:[#allocation8 + $0x3b8] sm:$0xff]
        %v4373 = vld [vmem:[#allocation8 + $0x3c0] sm:$0xff]
        %v4374 = vld [vmem:[#allocation8 + $0x3c8] sm:$0xff]
        %v4375 = vld [vmem:[#allocation8 + $0x3d0] sm:$0xff]
        %v4376 = vld [vmem:[#allocation8 + $0x3d8] sm:$0xff]
        %v4377 = vld [vmem:[#allocation8 + $0x3e0] sm:$0xff]
        %v4378 = vld [vmem:[#allocation8 + $0x3e8] sm:$0xff]
        %v4379 = vld [vmem:[#allocation8 + $0x3f0] sm:$0xff]
        %v4380 = vld [vmem:[#allocation8 + $0x3f8] sm:$0xff]
        %v4381 = vld [vmem:[#allocation8 + $0x400] sm:$0xff]
        %v4382 = vld [vmem:[#allocation8 + $0x408] sm:$0xff]
        %v4383 = vld [vmem:[#allocation8 + $0x410] sm:$0xff]
        %v4384 = vld [vmem:[#allocation8 + $0x418] sm:$0xff]
        %v4385 = vld [vmem:[#allocation8 + $0x420] sm:$0xff]
        %v4386 = vld [vmem:[#allocation8 + $0x428] sm:$0xff]
        %v4387 = vld [vmem:[#allocation8 + $0x430] sm:$0xff]
        %v4388 = vld [vmem:[#allocation8 + $0x438] sm:$0xff]
        %v4389 = vld [vmem:[#allocation8 + $0x440] sm:$0xff]
        %v4390 = vld [vmem:[#allocation8 + $0x448] sm:$0xff]
        %v4391 = vld [vmem:[#allocation8 + $0x450] sm:$0xff]
        %v4392 = vld [vmem:[#allocation8 + $0x458] sm:$0xff]
        %v4393 = vld [vmem:[#allocation8 + $0x460] sm:$0xff]
        %v4394 = vld [vmem:[#allocation8 + $0x468] sm:$0xff]
        %v4395 = vld [vmem:[#allocation8 + $0x470] sm:$0xff]
        %v4396 = vld [vmem:[#allocation8 + $0x478] sm:$0xff]
        %v4397 = vld [vmem:[#allocation8 + $0x480] sm:$0xff]
        %v4398 = vld [vmem:[#allocation8 + $0x488] sm:$0xff]
        %v4399 = vld [vmem:[#allocation8 + $0x490] sm:$0xff]
        %v4400 = vld [vmem:[#allocation8 + $0x498] sm:$0xff]
        %v4401 = vld [vmem:[#allocation8 + $0x4a0] sm:$0xff]
        %v4402 = vld [vmem:[#allocation8 + $0x4a8] sm:$0xff]
        %v4403 = vld [vmem:[#allocation8 + $0x4b0] sm:$0xff]
        %v4404 = vld [vmem:[#allocation8 + $0x4b8] sm:$0xff]
        %v4405 = vld [vmem:[#allocation8 + $0x4c0] sm:$0xff]
        %v4406 = vld [vmem:[#allocation8 + $0x4c8] sm:$0xff]
        %v4407 = vld [vmem:[#allocation8 + $0x4d0] sm:$0xff]
        %v4408 = vld [vmem:[#allocation8 + $0x4d8] sm:$0xff]
        %v4409 = vld [vmem:[#allocation8 + $0x4e0] sm:$0xff]
        %v4410 = vld [vmem:[#allocation8 + $0x4e8] sm:$0xff]
        %v4411 = vld [vmem:[#allocation8 + $0x4f0] sm:$0xff]
        %v4412 = vld [vmem:[#allocation8 + $0x4f8] sm:$0xff]
        %v4413 = vld [vmem:[#allocation8 + $0x500] sm:$0xff]
        %v4414 = vld [vmem:[#allocation8 + $0x508] sm:$0xff]
        %v4415 = vld [vmem:[#allocation8 + $0x510] sm:$0xff]
        %v4416 = vld [vmem:[#allocation8 + $0x518] sm:$0xff]
        %v4417 = vld [vmem:[#allocation8 + $0x520] sm:$0xff]
        %v4418 = vld [vmem:[#allocation8 + $0x528] sm:$0xff]
        %v4419 = vld [vmem:[#allocation8 + $0x530] sm:$0xff]
        %v4420 = vld [vmem:[#allocation8 + $0x538] sm:$0xff]
        %v4421 = vld [vmem:[#allocation8 + $0x540] sm:$0xff]
        %v4422 = vld [vmem:[#allocation8 + $0x548] sm:$0xff]
        %v4423 = vld [vmem:[#allocation8 + $0x550] sm:$0xff]
        %v4424 = vld [vmem:[#allocation8 + $0x558] sm:$0xff]
        %v4425 = vld [vmem:[#allocation8 + $0x560] sm:$0xff]
        %v4426 = vld [vmem:[#allocation8 + $0x568] sm:$0xff]
        %v4427 = vld [vmem:[#allocation8 + $0x570] sm:$0xff]
        %v4428 = vld [vmem:[#allocation8 + $0x578] sm:$0xff]
        %v4429 = vld [vmem:[#allocation8 + $0x580] sm:$0xff]
        %v4430 = vld [vmem:[#allocation8 + $0x588] sm:$0xff]
        %v4431 = vld [vmem:[#allocation8 + $0x590] sm:$0xff]
        %v4432 = vld [vmem:[#allocation8 + $0x598] sm:$0xff]
        %v4433 = vld [vmem:[#allocation8 + $0x5a0] sm:$0xff]
        %v4434 = vld [vmem:[#allocation8 + $0x5a8] sm:$0xff]
        %v4435 = vld [vmem:[#allocation8 + $0x5b0] sm:$0xff]
        %v4436 = vld [vmem:[#allocation8 + $0x5b8] sm:$0xff]
        %v4437 = vld [vmem:[#allocation8 + $0x5c0] sm:$0xff]
        %v4438 = vld [vmem:[#allocation8 + $0x5c8] sm:$0xff]
        %v4439 = vld [vmem:[#allocation8 + $0x5d0] sm:$0xff]
        %v4440 = vld [vmem:[#allocation8 + $0x5d8] sm:$0xff]
        %v4441 = vld [vmem:[#allocation8 + $0x5e0] sm:$0xff]
        %v4442 = vld [vmem:[#allocation8 + $0x5e8] sm:$0xff]
        %v4443 = vld [vmem:[#allocation8 + $0x5f0] sm:$0xff]
        %v4444 = vld [vmem:[#allocation8 + $0x5f8] sm:$0xff]
        %v4445 = vld [vmem:[#allocation8 + $0x600] sm:$0xff]
        %v4446 = vld [vmem:[#allocation8 + $0x608] sm:$0xff]
        %v4447 = vld [vmem:[#allocation8 + $0x610] sm:$0xff]
        %v4448 = vld [vmem:[#allocation8 + $0x618] sm:$0xff]
        %v4449 = vld [vmem:[#allocation8 + $0x620] sm:$0xff]
        %v4450 = vld [vmem:[#allocation8 + $0x628] sm:$0xff]
        %v4451 = vld [vmem:[#allocation8 + $0x630] sm:$0xff]
        %v4452 = vld [vmem:[#allocation8 + $0x638] sm:$0xff]
        %v4453 = vld [vmem:[#allocation8 + $0x640] sm:$0xff]
        %v4454 = vld [vmem:[#allocation8 + $0x648] sm:$0xff]
        %v4455 = vld [vmem:[#allocation8 + $0x650] sm:$0xff]
        %v4456 = vld [vmem:[#allocation8 + $0x658] sm:$0xff]
        %v4457 = vld [vmem:[#allocation8 + $0x660] sm:$0xff]
        %v4458 = vld [vmem:[#allocation8 + $0x668] sm:$0xff]
        %v4459 = vld [vmem:[#allocation8 + $0x670] sm:$0xff]
        %v4460 = vld [vmem:[#allocation8 + $0x678] sm:$0xff]
        %v4461 = vld [vmem:[#allocation8 + $0x680] sm:$0xff]
        %v4462 = vld [vmem:[#allocation8 + $0x688] sm:$0xff]
        %v4463 = vld [vmem:[#allocation8 + $0x690] sm:$0xff]
        %v4464 = vld [vmem:[#allocation8 + $0x698] sm:$0xff]
        %v4465 = vld [vmem:[#allocation8 + $0x6a0] sm:$0xff]
        %v4466 = vld [vmem:[#allocation8 + $0x6a8] sm:$0xff]
        %v4467 = vld [vmem:[#allocation8 + $0x6b0] sm:$0xff]
        %v4468 = vld [vmem:[#allocation8 + $0x6b8] sm:$0xff]
        %v4469 = vld [vmem:[#allocation8 + $0x6c0] sm:$0xff]
        %v4470 = vld [vmem:[#allocation8 + $0x6c8] sm:$0xff]
        %v4471 = vld [vmem:[#allocation8 + $0x6d0] sm:$0xff]
        %v4472 = vld [vmem:[#allocation8 + $0x6d8] sm:$0xff]
        %v4473 = vld [vmem:[#allocation8 + $0x6e0] sm:$0xff]
        %v4474 = vld [vmem:[#allocation8 + $0x6e8] sm:$0xff]
        %v4475 = vld [vmem:[#allocation8 + $0x6f0] sm:$0xff]
        %v4476 = vld [vmem:[#allocation8 + $0x6f8] sm:$0xff]
        %v4477 = vld [vmem:[#allocation8 + $0x700] sm:$0xff]
        %v4478 = vld [vmem:[#allocation8 + $0x708] sm:$0xff]
        %v4479 = vld [vmem:[#allocation8 + $0x710] sm:$0xff]
        %v4480 = vld [vmem:[#allocation8 + $0x718] sm:$0xff]
        %v4481 = vld [vmem:[#allocation8 + $0x720] sm:$0xff]
        %v4482 = vld [vmem:[#allocation8 + $0x728] sm:$0xff]
        %v4483 = vld [vmem:[#allocation8 + $0x730] sm:$0xff]
        %v4484 = vld [vmem:[#allocation8 + $0x738] sm:$0xff]
        %v4485 = vld [vmem:[#allocation8 + $0x740] sm:$0xff]
        %v4486 = vld [vmem:[#allocation8 + $0x748] sm:$0xff]
        %v4487 = vld [vmem:[#allocation8 + $0x750] sm:$0xff]
        %v4488 = vld [vmem:[#allocation8 + $0x758] sm:$0xff]
        %v4489 = vld [vmem:[#allocation8 + $0x760] sm:$0xff]
        %v4490 = vld [vmem:[#allocation8 + $0x768] sm:$0xff]
        %v4491 = vld [vmem:[#allocation8 + $0x770] sm:$0xff]
        %v4492 = vld [vmem:[#allocation8 + $0x778] sm:$0xff]
        %v4493 = vld [vmem:[#allocation8 + $0x780] sm:$0xff]
        %v4494 = vld [vmem:[#allocation8 + $0x788] sm:$0xff]
        %v4495 = vld [vmem:[#allocation8 + $0x790] sm:$0xff]
        %v4496 = vld [vmem:[#allocation8 + $0x798] sm:$0xff]
        %v4497 = vld [vmem:[#allocation8 + $0x7a0] sm:$0xff]
        %v4498 = vld [vmem:[#allocation8 + $0x7a8] sm:$0xff]
        %v4499 = vld [vmem:[#allocation8 + $0x7b0] sm:$0xff]
        %v4500 = vld [vmem:[#allocation8 + $0x7b8] sm:$0xff]
        %v4501 = vld [vmem:[#allocation8 + $0x7c0] sm:$0xff]
        %v4502 = vld [vmem:[#allocation8 + $0x7c8] sm:$0xff]
        %v4503 = vld [vmem:[#allocation8 + $0x7d0] sm:$0xff]
        %v4504 = vld [vmem:[#allocation8 + $0x7d8] sm:$0xff]
        %v4505 = vld [vmem:[#allocation8 + $0x7e0] sm:$0xff]
        %v4506 = vld [vmem:[#allocation8 + $0x7e8] sm:$0xff]
        %v4507 = vld [vmem:[#allocation8 + $0x7f0] sm:$0xff]
        %v4508 = vld [vmem:[#allocation8 + $0x7f8] sm:$0xff]
        %s4509 = scalar_lea.vmem [#allocation8], 2048
        %v4510 = vld [vmem:[%s4509] sm:$0xff]
        %v4511 = vld [vmem:[%s4509 + $0x8] sm:$0xff]
        %v4512 = vld [vmem:[%s4509 + $0x10] sm:$0xff]
        %v4513 = vld [vmem:[%s4509 + $0x18] sm:$0xff]
        %v4514 = vld [vmem:[%s4509 + $0x20] sm:$0xff]
        %v4515 = vld [vmem:[%s4509 + $0x28] sm:$0xff]
        %v4516 = vld [vmem:[%s4509 + $0x30] sm:$0xff]
        %v4517 = vld [vmem:[%s4509 + $0x38] sm:$0xff]
        %v4518 = vld [vmem:[%s4509 + $0x40] sm:$0xff]
        %v4519 = vld [vmem:[%s4509 + $0x48] sm:$0xff]
        %v4520 = vld [vmem:[%s4509 + $0x50] sm:$0xff]
        %v4521 = vld [vmem:[%s4509 + $0x58] sm:$0xff]
        %v4522 = vld [vmem:[%s4509 + $0x60] sm:$0xff]
        %v4523 = vld [vmem:[%s4509 + $0x68] sm:$0xff]
        %v4524 = vld [vmem:[%s4509 + $0x70] sm:$0xff]
        %v4525 = vld [vmem:[%s4509 + $0x78] sm:$0xff]
        %v4526 = vld [vmem:[%s4509 + $0x80] sm:$0xff]
        %v4527 = vld [vmem:[%s4509 + $0x88] sm:$0xff]
        %v4528 = vld [vmem:[%s4509 + $0x90] sm:$0xff]
        %v4529 = vld [vmem:[%s4509 + $0x98] sm:$0xff]
        %v4530 = vld [vmem:[%s4509 + $0xa0] sm:$0xff]
        %v4531 = vld [vmem:[%s4509 + $0xa8] sm:$0xff]
        %v4532 = vld [vmem:[%s4509 + $0xb0] sm:$0xff]
        %v4533 = vld [vmem:[%s4509 + $0xb8] sm:$0xff]
        %v4534 = vld [vmem:[%s4509 + $0xc0] sm:$0xff]
        %v4535 = vld [vmem:[%s4509 + $0xc8] sm:$0xff]
        %v4536 = vld [vmem:[%s4509 + $0xd0] sm:$0xff]
        %v4537 = vld [vmem:[%s4509 + $0xd8] sm:$0xff]
        %v4538 = vld [vmem:[%s4509 + $0xe0] sm:$0xff]
        %v4539 = vld [vmem:[%s4509 + $0xe8] sm:$0xff]
        %v4540 = vld [vmem:[%s4509 + $0xf0] sm:$0xff]
        %v4541 = vld [vmem:[%s4509 + $0xf8] sm:$0xff]
        %v4542 = vld [vmem:[%s4509 + $0x100] sm:$0xff]
        %v4543 = vld [vmem:[%s4509 + $0x108] sm:$0xff]
        %v4544 = vld [vmem:[%s4509 + $0x110] sm:$0xff]
        %v4545 = vld [vmem:[%s4509 + $0x118] sm:$0xff]
        %v4546 = vld [vmem:[%s4509 + $0x120] sm:$0xff]
        %v4547 = vld [vmem:[%s4509 + $0x128] sm:$0xff]
        %v4548 = vld [vmem:[%s4509 + $0x130] sm:$0xff]
        %v4549 = vld [vmem:[%s4509 + $0x138] sm:$0xff]
        %v4550 = vld [vmem:[%s4509 + $0x140] sm:$0xff]
        %v4551 = vld [vmem:[%s4509 + $0x148] sm:$0xff]
        %v4552 = vld [vmem:[%s4509 + $0x150] sm:$0xff]
        %v4553 = vld [vmem:[%s4509 + $0x158] sm:$0xff]
        %v4554 = vld [vmem:[%s4509 + $0x160] sm:$0xff]
        %v4555 = vld [vmem:[%s4509 + $0x168] sm:$0xff]
        %v4556 = vld [vmem:[%s4509 + $0x170] sm:$0xff]
        %v4557 = vld [vmem:[%s4509 + $0x178] sm:$0xff]
        %v4558 = vld [vmem:[%s4509 + $0x180] sm:$0xff]
        %v4559 = vld [vmem:[%s4509 + $0x188] sm:$0xff]
        %v4560 = vld [vmem:[%s4509 + $0x190] sm:$0xff]
        %v4561 = vld [vmem:[%s4509 + $0x198] sm:$0xff]
        %v4562 = vld [vmem:[%s4509 + $0x1a0] sm:$0xff]
        %v4563 = vld [vmem:[%s4509 + $0x1a8] sm:$0xff]
        %v4564 = vld [vmem:[%s4509 + $0x1b0] sm:$0xff]
        %v4565 = vld [vmem:[%s4509 + $0x1b8] sm:$0xff]
        %v4566 = vld [vmem:[%s4509 + $0x1c0] sm:$0xff]
        %v4567 = vld [vmem:[%s4509 + $0x1c8] sm:$0xff]
        %v4568 = vld [vmem:[%s4509 + $0x1d0] sm:$0xff]
        %v4569 = vld [vmem:[%s4509 + $0x1d8] sm:$0xff]
        %v4570 = vld [vmem:[%s4509 + $0x1e0] sm:$0xff]
        %v4571 = vld [vmem:[%s4509 + $0x1e8] sm:$0xff]
        %v4572 = vld [vmem:[%s4509 + $0x1f0] sm:$0xff]
        %v4573 = vld [vmem:[%s4509 + $0x1f8] sm:$0xff]
        %v4574 = vld [vmem:[%s4509 + $0x200] sm:$0xff]
        %v4575 = vld [vmem:[%s4509 + $0x208] sm:$0xff]
        %v4576 = vld [vmem:[%s4509 + $0x210] sm:$0xff]
        %v4577 = vld [vmem:[%s4509 + $0x218] sm:$0xff]
        %v4578 = vld [vmem:[%s4509 + $0x220] sm:$0xff]
        %v4579 = vld [vmem:[%s4509 + $0x228] sm:$0xff]
        %v4580 = vld [vmem:[%s4509 + $0x230] sm:$0xff]
        %v4581 = vld [vmem:[%s4509 + $0x238] sm:$0xff]
        %v4582 = vld [vmem:[%s4509 + $0x240] sm:$0xff]
        %v4583 = vld [vmem:[%s4509 + $0x248] sm:$0xff]
        %v4584 = vld [vmem:[%s4509 + $0x250] sm:$0xff]
        %v4585 = vld [vmem:[%s4509 + $0x258] sm:$0xff]
        %v4586 = vld [vmem:[%s4509 + $0x260] sm:$0xff]
        %v4587 = vld [vmem:[%s4509 + $0x268] sm:$0xff]
        %v4588 = vld [vmem:[%s4509 + $0x270] sm:$0xff]
        %v4589 = vld [vmem:[%s4509 + $0x278] sm:$0xff]
        %v4590 = vld [vmem:[%s4509 + $0x280] sm:$0xff]
        %v4591 = vld [vmem:[%s4509 + $0x288] sm:$0xff]
        %v4592 = vld [vmem:[%s4509 + $0x290] sm:$0xff]
        %v4593 = vld [vmem:[%s4509 + $0x298] sm:$0xff]
        %v4594 = vld [vmem:[%s4509 + $0x2a0] sm:$0xff]
        %v4595 = vld [vmem:[%s4509 + $0x2a8] sm:$0xff]
        %v4596 = vld [vmem:[%s4509 + $0x2b0] sm:$0xff]
        %v4597 = vld [vmem:[%s4509 + $0x2b8] sm:$0xff]
        %v4598 = vld [vmem:[%s4509 + $0x2c0] sm:$0xff]
        %v4599 = vld [vmem:[%s4509 + $0x2c8] sm:$0xff]
        %v4600 = vld [vmem:[%s4509 + $0x2d0] sm:$0xff]
        %v4601 = vld [vmem:[%s4509 + $0x2d8] sm:$0xff]
        %v4602 = vld [vmem:[%s4509 + $0x2e0] sm:$0xff]
        %v4603 = vld [vmem:[%s4509 + $0x2e8] sm:$0xff]
        %v4604 = vld [vmem:[%s4509 + $0x2f0] sm:$0xff]
        %v4605 = vld [vmem:[%s4509 + $0x2f8] sm:$0xff]
        %v4606 = vld [vmem:[%s4509 + $0x300] sm:$0xff]
        %v4607 = vld [vmem:[%s4509 + $0x308] sm:$0xff]
        %v4608 = vld [vmem:[%s4509 + $0x310] sm:$0xff]
        %v4609 = vld [vmem:[%s4509 + $0x318] sm:$0xff]
        %v4610 = vld [vmem:[%s4509 + $0x320] sm:$0xff]
        %v4611 = vld [vmem:[%s4509 + $0x328] sm:$0xff]
        %v4612 = vld [vmem:[%s4509 + $0x330] sm:$0xff]
        %v4613 = vld [vmem:[%s4509 + $0x338] sm:$0xff]
        %v4614 = vld [vmem:[%s4509 + $0x340] sm:$0xff]
        %v4615 = vld [vmem:[%s4509 + $0x348] sm:$0xff]
        %v4616 = vld [vmem:[%s4509 + $0x350] sm:$0xff]
        %v4617 = vld [vmem:[%s4509 + $0x358] sm:$0xff]
        %v4618 = vld [vmem:[%s4509 + $0x360] sm:$0xff]
        %v4619 = vld [vmem:[%s4509 + $0x368] sm:$0xff]
        %v4620 = vld [vmem:[%s4509 + $0x370] sm:$0xff]
        %v4621 = vld [vmem:[%s4509 + $0x378] sm:$0xff]
        %v4622 = vld [vmem:[%s4509 + $0x380] sm:$0xff]
        %v4623 = vld [vmem:[%s4509 + $0x388] sm:$0xff]
        %v4624 = vld [vmem:[%s4509 + $0x390] sm:$0xff]
        %v4625 = vld [vmem:[%s4509 + $0x398] sm:$0xff]
        %v4626 = vld [vmem:[%s4509 + $0x3a0] sm:$0xff]
        %v4627 = vld [vmem:[%s4509 + $0x3a8] sm:$0xff]
        %v4628 = vld [vmem:[%s4509 + $0x3b0] sm:$0xff]
        %v4629 = vld [vmem:[%s4509 + $0x3b8] sm:$0xff]
        %v4630 = vld [vmem:[%s4509 + $0x3c0] sm:$0xff]
        %v4631 = vld [vmem:[%s4509 + $0x3c8] sm:$0xff]
        %v4632 = vld [vmem:[%s4509 + $0x3d0] sm:$0xff]
        %v4633 = vld [vmem:[%s4509 + $0x3d8] sm:$0xff]
        %v4634 = vld [vmem:[%s4509 + $0x3e0] sm:$0xff]
        %v4635 = vld [vmem:[%s4509 + $0x3e8] sm:$0xff]
        %v4636 = vld [vmem:[%s4509 + $0x3f0] sm:$0xff]
        %v4637 = vld [vmem:[%s4509 + $0x3f8] sm:$0xff]
        %v4638 = vld [vmem:[%s4509 + $0x400] sm:$0xff]
        %v4639 = vld [vmem:[%s4509 + $0x408] sm:$0xff]
        %v4640 = vld [vmem:[%s4509 + $0x410] sm:$0xff]
        %v4641 = vld [vmem:[%s4509 + $0x418] sm:$0xff]
        %v4642 = vld [vmem:[%s4509 + $0x420] sm:$0xff]
        %v4643 = vld [vmem:[%s4509 + $0x428] sm:$0xff]
        %v4644 = vld [vmem:[%s4509 + $0x430] sm:$0xff]
        %v4645 = vld [vmem:[%s4509 + $0x438] sm:$0xff]
        %v4646 = vld [vmem:[%s4509 + $0x440] sm:$0xff]
        %v4647 = vld [vmem:[%s4509 + $0x448] sm:$0xff]
        %v4648 = vld [vmem:[%s4509 + $0x450] sm:$0xff]
        %v4649 = vld [vmem:[%s4509 + $0x458] sm:$0xff]
        %v4650 = vld [vmem:[%s4509 + $0x460] sm:$0xff]
        %v4651 = vld [vmem:[%s4509 + $0x468] sm:$0xff]
        %v4652 = vld [vmem:[%s4509 + $0x470] sm:$0xff]
        %v4653 = vld [vmem:[%s4509 + $0x478] sm:$0xff]
        %v4654 = vld [vmem:[%s4509 + $0x480] sm:$0xff]
        %v4655 = vld [vmem:[%s4509 + $0x488] sm:$0xff]
        %v4656 = vld [vmem:[%s4509 + $0x490] sm:$0xff]
        %v4657 = vld [vmem:[%s4509 + $0x498] sm:$0xff]
        %v4658 = vld [vmem:[%s4509 + $0x4a0] sm:$0xff]
        %v4659 = vld [vmem:[%s4509 + $0x4a8] sm:$0xff]
        %v4660 = vld [vmem:[%s4509 + $0x4b0] sm:$0xff]
        %v4661 = vld [vmem:[%s4509 + $0x4b8] sm:$0xff]
        %v4662 = vld [vmem:[%s4509 + $0x4c0] sm:$0xff]
        %v4663 = vld [vmem:[%s4509 + $0x4c8] sm:$0xff]
        %v4664 = vld [vmem:[%s4509 + $0x4d0] sm:$0xff]
        %v4665 = vld [vmem:[%s4509 + $0x4d8] sm:$0xff]
        %v4666 = vld [vmem:[%s4509 + $0x4e0] sm:$0xff]
        %v4667 = vld [vmem:[%s4509 + $0x4e8] sm:$0xff]
        %v4668 = vld [vmem:[%s4509 + $0x4f0] sm:$0xff]
        %v4669 = vld [vmem:[%s4509 + $0x4f8] sm:$0xff]
        %v4670 = vld [vmem:[%s4509 + $0x500] sm:$0xff]
        %v4671 = vld [vmem:[%s4509 + $0x508] sm:$0xff]
        %v4672 = vld [vmem:[%s4509 + $0x510] sm:$0xff]
        %v4673 = vld [vmem:[%s4509 + $0x518] sm:$0xff]
        %v4674 = vld [vmem:[%s4509 + $0x520] sm:$0xff]
        %v4675 = vld [vmem:[%s4509 + $0x528] sm:$0xff]
        %v4676 = vld [vmem:[%s4509 + $0x530] sm:$0xff]
        %v4677 = vld [vmem:[%s4509 + $0x538] sm:$0xff]
        %v4678 = vld [vmem:[%s4509 + $0x540] sm:$0xff]
        %v4679 = vld [vmem:[%s4509 + $0x548] sm:$0xff]
        %v4680 = vld [vmem:[%s4509 + $0x550] sm:$0xff]
        %v4681 = vld [vmem:[%s4509 + $0x558] sm:$0xff]
        %v4682 = vld [vmem:[%s4509 + $0x560] sm:$0xff]
        %v4683 = vld [vmem:[%s4509 + $0x568] sm:$0xff]
        %v4684 = vld [vmem:[%s4509 + $0x570] sm:$0xff]
        %v4685 = vld [vmem:[%s4509 + $0x578] sm:$0xff]
        %v4686 = vld [vmem:[%s4509 + $0x580] sm:$0xff]
        %v4687 = vld [vmem:[%s4509 + $0x588] sm:$0xff]
        %v4688 = vld [vmem:[%s4509 + $0x590] sm:$0xff]
        %v4689 = vld [vmem:[%s4509 + $0x598] sm:$0xff]
        %v4690 = vld [vmem:[%s4509 + $0x5a0] sm:$0xff]
        %v4691 = vld [vmem:[%s4509 + $0x5a8] sm:$0xff]
        %v4692 = vld [vmem:[%s4509 + $0x5b0] sm:$0xff]
        %v4693 = vld [vmem:[%s4509 + $0x5b8] sm:$0xff]
        %v4694 = vld [vmem:[%s4509 + $0x5c0] sm:$0xff]
        %v4695 = vld [vmem:[%s4509 + $0x5c8] sm:$0xff]
        %v4696 = vld [vmem:[%s4509 + $0x5d0] sm:$0xff]
        %v4697 = vld [vmem:[%s4509 + $0x5d8] sm:$0xff]
        %v4698 = vld [vmem:[%s4509 + $0x5e0] sm:$0xff]
        %v4699 = vld [vmem:[%s4509 + $0x5e8] sm:$0xff]
        %v4700 = vld [vmem:[%s4509 + $0x5f0] sm:$0xff]
        %v4701 = vld [vmem:[%s4509 + $0x5f8] sm:$0xff]
        %v4702 = vld [vmem:[%s4509 + $0x600] sm:$0xff]
        %v4703 = vld [vmem:[%s4509 + $0x608] sm:$0xff]
        %v4704 = vld [vmem:[%s4509 + $0x610] sm:$0xff]
        %v4705 = vld [vmem:[%s4509 + $0x618] sm:$0xff]
        %v4706 = vld [vmem:[%s4509 + $0x620] sm:$0xff]
        %v4707 = vld [vmem:[%s4509 + $0x628] sm:$0xff]
        %v4708 = vld [vmem:[%s4509 + $0x630] sm:$0xff]
        %v4709 = vld [vmem:[%s4509 + $0x638] sm:$0xff]
        %v4710 = vld [vmem:[%s4509 + $0x640] sm:$0xff]
        %v4711 = vld [vmem:[%s4509 + $0x648] sm:$0xff]
        %v4712 = vld [vmem:[%s4509 + $0x650] sm:$0xff]
        %v4713 = vld [vmem:[%s4509 + $0x658] sm:$0xff]
        %v4714 = vld [vmem:[%s4509 + $0x660] sm:$0xff]
        %v4715 = vld [vmem:[%s4509 + $0x668] sm:$0xff]
        %v4716 = vld [vmem:[%s4509 + $0x670] sm:$0xff]
        %v4717 = vld [vmem:[%s4509 + $0x678] sm:$0xff]
        %v4718 = vld [vmem:[%s4509 + $0x680] sm:$0xff]
        %v4719 = vld [vmem:[%s4509 + $0x688] sm:$0xff]
        %v4720 = vld [vmem:[%s4509 + $0x690] sm:$0xff]
        %v4721 = vld [vmem:[%s4509 + $0x698] sm:$0xff]
        %v4722 = vld [vmem:[%s4509 + $0x6a0] sm:$0xff]
        %v4723 = vld [vmem:[%s4509 + $0x6a8] sm:$0xff]
        %v4724 = vld [vmem:[%s4509 + $0x6b0] sm:$0xff]
        %v4725 = vld [vmem:[%s4509 + $0x6b8] sm:$0xff]
        %v4726 = vld [vmem:[%s4509 + $0x6c0] sm:$0xff]
        %v4727 = vld [vmem:[%s4509 + $0x6c8] sm:$0xff]
        %v4728 = vld [vmem:[%s4509 + $0x6d0] sm:$0xff]
        %v4729 = vld [vmem:[%s4509 + $0x6d8] sm:$0xff]
        %v4730 = vld [vmem:[%s4509 + $0x6e0] sm:$0xff]
        %v4731 = vld [vmem:[%s4509 + $0x6e8] sm:$0xff]
        %v4732 = vld [vmem:[%s4509 + $0x6f0] sm:$0xff]
        %v4733 = vld [vmem:[%s4509 + $0x6f8] sm:$0xff]
        %v4734 = vld [vmem:[%s4509 + $0x700] sm:$0xff]
        %v4735 = vld [vmem:[%s4509 + $0x708] sm:$0xff]
        %v4736 = vld [vmem:[%s4509 + $0x710] sm:$0xff]
        %v4737 = vld [vmem:[%s4509 + $0x718] sm:$0xff]
        %v4738 = vld [vmem:[%s4509 + $0x720] sm:$0xff]
        %v4739 = vld [vmem:[%s4509 + $0x728] sm:$0xff]
        %v4740 = vld [vmem:[%s4509 + $0x730] sm:$0xff]
        %v4741 = vld [vmem:[%s4509 + $0x738] sm:$0xff]
        %v4742 = vld [vmem:[%s4509 + $0x740] sm:$0xff]
        %v4743 = vld [vmem:[%s4509 + $0x748] sm:$0xff]
        %v4744 = vld [vmem:[%s4509 + $0x750] sm:$0xff]
        %v4745 = vld [vmem:[%s4509 + $0x758] sm:$0xff]
        %v4746 = vld [vmem:[%s4509 + $0x760] sm:$0xff]
        %v4747 = vld [vmem:[%s4509 + $0x768] sm:$0xff]
        %v4748 = vld [vmem:[%s4509 + $0x770] sm:$0xff]
        %v4749 = vld [vmem:[%s4509 + $0x778] sm:$0xff]
        %v4750 = vld [vmem:[%s4509 + $0x780] sm:$0xff]
        %v4751 = vld [vmem:[%s4509 + $0x788] sm:$0xff]
        %v4752 = vld [vmem:[%s4509 + $0x790] sm:$0xff]
        %v4753 = vld [vmem:[%s4509 + $0x798] sm:$0xff]
        %v4754 = vld [vmem:[%s4509 + $0x7a0] sm:$0xff]
        %v4755 = vld [vmem:[%s4509 + $0x7a8] sm:$0xff]
        %v4756 = vld [vmem:[%s4509 + $0x7b0] sm:$0xff]
        %v4757 = vld [vmem:[%s4509 + $0x7b8] sm:$0xff]
        %v4758 = vld [vmem:[%s4509 + $0x7c0] sm:$0xff]
        %v4759 = vld [vmem:[%s4509 + $0x7c8] sm:$0xff]
        %v4760 = vld [vmem:[%s4509 + $0x7d0] sm:$0xff]
        %v4761 = vld [vmem:[%s4509 + $0x7d8] sm:$0xff]
        %v4762 = vld [vmem:[%s4509 + $0x7e0] sm:$0xff]
        %v4763 = vld [vmem:[%s4509 + $0x7e8] sm:$0xff]
        %v4764 = vld [vmem:[%s4509 + $0x7f0] sm:$0xff]
        %v4765 = vld [vmem:[%s4509 + $0x7f8] sm:$0xff]
        %v4770 = vrot.slane %v4166, 4
        %v4771 = vrot.slane %v4168, 4
        %v4772 = vrot.slane %v4243, 4
        %v4773 = vrot.slane %v4245, 4
        %4778 = vmatprep.subr.mxu0 %v4511
        %4779 = vmatpush1.msra.mxu0 %v4510
        %4780 = vmatprep.subr.mxu0 %v4515
        %4781 = vmatpush1.msra.mxu0 %v4514
        %4782 = vmatprep.subr.mxu0 %v4519
        %4783 = vmatpush1.msra.mxu0 %v4518
        %4784 = vmatprep.subr.mxu0 %v4523
        %4785 = vmatpush1.msra.mxu0 %v4522
        %4786 = vmatprep.subr.mxu0 %v4527
        %4787 = vmatpush1.msra.mxu0 %v4526
        %4788 = vmatprep.subr.mxu0 %v4531
        %4789 = vmatpush1.msra.mxu0 %v4530
        %4790 = vmatprep.subr.mxu0 %v4535
        %4791 = vmatpush1.msra.mxu0 %v4534
        %4792 = vmatprep.subr.mxu0 %v4539
        %4793 = vmatpush1.msra.mxu0 %v4538
        %4794 = vmatprep.subr.mxu0 %v4543
        %4795 = vmatpush1.msra.mxu0 %v4542
        %4796 = vmatprep.subr.mxu0 %v4547
        %4797 = vmatpush1.msra.mxu0 %v4546
        %4798 = vmatprep.subr.mxu0 %v4551
        %4799 = vmatpush1.msra.mxu0 %v4550
        %4800 = vmatprep.subr.mxu0 %v4555
        %4801 = vmatpush1.msra.mxu0 %v4554
        %4802 = vmatprep.subr.mxu0 %v4559
        %4803 = vmatpush1.msra.mxu0 %v4558
        %4804 = vmatprep.subr.mxu0 %v4563
        %4805 = vmatpush1.msra.mxu0 %v4562
        %4806 = vmatprep.subr.mxu0 %v4567
        %4807 = vmatpush1.msra.mxu0 %v4566
        %4808 = vmatprep.subr.mxu0 %v4571
        %4809 = vmatpush1.msra.mxu0 %v4570
        %4810 = vmatprep.subr.mxu0 %v4575
        %4811 = vmatpush1.msra.mxu0 %v4574
        %4812 = vmatprep.subr.mxu0 %v4579
        %4813 = vmatpush1.msra.mxu0 %v4578
        %4814 = vmatprep.subr.mxu0 %v4583
        %4815 = vmatpush1.msra.mxu0 %v4582
        %4816 = vmatprep.subr.mxu0 %v4587
        %4817 = vmatpush1.msra.mxu0 %v4586
        %4818 = vmatprep.subr.mxu0 %v4591
        %4819 = vmatpush1.msra.mxu0 %v4590
        %4820 = vmatprep.subr.mxu0 %v4595
        %4821 = vmatpush1.msra.mxu0 %v4594
        %4822 = vmatprep.subr.mxu0 %v4599
        %4823 = vmatpush1.msra.mxu0 %v4598
        %4824 = vmatprep.subr.mxu0 %v4603
        %4825 = vmatpush1.msra.mxu0 %v4602
        %4826 = vmatprep.subr.mxu0 %v4607
        %4827 = vmatpush1.msra.mxu0 %v4606
        %4828 = vmatprep.subr.mxu0 %v4611
        %4829 = vmatpush1.msra.mxu0 %v4610
        %4830 = vmatprep.subr.mxu0 %v4615
        %4831 = vmatpush1.msra.mxu0 %v4614
        %4832 = vmatprep.subr.mxu0 %v4619
        %4833 = vmatpush1.msra.mxu0 %v4618
        %4834 = vmatprep.subr.mxu0 %v4623
        %4835 = vmatpush1.msra.mxu0 %v4622
        %4836 = vmatprep.subr.mxu0 %v4627
        %4837 = vmatpush1.msra.mxu0 %v4626
        %4838 = vmatprep.subr.mxu0 %v4631
        %4839 = vmatpush1.msra.mxu0 %v4630
        %4840 = vmatprep.subr.mxu0 %v4635
        %4841 = vmatpush1.msra.mxu0 %v4634
        %4842 = vmatprep.mubr.f32.mxu0 %v4771
        %4843 = vmatmul.mubr.f32.gmra.mrb[0].mxu0 %v4770
        %v4844 = vpop.f32.mrb[0].mxu0
        %v4845 = vadd.f32 0.0, %v4844
        %v4846 = vpop.f32.mrb[0].mxu0
        %v4847 = vadd.f32 0.0, %v4846
        %4848 = vdwg.mxu0
        %4849 = vmatprep.subr.mxu0 %v4639
        %4850 = vmatpush1.msra.mxu0 %v4638
        %4851 = vmatprep.subr.mxu0 %v4643
        %4852 = vmatpush1.msra.mxu0 %v4642
        %4853 = vmatprep.subr.mxu0 %v4647
        %4854 = vmatpush1.msra.mxu0 %v4646
        %4855 = vmatprep.subr.mxu0 %v4651
        %4856 = vmatpush1.msra.mxu0 %v4650
        %4857 = vmatprep.subr.mxu0 %v4655
        %4858 = vmatpush1.msra.mxu0 %v4654
        %4859 = vmatprep.subr.mxu0 %v4659
        %4860 = vmatpush1.msra.mxu0 %v4658
        %4861 = vmatprep.subr.mxu0 %v4663
        %4862 = vmatpush1.msra.mxu0 %v4662
        %4863 = vmatprep.subr.mxu0 %v4667
        %4864 = vmatpush1.msra.mxu0 %v4666
        %4865 = vmatprep.subr.mxu0 %v4671
        %4866 = vmatpush1.msra.mxu0 %v4670
        %4867 = vmatprep.subr.mxu0 %v4675
        %4868 = vmatpush1.msra.mxu0 %v4674
        %4869 = vmatprep.subr.mxu0 %v4679
        %4870 = vmatpush1.msra.mxu0 %v4678
        %4871 = vmatprep.subr.mxu0 %v4683
        %4872 = vmatpush1.msra.mxu0 %v4682
        %4873 = vmatprep.subr.mxu0 %v4687
        %4874 = vmatpush1.msra.mxu0 %v4686
        %4875 = vmatprep.subr.mxu0 %v4691
        %4876 = vmatpush1.msra.mxu0 %v4690
        %4877 = vmatprep.subr.mxu0 %v4695
        %4878 = vmatpush1.msra.mxu0 %v4694
        %4879 = vmatprep.subr.mxu0 %v4699
        %4880 = vmatpush1.msra.mxu0 %v4698
        %4881 = vmatprep.subr.mxu0 %v4703
        %4882 = vmatpush1.msra.mxu0 %v4702
        %4883 = vmatprep.subr.mxu0 %v4707
        %4884 = vmatpush1.msra.mxu0 %v4706
        %4885 = vmatprep.subr.mxu0 %v4711
        %4886 = vmatpush1.msra.mxu0 %v4710
        %4887 = vmatprep.subr.mxu0 %v4715
        %4888 = vmatpush1.msra.mxu0 %v4714
        %4889 = vmatprep.subr.mxu0 %v4719
        %4890 = vmatpush1.msra.mxu0 %v4718
        %4891 = vmatprep.subr.mxu0 %v4723
        %4892 = vmatpush1.msra.mxu0 %v4722
        %4893 = vmatprep.subr.mxu0 %v4727
        %4894 = vmatpush1.msra.mxu0 %v4726
        %4895 = vmatprep.subr.mxu0 %v4731
        %4896 = vmatpush1.msra.mxu0 %v4730
        %4897 = vmatprep.subr.mxu0 %v4735
        %4898 = vmatpush1.msra.mxu0 %v4734
        %4899 = vmatprep.subr.mxu0 %v4739
        %4900 = vmatpush1.msra.mxu0 %v4738
        %4901 = vmatprep.subr.mxu0 %v4743
        %4902 = vmatpush1.msra.mxu0 %v4742
        %4903 = vmatprep.subr.mxu0 %v4747
        %4904 = vmatpush1.msra.mxu0 %v4746
        %4905 = vmatprep.subr.mxu0 %v4751
        %4906 = vmatpush1.msra.mxu0 %v4750
        %4907 = vmatprep.subr.mxu0 %v4755
        %4908 = vmatpush1.msra.mxu0 %v4754
        %4909 = vmatprep.subr.mxu0 %v4759
        %4910 = vmatpush1.msra.mxu0 %v4758
        %4911 = vmatprep.subr.mxu0 %v4763
        %4912 = vmatpush1.msra.mxu0 %v4762
        %4913 = vmatprep.mubr.f32.mxu0 %v4773
        %4914 = vmatmul.mubr.f32.gmra.mrb[0].mxu0 %v4772
        %v4915 = vpop.f32.mrb[0].mxu0
        %v4916 = vadd.f32 %v4845, %v4915
        %v4917 = vpop.f32.mrb[0].mxu0
        %v4918 = vadd.f32 %v4847, %v4917
        %4919 = vdwg.mxu0
        %4920 = vmatprep.subr.mxu0 %v4513
        %4921 = vmatpush1.msra.mxu0 %v4512
        %4922 = vmatprep.subr.mxu0 %v4517
        %4923 = vmatpush1.msra.mxu0 %v4516
        %4924 = vmatprep.subr.mxu0 %v4521
        %4925 = vmatpush1.msra.mxu0 %v4520
        %4926 = vmatprep.subr.mxu0 %v4525
        %4927 = vmatpush1.msra.mxu0 %v4524
        %4928 = vmatprep.subr.mxu0 %v4529
        %4929 = vmatpush1.msra.mxu0 %v4528
        %4930 = vmatprep.subr.mxu0 %v4533
        %4931 = vmatpush1.msra.mxu0 %v4532
        %4932 = vmatprep.subr.mxu0 %v4537
        %4933 = vmatpush1.msra.mxu0 %v4536
        %4934 = vmatprep.subr.mxu0 %v4541
        %4935 = vmatpush1.msra.mxu0 %v4540
        %4936 = vmatprep.subr.mxu0 %v4545
        %4937 = vmatpush1.msra.mxu0 %v4544
        %4938 = vmatprep.subr.mxu0 %v4549
        %4939 = vmatpush1.msra.mxu0 %v4548
        %4940 = vmatprep.subr.mxu0 %v4553
        %4941 = vmatpush1.msra.mxu0 %v4552
        %4942 = vmatprep.subr.mxu0 %v4557
        %4943 = vmatpush1.msra.mxu0 %v4556
        %4944 = vmatprep.subr.mxu0 %v4561
        %4945 = vmatpush1.msra.mxu0 %v4560
        %4946 = vmatprep.subr.mxu0 %v4565
        %4947 = vmatpush1.msra.mxu0 %v4564
        %4948 = vmatprep.subr.mxu0 %v4569
        %4949 = vmatpush1.msra.mxu0 %v4568
        %4950 = vmatprep.subr.mxu0 %v4573
        %4951 = vmatpush1.msra.mxu0 %v4572
        %4952 = vmatprep.subr.mxu0 %v4577
        %4953 = vmatpush1.msra.mxu0 %v4576
        %4954 = vmatprep.subr.mxu0 %v4581
        %4955 = vmatpush1.msra.mxu0 %v4580
        %4956 = vmatprep.subr.mxu0 %v4585
        %4957 = vmatpush1.msra.mxu0 %v4584
        %4958 = vmatprep.subr.mxu0 %v4589
        %4959 = vmatpush1.msra.mxu0 %v4588
        %4960 = vmatprep.subr.mxu0 %v4593
        %4961 = vmatpush1.msra.mxu0 %v4592
        %4962 = vmatprep.subr.mxu0 %v4597
        %4963 = vmatpush1.msra.mxu0 %v4596
        %4964 = vmatprep.subr.mxu0 %v4601
        %4965 = vmatpush1.msra.mxu0 %v4600
        %4966 = vmatprep.subr.mxu0 %v4605
        %4967 = vmatpush1.msra.mxu0 %v4604
        %4968 = vmatprep.subr.mxu0 %v4609
        %4969 = vmatpush1.msra.mxu0 %v4608
        %4970 = vmatprep.subr.mxu0 %v4613
        %4971 = vmatpush1.msra.mxu0 %v4612
        %4972 = vmatprep.subr.mxu0 %v4617
        %4973 = vmatpush1.msra.mxu0 %v4616
        %4974 = vmatprep.subr.mxu0 %v4621
        %4975 = vmatpush1.msra.mxu0 %v4620
        %4976 = vmatprep.subr.mxu0 %v4625
        %4977 = vmatpush1.msra.mxu0 %v4624
        %4978 = vmatprep.subr.mxu0 %v4629
        %4979 = vmatpush1.msra.mxu0 %v4628
        %4980 = vmatprep.subr.mxu0 %v4633
        %4981 = vmatpush1.msra.mxu0 %v4632
        %4982 = vmatprep.subr.mxu0 %v4637
        %4983 = vmatpush1.msra.mxu0 %v4636
        %4984 = vmatprep.mubr.f32.mxu0 %v4771
        %4985 = vmatmul.mubr.f32.gmra.mrb[0].mxu0 %v4770
        %v4986 = vpop.f32.mrb[0].mxu0
        %v4987 = vadd.f32 0.0, %v4986
        %v4988 = vpop.f32.mrb[0].mxu0
        %v4989 = vadd.f32 0.0, %v4988
        %4990 = vdwg.mxu0
        %4991 = vmatprep.subr.mxu0 %v4641
        %4992 = vmatpush1.msra.mxu0 %v4640
        %4993 = vmatprep.subr.mxu0 %v4645
        %4994 = vmatpush1.msra.mxu0 %v4644
        %4995 = vmatprep.subr.mxu0 %v4649
        %4996 = vmatpush1.msra.mxu0 %v4648
        %4997 = vmatprep.subr.mxu0 %v4653
        %4998 = vmatpush1.msra.mxu0 %v4652
        %4999 = vmatprep.subr.mxu0 %v4657
        %5000 = vmatpush1.msra.mxu0 %v4656
        %5001 = vmatprep.subr.mxu0 %v4661
        %5002 = vmatpush1.msra.mxu0 %v4660
        %5003 = vmatprep.subr.mxu0 %v4665
        %5004 = vmatpush1.msra.mxu0 %v4664
        %5005 = vmatprep.subr.mxu0 %v4669
        %5006 = vmatpush1.msra.mxu0 %v4668
        %5007 = vmatprep.subr.mxu0 %v4673
        %5008 = vmatpush1.msra.mxu0 %v4672
        %5009 = vmatprep.subr.mxu0 %v4677
        %5010 = vmatpush1.msra.mxu0 %v4676
        %5011 = vmatprep.subr.mxu0 %v4681
        %5012 = vmatpush1.msra.mxu0 %v4680
        %5013 = vmatprep.subr.mxu0 %v4685
        %5014 = vmatpush1.msra.mxu0 %v4684
        %5015 = vmatprep.subr.mxu0 %v4689
        %5016 = vmatpush1.msra.mxu0 %v4688
        %5017 = vmatprep.subr.mxu0 %v4693
        %5018 = vmatpush1.msra.mxu0 %v4692
        %5019 = vmatprep.subr.mxu0 %v4697
        %5020 = vmatpush1.msra.mxu0 %v4696
        %5021 = vmatprep.subr.mxu0 %v4701
        %5022 = vmatpush1.msra.mxu0 %v4700
        %5023 = vmatprep.subr.mxu0 %v4705
        %5024 = vmatpush1.msra.mxu0 %v4704
        %5025 = vmatprep.subr.mxu0 %v4709
        %5026 = vmatpush1.msra.mxu0 %v4708
        %5027 = vmatprep.subr.mxu0 %v4713
        %5028 = vmatpush1.msra.mxu0 %v4712
        %5029 = vmatprep.subr.mxu0 %v4717
        %5030 = vmatpush1.msra.mxu0 %v4716
        %5031 = vmatprep.subr.mxu0 %v4721
        %5032 = vmatpush1.msra.mxu0 %v4720
        %5033 = vmatprep.subr.mxu0 %v4725
        %5034 = vmatpush1.msra.mxu0 %v4724
        %5035 = vmatprep.subr.mxu0 %v4729
        %5036 = vmatpush1.msra.mxu0 %v4728
        %5037 = vmatprep.subr.mxu0 %v4733
        %5038 = vmatpush1.msra.mxu0 %v4732
        %5039 = vmatprep.subr.mxu0 %v4737
        %5040 = vmatpush1.msra.mxu0 %v4736
        %5041 = vmatprep.subr.mxu0 %v4741
        %5042 = vmatpush1.msra.mxu0 %v4740
        %5043 = vmatprep.subr.mxu0 %v4745
        %5044 = vmatpush1.msra.mxu0 %v4744
        %5045 = vmatprep.subr.mxu0 %v4749
        %5046 = vmatpush1.msra.mxu0 %v4748
        %5047 = vmatprep.subr.mxu0 %v4753
        %5048 = vmatpush1.msra.mxu0 %v4752
        %5049 = vmatprep.subr.mxu0 %v4757
        %5050 = vmatpush1.msra.mxu0 %v4756
        %5051 = vmatprep.subr.mxu0 %v4761
        %5052 = vmatpush1.msra.mxu0 %v4760
        %5053 = vmatprep.subr.mxu0 %v4765
        %5054 = vmatpush1.msra.mxu0 %v4764
        %5055 = vmatprep.mubr.f32.mxu0 %v4773
        %5056 = vmatmul.mubr.f32.gmra.mrb[0].mxu0 %v4772
        %v5057 = vpop.f32.mrb[0].mxu0
        %v5058 = vadd.f32 %v4987, %v5057
        %v5059 = vpop.f32.mrb[0].mxu0
        %v5060 = vadd.f32 %v4989, %v5059
        %5061 = vdwg.mxu0
        %5062 = vmatprep.subr.mxu0 %v4254
        %5063 = vmatpush1.msra.mxu0 %v4253
        %5064 = vmatprep.subr.mxu0 %v4258
        %5065 = vmatpush1.msra.mxu0 %v4257
        %5066 = vmatprep.subr.mxu0 %v4262
        %5067 = vmatpush1.msra.mxu0 %v4261
        %5068 = vmatprep.subr.mxu0 %v4266
        %5069 = vmatpush1.msra.mxu0 %v4265
        %5070 = vmatprep.subr.mxu0 %v4270
        %5071 = vmatpush1.msra.mxu0 %v4269
        %5072 = vmatprep.subr.mxu0 %v4274
        %5073 = vmatpush1.msra.mxu0 %v4273
        %5074 = vmatprep.subr.mxu0 %v4278
        %5075 = vmatpush1.msra.mxu0 %v4277
        %5076 = vmatprep.subr.mxu0 %v4282
        %5077 = vmatpush1.msra.mxu0 %v4281
        %5078 = vmatprep.subr.mxu0 %v4286
        %5079 = vmatpush1.msra.mxu0 %v4285
        %5080 = vmatprep.subr.mxu0 %v4290
        %5081 = vmatpush1.msra.mxu0 %v4289
        %5082 = vmatprep.subr.mxu0 %v4294
        %5083 = vmatpush1.msra.mxu0 %v4293
        %5084 = vmatprep.subr.mxu0 %v4298
        %5085 = vmatpush1.msra.mxu0 %v4297
        %5086 = vmatprep.subr.mxu0 %v4302
        %5087 = vmatpush1.msra.mxu0 %v4301
        %5088 = vmatprep.subr.mxu0 %v4306
        %5089 = vmatpush1.msra.mxu0 %v4305
        %5090 = vmatprep.subr.mxu0 %v4310
        %5091 = vmatpush1.msra.mxu0 %v4309
        %5092 = vmatprep.subr.mxu0 %v4314
        %5093 = vmatpush1.msra.mxu0 %v4313
        %5094 = vmatprep.subr.mxu0 %v4318
        %5095 = vmatpush1.msra.mxu0 %v4317
        %5096 = vmatprep.subr.mxu0 %v4322
        %5097 = vmatpush1.msra.mxu0 %v4321
        %5098 = vmatprep.subr.mxu0 %v4326
        %5099 = vmatpush1.msra.mxu0 %v4325
        %5100 = vmatprep.subr.mxu0 %v4330
        %5101 = vmatpush1.msra.mxu0 %v4329
        %5102 = vmatprep.subr.mxu0 %v4334
        %5103 = vmatpush1.msra.mxu0 %v4333
        %5104 = vmatprep.subr.mxu0 %v4338
        %5105 = vmatpush1.msra.mxu0 %v4337
        %5106 = vmatprep.subr.mxu0 %v4342
        %5107 = vmatpush1.msra.mxu0 %v4341
        %5108 = vmatprep.subr.mxu0 %v4346
        %5109 = vmatpush1.msra.mxu0 %v4345
        %5110 = vmatprep.subr.mxu0 %v4350
        %5111 = vmatpush1.msra.mxu0 %v4349
        %5112 = vmatprep.subr.mxu0 %v4354
        %5113 = vmatpush1.msra.mxu0 %v4353
        %5114 = vmatprep.subr.mxu0 %v4358
        %5115 = vmatpush1.msra.mxu0 %v4357
        %5116 = vmatprep.subr.mxu0 %v4362
        %5117 = vmatpush1.msra.mxu0 %v4361
        %5118 = vmatprep.subr.mxu0 %v4366
        %5119 = vmatpush1.msra.mxu0 %v4365
        %5120 = vmatprep.subr.mxu0 %v4370
        %5121 = vmatpush1.msra.mxu0 %v4369
        %5122 = vmatprep.subr.mxu0 %v4374
        %5123 = vmatpush1.msra.mxu0 %v4373
        %5124 = vmatprep.subr.mxu0 %v4378
        %5125 = vmatpush1.msra.mxu0 %v4377
        %5126 = vmatprep.mubr.f32.mxu0 %v4168
        %5127 = vmatmul.mubr.f32.gmra.mrb[0].mxu0 %v4166
        %v5128 = vpop.f32.mrb[0].mxu0
        %v5129 = vadd.f32 %v4916, %v5128
        %v5130 = vpop.f32.mrb[0].mxu0
        %v5131 = vadd.f32 %v4918, %v5130
        %5132 = vdwg.mxu0
        %5133 = vmatprep.subr.mxu0 %v4382
        %5134 = vmatpush1.msra.mxu0 %v4381
        %5135 = vmatprep.subr.mxu0 %v4386
        %5136 = vmatpush1.msra.mxu0 %v4385
        %5137 = vmatprep.subr.mxu0 %v4390
        %5138 = vmatpush1.msra.mxu0 %v4389
        %5139 = vmatprep.subr.mxu0 %v4394
        %5140 = vmatpush1.msra.mxu0 %v4393
        %5141 = vmatprep.subr.mxu0 %v4398
        %5142 = vmatpush1.msra.mxu0 %v4397
        %5143 = vmatprep.subr.mxu0 %v4402
        %5144 = vmatpush1.msra.mxu0 %v4401
        %5145 = vmatprep.subr.mxu0 %v4406
        %5146 = vmatpush1.msra.mxu0 %v4405
        %5147 = vmatprep.subr.mxu0 %v4410
        %5148 = vmatpush1.msra.mxu0 %v4409
        %5149 = vmatprep.subr.mxu0 %v4414
        %5150 = vmatpush1.msra.mxu0 %v4413
        %5151 = vmatprep.subr.mxu0 %v4418
        %5152 = vmatpush1.msra.mxu0 %v4417
        %5153 = vmatprep.subr.mxu0 %v4422
        %5154 = vmatpush1.msra.mxu0 %v4421
        %5155 = vmatprep.subr.mxu0 %v4426
        %5156 = vmatpush1.msra.mxu0 %v4425
        %5157 = vmatprep.subr.mxu0 %v4430
        %5158 = vmatpush1.msra.mxu0 %v4429
        %5159 = vmatprep.subr.mxu0 %v4434
        %5160 = vmatpush1.msra.mxu0 %v4433
        %5161 = vmatprep.subr.mxu0 %v4438
        %5162 = vmatpush1.msra.mxu0 %v4437
        %5163 = vmatprep.subr.mxu0 %v4442
        %5164 = vmatpush1.msra.mxu0 %v4441
        %5165 = vmatprep.subr.mxu0 %v4446
        %5166 = vmatpush1.msra.mxu0 %v4445
        %5167 = vmatprep.subr.mxu0 %v4450
        %5168 = vmatpush1.msra.mxu0 %v4449
        %5169 = vmatprep.subr.mxu0 %v4454
        %5170 = vmatpush1.msra.mxu0 %v4453
        %5171 = vmatprep.subr.mxu0 %v4458
        %5172 = vmatpush1.msra.mxu0 %v4457
        %5173 = vmatprep.subr.mxu0 %v4462
        %5174 = vmatpush1.msra.mxu0 %v4461
        %5175 = vmatprep.subr.mxu0 %v4466
        %5176 = vmatpush1.msra.mxu0 %v4465
        %5177 = vmatprep.subr.mxu0 %v4470
        %5178 = vmatpush1.msra.mxu0 %v4469
        %5179 = vmatprep.subr.mxu0 %v4474
        %5180 = vmatpush1.msra.mxu0 %v4473
        %5181 = vmatprep.subr.mxu0 %v4478
        %5182 = vmatpush1.msra.mxu0 %v4477
        %5183 = vmatprep.subr.mxu0 %v4482
        %5184 = vmatpush1.msra.mxu0 %v4481
        %5185 = vmatprep.subr.mxu0 %v4486
        %5186 = vmatpush1.msra.mxu0 %v4485
        %5187 = vmatprep.subr.mxu0 %v4490
        %5188 = vmatpush1.msra.mxu0 %v4489
        %5189 = vmatprep.subr.mxu0 %v4494
        %5190 = vmatpush1.msra.mxu0 %v4493
        %5191 = vmatprep.subr.mxu0 %v4498
        %5192 = vmatpush1.msra.mxu0 %v4497
        %5193 = vmatprep.subr.mxu0 %v4502
        %5194 = vmatpush1.msra.mxu0 %v4501
        %5195 = vmatprep.subr.mxu0 %v4506
        %5196 = vmatpush1.msra.mxu0 %v4505
        %5197 = vmatprep.mubr.f32.mxu0 %v4245
        %5198 = vmatmul.mubr.f32.gmra.mrb[0].mxu0 %v4243
        %v5199 = vpop.f32.mrb[0].mxu0
        %v5200 = vadd.f32 %v5129, %v5199
        %v5201 = vpop.f32.mrb[0].mxu0
        %v5202 = vadd.f32 %v5131, %v5201
        %5203 = vdwg.mxu0
        %5204 = vmatprep.subr.mxu0 %v4256
        %5205 = vmatpush1.msra.mxu0 %v4255
        %5206 = vmatprep.subr.mxu0 %v4260
        %5207 = vmatpush1.msra.mxu0 %v4259
        %5208 = vmatprep.subr.mxu0 %v4264
        %5209 = vmatpush1.msra.mxu0 %v4263
        %5210 = vmatprep.subr.mxu0 %v4268
        %5211 = vmatpush1.msra.mxu0 %v4267
        %5212 = vmatprep.subr.mxu0 %v4272
        %5213 = vmatpush1.msra.mxu0 %v4271
        %5214 = vmatprep.subr.mxu0 %v4276
        %5215 = vmatpush1.msra.mxu0 %v4275
        %5216 = vmatprep.subr.mxu0 %v4280
        %5217 = vmatpush1.msra.mxu0 %v4279
        %5218 = vmatprep.subr.mxu0 %v4284
        %5219 = vmatpush1.msra.mxu0 %v4283
        %5220 = vmatprep.subr.mxu0 %v4288
        %5221 = vmatpush1.msra.mxu0 %v4287
        %5222 = vmatprep.subr.mxu0 %v4292
        %5223 = vmatpush1.msra.mxu0 %v4291
        %5224 = vmatprep.subr.mxu0 %v4296
        %5225 = vmatpush1.msra.mxu0 %v4295
        %5226 = vmatprep.subr.mxu0 %v4300
        %5227 = vmatpush1.msra.mxu0 %v4299
        %5228 = vmatprep.subr.mxu0 %v4304
        %5229 = vmatpush1.msra.mxu0 %v4303
        %5230 = vmatprep.subr.mxu0 %v4308
        %5231 = vmatpush1.msra.mxu0 %v4307
        %5232 = vmatprep.subr.mxu0 %v4312
        %5233 = vmatpush1.msra.mxu0 %v4311
        %5234 = vmatprep.subr.mxu0 %v4316
        %5235 = vmatpush1.msra.mxu0 %v4315
        %5236 = vmatprep.subr.mxu0 %v4320
        %5237 = vmatpush1.msra.mxu0 %v4319
        %5238 = vmatprep.subr.mxu0 %v4324
        %5239 = vmatpush1.msra.mxu0 %v4323
        %5240 = vmatprep.subr.mxu0 %v4328
        %5241 = vmatpush1.msra.mxu0 %v4327
        %5242 = vmatprep.subr.mxu0 %v4332
        %5243 = vmatpush1.msra.mxu0 %v4331
        %5244 = vmatprep.subr.mxu0 %v4336
        %5245 = vmatpush1.msra.mxu0 %v4335
        %5246 = vmatprep.subr.mxu0 %v4340
        %5247 = vmatpush1.msra.mxu0 %v4339
        %5248 = vmatprep.subr.mxu0 %v4344
        %5249 = vmatpush1.msra.mxu0 %v4343
        %5250 = vmatprep.subr.mxu0 %v4348
        %5251 = vmatpush1.msra.mxu0 %v4347
        %5252 = vmatprep.subr.mxu0 %v4352
        %5253 = vmatpush1.msra.mxu0 %v4351
        %5254 = vmatprep.subr.mxu0 %v4356
        %5255 = vmatpush1.msra.mxu0 %v4355
        %5256 = vmatprep.subr.mxu0 %v4360
        %5257 = vmatpush1.msra.mxu0 %v4359
        %5258 = vmatprep.subr.mxu0 %v4364
        %5259 = vmatpush1.msra.mxu0 %v4363
        %5260 = vmatprep.subr.mxu0 %v4368
        %5261 = vmatpush1.msra.mxu0 %v4367
        %5262 = vmatprep.subr.mxu0 %v4372
        %5263 = vmatpush1.msra.mxu0 %v4371
        %5264 = vmatprep.subr.mxu0 %v4376
        %5265 = vmatpush1.msra.mxu0 %v4375
        %5266 = vmatprep.subr.mxu0 %v4380
        %5267 = vmatpush1.msra.mxu0 %v4379
        %5268 = vmatprep.mubr.f32.mxu0 %v4168
        %5269 = vmatmul.mubr.f32.gmra.mrb[0].mxu0 %v4166
        %v5270 = vpop.f32.mrb[0].mxu0
        %v5271 = vadd.f32 %v5058, %v5270
        %v5272 = vpop.f32.mrb[0].mxu0
        %v5273 = vadd.f32 %v5060, %v5272
        %5274 = vdwg.mxu0
        %5275 = vmatprep.subr.mxu0 %v4384
        %5276 = vmatpush1.msra.mxu0 %v4383
        %5277 = vmatprep.subr.mxu0 %v4388
        %5278 = vmatpush1.msra.mxu0 %v4387
        %5279 = vmatprep.subr.mxu0 %v4392
        %5280 = vmatpush1.msra.mxu0 %v4391
        %5281 = vmatprep.subr.mxu0 %v4396
        %5282 = vmatpush1.msra.mxu0 %v4395
        %5283 = vmatprep.subr.mxu0 %v4400
        %5284 = vmatpush1.msra.mxu0 %v4399
        %5285 = vmatprep.subr.mxu0 %v4404
        %5286 = vmatpush1.msra.mxu0 %v4403
        %5287 = vmatprep.subr.mxu0 %v4408
        %5288 = vmatpush1.msra.mxu0 %v4407
        %5289 = vmatprep.subr.mxu0 %v4412
        %5290 = vmatpush1.msra.mxu0 %v4411
        %5291 = vmatprep.subr.mxu0 %v4416
        %5292 = vmatpush1.msra.mxu0 %v4415
        %5293 = vmatprep.subr.mxu0 %v4420
        %5294 = vmatpush1.msra.mxu0 %v4419
        %5295 = vmatprep.subr.mxu0 %v4424
        %5296 = vmatpush1.msra.mxu0 %v4423
        %5297 = vmatprep.subr.mxu0 %v4428
        %5298 = vmatpush1.msra.mxu0 %v4427
        %5299 = vmatprep.subr.mxu0 %v4432
        %5300 = vmatpush1.msra.mxu0 %v4431
        %5301 = vmatprep.subr.mxu0 %v4436
        %5302 = vmatpush1.msra.mxu0 %v4435
        %5303 = vmatprep.subr.mxu0 %v4440
        %5304 = vmatpush1.msra.mxu0 %v4439
        %5305 = vmatprep.subr.mxu0 %v4444
        %5306 = vmatpush1.msra.mxu0 %v4443
        %5307 = vmatprep.subr.mxu0 %v4448
        %5308 = vmatpush1.msra.mxu0 %v4447
        %5309 = vmatprep.subr.mxu0 %v4452
        %5310 = vmatpush1.msra.mxu0 %v4451
        %5311 = vmatprep.subr.mxu0 %v4456
        %5312 = vmatpush1.msra.mxu0 %v4455
        %5313 = vmatprep.subr.mxu0 %v4460
        %5314 = vmatpush1.msra.mxu0 %v4459
        %5315 = vmatprep.subr.mxu0 %v4464
        %5316 = vmatpush1.msra.mxu0 %v4463
        %5317 = vmatprep.subr.mxu0 %v4468
        %5318 = vmatpush1.msra.mxu0 %v4467
        %5319 = vmatprep.subr.mxu0 %v4472
        %5320 = vmatpush1.msra.mxu0 %v4471
        %5321 = vmatprep.subr.mxu0 %v4476
        %5322 = vmatpush1.msra.mxu0 %v4475
        %5323 = vmatprep.subr.mxu0 %v4480
        %5324 = vmatpush1.msra.mxu0 %v4479
        %5325 = vmatprep.subr.mxu0 %v4484
        %5326 = vmatpush1.msra.mxu0 %v4483
        %5327 = vmatprep.subr.mxu0 %v4488
        %5328 = vmatpush1.msra.mxu0 %v4487
        %5329 = vmatprep.subr.mxu0 %v4492
        %5330 = vmatpush1.msra.mxu0 %v4491
        %5331 = vmatprep.subr.mxu0 %v4496
        %5332 = vmatpush1.msra.mxu0 %v4495
        %5333 = vmatprep.subr.mxu0 %v4500
        %5334 = vmatpush1.msra.mxu0 %v4499
        %5335 = vmatprep.subr.mxu0 %v4504
        %5336 = vmatpush1.msra.mxu0 %v4503
        %5337 = vmatprep.subr.mxu0 %v4508
        %5338 = vmatpush1.msra.mxu0 %v4507
        %5339 = vmatprep.mubr.f32.mxu0 %v4245
        %5340 = vmatmul.mubr.f32.gmra.mrb[0].mxu0 %v4243
        %v5341 = vpop.f32.mrb[0].mxu0
        %v5342 = vadd.f32 %v5271, %v5341
        %v5343 = vpop.f32.mrb[0].mxu0
        %v5344 = vadd.f32 %v5273, %v5343
        %5345 = vdwg.mxu0
        %s5346 = scalar_lea.vmem [#allocation8], 4096
        %v5347 = vld [vmem:[%s5346] sm:$0xff]
        %v5348 = vld [vmem:[%s5346 + $0x8] sm:$0xff]
        %v5349 = vld [vmem:[%s5346 + $0x10] sm:$0xff]
        %v5350 = vld [vmem:[%s5346 + $0x18] sm:$0xff]
        %v5351 = vld [vmem:[%s5346 + $0x20] sm:$0xff]
        %v5352 = vld [vmem:[%s5346 + $0x28] sm:$0xff]
        %v5353 = vld [vmem:[%s5346 + $0x30] sm:$0xff]
        %v5354 = vld [vmem:[%s5346 + $0x38] sm:$0xff]
        %v5355 = vld [vmem:[%s5346 + $0x40] sm:$0xff]
        %v5356 = vld [vmem:[%s5346 + $0x48] sm:$0xff]
        %v5357 = vld [vmem:[%s5346 + $0x50] sm:$0xff]
        %v5358 = vld [vmem:[%s5346 + $0x58] sm:$0xff]
        %v5359 = vld [vmem:[%s5346 + $0x60] sm:$0xff]
        %v5360 = vld [vmem:[%s5346 + $0x68] sm:$0xff]
        %v5361 = vld [vmem:[%s5346 + $0x70] sm:$0xff]
        %v5362 = vld [vmem:[%s5346 + $0x78] sm:$0xff]
        %v5363 = vld [vmem:[%s5346 + $0x80] sm:$0xff]
        %v5364 = vld [vmem:[%s5346 + $0x88] sm:$0xff]
        %v5365 = vld [vmem:[%s5346 + $0x90] sm:$0xff]
        %v5366 = vld [vmem:[%s5346 + $0x98] sm:$0xff]
        %v5367 = vld [vmem:[%s5346 + $0xa0] sm:$0xff]
        %v5368 = vld [vmem:[%s5346 + $0xa8] sm:$0xff]
        %v5369 = vld [vmem:[%s5346 + $0xb0] sm:$0xff]
        %v5370 = vld [vmem:[%s5346 + $0xb8] sm:$0xff]
        %v5371 = vld [vmem:[%s5346 + $0xc0] sm:$0xff]
        %v5372 = vld [vmem:[%s5346 + $0xc8] sm:$0xff]
        %v5373 = vld [vmem:[%s5346 + $0xd0] sm:$0xff]
        %v5374 = vld [vmem:[%s5346 + $0xd8] sm:$0xff]
        %v5375 = vld [vmem:[%s5346 + $0xe0] sm:$0xff]
        %v5376 = vld [vmem:[%s5346 + $0xe8] sm:$0xff]
        %v5377 = vld [vmem:[%s5346 + $0xf0] sm:$0xff]
        %v5378 = vld [vmem:[%s5346 + $0xf8] sm:$0xff]
        %v5379 = vld [vmem:[%s5346 + $0x100] sm:$0xff]
        %v5380 = vld [vmem:[%s5346 + $0x108] sm:$0xff]
        %v5381 = vld [vmem:[%s5346 + $0x110] sm:$0xff]
        %v5382 = vld [vmem:[%s5346 + $0x118] sm:$0xff]
        %v5383 = vld [vmem:[%s5346 + $0x120] sm:$0xff]
        %v5384 = vld [vmem:[%s5346 + $0x128] sm:$0xff]
        %v5385 = vld [vmem:[%s5346 + $0x130] sm:$0xff]
        %v5386 = vld [vmem:[%s5346 + $0x138] sm:$0xff]
        %v5387 = vld [vmem:[%s5346 + $0x140] sm:$0xff]
        %v5388 = vld [vmem:[%s5346 + $0x148] sm:$0xff]
        %v5389 = vld [vmem:[%s5346 + $0x150] sm:$0xff]
        %v5390 = vld [vmem:[%s5346 + $0x158] sm:$0xff]
        %v5391 = vld [vmem:[%s5346 + $0x160] sm:$0xff]
        %v5392 = vld [vmem:[%s5346 + $0x168] sm:$0xff]
        %v5393 = vld [vmem:[%s5346 + $0x170] sm:$0xff]
        %v5394 = vld [vmem:[%s5346 + $0x178] sm:$0xff]
        %v5395 = vld [vmem:[%s5346 + $0x180] sm:$0xff]
        %v5396 = vld [vmem:[%s5346 + $0x188] sm:$0xff]
        %v5397 = vld [vmem:[%s5346 + $0x190] sm:$0xff]
        %v5398 = vld [vmem:[%s5346 + $0x198] sm:$0xff]
        %v5399 = vld [vmem:[%s5346 + $0x1a0] sm:$0xff]
        %v5400 = vld [vmem:[%s5346 + $0x1a8] sm:$0xff]
        %v5401 = vld [vmem:[%s5346 + $0x1b0] sm:$0xff]
        %v5402 = vld [vmem:[%s5346 + $0x1b8] sm:$0xff]
        %v5403 = vld [vmem:[%s5346 + $0x1c0] sm:$0xff]
        %v5404 = vld [vmem:[%s5346 + $0x1c8] sm:$0xff]
        %v5405 = vld [vmem:[%s5346 + $0x1d0] sm:$0xff]
        %v5406 = vld [vmem:[%s5346 + $0x1d8] sm:$0xff]
        %v5407 = vld [vmem:[%s5346 + $0x1e0] sm:$0xff]
        %v5408 = vld [vmem:[%s5346 + $0x1e8] sm:$0xff]
        %v5409 = vld [vmem:[%s5346 + $0x1f0] sm:$0xff]
        %v5410 = vld [vmem:[%s5346 + $0x1f8] sm:$0xff]
        %v5411 = vld [vmem:[%s5346 + $0x200] sm:$0xff]
        %v5412 = vld [vmem:[%s5346 + $0x208] sm:$0xff]
        %v5413 = vld [vmem:[%s5346 + $0x210] sm:$0xff]
        %v5414 = vld [vmem:[%s5346 + $0x218] sm:$0xff]
        %v5415 = vld [vmem:[%s5346 + $0x220] sm:$0xff]
        %v5416 = vld [vmem:[%s5346 + $0x228] sm:$0xff]
        %v5417 = vld [vmem:[%s5346 + $0x230] sm:$0xff]
        %v5418 = vld [vmem:[%s5346 + $0x238] sm:$0xff]
        %v5419 = vld [vmem:[%s5346 + $0x240] sm:$0xff]
        %v5420 = vld [vmem:[%s5346 + $0x248] sm:$0xff]
        %v5421 = vld [vmem:[%s5346 + $0x250] sm:$0xff]
        %v5422 = vld [vmem:[%s5346 + $0x258] sm:$0xff]
        %v5423 = vld [vmem:[%s5346 + $0x260] sm:$0xff]
        %v5424 = vld [vmem:[%s5346 + $0x268] sm:$0xff]
        %v5425 = vld [vmem:[%s5346 + $0x270] sm:$0xff]
        %v5426 = vld [vmem:[%s5346 + $0x278] sm:$0xff]
        %v5427 = vld [vmem:[%s5346 + $0x280] sm:$0xff]
        %v5428 = vld [vmem:[%s5346 + $0x288] sm:$0xff]
        %v5429 = vld [vmem:[%s5346 + $0x290] sm:$0xff]
        %v5430 = vld [vmem:[%s5346 + $0x298] sm:$0xff]
        %v5431 = vld [vmem:[%s5346 + $0x2a0] sm:$0xff]
        %v5432 = vld [vmem:[%s5346 + $0x2a8] sm:$0xff]
        %v5433 = vld [vmem:[%s5346 + $0x2b0] sm:$0xff]
        %v5434 = vld [vmem:[%s5346 + $0x2b8] sm:$0xff]
        %v5435 = vld [vmem:[%s5346 + $0x2c0] sm:$0xff]
        %v5436 = vld [vmem:[%s5346 + $0x2c8] sm:$0xff]
        %v5437 = vld [vmem:[%s5346 + $0x2d0] sm:$0xff]
        %v5438 = vld [vmem:[%s5346 + $0x2d8] sm:$0xff]
        %v5439 = vld [vmem:[%s5346 + $0x2e0] sm:$0xff]
        %v5440 = vld [vmem:[%s5346 + $0x2e8] sm:$0xff]
        %v5441 = vld [vmem:[%s5346 + $0x2f0] sm:$0xff]
        %v5442 = vld [vmem:[%s5346 + $0x2f8] sm:$0xff]
        %v5443 = vld [vmem:[%s5346 + $0x300] sm:$0xff]
        %v5444 = vld [vmem:[%s5346 + $0x308] sm:$0xff]
        %v5445 = vld [vmem:[%s5346 + $0x310] sm:$0xff]
        %v5446 = vld [vmem:[%s5346 + $0x318] sm:$0xff]
        %v5447 = vld [vmem:[%s5346 + $0x320] sm:$0xff]
        %v5448 = vld [vmem:[%s5346 + $0x328] sm:$0xff]
        %v5449 = vld [vmem:[%s5346 + $0x330] sm:$0xff]
        %v5450 = vld [vmem:[%s5346 + $0x338] sm:$0xff]
        %v5451 = vld [vmem:[%s5346 + $0x340] sm:$0xff]
        %v5452 = vld [vmem:[%s5346 + $0x348] sm:$0xff]
        %v5453 = vld [vmem:[%s5346 + $0x350] sm:$0xff]
        %v5454 = vld [vmem:[%s5346 + $0x358] sm:$0xff]
        %v5455 = vld [vmem:[%s5346 + $0x360] sm:$0xff]
        %v5456 = vld [vmem:[%s5346 + $0x368] sm:$0xff]
        %v5457 = vld [vmem:[%s5346 + $0x370] sm:$0xff]
        %v5458 = vld [vmem:[%s5346 + $0x378] sm:$0xff]
        %v5459 = vld [vmem:[%s5346 + $0x380] sm:$0xff]
        %v5460 = vld [vmem:[%s5346 + $0x388] sm:$0xff]
        %v5461 = vld [vmem:[%s5346 + $0x390] sm:$0xff]
        %v5462 = vld [vmem:[%s5346 + $0x398] sm:$0xff]
        %v5463 = vld [vmem:[%s5346 + $0x3a0] sm:$0xff]
        %v5464 = vld [vmem:[%s5346 + $0x3a8] sm:$0xff]
        %v5465 = vld [vmem:[%s5346 + $0x3b0] sm:$0xff]
        %v5466 = vld [vmem:[%s5346 + $0x3b8] sm:$0xff]
        %v5467 = vld [vmem:[%s5346 + $0x3c0] sm:$0xff]
        %v5468 = vld [vmem:[%s5346 + $0x3c8] sm:$0xff]
        %v5469 = vld [vmem:[%s5346 + $0x3d0] sm:$0xff]
        %v5470 = vld [vmem:[%s5346 + $0x3d8] sm:$0xff]
        %v5471 = vld [vmem:[%s5346 + $0x3e0] sm:$0xff]
        %v5472 = vld [vmem:[%s5346 + $0x3e8] sm:$0xff]
        %v5473 = vld [vmem:[%s5346 + $0x3f0] sm:$0xff]
        %v5474 = vld [vmem:[%s5346 + $0x3f8] sm:$0xff]
        %v5475 = vld [vmem:[%s5346 + $0x400] sm:$0xff]
        %v5476 = vld [vmem:[%s5346 + $0x408] sm:$0xff]
        %v5477 = vld [vmem:[%s5346 + $0x410] sm:$0xff]
        %v5478 = vld [vmem:[%s5346 + $0x418] sm:$0xff]
        %v5479 = vld [vmem:[%s5346 + $0x420] sm:$0xff]
        %v5480 = vld [vmem:[%s5346 + $0x428] sm:$0xff]
        %v5481 = vld [vmem:[%s5346 + $0x430] sm:$0xff]
        %v5482 = vld [vmem:[%s5346 + $0x438] sm:$0xff]
        %v5483 = vld [vmem:[%s5346 + $0x440] sm:$0xff]
        %v5484 = vld [vmem:[%s5346 + $0x448] sm:$0xff]
        %v5485 = vld [vmem:[%s5346 + $0x450] sm:$0xff]
        %v5486 = vld [vmem:[%s5346 + $0x458] sm:$0xff]
        %v5487 = vld [vmem:[%s5346 + $0x460] sm:$0xff]
        %v5488 = vld [vmem:[%s5346 + $0x468] sm:$0xff]
        %v5489 = vld [vmem:[%s5346 + $0x470] sm:$0xff]
        %v5490 = vld [vmem:[%s5346 + $0x478] sm:$0xff]
        %v5491 = vld [vmem:[%s5346 + $0x480] sm:$0xff]
        %v5492 = vld [vmem:[%s5346 + $0x488] sm:$0xff]
        %v5493 = vld [vmem:[%s5346 + $0x490] sm:$0xff]
        %v5494 = vld [vmem:[%s5346 + $0x498] sm:$0xff]
        %v5495 = vld [vmem:[%s5346 + $0x4a0] sm:$0xff]
        %v5496 = vld [vmem:[%s5346 + $0x4a8] sm:$0xff]
        %v5497 = vld [vmem:[%s5346 + $0x4b0] sm:$0xff]
        %v5498 = vld [vmem:[%s5346 + $0x4b8] sm:$0xff]
        %v5499 = vld [vmem:[%s5346 + $0x4c0] sm:$0xff]
        %v5500 = vld [vmem:[%s5346 + $0x4c8] sm:$0xff]
        %v5501 = vld [vmem:[%s5346 + $0x4d0] sm:$0xff]
        %v5502 = vld [vmem:[%s5346 + $0x4d8] sm:$0xff]
        %v5503 = vld [vmem:[%s5346 + $0x4e0] sm:$0xff]
        %v5504 = vld [vmem:[%s5346 + $0x4e8] sm:$0xff]
        %v5505 = vld [vmem:[%s5346 + $0x4f0] sm:$0xff]
        %v5506 = vld [vmem:[%s5346 + $0x4f8] sm:$0xff]
        %v5507 = vld [vmem:[%s5346 + $0x500] sm:$0xff]
        %v5508 = vld [vmem:[%s5346 + $0x508] sm:$0xff]
        %v5509 = vld [vmem:[%s5346 + $0x510] sm:$0xff]
        %v5510 = vld [vmem:[%s5346 + $0x518] sm:$0xff]
        %v5511 = vld [vmem:[%s5346 + $0x520] sm:$0xff]
        %v5512 = vld [vmem:[%s5346 + $0x528] sm:$0xff]
        %v5513 = vld [vmem:[%s5346 + $0x530] sm:$0xff]
        %v5514 = vld [vmem:[%s5346 + $0x538] sm:$0xff]
        %v5515 = vld [vmem:[%s5346 + $0x540] sm:$0xff]
        %v5516 = vld [vmem:[%s5346 + $0x548] sm:$0xff]
        %v5517 = vld [vmem:[%s5346 + $0x550] sm:$0xff]
        %v5518 = vld [vmem:[%s5346 + $0x558] sm:$0xff]
        %v5519 = vld [vmem:[%s5346 + $0x560] sm:$0xff]
        %v5520 = vld [vmem:[%s5346 + $0x568] sm:$0xff]
        %v5521 = vld [vmem:[%s5346 + $0x570] sm:$0xff]
        %v5522 = vld [vmem:[%s5346 + $0x578] sm:$0xff]
        %v5523 = vld [vmem:[%s5346 + $0x580] sm:$0xff]
        %v5524 = vld [vmem:[%s5346 + $0x588] sm:$0xff]
        %v5525 = vld [vmem:[%s5346 + $0x590] sm:$0xff]
        %v5526 = vld [vmem:[%s5346 + $0x598] sm:$0xff]
        %v5527 = vld [vmem:[%s5346 + $0x5a0] sm:$0xff]
        %v5528 = vld [vmem:[%s5346 + $0x5a8] sm:$0xff]
        %v5529 = vld [vmem:[%s5346 + $0x5b0] sm:$0xff]
        %v5530 = vld [vmem:[%s5346 + $0x5b8] sm:$0xff]
        %v5531 = vld [vmem:[%s5346 + $0x5c0] sm:$0xff]
        %v5532 = vld [vmem:[%s5346 + $0x5c8] sm:$0xff]
        %v5533 = vld [vmem:[%s5346 + $0x5d0] sm:$0xff]
        %v5534 = vld [vmem:[%s5346 + $0x5d8] sm:$0xff]
        %v5535 = vld [vmem:[%s5346 + $0x5e0] sm:$0xff]
        %v5536 = vld [vmem:[%s5346 + $0x5e8] sm:$0xff]
        %v5537 = vld [vmem:[%s5346 + $0x5f0] sm:$0xff]
        %v5538 = vld [vmem:[%s5346 + $0x5f8] sm:$0xff]
        %v5539 = vld [vmem:[%s5346 + $0x600] sm:$0xff]
        %v5540 = vld [vmem:[%s5346 + $0x608] sm:$0xff]
        %v5541 = vld [vmem:[%s5346 + $0x610] sm:$0xff]
        %v5542 = vld [vmem:[%s5346 + $0x618] sm:$0xff]
        %v5543 = vld [vmem:[%s5346 + $0x620] sm:$0xff]
        %v5544 = vld [vmem:[%s5346 + $0x628] sm:$0xff]
        %v5545 = vld [vmem:[%s5346 + $0x630] sm:$0xff]
        %v5546 = vld [vmem:[%s5346 + $0x638] sm:$0xff]
        %v5547 = vld [vmem:[%s5346 + $0x640] sm:$0xff]
        %v5548 = vld [vmem:[%s5346 + $0x648] sm:$0xff]
        %v5549 = vld [vmem:[%s5346 + $0x650] sm:$0xff]
        %v5550 = vld [vmem:[%s5346 + $0x658] sm:$0xff]
        %v5551 = vld [vmem:[%s5346 + $0x660] sm:$0xff]
        %v5552 = vld [vmem:[%s5346 + $0x668] sm:$0xff]
        %v5553 = vld [vmem:[%s5346 + $0x670] sm:$0xff]
        %v5554 = vld [vmem:[%s5346 + $0x678] sm:$0xff]
        %v5555 = vld [vmem:[%s5346 + $0x680] sm:$0xff]
        %v5556 = vld [vmem:[%s5346 + $0x688] sm:$0xff]
        %v5557 = vld [vmem:[%s5346 + $0x690] sm:$0xff]
        %v5558 = vld [vmem:[%s5346 + $0x698] sm:$0xff]
        %v5559 = vld [vmem:[%s5346 + $0x6a0] sm:$0xff]
        %v5560 = vld [vmem:[%s5346 + $0x6a8] sm:$0xff]
        %v5561 = vld [vmem:[%s5346 + $0x6b0] sm:$0xff]
        %v5562 = vld [vmem:[%s5346 + $0x6b8] sm:$0xff]
        %v5563 = vld [vmem:[%s5346 + $0x6c0] sm:$0xff]
        %v5564 = vld [vmem:[%s5346 + $0x6c8] sm:$0xff]
        %v5565 = vld [vmem:[%s5346 + $0x6d0] sm:$0xff]
        %v5566 = vld [vmem:[%s5346 + $0x6d8] sm:$0xff]
        %v5567 = vld [vmem:[%s5346 + $0x6e0] sm:$0xff]
        %v5568 = vld [vmem:[%s5346 + $0x6e8] sm:$0xff]
        %v5569 = vld [vmem:[%s5346 + $0x6f0] sm:$0xff]
        %v5570 = vld [vmem:[%s5346 + $0x6f8] sm:$0xff]
        %v5571 = vld [vmem:[%s5346 + $0x700] sm:$0xff]
        %v5572 = vld [vmem:[%s5346 + $0x708] sm:$0xff]
        %v5573 = vld [vmem:[%s5346 + $0x710] sm:$0xff]
        %v5574 = vld [vmem:[%s5346 + $0x718] sm:$0xff]
        %v5575 = vld [vmem:[%s5346 + $0x720] sm:$0xff]
        %v5576 = vld [vmem:[%s5346 + $0x728] sm:$0xff]
        %v5577 = vld [vmem:[%s5346 + $0x730] sm:$0xff]
        %v5578 = vld [vmem:[%s5346 + $0x738] sm:$0xff]
        %v5579 = vld [vmem:[%s5346 + $0x740] sm:$0xff]
        %v5580 = vld [vmem:[%s5346 + $0x748] sm:$0xff]
        %v5581 = vld [vmem:[%s5346 + $0x750] sm:$0xff]
        %v5582 = vld [vmem:[%s5346 + $0x758] sm:$0xff]
        %v5583 = vld [vmem:[%s5346 + $0x760] sm:$0xff]
        %v5584 = vld [vmem:[%s5346 + $0x768] sm:$0xff]
        %v5585 = vld [vmem:[%s5346 + $0x770] sm:$0xff]
        %v5586 = vld [vmem:[%s5346 + $0x778] sm:$0xff]
        %v5587 = vld [vmem:[%s5346 + $0x780] sm:$0xff]
        %v5588 = vld [vmem:[%s5346 + $0x788] sm:$0xff]
        %v5589 = vld [vmem:[%s5346 + $0x790] sm:$0xff]
        %v5590 = vld [vmem:[%s5346 + $0x798] sm:$0xff]
        %v5591 = vld [vmem:[%s5346 + $0x7a0] sm:$0xff]
        %v5592 = vld [vmem:[%s5346 + $0x7a8] sm:$0xff]
        %v5593 = vld [vmem:[%s5346 + $0x7b0] sm:$0xff]
        %v5594 = vld [vmem:[%s5346 + $0x7b8] sm:$0xff]
        %v5595 = vld [vmem:[%s5346 + $0x7c0] sm:$0xff]
        %v5596 = vld [vmem:[%s5346 + $0x7c8] sm:$0xff]
        %v5597 = vld [vmem:[%s5346 + $0x7d0] sm:$0xff]
        %v5598 = vld [vmem:[%s5346 + $0x7d8] sm:$0xff]
        %v5599 = vld [vmem:[%s5346 + $0x7e0] sm:$0xff]
        %v5600 = vld [vmem:[%s5346 + $0x7e8] sm:$0xff]
        %v5601 = vld [vmem:[%s5346 + $0x7f0] sm:$0xff]
        %v5602 = vld [vmem:[%s5346 + $0x7f8] sm:$0xff]
        %5603 = vmatprep.subr.mxu0 %v5348
        %5604 = vmatpush1.msra.mxu0 %v5347
        %5605 = vmatprep.subr.mxu0 %v5352
        %5606 = vmatpush1.msra.mxu0 %v5351
        %5607 = vmatprep.subr.mxu0 %v5356
        %5608 = vmatpush1.msra.mxu0 %v5355
        %5609 = vmatprep.subr.mxu0 %v5360
        %5610 = vmatpush1.msra.mxu0 %v5359
        %5611 = vmatprep.subr.mxu0 %v5364
        %5612 = vmatpush1.msra.mxu0 %v5363
        %5613 = vmatprep.subr.mxu0 %v5368
        %5614 = vmatpush1.msra.mxu0 %v5367
        %5615 = vmatprep.subr.mxu0 %v5372
        %5616 = vmatpush1.msra.mxu0 %v5371
        %5617 = vmatprep.subr.mxu0 %v5376
        %5618 = vmatpush1.msra.mxu0 %v5375
        %5619 = vmatprep.subr.mxu0 %v5380
        %5620 = vmatpush1.msra.mxu0 %v5379
        %5621 = vmatprep.subr.mxu0 %v5384
        %5622 = vmatpush1.msra.mxu0 %v5383
        %5623 = vmatprep.subr.mxu0 %v5388
        %5624 = vmatpush1.msra.mxu0 %v5387
        %5625 = vmatprep.subr.mxu0 %v5392
        %5626 = vmatpush1.msra.mxu0 %v5391
        %5627 = vmatprep.subr.mxu0 %v5396
        %5628 = vmatpush1.msra.mxu0 %v5395
        %5629 = vmatprep.subr.mxu0 %v5400
        %5630 = vmatpush1.msra.mxu0 %v5399
        %5631 = vmatprep.subr.mxu0 %v5404
        %5632 = vmatpush1.msra.mxu0 %v5403
        %5633 = vmatprep.subr.mxu0 %v5408
        %5634 = vmatpush1.msra.mxu0 %v5407
        %5635 = vmatprep.subr.mxu0 %v5412
        %5636 = vmatpush1.msra.mxu0 %v5411
        %5637 = vmatprep.subr.mxu0 %v5416
        %5638 = vmatpush1.msra.mxu0 %v5415
        %5639 = vmatprep.subr.mxu0 %v5420
        %5640 = vmatpush1.msra.mxu0 %v5419
        %5641 = vmatprep.subr.mxu0 %v5424
        %5642 = vmatpush1.msra.mxu0 %v5423
        %5643 = vmatprep.subr.mxu0 %v5428
        %5644 = vmatpush1.msra.mxu0 %v5427
        %5645 = vmatprep.subr.mxu0 %v5432
        %5646 = vmatpush1.msra.mxu0 %v5431
        %5647 = vmatprep.subr.mxu0 %v5436
        %5648 = vmatpush1.msra.mxu0 %v5435
        %5649 = vmatprep.subr.mxu0 %v5440
        %5650 = vmatpush1.msra.mxu0 %v5439
        %5651 = vmatprep.subr.mxu0 %v5444
        %5652 = vmatpush1.msra.mxu0 %v5443
        %5653 = vmatprep.subr.mxu0 %v5448
        %5654 = vmatpush1.msra.mxu0 %v5447
        %5655 = vmatprep.subr.mxu0 %v5452
        %5656 = vmatpush1.msra.mxu0 %v5451
        %5657 = vmatprep.subr.mxu0 %v5456
        %5658 = vmatpush1.msra.mxu0 %v5455
        %5659 = vmatprep.subr.mxu0 %v5460
        %5660 = vmatpush1.msra.mxu0 %v5459
        %5661 = vmatprep.subr.mxu0 %v5464
        %5662 = vmatpush1.msra.mxu0 %v5463
        %5663 = vmatprep.subr.mxu0 %v5468
        %5664 = vmatpush1.msra.mxu0 %v5467
        %5665 = vmatprep.subr.mxu0 %v5472
        %5666 = vmatpush1.msra.mxu0 %v5471
        %5667 = vmatprep.mubr.f32.mxu0 %v4174
        %5668 = vmatmul.mubr.f32.gmra.mrb[0].mxu0 %v4172
        %v5669 = vpop.f32.mrb[0].mxu0
        %v5670 = vadd.f32 0.0, %v5669
        %v5671 = vpop.f32.mrb[0].mxu0
        %v5672 = vadd.f32 0.0, %v5671
        %5673 = vdwg.mxu0
        %5674 = vmatprep.subr.mxu0 %v5476
        %5675 = vmatpush1.msra.mxu0 %v5475
        %5676 = vmatprep.subr.mxu0 %v5480
        %5677 = vmatpush1.msra.mxu0 %v5479
        %5678 = vmatprep.subr.mxu0 %v5484
        %5679 = vmatpush1.msra.mxu0 %v5483
        %5680 = vmatprep.subr.mxu0 %v5488
        %5681 = vmatpush1.msra.mxu0 %v5487
        %5682 = vmatprep.subr.mxu0 %v5492
        %5683 = vmatpush1.msra.mxu0 %v5491
        %5684 = vmatprep.subr.mxu0 %v5496
        %5685 = vmatpush1.msra.mxu0 %v5495
        %5686 = vmatprep.subr.mxu0 %v5500
        %5687 = vmatpush1.msra.mxu0 %v5499
        %5688 = vmatprep.subr.mxu0 %v5504
        %5689 = vmatpush1.msra.mxu0 %v5503
        %5690 = vmatprep.subr.mxu0 %v5508
        %5691 = vmatpush1.msra.mxu0 %v5507
        %5692 = vmatprep.subr.mxu0 %v5512
        %5693 = vmatpush1.msra.mxu0 %v5511
        %5694 = vmatprep.subr.mxu0 %v5516
        %5695 = vmatpush1.msra.mxu0 %v5515
        %5696 = vmatprep.subr.mxu0 %v5520
        %5697 = vmatpush1.msra.mxu0 %v5519
        %5698 = vmatprep.subr.mxu0 %v5524
        %5699 = vmatpush1.msra.mxu0 %v5523
        %5700 = vmatprep.subr.mxu0 %v5528
        %5701 = vmatpush1.msra.mxu0 %v5527
        %5702 = vmatprep.subr.mxu0 %v5532
        %5703 = vmatpush1.msra.mxu0 %v5531
        %5704 = vmatprep.subr.mxu0 %v5536
        %5705 = vmatpush1.msra.mxu0 %v5535
        %5706 = vmatprep.subr.mxu0 %v5540
        %5707 = vmatpush1.msra.mxu0 %v5539
        %5708 = vmatprep.subr.mxu0 %v5544
        %5709 = vmatpush1.msra.mxu0 %v5543
        %5710 = vmatprep.subr.mxu0 %v5548
        %5711 = vmatpush1.msra.mxu0 %v5547
        %5712 = vmatprep.subr.mxu0 %v5552
        %5713 = vmatpush1.msra.mxu0 %v5551
        %5714 = vmatprep.subr.mxu0 %v5556
        %5715 = vmatpush1.msra.mxu0 %v5555
        %5716 = vmatprep.subr.mxu0 %v5560
        %5717 = vmatpush1.msra.mxu0 %v5559
        %5718 = vmatprep.subr.mxu0 %v5564
        %5719 = vmatpush1.msra.mxu0 %v5563
        %5720 = vmatprep.subr.mxu0 %v5568
        %5721 = vmatpush1.msra.mxu0 %v5567
        %5722 = vmatprep.subr.mxu0 %v5572
        %5723 = vmatpush1.msra.mxu0 %v5571
        %5724 = vmatprep.subr.mxu0 %v5576
        %5725 = vmatpush1.msra.mxu0 %v5575
        %5726 = vmatprep.subr.mxu0 %v5580
        %5727 = vmatpush1.msra.mxu0 %v5579
        %5728 = vmatprep.subr.mxu0 %v5584
        %5729 = vmatpush1.msra.mxu0 %v5583
        %5730 = vmatprep.subr.mxu0 %v5588
        %5731 = vmatpush1.msra.mxu0 %v5587
        %5732 = vmatprep.subr.mxu0 %v5592
        %5733 = vmatpush1.msra.mxu0 %v5591
        %5734 = vmatprep.subr.mxu0 %v5596
        %5735 = vmatpush1.msra.mxu0 %v5595
        %5736 = vmatprep.subr.mxu0 %v5600
        %5737 = vmatpush1.msra.mxu0 %v5599
        %5738 = vmatprep.mubr.f32.mxu0 %v4251
        %5739 = vmatmul.mubr.f32.gmra.mrb[0].mxu0 %v4249
        %v5740 = vpop.f32.mrb[0].mxu0
        %v5741 = vadd.f32 %v5670, %v5740
        %v5742 = vpop.f32.mrb[0].mxu0
        %v5743 = vadd.f32 %v5672, %v5742
        %5744 = vdwg.mxu0
        %5745 = vmatprep.subr.mxu0 %v5350
        %5746 = vmatpush1.msra.mxu0 %v5349
        %5747 = vmatprep.subr.mxu0 %v5354
        %5748 = vmatpush1.msra.mxu0 %v5353
        %5749 = vmatprep.subr.mxu0 %v5358
        %5750 = vmatpush1.msra.mxu0 %v5357
        %5751 = vmatprep.subr.mxu0 %v5362
        %5752 = vmatpush1.msra.mxu0 %v5361
        %5753 = vmatprep.subr.mxu0 %v5366
        %5754 = vmatpush1.msra.mxu0 %v5365
        %5755 = vmatprep.subr.mxu0 %v5370
        %5756 = vmatpush1.msra.mxu0 %v5369
        %5757 = vmatprep.subr.mxu0 %v5374
        %5758 = vmatpush1.msra.mxu0 %v5373
        %5759 = vmatprep.subr.mxu0 %v5378
        %5760 = vmatpush1.msra.mxu0 %v5377
        %5761 = vmatprep.subr.mxu0 %v5382
        %5762 = vmatpush1.msra.mxu0 %v5381
        %5763 = vmatprep.subr.mxu0 %v5386
        %5764 = vmatpush1.msra.mxu0 %v5385
        %5765 = vmatprep.subr.mxu0 %v5390
        %5766 = vmatpush1.msra.mxu0 %v5389
        %5767 = vmatprep.subr.mxu0 %v5394
        %5768 = vmatpush1.msra.mxu0 %v5393
        %5769 = vmatprep.subr.mxu0 %v5398
        %5770 = vmatpush1.msra.mxu0 %v5397
        %5771 = vmatprep.subr.mxu0 %v5402
        %5772 = vmatpush1.msra.mxu0 %v5401
        %5773 = vmatprep.subr.mxu0 %v5406
        %5774 = vmatpush1.msra.mxu0 %v5405
        %5775 = vmatprep.subr.mxu0 %v5410
        %5776 = vmatpush1.msra.mxu0 %v5409
        %5777 = vmatprep.subr.mxu0 %v5414
        %5778 = vmatpush1.msra.mxu0 %v5413
        %5779 = vmatprep.subr.mxu0 %v5418
        %5780 = vmatpush1.msra.mxu0 %v5417
        %5781 = vmatprep.subr.mxu0 %v5422
        %5782 = vmatpush1.msra.mxu0 %v5421
        %5783 = vmatprep.subr.mxu0 %v5426
        %5784 = vmatpush1.msra.mxu0 %v5425
        %5785 = vmatprep.subr.mxu0 %v5430
        %5786 = vmatpush1.msra.mxu0 %v5429
        %5787 = vmatprep.subr.mxu0 %v5434
        %5788 = vmatpush1.msra.mxu0 %v5433
        %5789 = vmatprep.subr.mxu0 %v5438
        %5790 = vmatpush1.msra.mxu0 %v5437
        %5791 = vmatprep.subr.mxu0 %v5442
        %5792 = vmatpush1.msra.mxu0 %v5441
        %5793 = vmatprep.subr.mxu0 %v5446
        %5794 = vmatpush1.msra.mxu0 %v5445
        %5795 = vmatprep.subr.mxu0 %v5450
        %5796 = vmatpush1.msra.mxu0 %v5449
        %5797 = vmatprep.subr.mxu0 %v5454
        %5798 = vmatpush1.msra.mxu0 %v5453
        %5799 = vmatprep.subr.mxu0 %v5458
        %5800 = vmatpush1.msra.mxu0 %v5457
        %5801 = vmatprep.subr.mxu0 %v5462
        %5802 = vmatpush1.msra.mxu0 %v5461
        %5803 = vmatprep.subr.mxu0 %v5466
        %5804 = vmatpush1.msra.mxu0 %v5465
        %5805 = vmatprep.subr.mxu0 %v5470
        %5806 = vmatpush1.msra.mxu0 %v5469
        %5807 = vmatprep.subr.mxu0 %v5474
        %5808 = vmatpush1.msra.mxu0 %v5473
        %5809 = vmatprep.mubr.f32.mxu0 %v4174
        %5810 = vmatmul.mubr.f32.gmra.mrb[0].mxu0 %v4172
        %v5811 = vpop.f32.mrb[0].mxu0
        %v5812 = vadd.f32 0.0, %v5811
        %v5813 = vpop.f32.mrb[0].mxu0
        %v5814 = vadd.f32 0.0, %v5813
        %5815 = vdwg.mxu0
        %5816 = vmatprep.subr.mxu0 %v5478
        %5817 = vmatpush1.msra.mxu0 %v5477
        %5818 = vmatprep.subr.mxu0 %v5482
        %5819 = vmatpush1.msra.mxu0 %v5481
        %5820 = vmatprep.subr.mxu0 %v5486
        %5821 = vmatpush1.msra.mxu0 %v5485
        %5822 = vmatprep.subr.mxu0 %v5490
        %5823 = vmatpush1.msra.mxu0 %v5489
        %5824 = vmatprep.subr.mxu0 %v5494
        %5825 = vmatpush1.msra.mxu0 %v5493
        %5826 = vmatprep.subr.mxu0 %v5498
        %5827 = vmatpush1.msra.mxu0 %v5497
        %5828 = vmatprep.subr.mxu0 %v5502
        %5829 = vmatpush1.msra.mxu0 %v5501
        %5830 = vmatprep.subr.mxu0 %v5506
        %5831 = vmatpush1.msra.mxu0 %v5505
        %5832 = vmatprep.subr.mxu0 %v5510
        %5833 = vmatpush1.msra.mxu0 %v5509
        %5834 = vmatprep.subr.mxu0 %v5514
        %5835 = vmatpush1.msra.mxu0 %v5513
        %5836 = vmatprep.subr.mxu0 %v5518
        %5837 = vmatpush1.msra.mxu0 %v5517
        %5838 = vmatprep.subr.mxu0 %v5522
        %5839 = vmatpush1.msra.mxu0 %v5521
        %5840 = vmatprep.subr.mxu0 %v5526
        %5841 = vmatpush1.msra.mxu0 %v5525
        %5842 = vmatprep.subr.mxu0 %v5530
        %5843 = vmatpush1.msra.mxu0 %v5529
        %5844 = vmatprep.subr.mxu0 %v5534
        %5845 = vmatpush1.msra.mxu0 %v5533
        %5846 = vmatprep.subr.mxu0 %v5538
        %5847 = vmatpush1.msra.mxu0 %v5537
        %5848 = vmatprep.subr.mxu0 %v5542
        %5849 = vmatpush1.msra.mxu0 %v5541
        %5850 = vmatprep.subr.mxu0 %v5546
        %5851 = vmatpush1.msra.mxu0 %v5545
        %5852 = vmatprep.subr.mxu0 %v5550
        %5853 = vmatpush1.msra.mxu0 %v5549
        %5854 = vmatprep.subr.mxu0 %v5554
        %5855 = vmatpush1.msra.mxu0 %v5553
        %5856 = vmatprep.subr.mxu0 %v5558
        %5857 = vmatpush1.msra.mxu0 %v5557
        %5858 = vmatprep.subr.mxu0 %v5562
        %5859 = vmatpush1.msra.mxu0 %v5561
        %5860 = vmatprep.subr.mxu0 %v5566
        %5861 = vmatpush1.msra.mxu0 %v5565
        %5862 = vmatprep.subr.mxu0 %v5570
        %5863 = vmatpush1.msra.mxu0 %v5569
        %5864 = vmatprep.subr.mxu0 %v5574
        %5865 = vmatpush1.msra.mxu0 %v5573
        %5866 = vmatprep.subr.mxu0 %v5578
        %5867 = vmatpush1.msra.mxu0 %v5577
        %5868 = vmatprep.subr.mxu0 %v5582
        %5869 = vmatpush1.msra.mxu0 %v5581
        %5870 = vmatprep.subr.mxu0 %v5586
        %5871 = vmatpush1.msra.mxu0 %v5585
        %5872 = vmatprep.subr.mxu0 %v5590
        %5873 = vmatpush1.msra.mxu0 %v5589
        %5874 = vmatprep.subr.mxu0 %v5594
        %5875 = vmatpush1.msra.mxu0 %v5593
        %5876 = vmatprep.subr.mxu0 %v5598
        %5877 = vmatpush1.msra.mxu0 %v5597
        %5878 = vmatprep.subr.mxu0 %v5602
        %5879 = vmatpush1.msra.mxu0 %v5601
        %5880 = vmatprep.mubr.f32.mxu0 %v4251
        %5881 = vmatmul.mubr.f32.gmra.mrb[0].mxu0 %v4249
        %v5882 = vpop.f32.mrb[0].mxu0
        %v5883 = vadd.f32 %v5812, %v5882
        %v5884 = vpop.f32.mrb[0].mxu0
        %v5885 = vadd.f32 %v5814, %v5884
        %5886 = vdwg.mxu0
        %v5887 = vadd.f32 %v5200, %v5741
        %v5888 = vadd.f32 %v5202, %v5743
        %v5889 = vadd.f32 %v5342, %v5883
        %v5890 = vadd.f32 %v5344, %v5885
        %s5891 = scalar_lea.vmem [#allocation8], 6144
        %v5892 = vld [vmem:[%s5891] sm:$0xff]
        %v5893 = vld [vmem:[%s5891 + $0x8] sm:$0xff]
        %v5894 = vld [vmem:[%s5891 + $0x10] sm:$0xff]
        %v5895 = vld [vmem:[%s5891 + $0x18] sm:$0xff]
        %v5896 = vld [vmem:[%s5891 + $0x20] sm:$0xff]
        %v5897 = vld [vmem:[%s5891 + $0x28] sm:$0xff]
        %v5898 = vld [vmem:[%s5891 + $0x30] sm:$0xff]
        %v5899 = vld [vmem:[%s5891 + $0x38] sm:$0xff]
        %v5900 = vld [vmem:[%s5891 + $0x40] sm:$0xff]
        %v5901 = vld [vmem:[%s5891 + $0x48] sm:$0xff]
        %v5902 = vld [vmem:[%s5891 + $0x50] sm:$0xff]
        %v5903 = vld [vmem:[%s5891 + $0x58] sm:$0xff]
        %v5904 = vld [vmem:[%s5891 + $0x60] sm:$0xff]
        %v5905 = vld [vmem:[%s5891 + $0x68] sm:$0xff]
        %v5906 = vld [vmem:[%s5891 + $0x70] sm:$0xff]
        %v5907 = vld [vmem:[%s5891 + $0x78] sm:$0xff]
        %v5908 = vld [vmem:[%s5891 + $0x80] sm:$0xff]
        %v5909 = vld [vmem:[%s5891 + $0x88] sm:$0xff]
        %v5910 = vld [vmem:[%s5891 + $0x90] sm:$0xff]
        %v5911 = vld [vmem:[%s5891 + $0x98] sm:$0xff]
        %v5912 = vld [vmem:[%s5891 + $0xa0] sm:$0xff]
        %v5913 = vld [vmem:[%s5891 + $0xa8] sm:$0xff]
        %v5914 = vld [vmem:[%s5891 + $0xb0] sm:$0xff]
        %v5915 = vld [vmem:[%s5891 + $0xb8] sm:$0xff]
        %v5916 = vld [vmem:[%s5891 + $0xc0] sm:$0xff]
        %v5917 = vld [vmem:[%s5891 + $0xc8] sm:$0xff]
        %v5918 = vld [vmem:[%s5891 + $0xd0] sm:$0xff]
        %v5919 = vld [vmem:[%s5891 + $0xd8] sm:$0xff]
        %v5920 = vld [vmem:[%s5891 + $0xe0] sm:$0xff]
        %v5921 = vld [vmem:[%s5891 + $0xe8] sm:$0xff]
        %v5922 = vld [vmem:[%s5891 + $0xf0] sm:$0xff]
        %v5923 = vld [vmem:[%s5891 + $0xf8] sm:$0xff]
        %v5924 = vld [vmem:[%s5891 + $0x100] sm:$0xff]
        %v5925 = vld [vmem:[%s5891 + $0x108] sm:$0xff]
        %v5926 = vld [vmem:[%s5891 + $0x110] sm:$0xff]
        %v5927 = vld [vmem:[%s5891 + $0x118] sm:$0xff]
        %v5928 = vld [vmem:[%s5891 + $0x120] sm:$0xff]
        %v5929 = vld [vmem:[%s5891 + $0x128] sm:$0xff]
        %v5930 = vld [vmem:[%s5891 + $0x130] sm:$0xff]
        %v5931 = vld [vmem:[%s5891 + $0x138] sm:$0xff]
        %v5932 = vld [vmem:[%s5891 + $0x140] sm:$0xff]
        %v5933 = vld [vmem:[%s5891 + $0x148] sm:$0xff]
        %v5934 = vld [vmem:[%s5891 + $0x150] sm:$0xff]
        %v5935 = vld [vmem:[%s5891 + $0x158] sm:$0xff]
        %v5936 = vld [vmem:[%s5891 + $0x160] sm:$0xff]
        %v5937 = vld [vmem:[%s5891 + $0x168] sm:$0xff]
        %v5938 = vld [vmem:[%s5891 + $0x170] sm:$0xff]
        %v5939 = vld [vmem:[%s5891 + $0x178] sm:$0xff]
        %v5940 = vld [vmem:[%s5891 + $0x180] sm:$0xff]
        %v5941 = vld [vmem:[%s5891 + $0x188] sm:$0xff]
        %v5942 = vld [vmem:[%s5891 + $0x190] sm:$0xff]
        %v5943 = vld [vmem:[%s5891 + $0x198] sm:$0xff]
        %v5944 = vld [vmem:[%s5891 + $0x1a0] sm:$0xff]
        %v5945 = vld [vmem:[%s5891 + $0x1a8] sm:$0xff]
        %v5946 = vld [vmem:[%s5891 + $0x1b0] sm:$0xff]
        %v5947 = vld [vmem:[%s5891 + $0x1b8] sm:$0xff]
        %v5948 = vld [vmem:[%s5891 + $0x1c0] sm:$0xff]
        %v5949 = vld [vmem:[%s5891 + $0x1c8] sm:$0xff]
        %v5950 = vld [vmem:[%s5891 + $0x1d0] sm:$0xff]
        %v5951 = vld [vmem:[%s5891 + $0x1d8] sm:$0xff]
        %v5952 = vld [vmem:[%s5891 + $0x1e0] sm:$0xff]
        %v5953 = vld [vmem:[%s5891 + $0x1e8] sm:$0xff]
        %v5954 = vld [vmem:[%s5891 + $0x1f0] sm:$0xff]
        %v5955 = vld [vmem:[%s5891 + $0x1f8] sm:$0xff]
        %v5956 = vld [vmem:[%s5891 + $0x200] sm:$0xff]
        %v5957 = vld [vmem:[%s5891 + $0x208] sm:$0xff]
        %v5958 = vld [vmem:[%s5891 + $0x210] sm:$0xff]
        %v5959 = vld [vmem:[%s5891 + $0x218] sm:$0xff]
        %v5960 = vld [vmem:[%s5891 + $0x220] sm:$0xff]
        %v5961 = vld [vmem:[%s5891 + $0x228] sm:$0xff]
        %v5962 = vld [vmem:[%s5891 + $0x230] sm:$0xff]
        %v5963 = vld [vmem:[%s5891 + $0x238] sm:$0xff]
        %v5964 = vld [vmem:[%s5891 + $0x240] sm:$0xff]
        %v5965 = vld [vmem:[%s5891 + $0x248] sm:$0xff]
        %v5966 = vld [vmem:[%s5891 + $0x250] sm:$0xff]
        %v5967 = vld [vmem:[%s5891 + $0x258] sm:$0xff]
        %v5968 = vld [vmem:[%s5891 + $0x260] sm:$0xff]
        %v5969 = vld [vmem:[%s5891 + $0x268] sm:$0xff]
        %v5970 = vld [vmem:[%s5891 + $0x270] sm:$0xff]
        %v5971 = vld [vmem:[%s5891 + $0x278] sm:$0xff]
        %v5972 = vld [vmem:[%s5891 + $0x280] sm:$0xff]
        %v5973 = vld [vmem:[%s5891 + $0x288] sm:$0xff]
        %v5974 = vld [vmem:[%s5891 + $0x290] sm:$0xff]
        %v5975 = vld [vmem:[%s5891 + $0x298] sm:$0xff]
        %v5976 = vld [vmem:[%s5891 + $0x2a0] sm:$0xff]
        %v5977 = vld [vmem:[%s5891 + $0x2a8] sm:$0xff]
        %v5978 = vld [vmem:[%s5891 + $0x2b0] sm:$0xff]
        %v5979 = vld [vmem:[%s5891 + $0x2b8] sm:$0xff]
        %v5980 = vld [vmem:[%s5891 + $0x2c0] sm:$0xff]
        %v5981 = vld [vmem:[%s5891 + $0x2c8] sm:$0xff]
        %v5982 = vld [vmem:[%s5891 + $0x2d0] sm:$0xff]
        %v5983 = vld [vmem:[%s5891 + $0x2d8] sm:$0xff]
        %v5984 = vld [vmem:[%s5891 + $0x2e0] sm:$0xff]
        %v5985 = vld [vmem:[%s5891 + $0x2e8] sm:$0xff]
        %v5986 = vld [vmem:[%s5891 + $0x2f0] sm:$0xff]
        %v5987 = vld [vmem:[%s5891 + $0x2f8] sm:$0xff]
        %v5988 = vld [vmem:[%s5891 + $0x300] sm:$0xff]
        %v5989 = vld [vmem:[%s5891 + $0x308] sm:$0xff]
        %v5990 = vld [vmem:[%s5891 + $0x310] sm:$0xff]
        %v5991 = vld [vmem:[%s5891 + $0x318] sm:$0xff]
        %v5992 = vld [vmem:[%s5891 + $0x320] sm:$0xff]
        %v5993 = vld [vmem:[%s5891 + $0x328] sm:$0xff]
        %v5994 = vld [vmem:[%s5891 + $0x330] sm:$0xff]
        %v5995 = vld [vmem:[%s5891 + $0x338] sm:$0xff]
        %v5996 = vld [vmem:[%s5891 + $0x340] sm:$0xff]
        %v5997 = vld [vmem:[%s5891 + $0x348] sm:$0xff]
        %v5998 = vld [vmem:[%s5891 + $0x350] sm:$0xff]
        %v5999 = vld [vmem:[%s5891 + $0x358] sm:$0xff]
        %v6000 = vld [vmem:[%s5891 + $0x360] sm:$0xff]
        %v6001 = vld [vmem:[%s5891 + $0x368] sm:$0xff]
        %v6002 = vld [vmem:[%s5891 + $0x370] sm:$0xff]
        %v6003 = vld [vmem:[%s5891 + $0x378] sm:$0xff]
        %v6004 = vld [vmem:[%s5891 + $0x380] sm:$0xff]
        %v6005 = vld [vmem:[%s5891 + $0x388] sm:$0xff]
        %v6006 = vld [vmem:[%s5891 + $0x390] sm:$0xff]
        %v6007 = vld [vmem:[%s5891 + $0x398] sm:$0xff]
        %v6008 = vld [vmem:[%s5891 + $0x3a0] sm:$0xff]
        %v6009 = vld [vmem:[%s5891 + $0x3a8] sm:$0xff]
        %v6010 = vld [vmem:[%s5891 + $0x3b0] sm:$0xff]
        %v6011 = vld [vmem:[%s5891 + $0x3b8] sm:$0xff]
        %v6012 = vld [vmem:[%s5891 + $0x3c0] sm:$0xff]
        %v6013 = vld [vmem:[%s5891 + $0x3c8] sm:$0xff]
        %v6014 = vld [vmem:[%s5891 + $0x3d0] sm:$0xff]
        %v6015 = vld [vmem:[%s5891 + $0x3d8] sm:$0xff]
        %v6016 = vld [vmem:[%s5891 + $0x3e0] sm:$0xff]
        %v6017 = vld [vmem:[%s5891 + $0x3e8] sm:$0xff]
        %v6018 = vld [vmem:[%s5891 + $0x3f0] sm:$0xff]
        %v6019 = vld [vmem:[%s5891 + $0x3f8] sm:$0xff]
        %v6020 = vld [vmem:[%s5891 + $0x400] sm:$0xff]
        %v6021 = vld [vmem:[%s5891 + $0x408] sm:$0xff]
        %v6022 = vld [vmem:[%s5891 + $0x410] sm:$0xff]
        %v6023 = vld [vmem:[%s5891 + $0x418] sm:$0xff]
        %v6024 = vld [vmem:[%s5891 + $0x420] sm:$0xff]
        %v6025 = vld [vmem:[%s5891 + $0x428] sm:$0xff]
        %v6026 = vld [vmem:[%s5891 + $0x430] sm:$0xff]
        %v6027 = vld [vmem:[%s5891 + $0x438] sm:$0xff]
        %v6028 = vld [vmem:[%s5891 + $0x440] sm:$0xff]
        %v6029 = vld [vmem:[%s5891 + $0x448] sm:$0xff]
        %v6030 = vld [vmem:[%s5891 + $0x450] sm:$0xff]
        %v6031 = vld [vmem:[%s5891 + $0x458] sm:$0xff]
        %v6032 = vld [vmem:[%s5891 + $0x460] sm:$0xff]
        %v6033 = vld [vmem:[%s5891 + $0x468] sm:$0xff]
        %v6034 = vld [vmem:[%s5891 + $0x470] sm:$0xff]
        %v6035 = vld [vmem:[%s5891 + $0x478] sm:$0xff]
        %v6036 = vld [vmem:[%s5891 + $0x480] sm:$0xff]
        %v6037 = vld [vmem:[%s5891 + $0x488] sm:$0xff]
        %v6038 = vld [vmem:[%s5891 + $0x490] sm:$0xff]
        %v6039 = vld [vmem:[%s5891 + $0x498] sm:$0xff]
        %v6040 = vld [vmem:[%s5891 + $0x4a0] sm:$0xff]
        %v6041 = vld [vmem:[%s5891 + $0x4a8] sm:$0xff]
        %v6042 = vld [vmem:[%s5891 + $0x4b0] sm:$0xff]
        %v6043 = vld [vmem:[%s5891 + $0x4b8] sm:$0xff]
        %v6044 = vld [vmem:[%s5891 + $0x4c0] sm:$0xff]
        %v6045 = vld [vmem:[%s5891 + $0x4c8] sm:$0xff]
        %v6046 = vld [vmem:[%s5891 + $0x4d0] sm:$0xff]
        %v6047 = vld [vmem:[%s5891 + $0x4d8] sm:$0xff]
        %v6048 = vld [vmem:[%s5891 + $0x4e0] sm:$0xff]
        %v6049 = vld [vmem:[%s5891 + $0x4e8] sm:$0xff]
        %v6050 = vld [vmem:[%s5891 + $0x4f0] sm:$0xff]
        %v6051 = vld [vmem:[%s5891 + $0x4f8] sm:$0xff]
        %v6052 = vld [vmem:[%s5891 + $0x500] sm:$0xff]
        %v6053 = vld [vmem:[%s5891 + $0x508] sm:$0xff]
        %v6054 = vld [vmem:[%s5891 + $0x510] sm:$0xff]
        %v6055 = vld [vmem:[%s5891 + $0x518] sm:$0xff]
        %v6056 = vld [vmem:[%s5891 + $0x520] sm:$0xff]
        %v6057 = vld [vmem:[%s5891 + $0x528] sm:$0xff]
        %v6058 = vld [vmem:[%s5891 + $0x530] sm:$0xff]
        %v6059 = vld [vmem:[%s5891 + $0x538] sm:$0xff]
        %v6060 = vld [vmem:[%s5891 + $0x540] sm:$0xff]
        %v6061 = vld [vmem:[%s5891 + $0x548] sm:$0xff]
        %v6062 = vld [vmem:[%s5891 + $0x550] sm:$0xff]
        %v6063 = vld [vmem:[%s5891 + $0x558] sm:$0xff]
        %v6064 = vld [vmem:[%s5891 + $0x560] sm:$0xff]
        %v6065 = vld [vmem:[%s5891 + $0x568] sm:$0xff]
        %v6066 = vld [vmem:[%s5891 + $0x570] sm:$0xff]
        %v6067 = vld [vmem:[%s5891 + $0x578] sm:$0xff]
        %v6068 = vld [vmem:[%s5891 + $0x580] sm:$0xff]
        %v6069 = vld [vmem:[%s5891 + $0x588] sm:$0xff]
        %v6070 = vld [vmem:[%s5891 + $0x590] sm:$0xff]
        %v6071 = vld [vmem:[%s5891 + $0x598] sm:$0xff]
        %v6072 = vld [vmem:[%s5891 + $0x5a0] sm:$0xff]
        %v6073 = vld [vmem:[%s5891 + $0x5a8] sm:$0xff]
        %v6074 = vld [vmem:[%s5891 + $0x5b0] sm:$0xff]
        %v6075 = vld [vmem:[%s5891 + $0x5b8] sm:$0xff]
        %v6076 = vld [vmem:[%s5891 + $0x5c0] sm:$0xff]
        %v6077 = vld [vmem:[%s5891 + $0x5c8] sm:$0xff]
        %v6078 = vld [vmem:[%s5891 + $0x5d0] sm:$0xff]
        %v6079 = vld [vmem:[%s5891 + $0x5d8] sm:$0xff]
        %v6080 = vld [vmem:[%s5891 + $0x5e0] sm:$0xff]
        %v6081 = vld [vmem:[%s5891 + $0x5e8] sm:$0xff]
        %v6082 = vld [vmem:[%s5891 + $0x5f0] sm:$0xff]
        %v6083 = vld [vmem:[%s5891 + $0x5f8] sm:$0xff]
        %v6084 = vld [vmem:[%s5891 + $0x600] sm:$0xff]
        %v6085 = vld [vmem:[%s5891 + $0x608] sm:$0xff]
        %v6086 = vld [vmem:[%s5891 + $0x610] sm:$0xff]
        %v6087 = vld [vmem:[%s5891 + $0x618] sm:$0xff]
        %v6088 = vld [vmem:[%s5891 + $0x620] sm:$0xff]
        %v6089 = vld [vmem:[%s5891 + $0x628] sm:$0xff]
        %v6090 = vld [vmem:[%s5891 + $0x630] sm:$0xff]
        %v6091 = vld [vmem:[%s5891 + $0x638] sm:$0xff]
        %v6092 = vld [vmem:[%s5891 + $0x640] sm:$0xff]
        %v6093 = vld [vmem:[%s5891 + $0x648] sm:$0xff]
        %v6094 = vld [vmem:[%s5891 + $0x650] sm:$0xff]
        %v6095 = vld [vmem:[%s5891 + $0x658] sm:$0xff]
        %v6096 = vld [vmem:[%s5891 + $0x660] sm:$0xff]
        %v6097 = vld [vmem:[%s5891 + $0x668] sm:$0xff]
        %v6098 = vld [vmem:[%s5891 + $0x670] sm:$0xff]
        %v6099 = vld [vmem:[%s5891 + $0x678] sm:$0xff]
        %v6100 = vld [vmem:[%s5891 + $0x680] sm:$0xff]
        %v6101 = vld [vmem:[%s5891 + $0x688] sm:$0xff]
        %v6102 = vld [vmem:[%s5891 + $0x690] sm:$0xff]
        %v6103 = vld [vmem:[%s5891 + $0x698] sm:$0xff]
        %v6104 = vld [vmem:[%s5891 + $0x6a0] sm:$0xff]
        %v6105 = vld [vmem:[%s5891 + $0x6a8] sm:$0xff]
        %v6106 = vld [vmem:[%s5891 + $0x6b0] sm:$0xff]
        %v6107 = vld [vmem:[%s5891 + $0x6b8] sm:$0xff]
        %v6108 = vld [vmem:[%s5891 + $0x6c0] sm:$0xff]
        %v6109 = vld [vmem:[%s5891 + $0x6c8] sm:$0xff]
        %v6110 = vld [vmem:[%s5891 + $0x6d0] sm:$0xff]
        %v6111 = vld [vmem:[%s5891 + $0x6d8] sm:$0xff]
        %v6112 = vld [vmem:[%s5891 + $0x6e0] sm:$0xff]
        %v6113 = vld [vmem:[%s5891 + $0x6e8] sm:$0xff]
        %v6114 = vld [vmem:[%s5891 + $0x6f0] sm:$0xff]
        %v6115 = vld [vmem:[%s5891 + $0x6f8] sm:$0xff]
        %v6116 = vld [vmem:[%s5891 + $0x700] sm:$0xff]
        %v6117 = vld [vmem:[%s5891 + $0x708] sm:$0xff]
        %v6118 = vld [vmem:[%s5891 + $0x710] sm:$0xff]
        %v6119 = vld [vmem:[%s5891 + $0x718] sm:$0xff]
        %v6120 = vld [vmem:[%s5891 + $0x720] sm:$0xff]
        %v6121 = vld [vmem:[%s5891 + $0x728] sm:$0xff]
        %v6122 = vld [vmem:[%s5891 + $0x730] sm:$0xff]
        %v6123 = vld [vmem:[%s5891 + $0x738] sm:$0xff]
        %v6124 = vld [vmem:[%s5891 + $0x740] sm:$0xff]
        %v6125 = vld [vmem:[%s5891 + $0x748] sm:$0xff]
        %v6126 = vld [vmem:[%s5891 + $0x750] sm:$0xff]
        %v6127 = vld [vmem:[%s5891 + $0x758] sm:$0xff]
        %v6128 = vld [vmem:[%s5891 + $0x760] sm:$0xff]
        %v6129 = vld [vmem:[%s5891 + $0x768] sm:$0xff]
        %v6130 = vld [vmem:[%s5891 + $0x770] sm:$0xff]
        %v6131 = vld [vmem:[%s5891 + $0x778] sm:$0xff]
        %v6132 = vld [vmem:[%s5891 + $0x780] sm:$0xff]
        %v6133 = vld [vmem:[%s5891 + $0x788] sm:$0xff]
        %v6134 = vld [vmem:[%s5891 + $0x790] sm:$0xff]
        %v6135 = vld [vmem:[%s5891 + $0x798] sm:$0xff]
        %v6136 = vld [vmem:[%s5891 + $0x7a0] sm:$0xff]
        %v6137 = vld [vmem:[%s5891 + $0x7a8] sm:$0xff]
        %v6138 = vld [vmem:[%s5891 + $0x7b0] sm:$0xff]
        %v6139 = vld [vmem:[%s5891 + $0x7b8] sm:$0xff]
        %v6140 = vld [vmem:[%s5891 + $0x7c0] sm:$0xff]
        %v6141 = vld [vmem:[%s5891 + $0x7c8] sm:$0xff]
        %v6142 = vld [vmem:[%s5891 + $0x7d0] sm:$0xff]
        %v6143 = vld [vmem:[%s5891 + $0x7d8] sm:$0xff]
        %v6144 = vld [vmem:[%s5891 + $0x7e0] sm:$0xff]
        %v6145 = vld [vmem:[%s5891 + $0x7e8] sm:$0xff]
        %v6146 = vld [vmem:[%s5891 + $0x7f0] sm:$0xff]
        %v6147 = vld [vmem:[%s5891 + $0x7f8] sm:$0xff]
        %v6152 = vrot.slane %v4172, 4
        %v6153 = vrot.slane %v4174, 4
        %v6154 = vrot.slane %v4249, 4
        %v6155 = vrot.slane %v4251, 4
        %6160 = vmatprep.subr.mxu0 %v5893
        %6161 = vmatpush1.msra.mxu0 %v5892
        %6162 = vmatprep.subr.mxu0 %v5897
        %6163 = vmatpush1.msra.mxu0 %v5896
        %6164 = vmatprep.subr.mxu0 %v5901
        %6165 = vmatpush1.msra.mxu0 %v5900
        %6166 = vmatprep.subr.mxu0 %v5905
        %6167 = vmatpush1.msra.mxu0 %v5904
        %6168 = vmatprep.subr.mxu0 %v5909
        %6169 = vmatpush1.msra.mxu0 %v5908
        %6170 = vmatprep.subr.mxu0 %v5913
        %6171 = vmatpush1.msra.mxu0 %v5912
        %6172 = vmatprep.subr.mxu0 %v5917
        %6173 = vmatpush1.msra.mxu0 %v5916
        %6174 = vmatprep.subr.mxu0 %v5921
        %6175 = vmatpush1.msra.mxu0 %v5920
        %6176 = vmatprep.subr.mxu0 %v5925
        %6177 = vmatpush1.msra.mxu0 %v5924
        %6178 = vmatprep.subr.mxu0 %v5929
        %6179 = vmatpush1.msra.mxu0 %v5928
        %6180 = vmatprep.subr.mxu0 %v5933
        %6181 = vmatpush1.msra.mxu0 %v5932
        %6182 = vmatprep.subr.mxu0 %v5937
        %6183 = vmatpush1.msra.mxu0 %v5936
        %6184 = vmatprep.subr.mxu0 %v5941
        %6185 = vmatpush1.msra.mxu0 %v5940
        %6186 = vmatprep.subr.mxu0 %v5945
        %6187 = vmatpush1.msra.mxu0 %v5944
        %6188 = vmatprep.subr.mxu0 %v5949
        %6189 = vmatpush1.msra.mxu0 %v5948
        %6190 = vmatprep.subr.mxu0 %v5953
        %6191 = vmatpush1.msra.mxu0 %v5952
        %6192 = vmatprep.subr.mxu0 %v5957
        %6193 = vmatpush1.msra.mxu0 %v5956
        %6194 = vmatprep.subr.mxu0 %v5961
        %6195 = vmatpush1.msra.mxu0 %v5960
        %6196 = vmatprep.subr.mxu0 %v5965
        %6197 = vmatpush1.msra.mxu0 %v5964
        %6198 = vmatprep.subr.mxu0 %v5969
        %6199 = vmatpush1.msra.mxu0 %v5968
        %6200 = vmatprep.subr.mxu0 %v5973
        %6201 = vmatpush1.msra.mxu0 %v5972
        %6202 = vmatprep.subr.mxu0 %v5977
        %6203 = vmatpush1.msra.mxu0 %v5976
        %6204 = vmatprep.subr.mxu0 %v5981
        %6205 = vmatpush1.msra.mxu0 %v5980
        %6206 = vmatprep.subr.mxu0 %v5985
        %6207 = vmatpush1.msra.mxu0 %v5984
        %6208 = vmatprep.subr.mxu0 %v5989
        %6209 = vmatpush1.msra.mxu0 %v5988
        %6210 = vmatprep.subr.mxu0 %v5993
        %6211 = vmatpush1.msra.mxu0 %v5992
        %6212 = vmatprep.subr.mxu0 %v5997
        %6213 = vmatpush1.msra.mxu0 %v5996
        %6214 = vmatprep.subr.mxu0 %v6001
        %6215 = vmatpush1.msra.mxu0 %v6000
        %6216 = vmatprep.subr.mxu0 %v6005
        %6217 = vmatpush1.msra.mxu0 %v6004
        %6218 = vmatprep.subr.mxu0 %v6009
        %6219 = vmatpush1.msra.mxu0 %v6008
        %6220 = vmatprep.subr.mxu0 %v6013
        %6221 = vmatpush1.msra.mxu0 %v6012
        %6222 = vmatprep.subr.mxu0 %v6017
        %6223 = vmatpush1.msra.mxu0 %v6016
        %6224 = vmatprep.mubr.f32.mxu0 %v6153
        %6225 = vmatmul.mubr.f32.gmra.mrb[0].mxu0 %v6152
        %v6226 = vpop.f32.mrb[0].mxu0
        %v6227 = vadd.f32 0.0, %v6226
        %v6228 = vpop.f32.mrb[0].mxu0
        %v6229 = vadd.f32 0.0, %v6228
        %6230 = vdwg.mxu0
        %6231 = vmatprep.subr.mxu0 %v6021
        %6232 = vmatpush1.msra.mxu0 %v6020
        %6233 = vmatprep.subr.mxu0 %v6025
        %6234 = vmatpush1.msra.mxu0 %v6024
        %6235 = vmatprep.subr.mxu0 %v6029
        %6236 = vmatpush1.msra.mxu0 %v6028
        %6237 = vmatprep.subr.mxu0 %v6033
        %6238 = vmatpush1.msra.mxu0 %v6032
        %6239 = vmatprep.subr.mxu0 %v6037
        %6240 = vmatpush1.msra.mxu0 %v6036
        %6241 = vmatprep.subr.mxu0 %v6041
        %6242 = vmatpush1.msra.mxu0 %v6040
        %6243 = vmatprep.subr.mxu0 %v6045
        %6244 = vmatpush1.msra.mxu0 %v6044
        %6245 = vmatprep.subr.mxu0 %v6049
        %6246 = vmatpush1.msra.mxu0 %v6048
        %6247 = vmatprep.subr.mxu0 %v6053
        %6248 = vmatpush1.msra.mxu0 %v6052
        %6249 = vmatprep.subr.mxu0 %v6057
        %6250 = vmatpush1.msra.mxu0 %v6056
        %6251 = vmatprep.subr.mxu0 %v6061
        %6252 = vmatpush1.msra.mxu0 %v6060
        %6253 = vmatprep.subr.mxu0 %v6065
        %6254 = vmatpush1.msra.mxu0 %v6064
        %6255 = vmatprep.subr.mxu0 %v6069
        %6256 = vmatpush1.msra.mxu0 %v6068
        %6257 = vmatprep.subr.mxu0 %v6073
        %6258 = vmatpush1.msra.mxu0 %v6072
        %6259 = vmatprep.subr.mxu0 %v6077
        %6260 = vmatpush1.msra.mxu0 %v6076
        %6261 = vmatprep.subr.mxu0 %v6081
        %6262 = vmatpush1.msra.mxu0 %v6080
        %6263 = vmatprep.subr.mxu0 %v6085
        %6264 = vmatpush1.msra.mxu0 %v6084
        %6265 = vmatprep.subr.mxu0 %v6089
        %6266 = vmatpush1.msra.mxu0 %v6088
        %6267 = vmatprep.subr.mxu0 %v6093
        %6268 = vmatpush1.msra.mxu0 %v6092
        %6269 = vmatprep.subr.mxu0 %v6097
        %6270 = vmatpush1.msra.mxu0 %v6096
        %6271 = vmatprep.subr.mxu0 %v6101
        %6272 = vmatpush1.msra.mxu0 %v6100
        %6273 = vmatprep.subr.mxu0 %v6105
        %6274 = vmatpush1.msra.mxu0 %v6104
        %6275 = vmatprep.subr.mxu0 %v6109
        %6276 = vmatpush1.msra.mxu0 %v6108
        %6277 = vmatprep.subr.mxu0 %v6113
        %6278 = vmatpush1.msra.mxu0 %v6112
        %6279 = vmatprep.subr.mxu0 %v6117
        %6280 = vmatpush1.msra.mxu0 %v6116
        %6281 = vmatprep.subr.mxu0 %v6121
        %6282 = vmatpush1.msra.mxu0 %v6120
        %6283 = vmatprep.subr.mxu0 %v6125
        %6284 = vmatpush1.msra.mxu0 %v6124
        %6285 = vmatprep.subr.mxu0 %v6129
        %6286 = vmatpush1.msra.mxu0 %v6128
        %6287 = vmatprep.subr.mxu0 %v6133
        %6288 = vmatpush1.msra.mxu0 %v6132
        %6289 = vmatprep.subr.mxu0 %v6137
        %6290 = vmatpush1.msra.mxu0 %v6136
        %6291 = vmatprep.subr.mxu0 %v6141
        %6292 = vmatpush1.msra.mxu0 %v6140
        %6293 = vmatprep.subr.mxu0 %v6145
        %6294 = vmatpush1.msra.mxu0 %v6144
        %6295 = vmatprep.mubr.f32.mxu0 %v6155
        %6296 = vmatmul.mubr.f32.gmra.mrb[0].mxu0 %v6154
        %v6297 = vpop.f32.mrb[0].mxu0
        %v6298 = vadd.f32 %v6227, %v6297
        %v6299 = vpop.f32.mrb[0].mxu0
        %v6300 = vadd.f32 %v6229, %v6299
        %6301 = vdwg.mxu0
        %6302 = vmatprep.subr.mxu0 %v5895
        %6303 = vmatpush1.msra.mxu0 %v5894
        %6304 = vmatprep.subr.mxu0 %v5899
        %6305 = vmatpush1.msra.mxu0 %v5898
        %6306 = vmatprep.subr.mxu0 %v5903
        %6307 = vmatpush1.msra.mxu0 %v5902
        %6308 = vmatprep.subr.mxu0 %v5907
        %6309 = vmatpush1.msra.mxu0 %v5906
        %6310 = vmatprep.subr.mxu0 %v5911
        %6311 = vmatpush1.msra.mxu0 %v5910
        %6312 = vmatprep.subr.mxu0 %v5915
        %6313 = vmatpush1.msra.mxu0 %v5914
        %6314 = vmatprep.subr.mxu0 %v5919
        %6315 = vmatpush1.msra.mxu0 %v5918
        %6316 = vmatprep.subr.mxu0 %v5923
        %6317 = vmatpush1.msra.mxu0 %v5922
        %6318 = vmatprep.subr.mxu0 %v5927
        %6319 = vmatpush1.msra.mxu0 %v5926
        %6320 = vmatprep.subr.mxu0 %v5931
        %6321 = vmatpush1.msra.mxu0 %v5930
        %6322 = vmatprep.subr.mxu0 %v5935
        %6323 = vmatpush1.msra.mxu0 %v5934
        %6324 = vmatprep.subr.mxu0 %v5939
        %6325 = vmatpush1.msra.mxu0 %v5938
        %6326 = vmatprep.subr.mxu0 %v5943
        %6327 = vmatpush1.msra.mxu0 %v5942
        %6328 = vmatprep.subr.mxu0 %v5947
        %6329 = vmatpush1.msra.mxu0 %v5946
        %6330 = vmatprep.subr.mxu0 %v5951
        %6331 = vmatpush1.msra.mxu0 %v5950
        %6332 = vmatprep.subr.mxu0 %v5955
        %6333 = vmatpush1.msra.mxu0 %v5954
        %6334 = vmatprep.subr.mxu0 %v5959
        %6335 = vmatpush1.msra.mxu0 %v5958
        %6336 = vmatprep.subr.mxu0 %v5963
        %6337 = vmatpush1.msra.mxu0 %v5962
        %6338 = vmatprep.subr.mxu0 %v5967
        %6339 = vmatpush1.msra.mxu0 %v5966
        %6340 = vmatprep.subr.mxu0 %v5971
        %6341 = vmatpush1.msra.mxu0 %v5970
        %6342 = vmatprep.subr.mxu0 %v5975
        %6343 = vmatpush1.msra.mxu0 %v5974
        %6344 = vmatprep.subr.mxu0 %v5979
        %6345 = vmatpush1.msra.mxu0 %v5978
        %6346 = vmatprep.subr.mxu0 %v5983
        %6347 = vmatpush1.msra.mxu0 %v5982
        %6348 = vmatprep.subr.mxu0 %v5987
        %6349 = vmatpush1.msra.mxu0 %v5986
        %6350 = vmatprep.subr.mxu0 %v5991
        %6351 = vmatpush1.msra.mxu0 %v5990
        %6352 = vmatprep.subr.mxu0 %v5995
        %6353 = vmatpush1.msra.mxu0 %v5994
        %6354 = vmatprep.subr.mxu0 %v5999
        %6355 = vmatpush1.msra.mxu0 %v5998
        %6356 = vmatprep.subr.mxu0 %v6003
        %6357 = vmatpush1.msra.mxu0 %v6002
        %6358 = vmatprep.subr.mxu0 %v6007
        %6359 = vmatpush1.msra.mxu0 %v6006
        %6360 = vmatprep.subr.mxu0 %v6011
        %6361 = vmatpush1.msra.mxu0 %v6010
        %6362 = vmatprep.subr.mxu0 %v6015
        %6363 = vmatpush1.msra.mxu0 %v6014
        %6364 = vmatprep.subr.mxu0 %v6019
        %6365 = vmatpush1.msra.mxu0 %v6018
        %6366 = vmatprep.mubr.f32.mxu0 %v6153
        %6367 = vmatmul.mubr.f32.gmra.mrb[0].mxu0 %v6152
        %v6368 = vpop.f32.mrb[0].mxu0
        %v6369 = vadd.f32 0.0, %v6368
        %v6370 = vpop.f32.mrb[0].mxu0
        %v6371 = vadd.f32 0.0, %v6370
        %6372 = vdwg.mxu0
        %6373 = vmatprep.subr.mxu0 %v6023
        %6374 = vmatpush1.msra.mxu0 %v6022
        %6375 = vmatprep.subr.mxu0 %v6027
        %6376 = vmatpush1.msra.mxu0 %v6026
        %6377 = vmatprep.subr.mxu0 %v6031
        %6378 = vmatpush1.msra.mxu0 %v6030
        %6379 = vmatprep.subr.mxu0 %v6035
        %6380 = vmatpush1.msra.mxu0 %v6034
        %6381 = vmatprep.subr.mxu0 %v6039
        %6382 = vmatpush1.msra.mxu0 %v6038
        %6383 = vmatprep.subr.mxu0 %v6043
        %6384 = vmatpush1.msra.mxu0 %v6042
        %6385 = vmatprep.subr.mxu0 %v6047
        %6386 = vmatpush1.msra.mxu0 %v6046
        %6387 = vmatprep.subr.mxu0 %v6051
        %6388 = vmatpush1.msra.mxu0 %v6050
        %6389 = vmatprep.subr.mxu0 %v6055
        %6390 = vmatpush1.msra.mxu0 %v6054
        %6391 = vmatprep.subr.mxu0 %v6059
        %6392 = vmatpush1.msra.mxu0 %v6058
        %6393 = vmatprep.subr.mxu0 %v6063
        %6394 = vmatpush1.msra.mxu0 %v6062
        %6395 = vmatprep.subr.mxu0 %v6067
        %6396 = vmatpush1.msra.mxu0 %v6066
        %6397 = vmatprep.subr.mxu0 %v6071
        %6398 = vmatpush1.msra.mxu0 %v6070
        %6399 = vmatprep.subr.mxu0 %v6075
        %6400 = vmatpush1.msra.mxu0 %v6074
        %6401 = vmatprep.subr.mxu0 %v6079
        %6402 = vmatpush1.msra.mxu0 %v6078
        %6403 = vmatprep.subr.mxu0 %v6083
        %6404 = vmatpush1.msra.mxu0 %v6082
        %6405 = vmatprep.subr.mxu0 %v6087
        %6406 = vmatpush1.msra.mxu0 %v6086
        %6407 = vmatprep.subr.mxu0 %v6091
        %6408 = vmatpush1.msra.mxu0 %v6090
        %6409 = vmatprep.subr.mxu0 %v6095
        %6410 = vmatpush1.msra.mxu0 %v6094
        %6411 = vmatprep.subr.mxu0 %v6099
        %6412 = vmatpush1.msra.mxu0 %v6098
        %6413 = vmatprep.subr.mxu0 %v6103
        %6414 = vmatpush1.msra.mxu0 %v6102
        %6415 = vmatprep.subr.mxu0 %v6107
        %6416 = vmatpush1.msra.mxu0 %v6106
        %6417 = vmatprep.subr.mxu0 %v6111
        %6418 = vmatpush1.msra.mxu0 %v6110
        %6419 = vmatprep.subr.mxu0 %v6115
        %6420 = vmatpush1.msra.mxu0 %v6114
        %6421 = vmatprep.subr.mxu0 %v6119
        %6422 = vmatpush1.msra.mxu0 %v6118
        %6423 = vmatprep.subr.mxu0 %v6123
        %6424 = vmatpush1.msra.mxu0 %v6122
        %6425 = vmatprep.subr.mxu0 %v6127
        %6426 = vmatpush1.msra.mxu0 %v6126
        %6427 = vmatprep.subr.mxu0 %v6131
        %6428 = vmatpush1.msra.mxu0 %v6130
        %6429 = vmatprep.subr.mxu0 %v6135
        %6430 = vmatpush1.msra.mxu0 %v6134
        %6431 = vmatprep.subr.mxu0 %v6139
        %6432 = vmatpush1.msra.mxu0 %v6138
        %6433 = vmatprep.subr.mxu0 %v6143
        %6434 = vmatpush1.msra.mxu0 %v6142
        %6435 = vmatprep.subr.mxu0 %v6147
        %6436 = vmatpush1.msra.mxu0 %v6146
        %6437 = vmatprep.mubr.f32.mxu0 %v6155
        %6438 = vmatmul.mubr.f32.gmra.mrb[0].mxu0 %v6154
        %v6439 = vpop.f32.mrb[0].mxu0
        %v6440 = vadd.f32 %v6369, %v6439
        %v6441 = vpop.f32.mrb[0].mxu0
        %v6442 = vadd.f32 %v6371, %v6441
        %6443 = vdwg.mxu0
        %v6444 = vadd.f32 %v5887, %v6298
        %v6445 = vadd.f32 %v5888, %v6300
        %v6446 = vadd.f32 %v5889, %v6440
        %v6447 = vadd.f32 %v5890, %v6442
        %v6448 = vld [vmem:[#allocation10] sm:$0xf]
        %v6450 = vlaneseq
        %v6451 = vshrl.u32 %v6450, 7
        %v6452 = vsub.s32 0, %v6451
        %v6453 = vrot.slane %v6448, %v6452
        %v6454 = vlaneseq
        %v6455 = vshrl.u32 %v6454, 7
        %v6456 = vsub.s32 1, %v6455
        %v6457 = vrot.slane %v6448, %v6456
        %v6458 = vlaneseq
        %v6459 = vshrl.u32 %v6458, 7
        %v6460 = vsub.s32 2, %v6459
        %v6461 = vrot.slane %v6448, %v6460
        %v6462 = vlaneseq
        %v6463 = vshrl.u32 %v6462, 7
        %v6464 = vsub.s32 3, %v6463
        %v6465 = vrot.slane %v6448, %v6464
        %v6470 = vadd.f32 %v6444, %v6453
        %v6471 = vadd.f32 %v6445, %v6457
        %v6472 = vadd.f32 %v6446, %v6461
        %v6473 = vadd.f32 %v6447, %v6465
        %v6474 = vmul.f32 %v6470, 0.2
        %v6475 = vmul.f32 %v6471, 0.2
        %v6476 = vmul.f32 %v6472, 0.2
        %v6477 = vmul.f32 %v6473, 0.2
        %v6478 = vmax.f32 %v6470, %v6474
        %v6479 = vmax.f32 %v6471, %v6475
        %v6480 = vmax.f32 %v6472, %v6476
        %v6481 = vmax.f32 %v6473, %v6477
        %v6482 = vld [vmem:[#allocation11] sm:$0xf]
        %vm6483 = vcmask 31744
        %v6485 = vsel %vm6483, %v6482, 0
        %v6488 = vsel %vm858, %v6478, 0
        %v6491 = vsel %vm858, %v6479, 0
        %v6494 = vsel %vm858, %v6480, 0
        %v6497 = vsel %vm858, %v6481, 0
        %6499 = vmatprep.subr.mxu0 %v6491
        %6500 = vmatpush1.msra.mxu0 %v6488
        %6501 = vmatprep.subr.mxu0 0.0
        %6502 = vmatpush1.msra.mxu0 0.0
        %6503 = vmatprep.subr.mxu0 0.0
        %6504 = vmatpush1.msra.mxu0 0.0
        %6505 = vmatprep.subr.mxu0 0.0
        %6506 = vmatpush1.msra.mxu0 0.0
        %6507 = vmatprep.subr.mxu0 0.0
        %6508 = vmatpush1.msra.mxu0 0.0
        %6509 = vmatprep.subr.mxu0 0.0
        %6510 = vmatpush1.msra.mxu0 0.0
        %6511 = vmatprep.subr.mxu0 0.0
        %6512 = vmatpush1.msra.mxu0 0.0
        %6513 = vmatprep.subr.mxu0 0.0
        %6514 = vmatpush1.msra.mxu0 0.0
        %6515 = vmatprep.subr.mxu0 0.0
        %6516 = vmatpush1.msra.mxu0 0.0
        %6517 = vmatprep.subr.mxu0 0.0
        %6518 = vmatpush1.msra.mxu0 0.0
        %6519 = vmatprep.subr.mxu0 0.0
        %6520 = vmatpush1.msra.mxu0 0.0
        %6521 = vmatprep.subr.mxu0 0.0
        %6522 = vmatpush1.msra.mxu0 0.0
        %6523 = vmatprep.subr.mxu0 0.0
        %6524 = vmatpush1.msra.mxu0 0.0
        %6525 = vmatprep.subr.mxu0 0.0
        %6526 = vmatpush1.msra.mxu0 0.0
        %6527 = vmatprep.subr.mxu0 0.0
        %6528 = vmatpush1.msra.mxu0 0.0
        %6529 = vmatprep.subr.mxu0 0.0
        %6530 = vmatpush1.msra.mxu0 0.0
        %6531 = vmatprep.subr.mxu0 0.0
        %6532 = vmatpush1.msra.mxu0 0.0
        %6533 = vmatprep.subr.mxu0 0.0
        %6534 = vmatpush1.msra.mxu0 0.0
        %6535 = vmatprep.subr.mxu0 0.0
        %6536 = vmatpush1.msra.mxu0 0.0
        %6537 = vmatprep.subr.mxu0 0.0
        %6538 = vmatpush1.msra.mxu0 0.0
        %6539 = vmatprep.subr.mxu0 0.0
        %6540 = vmatpush1.msra.mxu0 0.0
        %6541 = vmatprep.subr.mxu0 0.0
        %6542 = vmatpush1.msra.mxu0 0.0
        %6543 = vmatprep.subr.mxu0 0.0
        %6544 = vmatpush1.msra.mxu0 0.0
        %6545 = vmatprep.subr.mxu0 0.0
        %6546 = vmatpush1.msra.mxu0 0.0
        %6547 = vmatprep.subr.mxu0 0.0
        %6548 = vmatpush1.msra.mxu0 0.0
        %6549 = vmatprep.subr.mxu0 0.0
        %6550 = vmatpush1.msra.mxu0 0.0
        %6551 = vmatprep.subr.mxu0 0.0
        %6552 = vmatpush1.msra.mxu0 0.0
        %6553 = vmatprep.subr.mxu0 0.0
        %6554 = vmatpush1.msra.mxu0 0.0
        %6555 = vmatprep.subr.mxu0 0.0
        %6556 = vmatpush1.msra.mxu0 0.0
        %6557 = vmatprep.subr.mxu0 0.0
        %6558 = vmatpush1.msra.mxu0 0.0
        %6559 = vmatprep.subr.mxu0 0.0
        %6560 = vmatpush1.msra.mxu0 0.0
        %6561 = vmatprep.subr.mxu0 0.0
        %6562 = vmatpush1.msra.mxu0 0.0
        %6563 = vmatprep.mubr.f32.mxu0 0.0
        %6564 = vmatmul.mubr.f32.gmra.mrb[0].mxu0 %v6485
        %v6565 = vpop.f32.mrb[0].mxu0
        %v6566 = vadd.f32 0.0, %v6565
        %v6567 = vpop.f32.mrb[0].mxu0
        %v6568 = vadd.f32 0.0, %v6567
        %6569 = vdwg.mxu0
        %6570 = vmatprep.subr.mxu0 %v6497
        %6571 = vmatpush1.msra.mxu0 %v6494
        %6572 = vmatprep.subr.mxu0 0.0
        %6573 = vmatpush1.msra.mxu0 0.0
        %6574 = vmatprep.subr.mxu0 0.0
        %6575 = vmatpush1.msra.mxu0 0.0
        %6576 = vmatprep.subr.mxu0 0.0
        %6577 = vmatpush1.msra.mxu0 0.0
        %6578 = vmatprep.subr.mxu0 0.0
        %6579 = vmatpush1.msra.mxu0 0.0
        %6580 = vmatprep.subr.mxu0 0.0
        %6581 = vmatpush1.msra.mxu0 0.0
        %6582 = vmatprep.subr.mxu0 0.0
        %6583 = vmatpush1.msra.mxu0 0.0
        %6584 = vmatprep.subr.mxu0 0.0
        %6585 = vmatpush1.msra.mxu0 0.0
        %6586 = vmatprep.subr.mxu0 0.0
        %6587 = vmatpush1.msra.mxu0 0.0
        %6588 = vmatprep.subr.mxu0 0.0
        %6589 = vmatpush1.msra.mxu0 0.0
        %6590 = vmatprep.subr.mxu0 0.0
        %6591 = vmatpush1.msra.mxu0 0.0
        %6592 = vmatprep.subr.mxu0 0.0
        %6593 = vmatpush1.msra.mxu0 0.0
        %6594 = vmatprep.subr.mxu0 0.0
        %6595 = vmatpush1.msra.mxu0 0.0
        %6596 = vmatprep.subr.mxu0 0.0
        %6597 = vmatpush1.msra.mxu0 0.0
        %6598 = vmatprep.subr.mxu0 0.0
        %6599 = vmatpush1.msra.mxu0 0.0
        %6600 = vmatprep.subr.mxu0 0.0
        %6601 = vmatpush1.msra.mxu0 0.0
        %6602 = vmatprep.subr.mxu0 0.0
        %6603 = vmatpush1.msra.mxu0 0.0
        %6604 = vmatprep.subr.mxu0 0.0
        %6605 = vmatpush1.msra.mxu0 0.0
        %6606 = vmatprep.subr.mxu0 0.0
        %6607 = vmatpush1.msra.mxu0 0.0
        %6608 = vmatprep.subr.mxu0 0.0
        %6609 = vmatpush1.msra.mxu0 0.0
        %6610 = vmatprep.subr.mxu0 0.0
        %6611 = vmatpush1.msra.mxu0 0.0
        %6612 = vmatprep.subr.mxu0 0.0
        %6613 = vmatpush1.msra.mxu0 0.0
        %6614 = vmatprep.subr.mxu0 0.0
        %6615 = vmatpush1.msra.mxu0 0.0
        %6616 = vmatprep.subr.mxu0 0.0
        %6617 = vmatpush1.msra.mxu0 0.0
        %6618 = vmatprep.subr.mxu0 0.0
        %6619 = vmatpush1.msra.mxu0 0.0
        %6620 = vmatprep.subr.mxu0 0.0
        %6621 = vmatpush1.msra.mxu0 0.0
        %6622 = vmatprep.subr.mxu0 0.0
        %6623 = vmatpush1.msra.mxu0 0.0
        %6624 = vmatprep.subr.mxu0 0.0
        %6625 = vmatpush1.msra.mxu0 0.0
        %6626 = vmatprep.subr.mxu0 0.0
        %6627 = vmatpush1.msra.mxu0 0.0
        %6628 = vmatprep.subr.mxu0 0.0
        %6629 = vmatpush1.msra.mxu0 0.0
        %6630 = vmatprep.subr.mxu0 0.0
        %6631 = vmatpush1.msra.mxu0 0.0
        %6632 = vmatprep.subr.mxu0 0.0
        %6633 = vmatpush1.msra.mxu0 0.0
        %6634 = vmatprep.mubr.f32.mxu0 0.0
        %6635 = vmatmul.mubr.f32.gmra.mrb[0].mxu0 %v6485
        %v6636 = vpop.f32.mrb[0].mxu0
        %v6637 = vadd.f32 0.0, %v6636
        %v6638 = vpop.f32.mrb[0].mxu0
        %v6639 = vadd.f32 0.0, %v6638
        %6640 = vdwg.mxu0
        %v6641 = vld [vmem:[#allocation13] sm:$0xff]
        %v6642 = vld [vmem:[#allocation13 + $0x8] sm:$0xff]
        %v6643 = vld [vmem:[#allocation13 + $0x10] sm:$0xff]
        %v6644 = vld [vmem:[#allocation13 + $0x18] sm:$0xff]
        %v6645 = vld [vmem:[#allocation13 + $0x20] sm:$0xff]
        %v6646 = vld [vmem:[#allocation13 + $0x28] sm:$0xff]
        %v6647 = vld [vmem:[#allocation13 + $0x30] sm:$0xff]
        %v6648 = vld [vmem:[#allocation13 + $0x38] sm:$0xff]
        %v6649 = vld [vmem:[#allocation13 + $0x40] sm:$0xff]
        %v6650 = vld [vmem:[#allocation13 + $0x48] sm:$0xff]
        %v6651 = vld [vmem:[#allocation13 + $0x50] sm:$0xff]
        %v6652 = vld [vmem:[#allocation13 + $0x58] sm:$0xff]
        %v6653 = vld [vmem:[#allocation13 + $0x60] sm:$0xff]
        %v6654 = vld [vmem:[#allocation13 + $0x68] sm:$0xff]
        %v6655 = vld [vmem:[#allocation13 + $0x70] sm:$0xff]
        %v6656 = vld [vmem:[#allocation13 + $0x78] sm:$0xff]
        %v6657 = vld [vmem:[#allocation13 + $0x80] sm:$0xff]
        %v6658 = vld [vmem:[#allocation13 + $0x88] sm:$0xff]
        %v6659 = vld [vmem:[#allocation13 + $0x90] sm:$0xff]
        %v6660 = vld [vmem:[#allocation13 + $0x98] sm:$0xff]
        %v6661 = vld [vmem:[#allocation13 + $0xa0] sm:$0xff]
        %v6662 = vld [vmem:[#allocation13 + $0xa8] sm:$0xff]
        %v6663 = vld [vmem:[#allocation13 + $0xb0] sm:$0xff]
        %v6664 = vld [vmem:[#allocation13 + $0xb8] sm:$0xff]
        %v6665 = vld [vmem:[#allocation13 + $0xc0] sm:$0xff]
        %v6666 = vld [vmem:[#allocation13 + $0xc8] sm:$0xff]
        %v6667 = vld [vmem:[#allocation13 + $0xd0] sm:$0xff]
        %v6668 = vld [vmem:[#allocation13 + $0xd8] sm:$0xff]
        %v6669 = vld [vmem:[#allocation13 + $0xe0] sm:$0xff]
        %v6670 = vld [vmem:[#allocation13 + $0xe8] sm:$0xff]
        %v6671 = vld [vmem:[#allocation13 + $0xf0] sm:$0xff]
        %v6672 = vld [vmem:[#allocation13 + $0xf8] sm:$0xff]
        %v6673 = vld [vmem:[#allocation13 + $0x100] sm:$0xff]
        %v6674 = vld [vmem:[#allocation13 + $0x108] sm:$0xff]
        %v6675 = vld [vmem:[#allocation13 + $0x110] sm:$0xff]
        %v6676 = vld [vmem:[#allocation13 + $0x118] sm:$0xff]
        %v6677 = vld [vmem:[#allocation13 + $0x120] sm:$0xff]
        %v6678 = vld [vmem:[#allocation13 + $0x128] sm:$0xff]
        %v6679 = vld [vmem:[#allocation13 + $0x130] sm:$0xff]
        %v6680 = vld [vmem:[#allocation13 + $0x138] sm:$0xff]
        %v6681 = vld [vmem:[#allocation13 + $0x140] sm:$0xff]
        %v6682 = vld [vmem:[#allocation13 + $0x148] sm:$0xff]
        %v6683 = vld [vmem:[#allocation13 + $0x150] sm:$0xff]
        %v6684 = vld [vmem:[#allocation13 + $0x158] sm:$0xff]
        %v6685 = vld [vmem:[#allocation13 + $0x160] sm:$0xff]
        %v6686 = vld [vmem:[#allocation13 + $0x168] sm:$0xff]
        %v6687 = vld [vmem:[#allocation13 + $0x170] sm:$0xff]
        %v6688 = vld [vmem:[#allocation13 + $0x178] sm:$0xff]
        %v6689 = vld [vmem:[#allocation13 + $0x180] sm:$0xff]
        %v6690 = vld [vmem:[#allocation13 + $0x188] sm:$0xff]
        %v6691 = vld [vmem:[#allocation13 + $0x190] sm:$0xff]
        %v6692 = vld [vmem:[#allocation13 + $0x198] sm:$0xff]
        %v6693 = vld [vmem:[#allocation13 + $0x1a0] sm:$0xff]
        %v6694 = vld [vmem:[#allocation13 + $0x1a8] sm:$0xff]
        %v6695 = vld [vmem:[#allocation13 + $0x1b0] sm:$0xff]
        %v6696 = vld [vmem:[#allocation13 + $0x1b8] sm:$0xff]
        %v6697 = vld [vmem:[#allocation13 + $0x1c0] sm:$0xff]
        %v6698 = vld [vmem:[#allocation13 + $0x1c8] sm:$0xff]
        %v6699 = vld [vmem:[#allocation13 + $0x1d0] sm:$0xff]
        %v6700 = vld [vmem:[#allocation13 + $0x1d8] sm:$0xff]
        %v6701 = vld [vmem:[#allocation13 + $0x1e0] sm:$0xff]
        %v6702 = vld [vmem:[#allocation13 + $0x1e8] sm:$0xff]
        %v6703 = vld [vmem:[#allocation13 + $0x1f0] sm:$0xff]
        %v6704 = vld [vmem:[#allocation13 + $0x1f8] sm:$0xff]
        %v6705 = vld [vmem:[#allocation13 + $0x200] sm:$0xff]
        %v6706 = vld [vmem:[#allocation13 + $0x208] sm:$0xff]
        %v6707 = vld [vmem:[#allocation13 + $0x210] sm:$0xff]
        %v6708 = vld [vmem:[#allocation13 + $0x218] sm:$0xff]
        %v6709 = vld [vmem:[#allocation13 + $0x220] sm:$0xff]
        %v6710 = vld [vmem:[#allocation13 + $0x228] sm:$0xff]
        %v6711 = vld [vmem:[#allocation13 + $0x230] sm:$0xff]
        %v6712 = vld [vmem:[#allocation13 + $0x238] sm:$0xff]
        %v6713 = vld [vmem:[#allocation13 + $0x240] sm:$0xff]
        %v6714 = vld [vmem:[#allocation13 + $0x248] sm:$0xff]
        %v6715 = vld [vmem:[#allocation13 + $0x250] sm:$0xff]
        %v6716 = vld [vmem:[#allocation13 + $0x258] sm:$0xff]
        %v6717 = vld [vmem:[#allocation13 + $0x260] sm:$0xff]
        %v6718 = vld [vmem:[#allocation13 + $0x268] sm:$0xff]
        %v6719 = vld [vmem:[#allocation13 + $0x270] sm:$0xff]
        %v6720 = vld [vmem:[#allocation13 + $0x278] sm:$0xff]
        %v6721 = vld [vmem:[#allocation13 + $0x280] sm:$0xff]
        %v6722 = vld [vmem:[#allocation13 + $0x288] sm:$0xff]
        %v6723 = vld [vmem:[#allocation13 + $0x290] sm:$0xff]
        %v6724 = vld [vmem:[#allocation13 + $0x298] sm:$0xff]
        %v6725 = vld [vmem:[#allocation13 + $0x2a0] sm:$0xff]
        %v6726 = vld [vmem:[#allocation13 + $0x2a8] sm:$0xff]
        %v6727 = vld [vmem:[#allocation13 + $0x2b0] sm:$0xff]
        %v6728 = vld [vmem:[#allocation13 + $0x2b8] sm:$0xff]
        %v6729 = vld [vmem:[#allocation13 + $0x2c0] sm:$0xff]
        %v6730 = vld [vmem:[#allocation13 + $0x2c8] sm:$0xff]
        %v6731 = vld [vmem:[#allocation13 + $0x2d0] sm:$0xff]
        %v6732 = vld [vmem:[#allocation13 + $0x2d8] sm:$0xff]
        %v6733 = vld [vmem:[#allocation13 + $0x2e0] sm:$0xff]
        %v6734 = vld [vmem:[#allocation13 + $0x2e8] sm:$0xff]
        %v6735 = vld [vmem:[#allocation13 + $0x2f0] sm:$0xff]
        %v6736 = vld [vmem:[#allocation13 + $0x2f8] sm:$0xff]
        %v6737 = vld [vmem:[#allocation13 + $0x300] sm:$0xff]
        %v6738 = vld [vmem:[#allocation13 + $0x308] sm:$0xff]
        %v6739 = vld [vmem:[#allocation13 + $0x310] sm:$0xff]
        %v6740 = vld [vmem:[#allocation13 + $0x318] sm:$0xff]
        %v6741 = vld [vmem:[#allocation13 + $0x320] sm:$0xff]
        %v6742 = vld [vmem:[#allocation13 + $0x328] sm:$0xff]
        %v6743 = vld [vmem:[#allocation13 + $0x330] sm:$0xff]
        %v6744 = vld [vmem:[#allocation13 + $0x338] sm:$0xff]
        %v6745 = vld [vmem:[#allocation13 + $0x340] sm:$0xff]
        %v6746 = vld [vmem:[#allocation13 + $0x348] sm:$0xff]
        %v6747 = vld [vmem:[#allocation13 + $0x350] sm:$0xff]
        %v6748 = vld [vmem:[#allocation13 + $0x358] sm:$0xff]
        %v6749 = vld [vmem:[#allocation13 + $0x360] sm:$0xff]
        %v6750 = vld [vmem:[#allocation13 + $0x368] sm:$0xff]
        %v6751 = vld [vmem:[#allocation13 + $0x370] sm:$0xff]
        %v6752 = vld [vmem:[#allocation13 + $0x378] sm:$0xff]
        %v6753 = vld [vmem:[#allocation13 + $0x380] sm:$0xff]
        %v6754 = vld [vmem:[#allocation13 + $0x388] sm:$0xff]
        %v6755 = vld [vmem:[#allocation13 + $0x390] sm:$0xff]
        %v6756 = vld [vmem:[#allocation13 + $0x398] sm:$0xff]
        %v6757 = vld [vmem:[#allocation13 + $0x3a0] sm:$0xff]
        %v6758 = vld [vmem:[#allocation13 + $0x3a8] sm:$0xff]
        %v6759 = vld [vmem:[#allocation13 + $0x3b0] sm:$0xff]
        %v6760 = vld [vmem:[#allocation13 + $0x3b8] sm:$0xff]
        %v6761 = vld [vmem:[#allocation13 + $0x3c0] sm:$0xff]
        %v6762 = vld [vmem:[#allocation13 + $0x3c8] sm:$0xff]
        %v6763 = vld [vmem:[#allocation13 + $0x3d0] sm:$0xff]
        %v6764 = vld [vmem:[#allocation13 + $0x3d8] sm:$0xff]
        %v6765 = vld [vmem:[#allocation13 + $0x3e0] sm:$0xff]
        %v6766 = vld [vmem:[#allocation13 + $0x3e8] sm:$0xff]
        %v6767 = vld [vmem:[#allocation13 + $0x3f0] sm:$0xff]
        %v6768 = vld [vmem:[#allocation13 + $0x3f8] sm:$0xff]
        %s6769 = scalar_lea.vmem [#allocation13], 1024
        %v6770 = vld [vmem:[%s6769] sm:$0xff]
        %v6771 = vld [vmem:[%s6769 + $0x8] sm:$0xff]
        %v6772 = vld [vmem:[%s6769 + $0x10] sm:$0xff]
        %v6773 = vld [vmem:[%s6769 + $0x18] sm:$0xff]
        %v6774 = vld [vmem:[%s6769 + $0x20] sm:$0xff]
        %v6775 = vld [vmem:[%s6769 + $0x28] sm:$0xff]
        %v6776 = vld [vmem:[%s6769 + $0x30] sm:$0xff]
        %v6777 = vld [vmem:[%s6769 + $0x38] sm:$0xff]
        %v6778 = vld [vmem:[%s6769 + $0x40] sm:$0xff]
        %v6779 = vld [vmem:[%s6769 + $0x48] sm:$0xff]
        %v6780 = vld [vmem:[%s6769 + $0x50] sm:$0xff]
        %v6781 = vld [vmem:[%s6769 + $0x58] sm:$0xff]
        %v6782 = vld [vmem:[%s6769 + $0x60] sm:$0xff]
        %v6783 = vld [vmem:[%s6769 + $0x68] sm:$0xff]
        %v6784 = vld [vmem:[%s6769 + $0x70] sm:$0xff]
        %v6785 = vld [vmem:[%s6769 + $0x78] sm:$0xff]
        %v6786 = vld [vmem:[%s6769 + $0x80] sm:$0xff]
        %v6787 = vld [vmem:[%s6769 + $0x88] sm:$0xff]
        %v6788 = vld [vmem:[%s6769 + $0x90] sm:$0xff]
        %v6789 = vld [vmem:[%s6769 + $0x98] sm:$0xff]
        %v6790 = vld [vmem:[%s6769 + $0xa0] sm:$0xff]
        %v6791 = vld [vmem:[%s6769 + $0xa8] sm:$0xff]
        %v6792 = vld [vmem:[%s6769 + $0xb0] sm:$0xff]
        %v6793 = vld [vmem:[%s6769 + $0xb8] sm:$0xff]
        %v6794 = vld [vmem:[%s6769 + $0xc0] sm:$0xff]
        %v6795 = vld [vmem:[%s6769 + $0xc8] sm:$0xff]
        %v6796 = vld [vmem:[%s6769 + $0xd0] sm:$0xff]
        %v6797 = vld [vmem:[%s6769 + $0xd8] sm:$0xff]
        %v6798 = vld [vmem:[%s6769 + $0xe0] sm:$0xff]
        %v6799 = vld [vmem:[%s6769 + $0xe8] sm:$0xff]
        %v6800 = vld [vmem:[%s6769 + $0xf0] sm:$0xff]
        %v6801 = vld [vmem:[%s6769 + $0xf8] sm:$0xff]
        %v6802 = vld [vmem:[%s6769 + $0x100] sm:$0xff]
        %v6803 = vld [vmem:[%s6769 + $0x108] sm:$0xff]
        %v6804 = vld [vmem:[%s6769 + $0x110] sm:$0xff]
        %v6805 = vld [vmem:[%s6769 + $0x118] sm:$0xff]
        %v6806 = vld [vmem:[%s6769 + $0x120] sm:$0xff]
        %v6807 = vld [vmem:[%s6769 + $0x128] sm:$0xff]
        %v6808 = vld [vmem:[%s6769 + $0x130] sm:$0xff]
        %v6809 = vld [vmem:[%s6769 + $0x138] sm:$0xff]
        %v6810 = vld [vmem:[%s6769 + $0x140] sm:$0xff]
        %v6811 = vld [vmem:[%s6769 + $0x148] sm:$0xff]
        %v6812 = vld [vmem:[%s6769 + $0x150] sm:$0xff]
        %v6813 = vld [vmem:[%s6769 + $0x158] sm:$0xff]
        %v6814 = vld [vmem:[%s6769 + $0x160] sm:$0xff]
        %v6815 = vld [vmem:[%s6769 + $0x168] sm:$0xff]
        %v6816 = vld [vmem:[%s6769 + $0x170] sm:$0xff]
        %v6817 = vld [vmem:[%s6769 + $0x178] sm:$0xff]
        %v6818 = vld [vmem:[%s6769 + $0x180] sm:$0xff]
        %v6819 = vld [vmem:[%s6769 + $0x188] sm:$0xff]
        %v6820 = vld [vmem:[%s6769 + $0x190] sm:$0xff]
        %v6821 = vld [vmem:[%s6769 + $0x198] sm:$0xff]
        %v6822 = vld [vmem:[%s6769 + $0x1a0] sm:$0xff]
        %v6823 = vld [vmem:[%s6769 + $0x1a8] sm:$0xff]
        %v6824 = vld [vmem:[%s6769 + $0x1b0] sm:$0xff]
        %v6825 = vld [vmem:[%s6769 + $0x1b8] sm:$0xff]
        %v6826 = vld [vmem:[%s6769 + $0x1c0] sm:$0xff]
        %v6827 = vld [vmem:[%s6769 + $0x1c8] sm:$0xff]
        %v6828 = vld [vmem:[%s6769 + $0x1d0] sm:$0xff]
        %v6829 = vld [vmem:[%s6769 + $0x1d8] sm:$0xff]
        %v6830 = vld [vmem:[%s6769 + $0x1e0] sm:$0xff]
        %v6831 = vld [vmem:[%s6769 + $0x1e8] sm:$0xff]
        %v6832 = vld [vmem:[%s6769 + $0x1f0] sm:$0xff]
        %v6833 = vld [vmem:[%s6769 + $0x1f8] sm:$0xff]
        %v6834 = vld [vmem:[%s6769 + $0x200] sm:$0xff]
        %v6835 = vld [vmem:[%s6769 + $0x208] sm:$0xff]
        %v6836 = vld [vmem:[%s6769 + $0x210] sm:$0xff]
        %v6837 = vld [vmem:[%s6769 + $0x218] sm:$0xff]
        %v6838 = vld [vmem:[%s6769 + $0x220] sm:$0xff]
        %v6839 = vld [vmem:[%s6769 + $0x228] sm:$0xff]
        %v6840 = vld [vmem:[%s6769 + $0x230] sm:$0xff]
        %v6841 = vld [vmem:[%s6769 + $0x238] sm:$0xff]
        %v6842 = vld [vmem:[%s6769 + $0x240] sm:$0xff]
        %v6843 = vld [vmem:[%s6769 + $0x248] sm:$0xff]
        %v6844 = vld [vmem:[%s6769 + $0x250] sm:$0xff]
        %v6845 = vld [vmem:[%s6769 + $0x258] sm:$0xff]
        %v6846 = vld [vmem:[%s6769 + $0x260] sm:$0xff]
        %v6847 = vld [vmem:[%s6769 + $0x268] sm:$0xff]
        %v6848 = vld [vmem:[%s6769 + $0x270] sm:$0xff]
        %v6849 = vld [vmem:[%s6769 + $0x278] sm:$0xff]
        %v6850 = vld [vmem:[%s6769 + $0x280] sm:$0xff]
        %v6851 = vld [vmem:[%s6769 + $0x288] sm:$0xff]
        %v6852 = vld [vmem:[%s6769 + $0x290] sm:$0xff]
        %v6853 = vld [vmem:[%s6769 + $0x298] sm:$0xff]
        %v6854 = vld [vmem:[%s6769 + $0x2a0] sm:$0xff]
        %v6855 = vld [vmem:[%s6769 + $0x2a8] sm:$0xff]
        %v6856 = vld [vmem:[%s6769 + $0x2b0] sm:$0xff]
        %v6857 = vld [vmem:[%s6769 + $0x2b8] sm:$0xff]
        %v6858 = vld [vmem:[%s6769 + $0x2c0] sm:$0xff]
        %v6859 = vld [vmem:[%s6769 + $0x2c8] sm:$0xff]
        %v6860 = vld [vmem:[%s6769 + $0x2d0] sm:$0xff]
        %v6861 = vld [vmem:[%s6769 + $0x2d8] sm:$0xff]
        %v6862 = vld [vmem:[%s6769 + $0x2e0] sm:$0xff]
        %v6863 = vld [vmem:[%s6769 + $0x2e8] sm:$0xff]
        %v6864 = vld [vmem:[%s6769 + $0x2f0] sm:$0xff]
        %v6865 = vld [vmem:[%s6769 + $0x2f8] sm:$0xff]
        %v6866 = vld [vmem:[%s6769 + $0x300] sm:$0xff]
        %v6867 = vld [vmem:[%s6769 + $0x308] sm:$0xff]
        %v6868 = vld [vmem:[%s6769 + $0x310] sm:$0xff]
        %v6869 = vld [vmem:[%s6769 + $0x318] sm:$0xff]
        %v6870 = vld [vmem:[%s6769 + $0x320] sm:$0xff]
        %v6871 = vld [vmem:[%s6769 + $0x328] sm:$0xff]
        %v6872 = vld [vmem:[%s6769 + $0x330] sm:$0xff]
        %v6873 = vld [vmem:[%s6769 + $0x338] sm:$0xff]
        %v6874 = vld [vmem:[%s6769 + $0x340] sm:$0xff]
        %v6875 = vld [vmem:[%s6769 + $0x348] sm:$0xff]
        %v6876 = vld [vmem:[%s6769 + $0x350] sm:$0xff]
        %v6877 = vld [vmem:[%s6769 + $0x358] sm:$0xff]
        %v6878 = vld [vmem:[%s6769 + $0x360] sm:$0xff]
        %v6879 = vld [vmem:[%s6769 + $0x368] sm:$0xff]
        %v6880 = vld [vmem:[%s6769 + $0x370] sm:$0xff]
        %v6881 = vld [vmem:[%s6769 + $0x378] sm:$0xff]
        %v6882 = vld [vmem:[%s6769 + $0x380] sm:$0xff]
        %v6883 = vld [vmem:[%s6769 + $0x388] sm:$0xff]
        %v6884 = vld [vmem:[%s6769 + $0x390] sm:$0xff]
        %v6885 = vld [vmem:[%s6769 + $0x398] sm:$0xff]
        %v6886 = vld [vmem:[%s6769 + $0x3a0] sm:$0xff]
        %v6887 = vld [vmem:[%s6769 + $0x3a8] sm:$0xff]
        %v6888 = vld [vmem:[%s6769 + $0x3b0] sm:$0xff]
        %v6889 = vld [vmem:[%s6769 + $0x3b8] sm:$0xff]
        %v6890 = vld [vmem:[%s6769 + $0x3c0] sm:$0xff]
        %v6891 = vld [vmem:[%s6769 + $0x3c8] sm:$0xff]
        %v6892 = vld [vmem:[%s6769 + $0x3d0] sm:$0xff]
        %v6893 = vld [vmem:[%s6769 + $0x3d8] sm:$0xff]
        %v6894 = vld [vmem:[%s6769 + $0x3e0] sm:$0xff]
        %v6895 = vld [vmem:[%s6769 + $0x3e8] sm:$0xff]
        %v6896 = vld [vmem:[%s6769 + $0x3f0] sm:$0xff]
        %v6897 = vld [vmem:[%s6769 + $0x3f8] sm:$0xff]
        %v6902 = vrot.slane %v6566, 1
        %v6903 = vrot.slane %v6568, 1
        %v6904 = vrot.slane %v6637, 1
        %v6905 = vrot.slane %v6639, 1
        %6910 = vmatprep.subr.mxu0 %v6771
        %6911 = vmatpush1.msra.mxu0 %v6770
        %6912 = vmatprep.subr.mxu0 %v6773
        %6913 = vmatpush1.msra.mxu0 %v6772
        %6914 = vmatprep.subr.mxu0 %v6775
        %6915 = vmatpush1.msra.mxu0 %v6774
        %6916 = vmatprep.subr.mxu0 %v6777
        %6917 = vmatpush1.msra.mxu0 %v6776
        %6918 = vmatprep.subr.mxu0 %v6779
        %6919 = vmatpush1.msra.mxu0 %v6778
        %6920 = vmatprep.subr.mxu0 %v6781
        %6921 = vmatpush1.msra.mxu0 %v6780
        %6922 = vmatprep.subr.mxu0 %v6783
        %6923 = vmatpush1.msra.mxu0 %v6782
        %6924 = vmatprep.subr.mxu0 %v6785
        %6925 = vmatpush1.msra.mxu0 %v6784
        %6926 = vmatprep.subr.mxu0 %v6787
        %6927 = vmatpush1.msra.mxu0 %v6786
        %6928 = vmatprep.subr.mxu0 %v6789
        %6929 = vmatpush1.msra.mxu0 %v6788
        %6930 = vmatprep.subr.mxu0 %v6791
        %6931 = vmatpush1.msra.mxu0 %v6790
        %6932 = vmatprep.subr.mxu0 %v6793
        %6933 = vmatpush1.msra.mxu0 %v6792
        %6934 = vmatprep.subr.mxu0 %v6795
        %6935 = vmatpush1.msra.mxu0 %v6794
        %6936 = vmatprep.subr.mxu0 %v6797
        %6937 = vmatpush1.msra.mxu0 %v6796
        %6938 = vmatprep.subr.mxu0 %v6799
        %6939 = vmatpush1.msra.mxu0 %v6798
        %6940 = vmatprep.subr.mxu0 %v6801
        %6941 = vmatpush1.msra.mxu0 %v6800
        %6942 = vmatprep.subr.mxu0 %v6803
        %6943 = vmatpush1.msra.mxu0 %v6802
        %6944 = vmatprep.subr.mxu0 %v6805
        %6945 = vmatpush1.msra.mxu0 %v6804
        %6946 = vmatprep.subr.mxu0 %v6807
        %6947 = vmatpush1.msra.mxu0 %v6806
        %6948 = vmatprep.subr.mxu0 %v6809
        %6949 = vmatpush1.msra.mxu0 %v6808
        %6950 = vmatprep.subr.mxu0 %v6811
        %6951 = vmatpush1.msra.mxu0 %v6810
        %6952 = vmatprep.subr.mxu0 %v6813
        %6953 = vmatpush1.msra.mxu0 %v6812
        %6954 = vmatprep.subr.mxu0 %v6815
        %6955 = vmatpush1.msra.mxu0 %v6814
        %6956 = vmatprep.subr.mxu0 %v6817
        %6957 = vmatpush1.msra.mxu0 %v6816
        %6958 = vmatprep.subr.mxu0 %v6819
        %6959 = vmatpush1.msra.mxu0 %v6818
        %6960 = vmatprep.subr.mxu0 %v6821
        %6961 = vmatpush1.msra.mxu0 %v6820
        %6962 = vmatprep.subr.mxu0 %v6823
        %6963 = vmatpush1.msra.mxu0 %v6822
        %6964 = vmatprep.subr.mxu0 %v6825
        %6965 = vmatpush1.msra.mxu0 %v6824
        %6966 = vmatprep.subr.mxu0 %v6827
        %6967 = vmatpush1.msra.mxu0 %v6826
        %6968 = vmatprep.subr.mxu0 %v6829
        %6969 = vmatpush1.msra.mxu0 %v6828
        %6970 = vmatprep.subr.mxu0 %v6831
        %6971 = vmatpush1.msra.mxu0 %v6830
        %6972 = vmatprep.subr.mxu0 %v6833
        %6973 = vmatpush1.msra.mxu0 %v6832
        %6974 = vmatprep.mubr.f32.mxu0 %v6903
        %6975 = vmatmul.mubr.f32.gmra.mrb[0].mxu0 %v6902
        %v6976 = vpop.f32.mrb[0].mxu0
        %v6977 = vadd.f32 0.0, %v6976
        %v6978 = vpop.f32.mrb[0].mxu0
        %v6979 = vadd.f32 0.0, %v6978
        %6980 = vdwg.mxu0
        %6981 = vmatprep.subr.mxu0 %v6835
        %6982 = vmatpush1.msra.mxu0 %v6834
        %6983 = vmatprep.subr.mxu0 %v6837
        %6984 = vmatpush1.msra.mxu0 %v6836
        %6985 = vmatprep.subr.mxu0 %v6839
        %6986 = vmatpush1.msra.mxu0 %v6838
        %6987 = vmatprep.subr.mxu0 %v6841
        %6988 = vmatpush1.msra.mxu0 %v6840
        %6989 = vmatprep.subr.mxu0 %v6843
        %6990 = vmatpush1.msra.mxu0 %v6842
        %6991 = vmatprep.subr.mxu0 %v6845
        %6992 = vmatpush1.msra.mxu0 %v6844
        %6993 = vmatprep.subr.mxu0 %v6847
        %6994 = vmatpush1.msra.mxu0 %v6846
        %6995 = vmatprep.subr.mxu0 %v6849
        %6996 = vmatpush1.msra.mxu0 %v6848
        %6997 = vmatprep.subr.mxu0 %v6851
        %6998 = vmatpush1.msra.mxu0 %v6850
        %6999 = vmatprep.subr.mxu0 %v6853
        %7000 = vmatpush1.msra.mxu0 %v6852
        %7001 = vmatprep.subr.mxu0 %v6855
        %7002 = vmatpush1.msra.mxu0 %v6854
        %7003 = vmatprep.subr.mxu0 %v6857
        %7004 = vmatpush1.msra.mxu0 %v6856
        %7005 = vmatprep.subr.mxu0 %v6859
        %7006 = vmatpush1.msra.mxu0 %v6858
        %7007 = vmatprep.subr.mxu0 %v6861
        %7008 = vmatpush1.msra.mxu0 %v6860
        %7009 = vmatprep.subr.mxu0 %v6863
        %7010 = vmatpush1.msra.mxu0 %v6862
        %7011 = vmatprep.subr.mxu0 %v6865
        %7012 = vmatpush1.msra.mxu0 %v6864
        %7013 = vmatprep.subr.mxu0 %v6867
        %7014 = vmatpush1.msra.mxu0 %v6866
        %7015 = vmatprep.subr.mxu0 %v6869
        %7016 = vmatpush1.msra.mxu0 %v6868
        %7017 = vmatprep.subr.mxu0 %v6871
        %7018 = vmatpush1.msra.mxu0 %v6870
        %7019 = vmatprep.subr.mxu0 %v6873
        %7020 = vmatpush1.msra.mxu0 %v6872
        %7021 = vmatprep.subr.mxu0 %v6875
        %7022 = vmatpush1.msra.mxu0 %v6874
        %7023 = vmatprep.subr.mxu0 %v6877
        %7024 = vmatpush1.msra.mxu0 %v6876
        %7025 = vmatprep.subr.mxu0 %v6879
        %7026 = vmatpush1.msra.mxu0 %v6878
        %7027 = vmatprep.subr.mxu0 %v6881
        %7028 = vmatpush1.msra.mxu0 %v6880
        %7029 = vmatprep.subr.mxu0 %v6883
        %7030 = vmatpush1.msra.mxu0 %v6882
        %7031 = vmatprep.subr.mxu0 %v6885
        %7032 = vmatpush1.msra.mxu0 %v6884
        %7033 = vmatprep.subr.mxu0 %v6887
        %7034 = vmatpush1.msra.mxu0 %v6886
        %7035 = vmatprep.subr.mxu0 %v6889
        %7036 = vmatpush1.msra.mxu0 %v6888
        %7037 = vmatprep.subr.mxu0 %v6891
        %7038 = vmatpush1.msra.mxu0 %v6890
        %7039 = vmatprep.subr.mxu0 %v6893
        %7040 = vmatpush1.msra.mxu0 %v6892
        %7041 = vmatprep.subr.mxu0 %v6895
        %7042 = vmatpush1.msra.mxu0 %v6894
        %7043 = vmatprep.subr.mxu0 %v6897
        %7044 = vmatpush1.msra.mxu0 %v6896
        %7045 = vmatprep.mubr.f32.mxu0 %v6905
        %7046 = vmatmul.mubr.f32.gmra.mrb[0].mxu0 %v6904
        %v7047 = vpop.f32.mrb[0].mxu0
        %v7048 = vadd.f32 %v6977, %v7047
        %v7049 = vpop.f32.mrb[0].mxu0
        %v7050 = vadd.f32 %v6979, %v7049
        %7051 = vdwg.mxu0
        %7052 = vmatprep.subr.mxu0 %v6642
        %7053 = vmatpush1.msra.mxu0 %v6641
        %7054 = vmatprep.subr.mxu0 %v6644
        %7055 = vmatpush1.msra.mxu0 %v6643
        %7056 = vmatprep.subr.mxu0 %v6646
        %7057 = vmatpush1.msra.mxu0 %v6645
        %7058 = vmatprep.subr.mxu0 %v6648
        %7059 = vmatpush1.msra.mxu0 %v6647
        %7060 = vmatprep.subr.mxu0 %v6650
        %7061 = vmatpush1.msra.mxu0 %v6649
        %7062 = vmatprep.subr.mxu0 %v6652
        %7063 = vmatpush1.msra.mxu0 %v6651
        %7064 = vmatprep.subr.mxu0 %v6654
        %7065 = vmatpush1.msra.mxu0 %v6653
        %7066 = vmatprep.subr.mxu0 %v6656
        %7067 = vmatpush1.msra.mxu0 %v6655
        %7068 = vmatprep.subr.mxu0 %v6658
        %7069 = vmatpush1.msra.mxu0 %v6657
        %7070 = vmatprep.subr.mxu0 %v6660
        %7071 = vmatpush1.msra.mxu0 %v6659
        %7072 = vmatprep.subr.mxu0 %v6662
        %7073 = vmatpush1.msra.mxu0 %v6661
        %7074 = vmatprep.subr.mxu0 %v6664
        %7075 = vmatpush1.msra.mxu0 %v6663
        %7076 = vmatprep.subr.mxu0 %v6666
        %7077 = vmatpush1.msra.mxu0 %v6665
        %7078 = vmatprep.subr.mxu0 %v6668
        %7079 = vmatpush1.msra.mxu0 %v6667
        %7080 = vmatprep.subr.mxu0 %v6670
        %7081 = vmatpush1.msra.mxu0 %v6669
        %7082 = vmatprep.subr.mxu0 %v6672
        %7083 = vmatpush1.msra.mxu0 %v6671
        %7084 = vmatprep.subr.mxu0 %v6674
        %7085 = vmatpush1.msra.mxu0 %v6673
        %7086 = vmatprep.subr.mxu0 %v6676
        %7087 = vmatpush1.msra.mxu0 %v6675
        %7088 = vmatprep.subr.mxu0 %v6678
        %7089 = vmatpush1.msra.mxu0 %v6677
        %7090 = vmatprep.subr.mxu0 %v6680
        %7091 = vmatpush1.msra.mxu0 %v6679
        %7092 = vmatprep.subr.mxu0 %v6682
        %7093 = vmatpush1.msra.mxu0 %v6681
        %7094 = vmatprep.subr.mxu0 %v6684
        %7095 = vmatpush1.msra.mxu0 %v6683
        %7096 = vmatprep.subr.mxu0 %v6686
        %7097 = vmatpush1.msra.mxu0 %v6685
        %7098 = vmatprep.subr.mxu0 %v6688
        %7099 = vmatpush1.msra.mxu0 %v6687
        %7100 = vmatprep.subr.mxu0 %v6690
        %7101 = vmatpush1.msra.mxu0 %v6689
        %7102 = vmatprep.subr.mxu0 %v6692
        %7103 = vmatpush1.msra.mxu0 %v6691
        %7104 = vmatprep.subr.mxu0 %v6694
        %7105 = vmatpush1.msra.mxu0 %v6693
        %7106 = vmatprep.subr.mxu0 %v6696
        %7107 = vmatpush1.msra.mxu0 %v6695
        %7108 = vmatprep.subr.mxu0 %v6698
        %7109 = vmatpush1.msra.mxu0 %v6697
        %7110 = vmatprep.subr.mxu0 %v6700
        %7111 = vmatpush1.msra.mxu0 %v6699
        %7112 = vmatprep.subr.mxu0 %v6702
        %7113 = vmatpush1.msra.mxu0 %v6701
        %7114 = vmatprep.subr.mxu0 %v6704
        %7115 = vmatpush1.msra.mxu0 %v6703
        %7116 = vmatprep.mubr.f32.mxu0 %v6568
        %7117 = vmatmul.mubr.f32.gmra.mrb[0].mxu0 %v6566
        %v7118 = vpop.f32.mrb[0].mxu0
        %v7119 = vadd.f32 %v7048, %v7118
        %v7120 = vpop.f32.mrb[0].mxu0
        %v7121 = vadd.f32 %v7050, %v7120
        %7122 = vdwg.mxu0
        %7123 = vmatprep.subr.mxu0 %v6706
        %7124 = vmatpush1.msra.mxu0 %v6705
        %7125 = vmatprep.subr.mxu0 %v6708
        %7126 = vmatpush1.msra.mxu0 %v6707
        %7127 = vmatprep.subr.mxu0 %v6710
        %7128 = vmatpush1.msra.mxu0 %v6709
        %7129 = vmatprep.subr.mxu0 %v6712
        %7130 = vmatpush1.msra.mxu0 %v6711
        %7131 = vmatprep.subr.mxu0 %v6714
        %7132 = vmatpush1.msra.mxu0 %v6713
        %7133 = vmatprep.subr.mxu0 %v6716
        %7134 = vmatpush1.msra.mxu0 %v6715
        %7135 = vmatprep.subr.mxu0 %v6718
        %7136 = vmatpush1.msra.mxu0 %v6717
        %7137 = vmatprep.subr.mxu0 %v6720
        %7138 = vmatpush1.msra.mxu0 %v6719
        %7139 = vmatprep.subr.mxu0 %v6722
        %7140 = vmatpush1.msra.mxu0 %v6721
        %7141 = vmatprep.subr.mxu0 %v6724
        %7142 = vmatpush1.msra.mxu0 %v6723
        %7143 = vmatprep.subr.mxu0 %v6726
        %7144 = vmatpush1.msra.mxu0 %v6725
        %7145 = vmatprep.subr.mxu0 %v6728
        %7146 = vmatpush1.msra.mxu0 %v6727
        %7147 = vmatprep.subr.mxu0 %v6730
        %7148 = vmatpush1.msra.mxu0 %v6729
        %7149 = vmatprep.subr.mxu0 %v6732
        %7150 = vmatpush1.msra.mxu0 %v6731
        %7151 = vmatprep.subr.mxu0 %v6734
        %7152 = vmatpush1.msra.mxu0 %v6733
        %7153 = vmatprep.subr.mxu0 %v6736
        %7154 = vmatpush1.msra.mxu0 %v6735
        %7155 = vmatprep.subr.mxu0 %v6738
        %7156 = vmatpush1.msra.mxu0 %v6737
        %7157 = vmatprep.subr.mxu0 %v6740
        %7158 = vmatpush1.msra.mxu0 %v6739
        %7159 = vmatprep.subr.mxu0 %v6742
        %7160 = vmatpush1.msra.mxu0 %v6741
        %7161 = vmatprep.subr.mxu0 %v6744
        %7162 = vmatpush1.msra.mxu0 %v6743
        %7163 = vmatprep.subr.mxu0 %v6746
        %7164 = vmatpush1.msra.mxu0 %v6745
        %7165 = vmatprep.subr.mxu0 %v6748
        %7166 = vmatpush1.msra.mxu0 %v6747
        %7167 = vmatprep.subr.mxu0 %v6750
        %7168 = vmatpush1.msra.mxu0 %v6749
        %7169 = vmatprep.subr.mxu0 %v6752
        %7170 = vmatpush1.msra.mxu0 %v6751
        %7171 = vmatprep.subr.mxu0 %v6754
        %7172 = vmatpush1.msra.mxu0 %v6753
        %7173 = vmatprep.subr.mxu0 %v6756
        %7174 = vmatpush1.msra.mxu0 %v6755
        %7175 = vmatprep.subr.mxu0 %v6758
        %7176 = vmatpush1.msra.mxu0 %v6757
        %7177 = vmatprep.subr.mxu0 %v6760
        %7178 = vmatpush1.msra.mxu0 %v6759
        %7179 = vmatprep.subr.mxu0 %v6762
        %7180 = vmatpush1.msra.mxu0 %v6761
        %7181 = vmatprep.subr.mxu0 %v6764
        %7182 = vmatpush1.msra.mxu0 %v6763
        %7183 = vmatprep.subr.mxu0 %v6766
        %7184 = vmatpush1.msra.mxu0 %v6765
        %7185 = vmatprep.subr.mxu0 %v6768
        %7186 = vmatpush1.msra.mxu0 %v6767
        %7187 = vmatprep.mubr.f32.mxu0 %v6639
        %7188 = vmatmul.mubr.f32.gmra.mrb[0].mxu0 %v6637
        %v7189 = vpop.f32.mrb[0].mxu0
        %v7190 = vadd.f32 %v7119, %v7189
        %v7191 = vpop.f32.mrb[0].mxu0
        %v7192 = vadd.f32 %v7121, %v7191
        %7193 = vdwg.mxu0
        %s7194 = scalar_lea.vmem [#allocation13], 2048
        %v7195 = vld [vmem:[%s7194] sm:$0xff]
        %v7196 = vld [vmem:[%s7194 + $0x8] sm:$0xff]
        %v7197 = vld [vmem:[%s7194 + $0x10] sm:$0xff]
        %v7198 = vld [vmem:[%s7194 + $0x18] sm:$0xff]
        %v7199 = vld [vmem:[%s7194 + $0x20] sm:$0xff]
        %v7200 = vld [vmem:[%s7194 + $0x28] sm:$0xff]
        %v7201 = vld [vmem:[%s7194 + $0x30] sm:$0xff]
        %v7202 = vld [vmem:[%s7194 + $0x38] sm:$0xff]
        %v7203 = vld [vmem:[%s7194 + $0x40] sm:$0xff]
        %v7204 = vld [vmem:[%s7194 + $0x48] sm:$0xff]
        %v7205 = vld [vmem:[%s7194 + $0x50] sm:$0xff]
        %v7206 = vld [vmem:[%s7194 + $0x58] sm:$0xff]
        %v7207 = vld [vmem:[%s7194 + $0x60] sm:$0xff]
        %v7208 = vld [vmem:[%s7194 + $0x68] sm:$0xff]
        %v7209 = vld [vmem:[%s7194 + $0x70] sm:$0xff]
        %v7210 = vld [vmem:[%s7194 + $0x78] sm:$0xff]
        %v7211 = vld [vmem:[%s7194 + $0x80] sm:$0xff]
        %v7212 = vld [vmem:[%s7194 + $0x88] sm:$0xff]
        %v7213 = vld [vmem:[%s7194 + $0x90] sm:$0xff]
        %v7214 = vld [vmem:[%s7194 + $0x98] sm:$0xff]
        %v7215 = vld [vmem:[%s7194 + $0xa0] sm:$0xff]
        %v7216 = vld [vmem:[%s7194 + $0xa8] sm:$0xff]
        %v7217 = vld [vmem:[%s7194 + $0xb0] sm:$0xff]
        %v7218 = vld [vmem:[%s7194 + $0xb8] sm:$0xff]
        %v7219 = vld [vmem:[%s7194 + $0xc0] sm:$0xff]
        %v7220 = vld [vmem:[%s7194 + $0xc8] sm:$0xff]
        %v7221 = vld [vmem:[%s7194 + $0xd0] sm:$0xff]
        %v7222 = vld [vmem:[%s7194 + $0xd8] sm:$0xff]
        %v7223 = vld [vmem:[%s7194 + $0xe0] sm:$0xff]
        %v7224 = vld [vmem:[%s7194 + $0xe8] sm:$0xff]
        %v7225 = vld [vmem:[%s7194 + $0xf0] sm:$0xff]
        %v7226 = vld [vmem:[%s7194 + $0xf8] sm:$0xff]
        %v7227 = vld [vmem:[%s7194 + $0x100] sm:$0xff]
        %v7228 = vld [vmem:[%s7194 + $0x108] sm:$0xff]
        %v7229 = vld [vmem:[%s7194 + $0x110] sm:$0xff]
        %v7230 = vld [vmem:[%s7194 + $0x118] sm:$0xff]
        %v7231 = vld [vmem:[%s7194 + $0x120] sm:$0xff]
        %v7232 = vld [vmem:[%s7194 + $0x128] sm:$0xff]
        %v7233 = vld [vmem:[%s7194 + $0x130] sm:$0xff]
        %v7234 = vld [vmem:[%s7194 + $0x138] sm:$0xff]
        %v7235 = vld [vmem:[%s7194 + $0x140] sm:$0xff]
        %v7236 = vld [vmem:[%s7194 + $0x148] sm:$0xff]
        %v7237 = vld [vmem:[%s7194 + $0x150] sm:$0xff]
        %v7238 = vld [vmem:[%s7194 + $0x158] sm:$0xff]
        %v7239 = vld [vmem:[%s7194 + $0x160] sm:$0xff]
        %v7240 = vld [vmem:[%s7194 + $0x168] sm:$0xff]
        %v7241 = vld [vmem:[%s7194 + $0x170] sm:$0xff]
        %v7242 = vld [vmem:[%s7194 + $0x178] sm:$0xff]
        %v7243 = vld [vmem:[%s7194 + $0x180] sm:$0xff]
        %v7244 = vld [vmem:[%s7194 + $0x188] sm:$0xff]
        %v7245 = vld [vmem:[%s7194 + $0x190] sm:$0xff]
        %v7246 = vld [vmem:[%s7194 + $0x198] sm:$0xff]
        %v7247 = vld [vmem:[%s7194 + $0x1a0] sm:$0xff]
        %v7248 = vld [vmem:[%s7194 + $0x1a8] sm:$0xff]
        %v7249 = vld [vmem:[%s7194 + $0x1b0] sm:$0xff]
        %v7250 = vld [vmem:[%s7194 + $0x1b8] sm:$0xff]
        %v7251 = vld [vmem:[%s7194 + $0x1c0] sm:$0xff]
        %v7252 = vld [vmem:[%s7194 + $0x1c8] sm:$0xff]
        %v7253 = vld [vmem:[%s7194 + $0x1d0] sm:$0xff]
        %v7254 = vld [vmem:[%s7194 + $0x1d8] sm:$0xff]
        %v7255 = vld [vmem:[%s7194 + $0x1e0] sm:$0xff]
        %v7256 = vld [vmem:[%s7194 + $0x1e8] sm:$0xff]
        %v7257 = vld [vmem:[%s7194 + $0x1f0] sm:$0xff]
        %v7258 = vld [vmem:[%s7194 + $0x1f8] sm:$0xff]
        %v7259 = vld [vmem:[%s7194 + $0x200] sm:$0xff]
        %v7260 = vld [vmem:[%s7194 + $0x208] sm:$0xff]
        %v7261 = vld [vmem:[%s7194 + $0x210] sm:$0xff]
        %v7262 = vld [vmem:[%s7194 + $0x218] sm:$0xff]
        %v7263 = vld [vmem:[%s7194 + $0x220] sm:$0xff]
        %v7264 = vld [vmem:[%s7194 + $0x228] sm:$0xff]
        %v7265 = vld [vmem:[%s7194 + $0x230] sm:$0xff]
        %v7266 = vld [vmem:[%s7194 + $0x238] sm:$0xff]
        %v7267 = vld [vmem:[%s7194 + $0x240] sm:$0xff]
        %v7268 = vld [vmem:[%s7194 + $0x248] sm:$0xff]
        %v7269 = vld [vmem:[%s7194 + $0x250] sm:$0xff]
        %v7270 = vld [vmem:[%s7194 + $0x258] sm:$0xff]
        %v7271 = vld [vmem:[%s7194 + $0x260] sm:$0xff]
        %v7272 = vld [vmem:[%s7194 + $0x268] sm:$0xff]
        %v7273 = vld [vmem:[%s7194 + $0x270] sm:$0xff]
        %v7274 = vld [vmem:[%s7194 + $0x278] sm:$0xff]
        %v7275 = vld [vmem:[%s7194 + $0x280] sm:$0xff]
        %v7276 = vld [vmem:[%s7194 + $0x288] sm:$0xff]
        %v7277 = vld [vmem:[%s7194 + $0x290] sm:$0xff]
        %v7278 = vld [vmem:[%s7194 + $0x298] sm:$0xff]
        %v7279 = vld [vmem:[%s7194 + $0x2a0] sm:$0xff]
        %v7280 = vld [vmem:[%s7194 + $0x2a8] sm:$0xff]
        %v7281 = vld [vmem:[%s7194 + $0x2b0] sm:$0xff]
        %v7282 = vld [vmem:[%s7194 + $0x2b8] sm:$0xff]
        %v7283 = vld [vmem:[%s7194 + $0x2c0] sm:$0xff]
        %v7284 = vld [vmem:[%s7194 + $0x2c8] sm:$0xff]
        %v7285 = vld [vmem:[%s7194 + $0x2d0] sm:$0xff]
        %v7286 = vld [vmem:[%s7194 + $0x2d8] sm:$0xff]
        %v7287 = vld [vmem:[%s7194 + $0x2e0] sm:$0xff]
        %v7288 = vld [vmem:[%s7194 + $0x2e8] sm:$0xff]
        %v7289 = vld [vmem:[%s7194 + $0x2f0] sm:$0xff]
        %v7290 = vld [vmem:[%s7194 + $0x2f8] sm:$0xff]
        %v7291 = vld [vmem:[%s7194 + $0x300] sm:$0xff]
        %v7292 = vld [vmem:[%s7194 + $0x308] sm:$0xff]
        %v7293 = vld [vmem:[%s7194 + $0x310] sm:$0xff]
        %v7294 = vld [vmem:[%s7194 + $0x318] sm:$0xff]
        %v7295 = vld [vmem:[%s7194 + $0x320] sm:$0xff]
        %v7296 = vld [vmem:[%s7194 + $0x328] sm:$0xff]
        %v7297 = vld [vmem:[%s7194 + $0x330] sm:$0xff]
        %v7298 = vld [vmem:[%s7194 + $0x338] sm:$0xff]
        %v7299 = vld [vmem:[%s7194 + $0x340] sm:$0xff]
        %v7300 = vld [vmem:[%s7194 + $0x348] sm:$0xff]
        %v7301 = vld [vmem:[%s7194 + $0x350] sm:$0xff]
        %v7302 = vld [vmem:[%s7194 + $0x358] sm:$0xff]
        %v7303 = vld [vmem:[%s7194 + $0x360] sm:$0xff]
        %v7304 = vld [vmem:[%s7194 + $0x368] sm:$0xff]
        %v7305 = vld [vmem:[%s7194 + $0x370] sm:$0xff]
        %v7306 = vld [vmem:[%s7194 + $0x378] sm:$0xff]
        %v7307 = vld [vmem:[%s7194 + $0x380] sm:$0xff]
        %v7308 = vld [vmem:[%s7194 + $0x388] sm:$0xff]
        %v7309 = vld [vmem:[%s7194 + $0x390] sm:$0xff]
        %v7310 = vld [vmem:[%s7194 + $0x398] sm:$0xff]
        %v7311 = vld [vmem:[%s7194 + $0x3a0] sm:$0xff]
        %v7312 = vld [vmem:[%s7194 + $0x3a8] sm:$0xff]
        %v7313 = vld [vmem:[%s7194 + $0x3b0] sm:$0xff]
        %v7314 = vld [vmem:[%s7194 + $0x3b8] sm:$0xff]
        %v7315 = vld [vmem:[%s7194 + $0x3c0] sm:$0xff]
        %v7316 = vld [vmem:[%s7194 + $0x3c8] sm:$0xff]
        %v7317 = vld [vmem:[%s7194 + $0x3d0] sm:$0xff]
        %v7318 = vld [vmem:[%s7194 + $0x3d8] sm:$0xff]
        %v7319 = vld [vmem:[%s7194 + $0x3e0] sm:$0xff]
        %v7320 = vld [vmem:[%s7194 + $0x3e8] sm:$0xff]
        %v7321 = vld [vmem:[%s7194 + $0x3f0] sm:$0xff]
        %v7322 = vld [vmem:[%s7194 + $0x3f8] sm:$0xff]
        %v7323 = vrot.slane %v6566, 2
        %v7324 = vrot.slane %v6568, 2
        %v7325 = vrot.slane %v6637, 2
        %v7326 = vrot.slane %v6639, 2
        %7331 = vmatprep.subr.mxu0 %v7196
        %7332 = vmatpush1.msra.mxu0 %v7195
        %7333 = vmatprep.subr.mxu0 %v7198
        %7334 = vmatpush1.msra.mxu0 %v7197
        %7335 = vmatprep.subr.mxu0 %v7200
        %7336 = vmatpush1.msra.mxu0 %v7199
        %7337 = vmatprep.subr.mxu0 %v7202
        %7338 = vmatpush1.msra.mxu0 %v7201
        %7339 = vmatprep.subr.mxu0 %v7204
        %7340 = vmatpush1.msra.mxu0 %v7203
        %7341 = vmatprep.subr.mxu0 %v7206
        %7342 = vmatpush1.msra.mxu0 %v7205
        %7343 = vmatprep.subr.mxu0 %v7208
        %7344 = vmatpush1.msra.mxu0 %v7207
        %7345 = vmatprep.subr.mxu0 %v7210
        %7346 = vmatpush1.msra.mxu0 %v7209
        %7347 = vmatprep.subr.mxu0 %v7212
        %7348 = vmatpush1.msra.mxu0 %v7211
        %7349 = vmatprep.subr.mxu0 %v7214
        %7350 = vmatpush1.msra.mxu0 %v7213
        %7351 = vmatprep.subr.mxu0 %v7216
        %7352 = vmatpush1.msra.mxu0 %v7215
        %7353 = vmatprep.subr.mxu0 %v7218
        %7354 = vmatpush1.msra.mxu0 %v7217
        %7355 = vmatprep.subr.mxu0 %v7220
        %7356 = vmatpush1.msra.mxu0 %v7219
        %7357 = vmatprep.subr.mxu0 %v7222
        %7358 = vmatpush1.msra.mxu0 %v7221
        %7359 = vmatprep.subr.mxu0 %v7224
        %7360 = vmatpush1.msra.mxu0 %v7223
        %7361 = vmatprep.subr.mxu0 %v7226
        %7362 = vmatpush1.msra.mxu0 %v7225
        %7363 = vmatprep.subr.mxu0 %v7228
        %7364 = vmatpush1.msra.mxu0 %v7227
        %7365 = vmatprep.subr.mxu0 %v7230
        %7366 = vmatpush1.msra.mxu0 %v7229
        %7367 = vmatprep.subr.mxu0 %v7232
        %7368 = vmatpush1.msra.mxu0 %v7231
        %7369 = vmatprep.subr.mxu0 %v7234
        %7370 = vmatpush1.msra.mxu0 %v7233
        %7371 = vmatprep.subr.mxu0 %v7236
        %7372 = vmatpush1.msra.mxu0 %v7235
        %7373 = vmatprep.subr.mxu0 %v7238
        %7374 = vmatpush1.msra.mxu0 %v7237
        %7375 = vmatprep.subr.mxu0 %v7240
        %7376 = vmatpush1.msra.mxu0 %v7239
        %7377 = vmatprep.subr.mxu0 %v7242
        %7378 = vmatpush1.msra.mxu0 %v7241
        %7379 = vmatprep.subr.mxu0 %v7244
        %7380 = vmatpush1.msra.mxu0 %v7243
        %7381 = vmatprep.subr.mxu0 %v7246
        %7382 = vmatpush1.msra.mxu0 %v7245
        %7383 = vmatprep.subr.mxu0 %v7248
        %7384 = vmatpush1.msra.mxu0 %v7247
        %7385 = vmatprep.subr.mxu0 %v7250
        %7386 = vmatpush1.msra.mxu0 %v7249
        %7387 = vmatprep.subr.mxu0 %v7252
        %7388 = vmatpush1.msra.mxu0 %v7251
        %7389 = vmatprep.subr.mxu0 %v7254
        %7390 = vmatpush1.msra.mxu0 %v7253
        %7391 = vmatprep.subr.mxu0 %v7256
        %7392 = vmatpush1.msra.mxu0 %v7255
        %7393 = vmatprep.subr.mxu0 %v7258
        %7394 = vmatpush1.msra.mxu0 %v7257
        %7395 = vmatprep.mubr.f32.mxu0 %v7324
        %7396 = vmatmul.mubr.f32.gmra.mrb[0].mxu0 %v7323
        %v7397 = vpop.f32.mrb[0].mxu0
        %v7398 = vadd.f32 0.0, %v7397
        %v7399 = vpop.f32.mrb[0].mxu0
        %v7400 = vadd.f32 0.0, %v7399
        %7401 = vdwg.mxu0
        %7402 = vmatprep.subr.mxu0 %v7260
        %7403 = vmatpush1.msra.mxu0 %v7259
        %7404 = vmatprep.subr.mxu0 %v7262
        %7405 = vmatpush1.msra.mxu0 %v7261
        %7406 = vmatprep.subr.mxu0 %v7264
        %7407 = vmatpush1.msra.mxu0 %v7263
        %7408 = vmatprep.subr.mxu0 %v7266
        %7409 = vmatpush1.msra.mxu0 %v7265
        %7410 = vmatprep.subr.mxu0 %v7268
        %7411 = vmatpush1.msra.mxu0 %v7267
        %7412 = vmatprep.subr.mxu0 %v7270
        %7413 = vmatpush1.msra.mxu0 %v7269
        %7414 = vmatprep.subr.mxu0 %v7272
        %7415 = vmatpush1.msra.mxu0 %v7271
        %7416 = vmatprep.subr.mxu0 %v7274
        %7417 = vmatpush1.msra.mxu0 %v7273
        %7418 = vmatprep.subr.mxu0 %v7276
        %7419 = vmatpush1.msra.mxu0 %v7275
        %7420 = vmatprep.subr.mxu0 %v7278
        %7421 = vmatpush1.msra.mxu0 %v7277
        %7422 = vmatprep.subr.mxu0 %v7280
        %7423 = vmatpush1.msra.mxu0 %v7279
        %7424 = vmatprep.subr.mxu0 %v7282
        %7425 = vmatpush1.msra.mxu0 %v7281
        %7426 = vmatprep.subr.mxu0 %v7284
        %7427 = vmatpush1.msra.mxu0 %v7283
        %7428 = vmatprep.subr.mxu0 %v7286
        %7429 = vmatpush1.msra.mxu0 %v7285
        %7430 = vmatprep.subr.mxu0 %v7288
        %7431 = vmatpush1.msra.mxu0 %v7287
        %7432 = vmatprep.subr.mxu0 %v7290
        %7433 = vmatpush1.msra.mxu0 %v7289
        %7434 = vmatprep.subr.mxu0 %v7292
        %7435 = vmatpush1.msra.mxu0 %v7291
        %7436 = vmatprep.subr.mxu0 %v7294
        %7437 = vmatpush1.msra.mxu0 %v7293
        %7438 = vmatprep.subr.mxu0 %v7296
        %7439 = vmatpush1.msra.mxu0 %v7295
        %7440 = vmatprep.subr.mxu0 %v7298
        %7441 = vmatpush1.msra.mxu0 %v7297
        %7442 = vmatprep.subr.mxu0 %v7300
        %7443 = vmatpush1.msra.mxu0 %v7299
        %7444 = vmatprep.subr.mxu0 %v7302
        %7445 = vmatpush1.msra.mxu0 %v7301
        %7446 = vmatprep.subr.mxu0 %v7304
        %7447 = vmatpush1.msra.mxu0 %v7303
        %7448 = vmatprep.subr.mxu0 %v7306
        %7449 = vmatpush1.msra.mxu0 %v7305
        %7450 = vmatprep.subr.mxu0 %v7308
        %7451 = vmatpush1.msra.mxu0 %v7307
        %7452 = vmatprep.subr.mxu0 %v7310
        %7453 = vmatpush1.msra.mxu0 %v7309
        %7454 = vmatprep.subr.mxu0 %v7312
        %7455 = vmatpush1.msra.mxu0 %v7311
        %7456 = vmatprep.subr.mxu0 %v7314
        %7457 = vmatpush1.msra.mxu0 %v7313
        %7458 = vmatprep.subr.mxu0 %v7316
        %7459 = vmatpush1.msra.mxu0 %v7315
        %7460 = vmatprep.subr.mxu0 %v7318
        %7461 = vmatpush1.msra.mxu0 %v7317
        %7462 = vmatprep.subr.mxu0 %v7320
        %7463 = vmatpush1.msra.mxu0 %v7319
        %7464 = vmatprep.subr.mxu0 %v7322
        %7465 = vmatpush1.msra.mxu0 %v7321
        %7466 = vmatprep.mubr.f32.mxu0 %v7326
        %7467 = vmatmul.mubr.f32.gmra.mrb[0].mxu0 %v7325
        %v7468 = vpop.f32.mrb[0].mxu0
        %v7469 = vadd.f32 %v7398, %v7468
        %v7470 = vpop.f32.mrb[0].mxu0
        %v7471 = vadd.f32 %v7400, %v7470
        %7472 = vdwg.mxu0
        %v7473 = vadd.f32 %v7190, %v7469
        %v7474 = vadd.f32 %v7192, %v7471
        %s7475 = scalar_lea.vmem [#allocation13], 3072
        %v7476 = vld [vmem:[%s7475] sm:$0xff]
        %v7477 = vld [vmem:[%s7475 + $0x8] sm:$0xff]
        %v7478 = vld [vmem:[%s7475 + $0x10] sm:$0xff]
        %v7479 = vld [vmem:[%s7475 + $0x18] sm:$0xff]
        %v7480 = vld [vmem:[%s7475 + $0x20] sm:$0xff]
        %v7481 = vld [vmem:[%s7475 + $0x28] sm:$0xff]
        %v7482 = vld [vmem:[%s7475 + $0x30] sm:$0xff]
        %v7483 = vld [vmem:[%s7475 + $0x38] sm:$0xff]
        %v7484 = vld [vmem:[%s7475 + $0x40] sm:$0xff]
        %v7485 = vld [vmem:[%s7475 + $0x48] sm:$0xff]
        %v7486 = vld [vmem:[%s7475 + $0x50] sm:$0xff]
        %v7487 = vld [vmem:[%s7475 + $0x58] sm:$0xff]
        %v7488 = vld [vmem:[%s7475 + $0x60] sm:$0xff]
        %v7489 = vld [vmem:[%s7475 + $0x68] sm:$0xff]
        %v7490 = vld [vmem:[%s7475 + $0x70] sm:$0xff]
        %v7491 = vld [vmem:[%s7475 + $0x78] sm:$0xff]
        %v7492 = vld [vmem:[%s7475 + $0x80] sm:$0xff]
        %v7493 = vld [vmem:[%s7475 + $0x88] sm:$0xff]
        %v7494 = vld [vmem:[%s7475 + $0x90] sm:$0xff]
        %v7495 = vld [vmem:[%s7475 + $0x98] sm:$0xff]
        %v7496 = vld [vmem:[%s7475 + $0xa0] sm:$0xff]
        %v7497 = vld [vmem:[%s7475 + $0xa8] sm:$0xff]
        %v7498 = vld [vmem:[%s7475 + $0xb0] sm:$0xff]
        %v7499 = vld [vmem:[%s7475 + $0xb8] sm:$0xff]
        %v7500 = vld [vmem:[%s7475 + $0xc0] sm:$0xff]
        %v7501 = vld [vmem:[%s7475 + $0xc8] sm:$0xff]
        %v7502 = vld [vmem:[%s7475 + $0xd0] sm:$0xff]
        %v7503 = vld [vmem:[%s7475 + $0xd8] sm:$0xff]
        %v7504 = vld [vmem:[%s7475 + $0xe0] sm:$0xff]
        %v7505 = vld [vmem:[%s7475 + $0xe8] sm:$0xff]
        %v7506 = vld [vmem:[%s7475 + $0xf0] sm:$0xff]
        %v7507 = vld [vmem:[%s7475 + $0xf8] sm:$0xff]
        %v7508 = vld [vmem:[%s7475 + $0x100] sm:$0xff]
        %v7509 = vld [vmem:[%s7475 + $0x108] sm:$0xff]
        %v7510 = vld [vmem:[%s7475 + $0x110] sm:$0xff]
        %v7511 = vld [vmem:[%s7475 + $0x118] sm:$0xff]
        %v7512 = vld [vmem:[%s7475 + $0x120] sm:$0xff]
        %v7513 = vld [vmem:[%s7475 + $0x128] sm:$0xff]
        %v7514 = vld [vmem:[%s7475 + $0x130] sm:$0xff]
        %v7515 = vld [vmem:[%s7475 + $0x138] sm:$0xff]
        %v7516 = vld [vmem:[%s7475 + $0x140] sm:$0xff]
        %v7517 = vld [vmem:[%s7475 + $0x148] sm:$0xff]
        %v7518 = vld [vmem:[%s7475 + $0x150] sm:$0xff]
        %v7519 = vld [vmem:[%s7475 + $0x158] sm:$0xff]
        %v7520 = vld [vmem:[%s7475 + $0x160] sm:$0xff]
        %v7521 = vld [vmem:[%s7475 + $0x168] sm:$0xff]
        %v7522 = vld [vmem:[%s7475 + $0x170] sm:$0xff]
        %v7523 = vld [vmem:[%s7475 + $0x178] sm:$0xff]
        %v7524 = vld [vmem:[%s7475 + $0x180] sm:$0xff]
        %v7525 = vld [vmem:[%s7475 + $0x188] sm:$0xff]
        %v7526 = vld [vmem:[%s7475 + $0x190] sm:$0xff]
        %v7527 = vld [vmem:[%s7475 + $0x198] sm:$0xff]
        %v7528 = vld [vmem:[%s7475 + $0x1a0] sm:$0xff]
        %v7529 = vld [vmem:[%s7475 + $0x1a8] sm:$0xff]
        %v7530 = vld [vmem:[%s7475 + $0x1b0] sm:$0xff]
        %v7531 = vld [vmem:[%s7475 + $0x1b8] sm:$0xff]
        %v7532 = vld [vmem:[%s7475 + $0x1c0] sm:$0xff]
        %v7533 = vld [vmem:[%s7475 + $0x1c8] sm:$0xff]
        %v7534 = vld [vmem:[%s7475 + $0x1d0] sm:$0xff]
        %v7535 = vld [vmem:[%s7475 + $0x1d8] sm:$0xff]
        %v7536 = vld [vmem:[%s7475 + $0x1e0] sm:$0xff]
        %v7537 = vld [vmem:[%s7475 + $0x1e8] sm:$0xff]
        %v7538 = vld [vmem:[%s7475 + $0x1f0] sm:$0xff]
        %v7539 = vld [vmem:[%s7475 + $0x1f8] sm:$0xff]
        %v7540 = vld [vmem:[%s7475 + $0x200] sm:$0xff]
        %v7541 = vld [vmem:[%s7475 + $0x208] sm:$0xff]
        %v7542 = vld [vmem:[%s7475 + $0x210] sm:$0xff]
        %v7543 = vld [vmem:[%s7475 + $0x218] sm:$0xff]
        %v7544 = vld [vmem:[%s7475 + $0x220] sm:$0xff]
        %v7545 = vld [vmem:[%s7475 + $0x228] sm:$0xff]
        %v7546 = vld [vmem:[%s7475 + $0x230] sm:$0xff]
        %v7547 = vld [vmem:[%s7475 + $0x238] sm:$0xff]
        %v7548 = vld [vmem:[%s7475 + $0x240] sm:$0xff]
        %v7549 = vld [vmem:[%s7475 + $0x248] sm:$0xff]
        %v7550 = vld [vmem:[%s7475 + $0x250] sm:$0xff]
        %v7551 = vld [vmem:[%s7475 + $0x258] sm:$0xff]
        %v7552 = vld [vmem:[%s7475 + $0x260] sm:$0xff]
        %v7553 = vld [vmem:[%s7475 + $0x268] sm:$0xff]
        %v7554 = vld [vmem:[%s7475 + $0x270] sm:$0xff]
        %v7555 = vld [vmem:[%s7475 + $0x278] sm:$0xff]
        %v7556 = vld [vmem:[%s7475 + $0x280] sm:$0xff]
        %v7557 = vld [vmem:[%s7475 + $0x288] sm:$0xff]
        %v7558 = vld [vmem:[%s7475 + $0x290] sm:$0xff]
        %v7559 = vld [vmem:[%s7475 + $0x298] sm:$0xff]
        %v7560 = vld [vmem:[%s7475 + $0x2a0] sm:$0xff]
        %v7561 = vld [vmem:[%s7475 + $0x2a8] sm:$0xff]
        %v7562 = vld [vmem:[%s7475 + $0x2b0] sm:$0xff]
        %v7563 = vld [vmem:[%s7475 + $0x2b8] sm:$0xff]
        %v7564 = vld [vmem:[%s7475 + $0x2c0] sm:$0xff]
        %v7565 = vld [vmem:[%s7475 + $0x2c8] sm:$0xff]
        %v7566 = vld [vmem:[%s7475 + $0x2d0] sm:$0xff]
        %v7567 = vld [vmem:[%s7475 + $0x2d8] sm:$0xff]
        %v7568 = vld [vmem:[%s7475 + $0x2e0] sm:$0xff]
        %v7569 = vld [vmem:[%s7475 + $0x2e8] sm:$0xff]
        %v7570 = vld [vmem:[%s7475 + $0x2f0] sm:$0xff]
        %v7571 = vld [vmem:[%s7475 + $0x2f8] sm:$0xff]
        %v7572 = vld [vmem:[%s7475 + $0x300] sm:$0xff]
        %v7573 = vld [vmem:[%s7475 + $0x308] sm:$0xff]
        %v7574 = vld [vmem:[%s7475 + $0x310] sm:$0xff]
        %v7575 = vld [vmem:[%s7475 + $0x318] sm:$0xff]
        %v7576 = vld [vmem:[%s7475 + $0x320] sm:$0xff]
        %v7577 = vld [vmem:[%s7475 + $0x328] sm:$0xff]
        %v7578 = vld [vmem:[%s7475 + $0x330] sm:$0xff]
        %v7579 = vld [vmem:[%s7475 + $0x338] sm:$0xff]
        %v7580 = vld [vmem:[%s7475 + $0x340] sm:$0xff]
        %v7581 = vld [vmem:[%s7475 + $0x348] sm:$0xff]
        %v7582 = vld [vmem:[%s7475 + $0x350] sm:$0xff]
        %v7583 = vld [vmem:[%s7475 + $0x358] sm:$0xff]
        %v7584 = vld [vmem:[%s7475 + $0x360] sm:$0xff]
        %v7585 = vld [vmem:[%s7475 + $0x368] sm:$0xff]
        %v7586 = vld [vmem:[%s7475 + $0x370] sm:$0xff]
        %v7587 = vld [vmem:[%s7475 + $0x378] sm:$0xff]
        %v7588 = vld [vmem:[%s7475 + $0x380] sm:$0xff]
        %v7589 = vld [vmem:[%s7475 + $0x388] sm:$0xff]
        %v7590 = vld [vmem:[%s7475 + $0x390] sm:$0xff]
        %v7591 = vld [vmem:[%s7475 + $0x398] sm:$0xff]
        %v7592 = vld [vmem:[%s7475 + $0x3a0] sm:$0xff]
        %v7593 = vld [vmem:[%s7475 + $0x3a8] sm:$0xff]
        %v7594 = vld [vmem:[%s7475 + $0x3b0] sm:$0xff]
        %v7595 = vld [vmem:[%s7475 + $0x3b8] sm:$0xff]
        %v7596 = vld [vmem:[%s7475 + $0x3c0] sm:$0xff]
        %v7597 = vld [vmem:[%s7475 + $0x3c8] sm:$0xff]
        %v7598 = vld [vmem:[%s7475 + $0x3d0] sm:$0xff]
        %v7599 = vld [vmem:[%s7475 + $0x3d8] sm:$0xff]
        %v7600 = vld [vmem:[%s7475 + $0x3e0] sm:$0xff]
        %v7601 = vld [vmem:[%s7475 + $0x3e8] sm:$0xff]
        %v7602 = vld [vmem:[%s7475 + $0x3f0] sm:$0xff]
        %v7603 = vld [vmem:[%s7475 + $0x3f8] sm:$0xff]
        %v7604 = vrot.slane %v6566, 3
        %v7605 = vrot.slane %v6568, 3
        %v7606 = vrot.slane %v6637, 3
        %v7607 = vrot.slane %v6639, 3
        %7612 = vmatprep.subr.mxu0 %v7477
        %7613 = vmatpush1.msra.mxu0 %v7476
        %7614 = vmatprep.subr.mxu0 %v7479
        %7615 = vmatpush1.msra.mxu0 %v7478
        %7616 = vmatprep.subr.mxu0 %v7481
        %7617 = vmatpush1.msra.mxu0 %v7480
        %7618 = vmatprep.subr.mxu0 %v7483
        %7619 = vmatpush1.msra.mxu0 %v7482
        %7620 = vmatprep.subr.mxu0 %v7485
        %7621 = vmatpush1.msra.mxu0 %v7484
        %7622 = vmatprep.subr.mxu0 %v7487
        %7623 = vmatpush1.msra.mxu0 %v7486
        %7624 = vmatprep.subr.mxu0 %v7489
        %7625 = vmatpush1.msra.mxu0 %v7488
        %7626 = vmatprep.subr.mxu0 %v7491
        %7627 = vmatpush1.msra.mxu0 %v7490
        %7628 = vmatprep.subr.mxu0 %v7493
        %7629 = vmatpush1.msra.mxu0 %v7492
        %7630 = vmatprep.subr.mxu0 %v7495
        %7631 = vmatpush1.msra.mxu0 %v7494
        %7632 = vmatprep.subr.mxu0 %v7497
        %7633 = vmatpush1.msra.mxu0 %v7496
        %7634 = vmatprep.subr.mxu0 %v7499
        %7635 = vmatpush1.msra.mxu0 %v7498
        %7636 = vmatprep.subr.mxu0 %v7501
        %7637 = vmatpush1.msra.mxu0 %v7500
        %7638 = vmatprep.subr.mxu0 %v7503
        %7639 = vmatpush1.msra.mxu0 %v7502
        %7640 = vmatprep.subr.mxu0 %v7505
        %7641 = vmatpush1.msra.mxu0 %v7504
        %7642 = vmatprep.subr.mxu0 %v7507
        %7643 = vmatpush1.msra.mxu0 %v7506
        %7644 = vmatprep.subr.mxu0 %v7509
        %7645 = vmatpush1.msra.mxu0 %v7508
        %7646 = vmatprep.subr.mxu0 %v7511
        %7647 = vmatpush1.msra.mxu0 %v7510
        %7648 = vmatprep.subr.mxu0 %v7513
        %7649 = vmatpush1.msra.mxu0 %v7512
        %7650 = vmatprep.subr.mxu0 %v7515
        %7651 = vmatpush1.msra.mxu0 %v7514
        %7652 = vmatprep.subr.mxu0 %v7517
        %7653 = vmatpush1.msra.mxu0 %v7516
        %7654 = vmatprep.subr.mxu0 %v7519
        %7655 = vmatpush1.msra.mxu0 %v7518
        %7656 = vmatprep.subr.mxu0 %v7521
        %7657 = vmatpush1.msra.mxu0 %v7520
        %7658 = vmatprep.subr.mxu0 %v7523
        %7659 = vmatpush1.msra.mxu0 %v7522
        %7660 = vmatprep.subr.mxu0 %v7525
        %7661 = vmatpush1.msra.mxu0 %v7524
        %7662 = vmatprep.subr.mxu0 %v7527
        %7663 = vmatpush1.msra.mxu0 %v7526
        %7664 = vmatprep.subr.mxu0 %v7529
        %7665 = vmatpush1.msra.mxu0 %v7528
        %7666 = vmatprep.subr.mxu0 %v7531
        %7667 = vmatpush1.msra.mxu0 %v7530
        %7668 = vmatprep.subr.mxu0 %v7533
        %7669 = vmatpush1.msra.mxu0 %v7532
        %7670 = vmatprep.subr.mxu0 %v7535
        %7671 = vmatpush1.msra.mxu0 %v7534
        %7672 = vmatprep.subr.mxu0 %v7537
        %7673 = vmatpush1.msra.mxu0 %v7536
        %7674 = vmatprep.subr.mxu0 %v7539
        %7675 = vmatpush1.msra.mxu0 %v7538
        %7676 = vmatprep.mubr.f32.mxu0 %v7605
        %7677 = vmatmul.mubr.f32.gmra.mrb[0].mxu0 %v7604
        %v7678 = vpop.f32.mrb[0].mxu0
        %v7679 = vadd.f32 0.0, %v7678
        %v7680 = vpop.f32.mrb[0].mxu0
        %v7681 = vadd.f32 0.0, %v7680
        %7682 = vdwg.mxu0
        %7683 = vmatprep.subr.mxu0 %v7541
        %7684 = vmatpush1.msra.mxu0 %v7540
        %7685 = vmatprep.subr.mxu0 %v7543
        %7686 = vmatpush1.msra.mxu0 %v7542
        %7687 = vmatprep.subr.mxu0 %v7545
        %7688 = vmatpush1.msra.mxu0 %v7544
        %7689 = vmatprep.subr.mxu0 %v7547
        %7690 = vmatpush1.msra.mxu0 %v7546
        %7691 = vmatprep.subr.mxu0 %v7549
        %7692 = vmatpush1.msra.mxu0 %v7548
        %7693 = vmatprep.subr.mxu0 %v7551
        %7694 = vmatpush1.msra.mxu0 %v7550
        %7695 = vmatprep.subr.mxu0 %v7553
        %7696 = vmatpush1.msra.mxu0 %v7552
        %7697 = vmatprep.subr.mxu0 %v7555
        %7698 = vmatpush1.msra.mxu0 %v7554
        %7699 = vmatprep.subr.mxu0 %v7557
        %7700 = vmatpush1.msra.mxu0 %v7556
        %7701 = vmatprep.subr.mxu0 %v7559
        %7702 = vmatpush1.msra.mxu0 %v7558
        %7703 = vmatprep.subr.mxu0 %v7561
        %7704 = vmatpush1.msra.mxu0 %v7560
        %7705 = vmatprep.subr.mxu0 %v7563
        %7706 = vmatpush1.msra.mxu0 %v7562
        %7707 = vmatprep.subr.mxu0 %v7565
        %7708 = vmatpush1.msra.mxu0 %v7564
        %7709 = vmatprep.subr.mxu0 %v7567
        %7710 = vmatpush1.msra.mxu0 %v7566
        %7711 = vmatprep.subr.mxu0 %v7569
        %7712 = vmatpush1.msra.mxu0 %v7568
        %7713 = vmatprep.subr.mxu0 %v7571
        %7714 = vmatpush1.msra.mxu0 %v7570
        %7715 = vmatprep.subr.mxu0 %v7573
        %7716 = vmatpush1.msra.mxu0 %v7572
        %7717 = vmatprep.subr.mxu0 %v7575
        %7718 = vmatpush1.msra.mxu0 %v7574
        %7719 = vmatprep.subr.mxu0 %v7577
        %7720 = vmatpush1.msra.mxu0 %v7576
        %7721 = vmatprep.subr.mxu0 %v7579
        %7722 = vmatpush1.msra.mxu0 %v7578
        %7723 = vmatprep.subr.mxu0 %v7581
        %7724 = vmatpush1.msra.mxu0 %v7580
        %7725 = vmatprep.subr.mxu0 %v7583
        %7726 = vmatpush1.msra.mxu0 %v7582
        %7727 = vmatprep.subr.mxu0 %v7585
        %7728 = vmatpush1.msra.mxu0 %v7584
        %7729 = vmatprep.subr.mxu0 %v7587
        %7730 = vmatpush1.msra.mxu0 %v7586
        %7731 = vmatprep.subr.mxu0 %v7589
        %7732 = vmatpush1.msra.mxu0 %v7588
        %7733 = vmatprep.subr.mxu0 %v7591
        %7734 = vmatpush1.msra.mxu0 %v7590
        %7735 = vmatprep.subr.mxu0 %v7593
        %7736 = vmatpush1.msra.mxu0 %v7592
        %7737 = vmatprep.subr.mxu0 %v7595
        %7738 = vmatpush1.msra.mxu0 %v7594
        %7739 = vmatprep.subr.mxu0 %v7597
        %7740 = vmatpush1.msra.mxu0 %v7596
        %7741 = vmatprep.subr.mxu0 %v7599
        %7742 = vmatpush1.msra.mxu0 %v7598
        %7743 = vmatprep.subr.mxu0 %v7601
        %7744 = vmatpush1.msra.mxu0 %v7600
        %7745 = vmatprep.subr.mxu0 %v7603
        %7746 = vmatpush1.msra.mxu0 %v7602
        %7747 = vmatprep.mubr.f32.mxu0 %v7607
        %7748 = vmatmul.mubr.f32.gmra.mrb[0].mxu0 %v7606
        %v7749 = vpop.f32.mrb[0].mxu0
        %v7750 = vadd.f32 %v7679, %v7749
        %v7751 = vpop.f32.mrb[0].mxu0
        %v7752 = vadd.f32 %v7681, %v7751
        %7753 = vdwg.mxu0
        %v7754 = vadd.f32 %v7473, %v7750
        %v7755 = vadd.f32 %v7474, %v7752
        %v7756 = vld [vmem:[#allocation14] sm:$0x3]
        %v7758 = vlaneseq
        %v7759 = vshrl.u32 %v7758, 7
        %v7760 = vsub.s32 0, %v7759
        %v7761 = vrot.slane %v7756, %v7760
        %v7762 = vlaneseq
        %v7763 = vshrl.u32 %v7762, 7
        %v7764 = vsub.s32 1, %v7763
        %v7765 = vrot.slane %v7756, %v7764
        %v7768 = vadd.f32 %v7754, %v7761
        %v7769 = vadd.f32 %v7755, %v7765
        %v7770 = vmul.f32 %v7768, 0.2
        %v7771 = vmul.f32 %v7769, 0.2
        %v7772 = vmax.f32 %v7768, %v7770
        %v7773 = vmax.f32 %v7769, %v7771
        %v7774 = vld [vmem:[#allocation16] sm:$0xff]
        %v7775 = vld [vmem:[#allocation16 + $0x8] sm:$0xff]
        %v7776 = vld [vmem:[#allocation16 + $0x10] sm:$0xff]
        %v7777 = vld [vmem:[#allocation16 + $0x18] sm:$0xff]
        %v7778 = vld [vmem:[#allocation16 + $0x20] sm:$0xff]
        %v7779 = vld [vmem:[#allocation16 + $0x28] sm:$0xff]
        %v7780 = vld [vmem:[#allocation16 + $0x30] sm:$0xff]
        %v7781 = vld [vmem:[#allocation16 + $0x38] sm:$0xff]
        %v7782 = vld [vmem:[#allocation16 + $0x40] sm:$0xff]
        %v7783 = vld [vmem:[#allocation16 + $0x48] sm:$0xff]
        %v7784 = vld [vmem:[#allocation16 + $0x50] sm:$0xff]
        %v7785 = vld [vmem:[#allocation16 + $0x58] sm:$0xff]
        %v7786 = vld [vmem:[#allocation16 + $0x60] sm:$0xff]
        %v7787 = vld [vmem:[#allocation16 + $0x68] sm:$0xff]
        %v7788 = vld [vmem:[#allocation16 + $0x70] sm:$0xff]
        %v7789 = vld [vmem:[#allocation16 + $0x78] sm:$0xff]
        %v7790 = vld [vmem:[#allocation16 + $0x80] sm:$0xff]
        %v7791 = vld [vmem:[#allocation16 + $0x88] sm:$0xff]
        %v7792 = vld [vmem:[#allocation16 + $0x90] sm:$0xff]
        %v7793 = vld [vmem:[#allocation16 + $0x98] sm:$0xff]
        %v7794 = vld [vmem:[#allocation16 + $0xa0] sm:$0xff]
        %v7795 = vld [vmem:[#allocation16 + $0xa8] sm:$0xff]
        %v7796 = vld [vmem:[#allocation16 + $0xb0] sm:$0xff]
        %v7797 = vld [vmem:[#allocation16 + $0xb8] sm:$0xff]
        %v7798 = vld [vmem:[#allocation16 + $0xc0] sm:$0xff]
        %v7799 = vld [vmem:[#allocation16 + $0xc8] sm:$0xff]
        %v7800 = vld [vmem:[#allocation16 + $0xd0] sm:$0xff]
        %v7801 = vld [vmem:[#allocation16 + $0xd8] sm:$0xff]
        %v7802 = vld [vmem:[#allocation16 + $0xe0] sm:$0xff]
        %v7803 = vld [vmem:[#allocation16 + $0xe8] sm:$0xff]
        %v7804 = vld [vmem:[#allocation16 + $0xf0] sm:$0xff]
        %v7805 = vld [vmem:[#allocation16 + $0xf8] sm:$0xff]
        %v7806 = vld [vmem:[#allocation17] sm:$0x1]
        %7807 = vmatprep.subr.mxu0 0.0
        %7808 = vmatpush1.msra.mxu0 %v7774
        %7809 = vmatprep.subr.mxu0 0.0
        %7810 = vmatpush1.msra.mxu0 %v7775
        %7811 = vmatprep.subr.mxu0 0.0
        %7812 = vmatpush1.msra.mxu0 %v7776
        %7813 = vmatprep.subr.mxu0 0.0
        %7814 = vmatpush1.msra.mxu0 %v7777
        %7815 = vmatprep.subr.mxu0 0.0
        %7816 = vmatpush1.msra.mxu0 %v7778
        %7817 = vmatprep.subr.mxu0 0.0
        %7818 = vmatpush1.msra.mxu0 %v7779
        %7819 = vmatprep.subr.mxu0 0.0
        %7820 = vmatpush1.msra.mxu0 %v7780
        %7821 = vmatprep.subr.mxu0 0.0
        %7822 = vmatpush1.msra.mxu0 %v7781
        %7823 = vmatprep.subr.mxu0 0.0
        %7824 = vmatpush1.msra.mxu0 %v7782
        %7825 = vmatprep.subr.mxu0 0.0
        %7826 = vmatpush1.msra.mxu0 %v7783
        %7827 = vmatprep.subr.mxu0 0.0
        %7828 = vmatpush1.msra.mxu0 %v7784
        %7829 = vmatprep.subr.mxu0 0.0
        %7830 = vmatpush1.msra.mxu0 %v7785
        %7831 = vmatprep.subr.mxu0 0.0
        %7832 = vmatpush1.msra.mxu0 %v7786
        %7833 = vmatprep.subr.mxu0 0.0
        %7834 = vmatpush1.msra.mxu0 %v7787
        %7835 = vmatprep.subr.mxu0 0.0
        %7836 = vmatpush1.msra.mxu0 %v7788
        %7837 = vmatprep.subr.mxu0 0.0
        %7838 = vmatpush1.msra.mxu0 %v7789
        %7839 = vmatprep.subr.mxu0 0.0
        %7840 = vmatpush1.msra.mxu0 %v7790
        %7841 = vmatprep.subr.mxu0 0.0
        %7842 = vmatpush1.msra.mxu0 %v7791
        %7843 = vmatprep.subr.mxu0 0.0
        %7844 = vmatpush1.msra.mxu0 %v7792
        %7845 = vmatprep.subr.mxu0 0.0
        %7846 = vmatpush1.msra.mxu0 %v7793
        %7847 = vmatprep.subr.mxu0 0.0
        %7848 = vmatpush1.msra.mxu0 %v7794
        %7849 = vmatprep.subr.mxu0 0.0
        %7850 = vmatpush1.msra.mxu0 %v7795
        %7851 = vmatprep.subr.mxu0 0.0
        %7852 = vmatpush1.msra.mxu0 %v7796
        %7853 = vmatprep.subr.mxu0 0.0
        %7854 = vmatpush1.msra.mxu0 %v7797
        %7855 = vmatprep.subr.mxu0 0.0
        %7856 = vmatpush1.msra.mxu0 %v7798
        %7857 = vmatprep.subr.mxu0 0.0
        %7858 = vmatpush1.msra.mxu0 %v7799
        %7859 = vmatprep.subr.mxu0 0.0
        %7860 = vmatpush1.msra.mxu0 %v7800
        %7861 = vmatprep.subr.mxu0 0.0
        %7862 = vmatpush1.msra.mxu0 %v7801
        %7863 = vmatprep.subr.mxu0 0.0
        %7864 = vmatpush1.msra.mxu0 %v7802
        %7865 = vmatprep.subr.mxu0 0.0
        %7866 = vmatpush1.msra.mxu0 %v7803
        %7867 = vmatprep.subr.mxu0 0.0
        %7868 = vmatpush1.msra.mxu0 %v7804
        %7869 = vmatprep.subr.mxu0 0.0
        %7870 = vmatpush1.msra.mxu0 %v7805
        %7871 = vmatprep.mubr.f32.mxu0 %v7773
        %7872 = vmatmul.mubr.f32.gmra.mrb[0].mxu0 %v7772
        %v7873 = vpop.f32.mrb[0].mxu0
        %v7874 = vadd.f32 %v7806, %v7873
        %v7875 = vpop.f32.mrb[0].mxu0
        %7876 = vdwg.mxu0
        %v7877 = vmul.f32 %v7874, 0.2
        %v7878 = vmax.f32 %v7874, %v7877
        %v7879 = vld [vmem:[%s15] sm:$0xff]
        %v7880 = vld [vmem:[%s15 + $0x8] sm:$0xff]
        %v7881 = vld [vmem:[%s15 + $0x10] sm:$0xff]
        %v7882 = vld [vmem:[%s15 + $0x18] sm:$0xff]
        %v7883 = vld [vmem:[%s15 + $0x20] sm:$0xff]
        %v7884 = vld [vmem:[%s15 + $0x28] sm:$0xff]
        %v7885 = vld [vmem:[%s15 + $0x30] sm:$0xff]
        %v7886 = vld [vmem:[%s15 + $0x38] sm:$0xff]
        %v7887 = vld [vmem:[%s15 + $0x40] sm:$0xff]
        %v7888 = vld [vmem:[%s15 + $0x48] sm:$0xff]
        %v7889 = vld [vmem:[%s15 + $0x50] sm:$0xff]
        %v7890 = vld [vmem:[%s15 + $0x58] sm:$0xff]
        %v7891 = vld [vmem:[%s15 + $0x60] sm:$0xff]
        %v7892 = vld [vmem:[%s15 + $0x68] sm:$0xff]
        %v7893 = vld [vmem:[%s15 + $0x70] sm:$0xff]
        %v7894 = vld [vmem:[%s15 + $0x78] sm:$0xff]
        %v7895 = vld [vmem:[#allocation19] sm:$0x1]
        %7896 = vmatprep.subr.mxu0 0.0
        %7897 = vmatpush1.msra.mxu0 %v7879
        %7898 = vmatprep.subr.mxu0 0.0
        %7899 = vmatpush1.msra.mxu0 %v7880
        %7900 = vmatprep.subr.mxu0 0.0
        %7901 = vmatpush1.msra.mxu0 %v7881
        %7902 = vmatprep.subr.mxu0 0.0
        %7903 = vmatpush1.msra.mxu0 %v7882
        %7904 = vmatprep.subr.mxu0 0.0
        %7905 = vmatpush1.msra.mxu0 %v7883
        %7906 = vmatprep.subr.mxu0 0.0
        %7907 = vmatpush1.msra.mxu0 %v7884
        %7908 = vmatprep.subr.mxu0 0.0
        %7909 = vmatpush1.msra.mxu0 %v7885
        %7910 = vmatprep.subr.mxu0 0.0
        %7911 = vmatpush1.msra.mxu0 %v7886
        %7912 = vmatprep.subr.mxu0 0.0
        %7913 = vmatpush1.msra.mxu0 %v7887
        %7914 = vmatprep.subr.mxu0 0.0
        %7915 = vmatpush1.msra.mxu0 %v7888
        %7916 = vmatprep.subr.mxu0 0.0
        %7917 = vmatpush1.msra.mxu0 %v7889
        %7918 = vmatprep.subr.mxu0 0.0
        %7919 = vmatpush1.msra.mxu0 %v7890
        %7920 = vmatprep.subr.mxu0 0.0
        %7921 = vmatpush1.msra.mxu0 %v7891
        %7922 = vmatprep.subr.mxu0 0.0
        %7923 = vmatpush1.msra.mxu0 %v7892
        %7924 = vmatprep.subr.mxu0 0.0
        %7925 = vmatpush1.msra.mxu0 %v7893
        %7926 = vmatprep.subr.mxu0 0.0
        %7927 = vmatpush1.msra.mxu0 %v7894
        %7928 = vmatprep.subr.mxu0 0.0
        %7929 = vmatpush1.msra.mxu0 0.0
        %7930 = vmatprep.subr.mxu0 0.0
        %7931 = vmatpush1.msra.mxu0 0.0
        %7932 = vmatprep.subr.mxu0 0.0
        %7933 = vmatpush1.msra.mxu0 0.0
        %7934 = vmatprep.subr.mxu0 0.0
        %7935 = vmatpush1.msra.mxu0 0.0
        %7936 = vmatprep.subr.mxu0 0.0
        %7937 = vmatpush1.msra.mxu0 0.0
        %7938 = vmatprep.subr.mxu0 0.0
        %7939 = vmatpush1.msra.mxu0 0.0
        %7940 = vmatprep.subr.mxu0 0.0
        %7941 = vmatpush1.msra.mxu0 0.0
        %7942 = vmatprep.subr.mxu0 0.0
        %7943 = vmatpush1.msra.mxu0 0.0
        %7944 = vmatprep.subr.mxu0 0.0
        %7945 = vmatpush1.msra.mxu0 0.0
        %7946 = vmatprep.subr.mxu0 0.0
        %7947 = vmatpush1.msra.mxu0 0.0
        %7948 = vmatprep.subr.mxu0 0.0
        %7949 = vmatpush1.msra.mxu0 0.0
        %7950 = vmatprep.subr.mxu0 0.0
        %7951 = vmatpush1.msra.mxu0 0.0
        %7952 = vmatprep.subr.mxu0 0.0
        %7953 = vmatpush1.msra.mxu0 0.0
        %7954 = vmatprep.subr.mxu0 0.0
        %7955 = vmatpush1.msra.mxu0 0.0
        %7956 = vmatprep.subr.mxu0 0.0
        %7957 = vmatpush1.msra.mxu0 0.0
        %7958 = vmatprep.subr.mxu0 0.0
        %7959 = vmatpush1.msra.mxu0 0.0
        %7960 = vmatprep.mubr.f32.mxu0 0.0
        %7961 = vmatmul.mubr.f32.gmra.mrb[0].mxu0 %v7878
        %v7962 = vpop.f32.mrb[0].mxu0
        %v7963 = vadd.f32 %v7895, %v7962
        %v7964 = vpop.f32.mrb[0].mxu0
        %7965 = vdwg.mxu0
        %v7966 = vmul.f32 %v7963, 0.2
        %v7967 = vmax.f32 %v7963, %v7966
        %v7968 = vld [vmem:[%s17] sm:$0xff]
        %v7969 = vld [vmem:[%s17 + $0x8] sm:$0xff]
        %v7970 = vld [vmem:[%s17 + $0x10] sm:$0xff]
        %v7971 = vld [vmem:[%s17 + $0x18] sm:$0xff]
        %v7972 = vld [vmem:[%s17 + $0x20] sm:$0xff]
        %v7973 = vld [vmem:[%s17 + $0x28] sm:$0xff]
        %v7974 = vld [vmem:[%s17 + $0x30] sm:$0xff]
        %v7975 = vld [vmem:[%s17 + $0x38] sm:$0xff]
        %v7976 = vld [vmem:[#allocation20] sm:$0x1]
        %v7978 = vsel %vm2449, %v7967, 0
        %7980 = vmatprep.subr.mxu0 0.0
        %7981 = vmatpush1.msra.mxu0 %v7968
        %7982 = vmatprep.subr.mxu0 0.0
        %7983 = vmatpush1.msra.mxu0 %v7969
        %7984 = vmatprep.subr.mxu0 0.0
        %7985 = vmatpush1.msra.mxu0 %v7970
        %7986 = vmatprep.subr.mxu0 0.0
        %7987 = vmatpush1.msra.mxu0 %v7971
        %7988 = vmatprep.subr.mxu0 0.0
        %7989 = vmatpush1.msra.mxu0 %v7972
        %7990 = vmatprep.subr.mxu0 0.0
        %7991 = vmatpush1.msra.mxu0 %v7973
        %7992 = vmatprep.subr.mxu0 0.0
        %7993 = vmatpush1.msra.mxu0 %v7974
        %7994 = vmatprep.subr.mxu0 0.0
        %7995 = vmatpush1.msra.mxu0 %v7975
        %7996 = vmatprep.subr.mxu0 0.0
        %7997 = vmatpush1.msra.mxu0 0.0
        %7998 = vmatprep.subr.mxu0 0.0
        %7999 = vmatpush1.msra.mxu0 0.0
        %8000 = vmatprep.subr.mxu0 0.0
        %8001 = vmatpush1.msra.mxu0 0.0
        %8002 = vmatprep.subr.mxu0 0.0
        %8003 = vmatpush1.msra.mxu0 0.0
        %8004 = vmatprep.subr.mxu0 0.0
        %8005 = vmatpush1.msra.mxu0 0.0
        %8006 = vmatprep.subr.mxu0 0.0
        %8007 = vmatpush1.msra.mxu0 0.0
        %8008 = vmatprep.subr.mxu0 0.0
        %8009 = vmatpush1.msra.mxu0 0.0
        %8010 = vmatprep.subr.mxu0 0.0
        %8011 = vmatpush1.msra.mxu0 0.0
        %8012 = vmatprep.subr.mxu0 0.0
        %8013 = vmatpush1.msra.mxu0 0.0
        %8014 = vmatprep.subr.mxu0 0.0
        %8015 = vmatpush1.msra.mxu0 0.0
        %8016 = vmatprep.subr.mxu0 0.0
        %8017 = vmatpush1.msra.mxu0 0.0
        %8018 = vmatprep.subr.mxu0 0.0
        %8019 = vmatpush1.msra.mxu0 0.0
        %8020 = vmatprep.subr.mxu0 0.0
        %8021 = vmatpush1.msra.mxu0 0.0
        %8022 = vmatprep.subr.mxu0 0.0
        %8023 = vmatpush1.msra.mxu0 0.0
        %8024 = vmatprep.subr.mxu0 0.0
        %8025 = vmatpush1.msra.mxu0 0.0
        %8026 = vmatprep.subr.mxu0 0.0
        %8027 = vmatpush1.msra.mxu0 0.0
        %8028 = vmatprep.subr.mxu0 0.0
        %8029 = vmatpush1.msra.mxu0 0.0
        %8030 = vmatprep.subr.mxu0 0.0
        %8031 = vmatpush1.msra.mxu0 0.0
        %8032 = vmatprep.subr.mxu0 0.0
        %8033 = vmatpush1.msra.mxu0 0.0
        %8034 = vmatprep.subr.mxu0 0.0
        %8035 = vmatpush1.msra.mxu0 0.0
        %8036 = vmatprep.subr.mxu0 0.0
        %8037 = vmatpush1.msra.mxu0 0.0
        %8038 = vmatprep.subr.mxu0 0.0
        %8039 = vmatpush1.msra.mxu0 0.0
        %8040 = vmatprep.subr.mxu0 0.0
        %8041 = vmatpush1.msra.mxu0 0.0
        %8042 = vmatprep.subr.mxu0 0.0
        %8043 = vmatpush1.msra.mxu0 0.0
        %8044 = vmatprep.mubr.f32.mxu0 0.0
        %8045 = vmatmul.mubr.f32.gmra.mrb[0].mxu0 %v7978
        %v8046 = vpop.f32.mrb[0].mxu0
        %v8047 = vadd.f32 %v7976, %v8046
        %v8048 = vpop.f32.mrb[0].mxu0
        %8049 = vdwg.mxu0
        %v8050 = vmul.f32 %v8047, 0.2
        %v8051 = vmax.f32 %v8047, %v8050
        %v8052 = vld [vmem:[%s19] sm:$0xff]
        %v8053 = vld [vmem:[%s19 + $0x8] sm:$0xff]
        %v8054 = vld [vmem:[%s19 + $0x10] sm:$0xff]
        %v8055 = vld [vmem:[%s19 + $0x18] sm:$0xff]
        %v8056 = vld [vmem:[#allocation22] sm:$0x1]
        %vm8057 = vcmask 261120
        %v8059 = vsel %vm8057, %v8051, 0
        %8061 = vmatprep.subr.mxu0 0.0
        %8062 = vmatpush1.msra.mxu0 %v8052
        %8063 = vmatprep.subr.mxu0 0.0
        %8064 = vmatpush1.msra.mxu0 %v8053
        %8065 = vmatprep.subr.mxu0 0.0
        %8066 = vmatpush1.msra.mxu0 %v8054
        %8067 = vmatprep.subr.mxu0 0.0
        %8068 = vmatpush1.msra.mxu0 %v8055
        %8069 = vmatprep.subr.mxu0 0.0
        %8070 = vmatpush1.msra.mxu0 0.0
        %8071 = vmatprep.subr.mxu0 0.0
        %8072 = vmatpush1.msra.mxu0 0.0
        %8073 = vmatprep.subr.mxu0 0.0
        %8074 = vmatpush1.msra.mxu0 0.0
        %8075 = vmatprep.subr.mxu0 0.0
        %8076 = vmatpush1.msra.mxu0 0.0
        %8077 = vmatprep.subr.mxu0 0.0
        %8078 = vmatpush1.msra.mxu0 0.0
        %8079 = vmatprep.subr.mxu0 0.0
        %8080 = vmatpush1.msra.mxu0 0.0
        %8081 = vmatprep.subr.mxu0 0.0
        %8082 = vmatpush1.msra.mxu0 0.0
        %8083 = vmatprep.subr.mxu0 0.0
        %8084 = vmatpush1.msra.mxu0 0.0
        %8085 = vmatprep.subr.mxu0 0.0
        %8086 = vmatpush1.msra.mxu0 0.0
        %8087 = vmatprep.subr.mxu0 0.0
        %8088 = vmatpush1.msra.mxu0 0.0
        %8089 = vmatprep.subr.mxu0 0.0
        %8090 = vmatpush1.msra.mxu0 0.0
        %8091 = vmatprep.subr.mxu0 0.0
        %8092 = vmatpush1.msra.mxu0 0.0
        %8093 = vmatprep.subr.mxu0 0.0
        %8094 = vmatpush1.msra.mxu0 0.0
        %8095 = vmatprep.subr.mxu0 0.0
        %8096 = vmatpush1.msra.mxu0 0.0
        %8097 = vmatprep.subr.mxu0 0.0
        %8098 = vmatpush1.msra.mxu0 0.0
        %8099 = vmatprep.subr.mxu0 0.0
        %8100 = vmatpush1.msra.mxu0 0.0
        %8101 = vmatprep.subr.mxu0 0.0
        %8102 = vmatpush1.msra.mxu0 0.0
        %8103 = vmatprep.subr.mxu0 0.0
        %8104 = vmatpush1.msra.mxu0 0.0
        %8105 = vmatprep.subr.mxu0 0.0
        %8106 = vmatpush1.msra.mxu0 0.0
        %8107 = vmatprep.subr.mxu0 0.0
        %8108 = vmatpush1.msra.mxu0 0.0
        %8109 = vmatprep.subr.mxu0 0.0
        %8110 = vmatpush1.msra.mxu0 0.0
        %8111 = vmatprep.subr.mxu0 0.0
        %8112 = vmatpush1.msra.mxu0 0.0
        %8113 = vmatprep.subr.mxu0 0.0
        %8114 = vmatpush1.msra.mxu0 0.0
        %8115 = vmatprep.subr.mxu0 0.0
        %8116 = vmatpush1.msra.mxu0 0.0
        %8117 = vmatprep.subr.mxu0 0.0
        %8118 = vmatpush1.msra.mxu0 0.0
        %8119 = vmatprep.subr.mxu0 0.0
        %8120 = vmatpush1.msra.mxu0 0.0
        %8121 = vmatprep.subr.mxu0 0.0
        %8122 = vmatpush1.msra.mxu0 0.0
        %8123 = vmatprep.subr.mxu0 0.0
        %8124 = vmatpush1.msra.mxu0 0.0
        %8125 = vmatprep.mubr.f32.mxu0 0.0
        %8126 = vmatmul.mubr.f32.gmra.mrb[0].mxu0 %v8059
        %v8127 = vpop.f32.mrb[0].mxu0
        %v8128 = vadd.f32 %v8056, %v8127
        %v8129 = vpop.f32.mrb[0].mxu0
        %8130 = vdwg.mxu0
        %vm8131 = vcmask 81920
        %8132 = vst.msk [vmem:[%s819] sm:$0x1] %vm8131, %v8128
        %s8133 = sand.u32 %s496, 1
        %s8134 = scalar_lea.sflag [#allocation4], %s8133
        %s8135 = sand.u32 %s496, 1
        %s8136 = scalar_lea.vmem [#allocation23], %s8135
        // Predicated region
        $region157: #{tpu_custom_call.1} parent=103 // pred_check
          %p8137 = pneg %p506
        $region158: #{tpu_custom_call.1} parent=103 // pred_check_branch
          %8139 = sbr.rel (%p8137) target = $region160
        $region159: #{tpu_custom_call.1} parent=103 // pred_region
          %s8141 = ssub.s32 16, 16
          %8142 = vsyncadd %s8134, %s8141
          %s8143 = smul.addr %s42, 16
          %s8144 = scalar_lea.hbm %s21, %s8143
          %s8146 = sshll.u32 %s8136, 4
          %s8147 = int_to_ptr.vmem [resolvable:$true] %s8146
          %8149 = dma.vmem_to_hbm [thread:$0]  %s8147, 16, %s8144, %s8134
        $region160: #{tpu_custom_call.1} parent=103 // pred_fallthru
          _
      $region104: #{tpu_custom_call.1} parent=5 // pred_fallthru
        _
      %p8150 = scmp.le.s32.totalorder 2, %s37
      // Predicated region
      $region161: #{tpu_custom_call.1} parent=5 // pred_check
        %p8151 = pneg %p8150
      $region162: #{tpu_custom_call.1} parent=5 // pred_check_branch
        %8153 = sbr.rel (%p8151) target = $region164
      $region163: #{tpu_custom_call.1} parent=5 // pred_region
        %s8154 = ssub.s32 %s37, 2
        // Predicated region
        $region165: #{tpu_custom_call.1} parent=163 // pred_check
          %p8155 = pneg %p512
        $region166: #{tpu_custom_call.1} parent=163 // pred_check_branch
          %8157 = sbr.rel (%p8155) target = $region168
        $region167: #{tpu_custom_call.1} parent=163 // pred_region
          %s8158 = sand.u32 %s497, 1
          %s8159 = scalar_lea.sflag [#allocation4], %s8158
          %s8160 = sand.u32 %s497, 1
          %s8161 = scalar_lea.vmem [#allocation23], %s8160
          %8162 = dma.done %s8159, 16
        $region168: #{tpu_custom_call.1} parent=163 // pred_fallthru
          _
      $region164: #{tpu_custom_call.1} parent=5 // pred_fallthru
        _
    $region6: #{tpu_custom_call.1} parent=1 // loop_footer
      %s41 = sadd.s32 1, %s37
    $region7: #{tpu_custom_call.1} parent=1 // loop_footer_branch
      %36 = sbr.rel target = $region3
    $region8: #{tpu_custom_call.1} parent=1 // loop_exit
      _
    %8163 = vsyncpa [#allocation3], 1
    %s8164 = scalar_lea.sflag [#allocation3], 1
    %8165 = vsyncpa %s8164, 1
    %8166 = vsyncpa [#allocation6], 1
    %8167 = vsyncpa [#allocation9], 1
    %8168 = vsyncpa [#allocation12], 1
    %8169 = vsyncpa [#allocation15], 1
    %8170 = vsyncpa [#allocation18], 1
    %8171 = vsyncpa [#allocation21], 1
    %8172 = vsyncpa [#allocation4], 1
    %s8173 = scalar_lea.sflag [#allocation4], 1
    %8174 = vsyncpa %s8173, 1

</llo_original>
